<compile_context>
chip_gen: v6e
topology: v6e:2x2x1
jax: 0.10.0
libtpu: 0.0.40
codegen_flags: <defaults>
</compile_context>

<pallas_src>
import jax
import jax.numpy as jnp
from jax.experimental import pallas as pl
from jax.experimental.pallas import tpu as pltpu


def _baseline_head_kernel(x_ref, w_ref, score_ref, feat_ref):
    """x_ref: (TB, C, HW)  w_ref: (C, Npad)  score_ref: (TB, Npad)  feat_ref: (TB, C)."""
    x = x_ref[...].astype(jnp.float32)               # (TB, C, HW)
    # Global average pool over the spatial axis (AdaptiveAvgPool2d(1) + view).
    global_feat = jnp.mean(x, axis=-1)               # (TB, C), reduce over lanes (XLU)
    feat_ref[...] = global_feat.astype(feat_ref.dtype)
    # Classifier: Linear(C -> num_classes, bias=False), applied to global_feat.
    score_ref[...] = jnp.dot(
        global_feat, w_ref[...], preferred_element_type=jnp.float32
    ).astype(score_ref.dtype)


def baseline_head(x_nchw, classifier_w, *, block_b=None,
                  vmem_limit_bytes=48 * 1024 * 1024):
    """Baseline head forward (training, kd=False).

    Args:
      x_nchw:       (B, C, H, W) backbone output feature map.
      classifier_w: (num_classes, C) Linear weight, PyTorch convention.

    Returns:
      (cls_score (B, num_classes), global_feat (B, C))  — both float32.
    """
    B, C, H, W = x_nchw.shape
    HW = H * W
    N = classifier_w.shape[0]

    # Lane-dense classifier columns: pad N up to a multiple of 128.
    n_pad = ((N + 127) // 128) * 128
    w = jnp.transpose(classifier_w, (1, 0)).astype(jnp.float32)   # (C, N)
    if n_pad != N:
        w = jnp.pad(w, ((0, 0), (0, n_pad - N)))                  # (C, Npad)

    # Free contiguous reshape — NO transpose of the feature map in HBM.
    x = x_nchw.reshape(B, C, HW)

    # Pick a batch tile that keeps double-buffered tiles under the VMEM budget
    # (sized for the smallest generation, v7x: 64 MiB physical VMEM).
    if block_b is None:
        in_row_bytes = C * HW * x.dtype.itemsize
        out_row_bytes = (C + n_pad) * 4
        weight_bytes = C * n_pad * w.dtype.itemsize
        avail = max(in_row_bytes, vmem_limit_bytes - 2 * weight_bytes)
        block_b = max(1, avail // (2 * (in_row_bytes + out_row_bytes)))
    if block_b >= B:
        block_b = B
    elif B > 8:
        # Keep sublane-aligned tiles when not covering the full batch.
        block_b = max(8, (block_b // 8) * 8)
        block_b = min(block_b, B)
    grid_b = pl.cdiv(B, block_b)

    score_pad, global_feat = pl.pallas_call(
        _baseline_head_kernel,
        out_shape=(
            jax.ShapeDtypeStruct((B, n_pad), jnp.float32),   # cls_score (padded N)
            jax.ShapeDtypeStruct((B, C), jnp.float32),       # global_feat
        ),
        grid_spec=pltpu.PrefetchScalarGridSpec(
            num_scalar_prefetch=0,
            grid=(grid_b,),
            in_specs=[
                pl.BlockSpec((block_b, C, HW), lambda i: (i, 0, 0)),  # feature map tile
                pl.BlockSpec((C, n_pad), lambda i: (0, 0)),           # resident weight
            ],
            out_specs=(
                pl.BlockSpec((block_b, n_pad), lambda i: (i, 0)),     # score tile
                pl.BlockSpec((block_b, C), lambda i: (i, 0)),         # feat tile
            ),
        ),
        compiler_params=pltpu.CompilerParams(
            dimension_semantics=("parallel",),
            vmem_limit_bytes=vmem_limit_bytes,
        ),
    )(x, w)

    cls_score = score_pad[:, :N]
    return cls_score, global_feat


if __name__ == "__main__":
    # Small shapes consistent with the module: resnet18/34 -> in_planes = 512.
    B, C, H, W = 2, 512, 8, 8
    num_classes = 16

    key = jax.random.PRNGKey(0)
    kx, kw = jax.random.split(key)

    # Backbone output feature map (stand-in for self.base(x)).
    x = jax.random.normal(kx, (B, C, H, W), dtype=jnp.float32)

    # classifier: nn.Linear(in_planes, num_classes, bias=False),
    # weights_init_classifier -> normal_(std=0.001).
    classifier_w = 0.001 * jax.random.normal(kw, (num_classes, C), dtype=jnp.float32)

    cls_score, global_feat = baseline_head(x, classifier_w)
    jax.block_until_ready((cls_score, global_feat))

    # Reference check in plain JAX.
    gf_ref = jnp.mean(x.reshape(B, C, H * W), axis=-1)            # (B, C)
    score_ref = gf_ref @ classifier_w.T                           # (B, N)

    assert cls_score.shape == (B, num_classes), cls_score.shape
    assert global_feat.shape == (B, C), global_feat.shape
    assert jnp.allclose(global_feat, gf_ref, atol=1e-5, rtol=1e-4)
    assert jnp.allclose(cls_score, score_ref, atol=1e-5, rtol=1e-4)

    print("KERNEL_OK")
</pallas_src>

<mosaic_0001>
module attributes {stable_mosaic.version = 11 : i64} {
  func.func @_baseline_head_kernel(%arg0: i32, %arg1: memref<2x512x64xf32, #tpu.memory_space<vmem>>, %arg2: memref<512x128xf32, #tpu.memory_space<vmem>>, %arg3: memref<2x128xf32, #tpu.memory_space<vmem>>, %arg4: memref<2x512xf32, #tpu.memory_space<vmem>>) attributes {dimension_semantics = [#tpu.dimension_semantics<parallel>], iteration_bounds = array<i64: 1>, scalar_prefetch = 0 : i64, scratch_operands = 0 : i64, tpu.core_type = #tpu.core_type<tc>, window_params = [{transform_indices = @transform_0, window_bounds = array<i64: 2, 512, 64>}, {pipeline_mode = #tpu.pipeline_mode<synchronous>, transform_indices = @transform_1, window_bounds = array<i64: 512, 128>}, {transform_indices = @transform_2, window_bounds = array<i64: 2, 128>}, {transform_indices = @transform_3, window_bounds = array<i64: 2, 512>}]} {
    %c0 = arith.constant 0 : index
    %c0_0 = arith.constant 0 : index
    %c0_1 = arith.constant 0 : index
    %0 = vector.load %arg1[%c0, %c0_0, %c0_1] : memref<2x512x64xf32, #tpu.memory_space<vmem>>, vector<2x512x64xf32>
    %cst = arith.constant dense<0.000000e+00> : vector<2x512xf32>
    %1 = vector.multi_reduction <add>, %0, %cst [2] : vector<2x512x64xf32> to vector<2x512xf32>
    %cst_2 = arith.constant 6.400000e+01 : f32
    %2 = vector.broadcast %cst_2 : f32 to vector<2x512xf32>
    %3 = arith.divf %1, %2 : vector<2x512xf32>
    %c0_3 = arith.constant 0 : index
    %c0_4 = arith.constant 0 : index
    %4 = vector.load %arg4[%c0_3, %c0_4] : memref<2x512xf32, #tpu.memory_space<vmem>>, vector<2x512xf32>
    tpu.vector_store %arg4[%c0_3, %c0_4], %3 {strides = array<i32>} : memref<2x512xf32, #tpu.memory_space<vmem>>, vector<2x512xf32>,
    %c0_5 = arith.constant 0 : index
    %c0_6 = arith.constant 0 : index
    %5 = vector.load %arg2[%c0_5, %c0_6] : memref<512x128xf32, #tpu.memory_space<vmem>>, vector<512x128xf32>
    %cst_7 = arith.constant dense<0.000000e+00> : vector<2x128xf32>
    %6 = tpu.matmul %3, %5, %cst_7 {dimension_numbers = #tpu.dot_dimension_numbers<[1], [0], [0], [1], [0, 0, 1, 1], [], []>} : vector<2x512xf32>, vector<512x128xf32>, vector<2x128xf32> -> vector<2x128xf32>
    %c0_8 = arith.constant 0 : index
    %c0_9 = arith.constant 0 : index
    %7 = vector.load %arg3[%c0_8, %c0_9] : memref<2x128xf32, #tpu.memory_space<vmem>>, vector<2x128xf32>
    tpu.vector_store %arg3[%c0_8, %c0_9], %6 {strides = array<i32>} : memref<2x128xf32, #tpu.memory_space<vmem>>, vector<2x128xf32>,
    return
  }
  func.func @transform_0(%arg0: i32) -> (i32, i32, i32) {
    %c0_i32 = arith.constant 0 : i32
    %c0_i32_0 = arith.constant 0 : i32
    %c0_i32_1 = arith.constant 0 : i32
    return %arg0, %c0_i32, %c0_i32_0 : i32, i32, i32
  }
  func.func @transform_1(%arg0: i32) -> (i32, i32) {
    %c0_i32 = arith.constant 0 : i32
    %c0_i32_0 = arith.constant 0 : i32
    %c0_i32_1 = arith.constant 0 : i32
    return %c0_i32, %c0_i32_0 : i32, i32
  }
  func.func @transform_2(%arg0: i32) -> (i32, i32) {
    %c0_i32 = arith.constant 0 : i32
    %c0_i32_0 = arith.constant 0 : i32
    return %arg0, %c0_i32 : i32, i32
  }
  func.func @transform_3(%arg0: i32) -> (i32, i32) {
    %c0_i32 = arith.constant 0 : i32
    %c0_i32_0 = arith.constant 0 : i32
    return %arg0, %c0_i32 : i32, i32
  }
}

</mosaic_0001>

<llo_original>
// kernel: tpu_custom_call.1
$region0: #{tpu_custom_call.1}
  #allocation0 [shape = 'u32[]', space=smem, size = 0x4, offset = 0x4, fixed_abs, tag = 'smem constant byte address 0x4 - core index']
  #allocation1 [shape = 'u32[144,128]{1,0:T(1,128)}', space=vmem, size = 0x12000, scoped, tag = 'internal scratch']
  %s0 = inlined_call_operand.vmem [shape: f32[2,512,64], index: 0, kind: input, shape index: {}]
  %s1 = inlined_call_operand.vmem [shape: f32[512,128], index: 1, kind: input, shape index: {}]
  %s2 = inlined_call_operand.hbm [shape: f32[2,128], index: 2, kind: output, shape index: {0}]
  %s3 = inlined_call_operand.hbm [shape: f32[2,512], index: 3, kind: output, shape index: {1}]
  %4 = xla_tuple %s2, %s3
  %s5 = sld [smem:[#allocation0]]
  $region26: #{tpu_custom_call.1} parent=0
    _
  %s7 = ssub.s32 1, %s5
  %s8 = scalar_select 0, %s7, %s5
  $region1: #{tpu_custom_call.1} parent=0
    #allocation2 [shape = 'u8[1024]{0}', space=vmem, size = 0x400, scoped, tag = 'output window, operand 0, single buffered']
    #allocation3 [shape = 's32[1]{0}', space=sflag, size = 0x4, scoped, tag = 'scoped memory for tpu_custom_call.1']
    #allocation4 [shape = 'u8[4096]{0}', space=vmem, size = 0x1000, scoped, tag = 'output window, operand 1, single buffered']
    #allocation5 [shape = 's32[1]{0}', space=sflag, size = 0x4, scoped, tag = 'scoped memory for tpu_custom_call.1']
    %9 = vsyncpa [#allocation3], 0
    %10 = vsyncpa [#allocation5], 0
    // Predicated region
    $region2: #{tpu_custom_call.1} parent=1 // pred_check
      _
    $region3: #{tpu_custom_call.1} parent=1 // pred_check_branch
      %12 = sbr.rel (0) target = $region5
    $region4: #{tpu_custom_call.1} parent=1 // pred_region
      _
    $region5: #{tpu_custom_call.1} parent=1 // pred_fallthru
      _
    // Predicated region
    $region6: #{tpu_custom_call.1} parent=1 // pred_check
      _
    $region7: #{tpu_custom_call.1} parent=1 // pred_check_branch
      %14 = sbr.rel (0) target = $region9
    $region8: #{tpu_custom_call.1} parent=1 // pred_region
      _
    $region9: #{tpu_custom_call.1} parent=1 // pred_fallthru
      _
    %v15 = vld [vmem:[%s0] sm:$0xff]
    %v16 = vld [vmem:[%s0 + $0x8] sm:$0xff]
    %v17 = vld [vmem:[%s0 + $0x10] sm:$0xff]
    %v18 = vld [vmem:[%s0 + $0x18] sm:$0xff]
    %v19 = vld [vmem:[%s0 + $0x20] sm:$0xff]
    %v20 = vld [vmem:[%s0 + $0x28] sm:$0xff]
    %v21 = vld [vmem:[%s0 + $0x30] sm:$0xff]
    %v22 = vld [vmem:[%s0 + $0x38] sm:$0xff]
    %v23 = vld [vmem:[%s0 + $0x40] sm:$0xff]
    %v24 = vld [vmem:[%s0 + $0x48] sm:$0xff]
    %v25 = vld [vmem:[%s0 + $0x50] sm:$0xff]
    %v26 = vld [vmem:[%s0 + $0x58] sm:$0xff]
    %v27 = vld [vmem:[%s0 + $0x60] sm:$0xff]
    %v28 = vld [vmem:[%s0 + $0x68] sm:$0xff]
    %v29 = vld [vmem:[%s0 + $0x70] sm:$0xff]
    %v30 = vld [vmem:[%s0 + $0x78] sm:$0xff]
    %v31 = vld [vmem:[%s0 + $0x80] sm:$0xff]
    %v32 = vld [vmem:[%s0 + $0x88] sm:$0xff]
    %v33 = vld [vmem:[%s0 + $0x90] sm:$0xff]
    %v34 = vld [vmem:[%s0 + $0x98] sm:$0xff]
    %v35 = vld [vmem:[%s0 + $0xa0] sm:$0xff]
    %v36 = vld [vmem:[%s0 + $0xa8] sm:$0xff]
    %v37 = vld [vmem:[%s0 + $0xb0] sm:$0xff]
    %v38 = vld [vmem:[%s0 + $0xb8] sm:$0xff]
    %v39 = vld [vmem:[%s0 + $0xc0] sm:$0xff]
    %v40 = vld [vmem:[%s0 + $0xc8] sm:$0xff]
    %v41 = vld [vmem:[%s0 + $0xd0] sm:$0xff]
    %v42 = vld [vmem:[%s0 + $0xd8] sm:$0xff]
    %v43 = vld [vmem:[%s0 + $0xe0] sm:$0xff]
    %v44 = vld [vmem:[%s0 + $0xe8] sm:$0xff]
    %v45 = vld [vmem:[%s0 + $0xf0] sm:$0xff]
    %v46 = vld [vmem:[%s0 + $0xf8] sm:$0xff]
    %v47 = vld [vmem:[%s0 + $0x100] sm:$0xff]
    %v48 = vld [vmem:[%s0 + $0x108] sm:$0xff]
    %v49 = vld [vmem:[%s0 + $0x110] sm:$0xff]
    %v50 = vld [vmem:[%s0 + $0x118] sm:$0xff]
    %v51 = vld [vmem:[%s0 + $0x120] sm:$0xff]
    %v52 = vld [vmem:[%s0 + $0x128] sm:$0xff]
    %v53 = vld [vmem:[%s0 + $0x130] sm:$0xff]
    %v54 = vld [vmem:[%s0 + $0x138] sm:$0xff]
    %v55 = vld [vmem:[%s0 + $0x140] sm:$0xff]
    %v56 = vld [vmem:[%s0 + $0x148] sm:$0xff]
    %v57 = vld [vmem:[%s0 + $0x150] sm:$0xff]
    %v58 = vld [vmem:[%s0 + $0x158] sm:$0xff]
    %v59 = vld [vmem:[%s0 + $0x160] sm:$0xff]
    %v60 = vld [vmem:[%s0 + $0x168] sm:$0xff]
    %v61 = vld [vmem:[%s0 + $0x170] sm:$0xff]
    %v62 = vld [vmem:[%s0 + $0x178] sm:$0xff]
    %v63 = vld [vmem:[%s0 + $0x180] sm:$0xff]
    %v64 = vld [vmem:[%s0 + $0x188] sm:$0xff]
    %v65 = vld [vmem:[%s0 + $0x190] sm:$0xff]
    %v66 = vld [vmem:[%s0 + $0x198] sm:$0xff]
    %v67 = vld [vmem:[%s0 + $0x1a0] sm:$0xff]
    %v68 = vld [vmem:[%s0 + $0x1a8] sm:$0xff]
    %v69 = vld [vmem:[%s0 + $0x1b0] sm:$0xff]
    %v70 = vld [vmem:[%s0 + $0x1b8] sm:$0xff]
    %v71 = vld [vmem:[%s0 + $0x1c0] sm:$0xff]
    %v72 = vld [vmem:[%s0 + $0x1c8] sm:$0xff]
    %v73 = vld [vmem:[%s0 + $0x1d0] sm:$0xff]
    %v74 = vld [vmem:[%s0 + $0x1d8] sm:$0xff]
    %v75 = vld [vmem:[%s0 + $0x1e0] sm:$0xff]
    %v76 = vld [vmem:[%s0 + $0x1e8] sm:$0xff]
    %v77 = vld [vmem:[%s0 + $0x1f0] sm:$0xff]
    %v78 = vld [vmem:[%s0 + $0x1f8] sm:$0xff]
    %v79 = vld [vmem:[%s0 + $0x200] sm:$0xff]
    %v80 = vld [vmem:[%s0 + $0x208] sm:$0xff]
    %v81 = vld [vmem:[%s0 + $0x210] sm:$0xff]
    %v82 = vld [vmem:[%s0 + $0x218] sm:$0xff]
    %v83 = vld [vmem:[%s0 + $0x220] sm:$0xff]
    %v84 = vld [vmem:[%s0 + $0x228] sm:$0xff]
    %v85 = vld [vmem:[%s0 + $0x230] sm:$0xff]
    %v86 = vld [vmem:[%s0 + $0x238] sm:$0xff]
    %v87 = vld [vmem:[%s0 + $0x240] sm:$0xff]
    %v88 = vld [vmem:[%s0 + $0x248] sm:$0xff]
    %v89 = vld [vmem:[%s0 + $0x250] sm:$0xff]
    %v90 = vld [vmem:[%s0 + $0x258] sm:$0xff]
    %v91 = vld [vmem:[%s0 + $0x260] sm:$0xff]
    %v92 = vld [vmem:[%s0 + $0x268] sm:$0xff]
    %v93 = vld [vmem:[%s0 + $0x270] sm:$0xff]
    %v94 = vld [vmem:[%s0 + $0x278] sm:$0xff]
    %v95 = vld [vmem:[%s0 + $0x280] sm:$0xff]
    %v96 = vld [vmem:[%s0 + $0x288] sm:$0xff]
    %v97 = vld [vmem:[%s0 + $0x290] sm:$0xff]
    %v98 = vld [vmem:[%s0 + $0x298] sm:$0xff]
    %v99 = vld [vmem:[%s0 + $0x2a0] sm:$0xff]
    %v100 = vld [vmem:[%s0 + $0x2a8] sm:$0xff]
    %v101 = vld [vmem:[%s0 + $0x2b0] sm:$0xff]
    %v102 = vld [vmem:[%s0 + $0x2b8] sm:$0xff]
    %v103 = vld [vmem:[%s0 + $0x2c0] sm:$0xff]
    %v104 = vld [vmem:[%s0 + $0x2c8] sm:$0xff]
    %v105 = vld [vmem:[%s0 + $0x2d0] sm:$0xff]
    %v106 = vld [vmem:[%s0 + $0x2d8] sm:$0xff]
    %v107 = vld [vmem:[%s0 + $0x2e0] sm:$0xff]
    %v108 = vld [vmem:[%s0 + $0x2e8] sm:$0xff]
    %v109 = vld [vmem:[%s0 + $0x2f0] sm:$0xff]
    %v110 = vld [vmem:[%s0 + $0x2f8] sm:$0xff]
    %v111 = vld [vmem:[%s0 + $0x300] sm:$0xff]
    %v112 = vld [vmem:[%s0 + $0x308] sm:$0xff]
    %v113 = vld [vmem:[%s0 + $0x310] sm:$0xff]
    %v114 = vld [vmem:[%s0 + $0x318] sm:$0xff]
    %v115 = vld [vmem:[%s0 + $0x320] sm:$0xff]
    %v116 = vld [vmem:[%s0 + $0x328] sm:$0xff]
    %v117 = vld [vmem:[%s0 + $0x330] sm:$0xff]
    %v118 = vld [vmem:[%s0 + $0x338] sm:$0xff]
    %v119 = vld [vmem:[%s0 + $0x340] sm:$0xff]
    %v120 = vld [vmem:[%s0 + $0x348] sm:$0xff]
    %v121 = vld [vmem:[%s0 + $0x350] sm:$0xff]
    %v122 = vld [vmem:[%s0 + $0x358] sm:$0xff]
    %v123 = vld [vmem:[%s0 + $0x360] sm:$0xff]
    %v124 = vld [vmem:[%s0 + $0x368] sm:$0xff]
    %v125 = vld [vmem:[%s0 + $0x370] sm:$0xff]
    %v126 = vld [vmem:[%s0 + $0x378] sm:$0xff]
    %v127 = vld [vmem:[%s0 + $0x380] sm:$0xff]
    %v128 = vld [vmem:[%s0 + $0x388] sm:$0xff]
    %v129 = vld [vmem:[%s0 + $0x390] sm:$0xff]
    %v130 = vld [vmem:[%s0 + $0x398] sm:$0xff]
    %v131 = vld [vmem:[%s0 + $0x3a0] sm:$0xff]
    %v132 = vld [vmem:[%s0 + $0x3a8] sm:$0xff]
    %v133 = vld [vmem:[%s0 + $0x3b0] sm:$0xff]
    %v134 = vld [vmem:[%s0 + $0x3b8] sm:$0xff]
    %v135 = vld [vmem:[%s0 + $0x3c0] sm:$0xff]
    %v136 = vld [vmem:[%s0 + $0x3c8] sm:$0xff]
    %v137 = vld [vmem:[%s0 + $0x3d0] sm:$0xff]
    %v138 = vld [vmem:[%s0 + $0x3d8] sm:$0xff]
    %v139 = vld [vmem:[%s0 + $0x3e0] sm:$0xff]
    %v140 = vld [vmem:[%s0 + $0x3e8] sm:$0xff]
    %v141 = vld [vmem:[%s0 + $0x3f0] sm:$0xff]
    %v142 = vld [vmem:[%s0 + $0x3f8] sm:$0xff]
    %vm143 = vcmask 523264
    %v144 = vsel %vm143, %v15, 0.0
    %145 = vadd.xlane.f32.xlu0 %v144
    %v146 = vpop.xlane.xlu0 %145
    %v147 = vsel %vm143, %v16, 0.0
    %148 = vadd.xlane.f32.xlu0 %v147
    %v149 = vpop.xlane.xlu0 %148
    %v150 = vsel %vm143, %v17, 0.0
    %151 = vadd.xlane.f32.xlu0 %v150
    %v152 = vpop.xlane.xlu0 %151
    %v153 = vsel %vm143, %v18, 0.0
    %154 = vadd.xlane.f32.xlu0 %v153
    %v155 = vpop.xlane.xlu0 %154
    %v156 = vsel %vm143, %v19, 0.0
    %157 = vadd.xlane.f32.xlu0 %v156
    %v158 = vpop.xlane.xlu0 %157
    %v159 = vsel %vm143, %v20, 0.0
    %160 = vadd.xlane.f32.xlu0 %v159
    %v161 = vpop.xlane.xlu0 %160
    %v162 = vsel %vm143, %v21, 0.0
    %163 = vadd.xlane.f32.xlu0 %v162
    %v164 = vpop.xlane.xlu0 %163
    %v165 = vsel %vm143, %v22, 0.0
    %166 = vadd.xlane.f32.xlu0 %v165
    %v167 = vpop.xlane.xlu0 %166
    %v168 = vsel %vm143, %v23, 0.0
    %169 = vadd.xlane.f32.xlu0 %v168
    %v170 = vpop.xlane.xlu0 %169
    %v171 = vsel %vm143, %v24, 0.0
    %172 = vadd.xlane.f32.xlu0 %v171
    %v173 = vpop.xlane.xlu0 %172
    %v174 = vsel %vm143, %v25, 0.0
    %175 = vadd.xlane.f32.xlu0 %v174
    %v176 = vpop.xlane.xlu0 %175
    %v177 = vsel %vm143, %v26, 0.0
    %178 = vadd.xlane.f32.xlu0 %v177
    %v179 = vpop.xlane.xlu0 %178
    %v180 = vsel %vm143, %v27, 0.0
    %181 = vadd.xlane.f32.xlu0 %v180
    %v182 = vpop.xlane.xlu0 %181
    %v183 = vsel %vm143, %v28, 0.0
    %184 = vadd.xlane.f32.xlu0 %v183
    %v185 = vpop.xlane.xlu0 %184
    %v186 = vsel %vm143, %v29, 0.0
    %187 = vadd.xlane.f32.xlu0 %v186
    %v188 = vpop.xlane.xlu0 %187
    %v189 = vsel %vm143, %v30, 0.0
    %190 = vadd.xlane.f32.xlu0 %v189
    %v191 = vpop.xlane.xlu0 %190
    %v192 = vsel %vm143, %v31, 0.0
    %193 = vadd.xlane.f32.xlu0 %v192
    %v194 = vpop.xlane.xlu0 %193
    %v195 = vsel %vm143, %v32, 0.0
    %196 = vadd.xlane.f32.xlu0 %v195
    %v197 = vpop.xlane.xlu0 %196
    %v198 = vsel %vm143, %v33, 0.0
    %199 = vadd.xlane.f32.xlu0 %v198
    %v200 = vpop.xlane.xlu0 %199
    %v201 = vsel %vm143, %v34, 0.0
    %202 = vadd.xlane.f32.xlu0 %v201
    %v203 = vpop.xlane.xlu0 %202
    %v204 = vsel %vm143, %v35, 0.0
    %205 = vadd.xlane.f32.xlu0 %v204
    %v206 = vpop.xlane.xlu0 %205
    %v207 = vsel %vm143, %v36, 0.0
    %208 = vadd.xlane.f32.xlu0 %v207
    %v209 = vpop.xlane.xlu0 %208
    %v210 = vsel %vm143, %v37, 0.0
    %211 = vadd.xlane.f32.xlu0 %v210
    %v212 = vpop.xlane.xlu0 %211
    %v213 = vsel %vm143, %v38, 0.0
    %214 = vadd.xlane.f32.xlu0 %v213
    %v215 = vpop.xlane.xlu0 %214
    %v216 = vsel %vm143, %v39, 0.0
    %217 = vadd.xlane.f32.xlu0 %v216
    %v218 = vpop.xlane.xlu0 %217
    %v219 = vsel %vm143, %v40, 0.0
    %220 = vadd.xlane.f32.xlu0 %v219
    %v221 = vpop.xlane.xlu0 %220
    %v222 = vsel %vm143, %v41, 0.0
    %223 = vadd.xlane.f32.xlu0 %v222
    %v224 = vpop.xlane.xlu0 %223
    %v225 = vsel %vm143, %v42, 0.0
    %226 = vadd.xlane.f32.xlu0 %v225
    %v227 = vpop.xlane.xlu0 %226
    %v228 = vsel %vm143, %v43, 0.0
    %229 = vadd.xlane.f32.xlu0 %v228
    %v230 = vpop.xlane.xlu0 %229
    %v231 = vsel %vm143, %v44, 0.0
    %232 = vadd.xlane.f32.xlu0 %v231
    %v233 = vpop.xlane.xlu0 %232
    %v234 = vsel %vm143, %v45, 0.0
    %235 = vadd.xlane.f32.xlu0 %v234
    %v236 = vpop.xlane.xlu0 %235
    %v237 = vsel %vm143, %v46, 0.0
    %238 = vadd.xlane.f32.xlu0 %v237
    %v239 = vpop.xlane.xlu0 %238
    %v240 = vsel %vm143, %v47, 0.0
    %241 = vadd.xlane.f32.xlu0 %v240
    %v242 = vpop.xlane.xlu0 %241
    %v243 = vsel %vm143, %v48, 0.0
    %244 = vadd.xlane.f32.xlu0 %v243
    %v245 = vpop.xlane.xlu0 %244
    %v246 = vsel %vm143, %v49, 0.0
    %247 = vadd.xlane.f32.xlu0 %v246
    %v248 = vpop.xlane.xlu0 %247
    %v249 = vsel %vm143, %v50, 0.0
    %250 = vadd.xlane.f32.xlu0 %v249
    %v251 = vpop.xlane.xlu0 %250
    %v252 = vsel %vm143, %v51, 0.0
    %253 = vadd.xlane.f32.xlu0 %v252
    %v254 = vpop.xlane.xlu0 %253
    %v255 = vsel %vm143, %v52, 0.0
    %256 = vadd.xlane.f32.xlu0 %v255
    %v257 = vpop.xlane.xlu0 %256
    %v258 = vsel %vm143, %v53, 0.0
    %259 = vadd.xlane.f32.xlu0 %v258
    %v260 = vpop.xlane.xlu0 %259
    %v261 = vsel %vm143, %v54, 0.0
    %262 = vadd.xlane.f32.xlu0 %v261
    %v263 = vpop.xlane.xlu0 %262
    %v264 = vsel %vm143, %v55, 0.0
    %265 = vadd.xlane.f32.xlu0 %v264
    %v266 = vpop.xlane.xlu0 %265
    %v267 = vsel %vm143, %v56, 0.0
    %268 = vadd.xlane.f32.xlu0 %v267
    %v269 = vpop.xlane.xlu0 %268
    %v270 = vsel %vm143, %v57, 0.0
    %271 = vadd.xlane.f32.xlu0 %v270
    %v272 = vpop.xlane.xlu0 %271
    %v273 = vsel %vm143, %v58, 0.0
    %274 = vadd.xlane.f32.xlu0 %v273
    %v275 = vpop.xlane.xlu0 %274
    %v276 = vsel %vm143, %v59, 0.0
    %277 = vadd.xlane.f32.xlu0 %v276
    %v278 = vpop.xlane.xlu0 %277
    %v279 = vsel %vm143, %v60, 0.0
    %280 = vadd.xlane.f32.xlu0 %v279
    %v281 = vpop.xlane.xlu0 %280
    %v282 = vsel %vm143, %v61, 0.0
    %283 = vadd.xlane.f32.xlu0 %v282
    %v284 = vpop.xlane.xlu0 %283
    %v285 = vsel %vm143, %v62, 0.0
    %286 = vadd.xlane.f32.xlu0 %v285
    %v287 = vpop.xlane.xlu0 %286
    %v288 = vsel %vm143, %v63, 0.0
    %289 = vadd.xlane.f32.xlu0 %v288
    %v290 = vpop.xlane.xlu0 %289
    %v291 = vsel %vm143, %v64, 0.0
    %292 = vadd.xlane.f32.xlu0 %v291
    %v293 = vpop.xlane.xlu0 %292
    %v294 = vsel %vm143, %v65, 0.0
    %295 = vadd.xlane.f32.xlu0 %v294
    %v296 = vpop.xlane.xlu0 %295
    %v297 = vsel %vm143, %v66, 0.0
    %298 = vadd.xlane.f32.xlu0 %v297
    %v299 = vpop.xlane.xlu0 %298
    %v300 = vsel %vm143, %v67, 0.0
    %301 = vadd.xlane.f32.xlu0 %v300
    %v302 = vpop.xlane.xlu0 %301
    %v303 = vsel %vm143, %v68, 0.0
    %304 = vadd.xlane.f32.xlu0 %v303
    %v305 = vpop.xlane.xlu0 %304
    %v306 = vsel %vm143, %v69, 0.0
    %307 = vadd.xlane.f32.xlu0 %v306
    %v308 = vpop.xlane.xlu0 %307
    %v309 = vsel %vm143, %v70, 0.0
    %310 = vadd.xlane.f32.xlu0 %v309
    %v311 = vpop.xlane.xlu0 %310
    %v312 = vsel %vm143, %v71, 0.0
    %313 = vadd.xlane.f32.xlu0 %v312
    %v314 = vpop.xlane.xlu0 %313
    %v315 = vsel %vm143, %v72, 0.0
    %316 = vadd.xlane.f32.xlu0 %v315
    %v317 = vpop.xlane.xlu0 %316
    %v318 = vsel %vm143, %v73, 0.0
    %319 = vadd.xlane.f32.xlu0 %v318
    %v320 = vpop.xlane.xlu0 %319
    %v321 = vsel %vm143, %v74, 0.0
    %322 = vadd.xlane.f32.xlu0 %v321
    %v323 = vpop.xlane.xlu0 %322
    %v324 = vsel %vm143, %v75, 0.0
    %325 = vadd.xlane.f32.xlu0 %v324
    %v326 = vpop.xlane.xlu0 %325
    %v327 = vsel %vm143, %v76, 0.0
    %328 = vadd.xlane.f32.xlu0 %v327
    %v329 = vpop.xlane.xlu0 %328
    %v330 = vsel %vm143, %v77, 0.0
    %331 = vadd.xlane.f32.xlu0 %v330
    %v332 = vpop.xlane.xlu0 %331
    %v333 = vsel %vm143, %v78, 0.0
    %334 = vadd.xlane.f32.xlu0 %v333
    %v335 = vpop.xlane.xlu0 %334
    %v336 = vsel %vm143, %v79, 0.0
    %337 = vadd.xlane.f32.xlu0 %v336
    %v338 = vpop.xlane.xlu0 %337
    %v339 = vsel %vm143, %v80, 0.0
    %340 = vadd.xlane.f32.xlu0 %v339
    %v341 = vpop.xlane.xlu0 %340
    %v342 = vsel %vm143, %v81, 0.0
    %343 = vadd.xlane.f32.xlu0 %v342
    %v344 = vpop.xlane.xlu0 %343
    %v345 = vsel %vm143, %v82, 0.0
    %346 = vadd.xlane.f32.xlu0 %v345
    %v347 = vpop.xlane.xlu0 %346
    %v348 = vsel %vm143, %v83, 0.0
    %349 = vadd.xlane.f32.xlu0 %v348
    %v350 = vpop.xlane.xlu0 %349
    %v351 = vsel %vm143, %v84, 0.0
    %352 = vadd.xlane.f32.xlu0 %v351
    %v353 = vpop.xlane.xlu0 %352
    %v354 = vsel %vm143, %v85, 0.0
    %355 = vadd.xlane.f32.xlu0 %v354
    %v356 = vpop.xlane.xlu0 %355
    %v357 = vsel %vm143, %v86, 0.0
    %358 = vadd.xlane.f32.xlu0 %v357
    %v359 = vpop.xlane.xlu0 %358
    %v360 = vsel %vm143, %v87, 0.0
    %361 = vadd.xlane.f32.xlu0 %v360
    %v362 = vpop.xlane.xlu0 %361
    %v363 = vsel %vm143, %v88, 0.0
    %364 = vadd.xlane.f32.xlu0 %v363
    %v365 = vpop.xlane.xlu0 %364
    %v366 = vsel %vm143, %v89, 0.0
    %367 = vadd.xlane.f32.xlu0 %v366
    %v368 = vpop.xlane.xlu0 %367
    %v369 = vsel %vm143, %v90, 0.0
    %370 = vadd.xlane.f32.xlu0 %v369
    %v371 = vpop.xlane.xlu0 %370
    %v372 = vsel %vm143, %v91, 0.0
    %373 = vadd.xlane.f32.xlu0 %v372
    %v374 = vpop.xlane.xlu0 %373
    %v375 = vsel %vm143, %v92, 0.0
    %376 = vadd.xlane.f32.xlu0 %v375
    %v377 = vpop.xlane.xlu0 %376
    %v378 = vsel %vm143, %v93, 0.0
    %379 = vadd.xlane.f32.xlu0 %v378
    %v380 = vpop.xlane.xlu0 %379
    %v381 = vsel %vm143, %v94, 0.0
    %382 = vadd.xlane.f32.xlu0 %v381
    %v383 = vpop.xlane.xlu0 %382
    %v384 = vsel %vm143, %v95, 0.0
    %385 = vadd.xlane.f32.xlu0 %v384
    %v386 = vpop.xlane.xlu0 %385
    %v387 = vsel %vm143, %v96, 0.0
    %388 = vadd.xlane.f32.xlu0 %v387
    %v389 = vpop.xlane.xlu0 %388
    %v390 = vsel %vm143, %v97, 0.0
    %391 = vadd.xlane.f32.xlu0 %v390
    %v392 = vpop.xlane.xlu0 %391
    %v393 = vsel %vm143, %v98, 0.0
    %394 = vadd.xlane.f32.xlu0 %v393
    %v395 = vpop.xlane.xlu0 %394
    %v396 = vsel %vm143, %v99, 0.0
    %397 = vadd.xlane.f32.xlu0 %v396
    %v398 = vpop.xlane.xlu0 %397
    %v399 = vsel %vm143, %v100, 0.0
    %400 = vadd.xlane.f32.xlu0 %v399
    %v401 = vpop.xlane.xlu0 %400
    %v402 = vsel %vm143, %v101, 0.0
    %403 = vadd.xlane.f32.xlu0 %v402
    %v404 = vpop.xlane.xlu0 %403
    %v405 = vsel %vm143, %v102, 0.0
    %406 = vadd.xlane.f32.xlu0 %v405
    %v407 = vpop.xlane.xlu0 %406
    %v408 = vsel %vm143, %v103, 0.0
    %409 = vadd.xlane.f32.xlu0 %v408
    %v410 = vpop.xlane.xlu0 %409
    %v411 = vsel %vm143, %v104, 0.0
    %412 = vadd.xlane.f32.xlu0 %v411
    %v413 = vpop.xlane.xlu0 %412
    %v414 = vsel %vm143, %v105, 0.0
    %415 = vadd.xlane.f32.xlu0 %v414
    %v416 = vpop.xlane.xlu0 %415
    %v417 = vsel %vm143, %v106, 0.0
    %418 = vadd.xlane.f32.xlu0 %v417
    %v419 = vpop.xlane.xlu0 %418
    %v420 = vsel %vm143, %v107, 0.0
    %421 = vadd.xlane.f32.xlu0 %v420
    %v422 = vpop.xlane.xlu0 %421
    %v423 = vsel %vm143, %v108, 0.0
    %424 = vadd.xlane.f32.xlu0 %v423
    %v425 = vpop.xlane.xlu0 %424
    %v426 = vsel %vm143, %v109, 0.0
    %427 = vadd.xlane.f32.xlu0 %v426
    %v428 = vpop.xlane.xlu0 %427
    %v429 = vsel %vm143, %v110, 0.0
    %430 = vadd.xlane.f32.xlu0 %v429
    %v431 = vpop.xlane.xlu0 %430
    %v432 = vsel %vm143, %v111, 0.0
    %433 = vadd.xlane.f32.xlu0 %v432
    %v434 = vpop.xlane.xlu0 %433
    %v435 = vsel %vm143, %v112, 0.0
    %436 = vadd.xlane.f32.xlu0 %v435
    %v437 = vpop.xlane.xlu0 %436
    %v438 = vsel %vm143, %v113, 0.0
    %439 = vadd.xlane.f32.xlu0 %v438
    %v440 = vpop.xlane.xlu0 %439
    %v441 = vsel %vm143, %v114, 0.0
    %442 = vadd.xlane.f32.xlu0 %v441
    %v443 = vpop.xlane.xlu0 %442
    %v444 = vsel %vm143, %v115, 0.0
    %445 = vadd.xlane.f32.xlu0 %v444
    %v446 = vpop.xlane.xlu0 %445
    %v447 = vsel %vm143, %v116, 0.0
    %448 = vadd.xlane.f32.xlu0 %v447
    %v449 = vpop.xlane.xlu0 %448
    %v450 = vsel %vm143, %v117, 0.0
    %451 = vadd.xlane.f32.xlu0 %v450
    %v452 = vpop.xlane.xlu0 %451
    %v453 = vsel %vm143, %v118, 0.0
    %454 = vadd.xlane.f32.xlu0 %v453
    %v455 = vpop.xlane.xlu0 %454
    %v456 = vsel %vm143, %v119, 0.0
    %457 = vadd.xlane.f32.xlu0 %v456
    %v458 = vpop.xlane.xlu0 %457
    %v459 = vsel %vm143, %v120, 0.0
    %460 = vadd.xlane.f32.xlu0 %v459
    %v461 = vpop.xlane.xlu0 %460
    %v462 = vsel %vm143, %v121, 0.0
    %463 = vadd.xlane.f32.xlu0 %v462
    %v464 = vpop.xlane.xlu0 %463
    %v465 = vsel %vm143, %v122, 0.0
    %466 = vadd.xlane.f32.xlu0 %v465
    %v467 = vpop.xlane.xlu0 %466
    %v468 = vsel %vm143, %v123, 0.0
    %469 = vadd.xlane.f32.xlu0 %v468
    %v470 = vpop.xlane.xlu0 %469
    %v471 = vsel %vm143, %v124, 0.0
    %472 = vadd.xlane.f32.xlu0 %v471
    %v473 = vpop.xlane.xlu0 %472
    %v474 = vsel %vm143, %v125, 0.0
    %475 = vadd.xlane.f32.xlu0 %v474
    %v476 = vpop.xlane.xlu0 %475
    %v477 = vsel %vm143, %v126, 0.0
    %478 = vadd.xlane.f32.xlu0 %v477
    %v479 = vpop.xlane.xlu0 %478
    %v480 = vsel %vm143, %v127, 0.0
    %481 = vadd.xlane.f32.xlu0 %v480
    %v482 = vpop.xlane.xlu0 %481
    %v483 = vsel %vm143, %v128, 0.0
    %484 = vadd.xlane.f32.xlu0 %v483
    %v485 = vpop.xlane.xlu0 %484
    %v486 = vsel %vm143, %v129, 0.0
    %487 = vadd.xlane.f32.xlu0 %v486
    %v488 = vpop.xlane.xlu0 %487
    %v489 = vsel %vm143, %v130, 0.0
    %490 = vadd.xlane.f32.xlu0 %v489
    %v491 = vpop.xlane.xlu0 %490
    %v492 = vsel %vm143, %v131, 0.0
    %493 = vadd.xlane.f32.xlu0 %v492
    %v494 = vpop.xlane.xlu0 %493
    %v495 = vsel %vm143, %v132, 0.0
    %496 = vadd.xlane.f32.xlu0 %v495
    %v497 = vpop.xlane.xlu0 %496
    %v498 = vsel %vm143, %v133, 0.0
    %499 = vadd.xlane.f32.xlu0 %v498
    %v500 = vpop.xlane.xlu0 %499
    %v501 = vsel %vm143, %v134, 0.0
    %502 = vadd.xlane.f32.xlu0 %v501
    %v503 = vpop.xlane.xlu0 %502
    %v504 = vsel %vm143, %v135, 0.0
    %505 = vadd.xlane.f32.xlu0 %v504
    %v506 = vpop.xlane.xlu0 %505
    %v507 = vsel %vm143, %v136, 0.0
    %508 = vadd.xlane.f32.xlu0 %v507
    %v509 = vpop.xlane.xlu0 %508
    %v510 = vsel %vm143, %v137, 0.0
    %511 = vadd.xlane.f32.xlu0 %v510
    %v512 = vpop.xlane.xlu0 %511
    %v513 = vsel %vm143, %v138, 0.0
    %514 = vadd.xlane.f32.xlu0 %v513
    %v515 = vpop.xlane.xlu0 %514
    %v516 = vsel %vm143, %v139, 0.0
    %517 = vadd.xlane.f32.xlu0 %v516
    %v518 = vpop.xlane.xlu0 %517
    %v519 = vsel %vm143, %v140, 0.0
    %520 = vadd.xlane.f32.xlu0 %v519
    %v521 = vpop.xlane.xlu0 %520
    %v522 = vsel %vm143, %v141, 0.0
    %523 = vadd.xlane.f32.xlu0 %v522
    %v524 = vpop.xlane.xlu0 %523
    %v525 = vsel %vm143, %v142, 0.0
    %526 = vadd.xlane.f32.xlu0 %v525
    %v527 = vpop.xlane.xlu0 %526
    %v528 = vrcp.pop 64.0
    %v529 = vmul.f32 %v146, %v528
    %v530 = vmul.f32 %v149, %v528
    %v531 = vmul.f32 %v152, %v528
    %v532 = vmul.f32 %v155, %v528
    %v533 = vmul.f32 %v158, %v528
    %v534 = vmul.f32 %v161, %v528
    %v535 = vmul.f32 %v164, %v528
    %v536 = vmul.f32 %v167, %v528
    %v537 = vmul.f32 %v170, %v528
    %v538 = vmul.f32 %v173, %v528
    %v539 = vmul.f32 %v176, %v528
    %v540 = vmul.f32 %v179, %v528
    %v541 = vmul.f32 %v182, %v528
    %v542 = vmul.f32 %v185, %v528
    %v543 = vmul.f32 %v188, %v528
    %v544 = vmul.f32 %v191, %v528
    %v545 = vmul.f32 %v194, %v528
    %v546 = vmul.f32 %v197, %v528
    %v547 = vmul.f32 %v200, %v528
    %v548 = vmul.f32 %v203, %v528
    %v549 = vmul.f32 %v206, %v528
    %v550 = vmul.f32 %v209, %v528
    %v551 = vmul.f32 %v212, %v528
    %v552 = vmul.f32 %v215, %v528
    %v553 = vmul.f32 %v218, %v528
    %v554 = vmul.f32 %v221, %v528
    %v555 = vmul.f32 %v224, %v528
    %v556 = vmul.f32 %v227, %v528
    %v557 = vmul.f32 %v230, %v528
    %v558 = vmul.f32 %v233, %v528
    %v559 = vmul.f32 %v236, %v528
    %v560 = vmul.f32 %v239, %v528
    %v561 = vmul.f32 %v242, %v528
    %v562 = vmul.f32 %v245, %v528
    %v563 = vmul.f32 %v248, %v528
    %v564 = vmul.f32 %v251, %v528
    %v565 = vmul.f32 %v254, %v528
    %v566 = vmul.f32 %v257, %v528
    %v567 = vmul.f32 %v260, %v528
    %v568 = vmul.f32 %v263, %v528
    %v569 = vmul.f32 %v266, %v528
    %v570 = vmul.f32 %v269, %v528
    %v571 = vmul.f32 %v272, %v528
    %v572 = vmul.f32 %v275, %v528
    %v573 = vmul.f32 %v278, %v528
    %v574 = vmul.f32 %v281, %v528
    %v575 = vmul.f32 %v284, %v528
    %v576 = vmul.f32 %v287, %v528
    %v577 = vmul.f32 %v290, %v528
    %v578 = vmul.f32 %v293, %v528
    %v579 = vmul.f32 %v296, %v528
    %v580 = vmul.f32 %v299, %v528
    %v581 = vmul.f32 %v302, %v528
    %v582 = vmul.f32 %v305, %v528
    %v583 = vmul.f32 %v308, %v528
    %v584 = vmul.f32 %v311, %v528
    %v585 = vmul.f32 %v314, %v528
    %v586 = vmul.f32 %v317, %v528
    %v587 = vmul.f32 %v320, %v528
    %v588 = vmul.f32 %v323, %v528
    %v589 = vmul.f32 %v326, %v528
    %v590 = vmul.f32 %v329, %v528
    %v591 = vmul.f32 %v332, %v528
    %v592 = vmul.f32 %v335, %v528
    %v593 = vmul.f32 %v338, %v528
    %v594 = vmul.f32 %v341, %v528
    %v595 = vmul.f32 %v344, %v528
    %v596 = vmul.f32 %v347, %v528
    %v597 = vmul.f32 %v350, %v528
    %v598 = vmul.f32 %v353, %v528
    %v599 = vmul.f32 %v356, %v528
    %v600 = vmul.f32 %v359, %v528
    %v601 = vmul.f32 %v362, %v528
    %v602 = vmul.f32 %v365, %v528
    %v603 = vmul.f32 %v368, %v528
    %v604 = vmul.f32 %v371, %v528
    %v605 = vmul.f32 %v374, %v528
    %v606 = vmul.f32 %v377, %v528
    %v607 = vmul.f32 %v380, %v528
    %v608 = vmul.f32 %v383, %v528
    %v609 = vmul.f32 %v386, %v528
    %v610 = vmul.f32 %v389, %v528
    %v611 = vmul.f32 %v392, %v528
    %v612 = vmul.f32 %v395, %v528
    %v613 = vmul.f32 %v398, %v528
    %v614 = vmul.f32 %v401, %v528
    %v615 = vmul.f32 %v404, %v528
    %v616 = vmul.f32 %v407, %v528
    %v617 = vmul.f32 %v410, %v528
    %v618 = vmul.f32 %v413, %v528
    %v619 = vmul.f32 %v416, %v528
    %v620 = vmul.f32 %v419, %v528
    %v621 = vmul.f32 %v422, %v528
    %v622 = vmul.f32 %v425, %v528
    %v623 = vmul.f32 %v428, %v528
    %v624 = vmul.f32 %v431, %v528
    %v625 = vmul.f32 %v434, %v528
    %v626 = vmul.f32 %v437, %v528
    %v627 = vmul.f32 %v440, %v528
    %v628 = vmul.f32 %v443, %v528
    %v629 = vmul.f32 %v446, %v528
    %v630 = vmul.f32 %v449, %v528
    %v631 = vmul.f32 %v452, %v528
    %v632 = vmul.f32 %v455, %v528
    %v633 = vmul.f32 %v458, %v528
    %v634 = vmul.f32 %v461, %v528
    %v635 = vmul.f32 %v464, %v528
    %v636 = vmul.f32 %v467, %v528
    %v637 = vmul.f32 %v470, %v528
    %v638 = vmul.f32 %v473, %v528
    %v639 = vmul.f32 %v476, %v528
    %v640 = vmul.f32 %v479, %v528
    %v641 = vmul.f32 %v482, %v528
    %v642 = vmul.f32 %v485, %v528
    %v643 = vmul.f32 %v488, %v528
    %v644 = vmul.f32 %v491, %v528
    %v645 = vmul.f32 %v494, %v528
    %v646 = vmul.f32 %v497, %v528
    %v647 = vmul.f32 %v500, %v528
    %v648 = vmul.f32 %v503, %v528
    %v649 = vmul.f32 %v506, %v528
    %v650 = vmul.f32 %v509, %v528
    %v651 = vmul.f32 %v512, %v528
    %v652 = vmul.f32 %v515, %v528
    %v653 = vmul.f32 %v518, %v528
    %v654 = vmul.f32 %v521, %v528
    %v655 = vmul.f32 %v524, %v528
    %v656 = vmul.f32 %v527, %v528
    %v786 = vunpack.c.l.s4 269488144
    %v787 = vunpack.c.0.s8 %v786
    %v788 = vlaneseq
    %v789 = vshrl.u32 %v788, 7
    %v790 = vsub.s32 %v787, %v789
    %v791 = vrot.slane %v529, %v790
    %v793 = vunpack.c.l.s4 842150450
    %v794 = vunpack.c.0.s8 %v793
    %v795 = vlaneseq
    %v796 = vshrl.u32 %v795, 7
    %v797 = vsub.s32 %v794, %v796
    %v798 = vrot.slane %v529, %v797
    %v800 = vunpack.c.l.s4 1414812756
    %v801 = vunpack.c.0.s8 %v800
    %v802 = vlaneseq
    %v803 = vshrl.u32 %v802, 7
    %v804 = vsub.s32 %v801, %v803
    %v805 = vrot.slane %v529, %v804
    %v807 = vunpack.c.l.s4 1987475062
    %v808 = vunpack.c.0.s8 %v807
    %v809 = vlaneseq
    %v810 = vshrl.u32 %v809, 7
    %v811 = vsub.s32 %v808, %v810
    %v812 = vrot.slane %v529, %v811
    %v814 = vunpack.c.l.s4 269488144
    %v815 = vunpack.c.0.s8 %v814
    %v816 = vlaneseq
    %v817 = vshrl.u32 %v816, 7
    %v818 = vsub.s32 %v815, %v817
    %v819 = vrot.slane %v530, %v818
    %v821 = vunpack.c.l.s4 842150450
    %v822 = vunpack.c.0.s8 %v821
    %v823 = vlaneseq
    %v824 = vshrl.u32 %v823, 7
    %v825 = vsub.s32 %v822, %v824
    %v826 = vrot.slane %v530, %v825
    %v828 = vunpack.c.l.s4 1414812756
    %v829 = vunpack.c.0.s8 %v828
    %v830 = vlaneseq
    %v831 = vshrl.u32 %v830, 7
    %v832 = vsub.s32 %v829, %v831
    %v833 = vrot.slane %v530, %v832
    %v835 = vunpack.c.l.s4 1987475062
    %v836 = vunpack.c.0.s8 %v835
    %v837 = vlaneseq
    %v838 = vshrl.u32 %v837, 7
    %v839 = vsub.s32 %v836, %v838
    %v840 = vrot.slane %v530, %v839
    %v842 = vunpack.c.l.s4 269488144
    %v843 = vunpack.c.0.s8 %v842
    %v844 = vlaneseq
    %v845 = vshrl.u32 %v844, 7
    %v846 = vsub.s32 %v843, %v845
    %v847 = vrot.slane %v531, %v846
    %v849 = vunpack.c.l.s4 842150450
    %v850 = vunpack.c.0.s8 %v849
    %v851 = vlaneseq
    %v852 = vshrl.u32 %v851, 7
    %v853 = vsub.s32 %v850, %v852
    %v854 = vrot.slane %v531, %v853
    %v856 = vunpack.c.l.s4 1414812756
    %v857 = vunpack.c.0.s8 %v856
    %v858 = vlaneseq
    %v859 = vshrl.u32 %v858, 7
    %v860 = vsub.s32 %v857, %v859
    %v861 = vrot.slane %v531, %v860
    %v863 = vunpack.c.l.s4 1987475062
    %v864 = vunpack.c.0.s8 %v863
    %v865 = vlaneseq
    %v866 = vshrl.u32 %v865, 7
    %v867 = vsub.s32 %v864, %v866
    %v868 = vrot.slane %v531, %v867
    %v870 = vunpack.c.l.s4 269488144
    %v871 = vunpack.c.0.s8 %v870
    %v872 = vlaneseq
    %v873 = vshrl.u32 %v872, 7
    %v874 = vsub.s32 %v871, %v873
    %v875 = vrot.slane %v532, %v874
    %v877 = vunpack.c.l.s4 842150450
    %v878 = vunpack.c.0.s8 %v877
    %v879 = vlaneseq
    %v880 = vshrl.u32 %v879, 7
    %v881 = vsub.s32 %v878, %v880
    %v882 = vrot.slane %v532, %v881
    %v884 = vunpack.c.l.s4 1414812756
    %v885 = vunpack.c.0.s8 %v884
    %v886 = vlaneseq
    %v887 = vshrl.u32 %v886, 7
    %v888 = vsub.s32 %v885, %v887
    %v889 = vrot.slane %v532, %v888
    %v891 = vunpack.c.l.s4 1987475062
    %v892 = vunpack.c.0.s8 %v891
    %v893 = vlaneseq
    %v894 = vshrl.u32 %v893, 7
    %v895 = vsub.s32 %v892, %v894
    %v896 = vrot.slane %v532, %v895
    %v898 = vunpack.c.l.s4 269488144
    %v899 = vunpack.c.0.s8 %v898
    %v900 = vlaneseq
    %v901 = vshrl.u32 %v900, 7
    %v902 = vsub.s32 %v899, %v901
    %v903 = vrot.slane %v533, %v902
    %v905 = vunpack.c.l.s4 842150450
    %v906 = vunpack.c.0.s8 %v905
    %v907 = vlaneseq
    %v908 = vshrl.u32 %v907, 7
    %v909 = vsub.s32 %v906, %v908
    %v910 = vrot.slane %v533, %v909
    %v912 = vunpack.c.l.s4 1414812756
    %v913 = vunpack.c.0.s8 %v912
    %v914 = vlaneseq
    %v915 = vshrl.u32 %v914, 7
    %v916 = vsub.s32 %v913, %v915
    %v917 = vrot.slane %v533, %v916
    %v919 = vunpack.c.l.s4 1987475062
    %v920 = vunpack.c.0.s8 %v919
    %v921 = vlaneseq
    %v922 = vshrl.u32 %v921, 7
    %v923 = vsub.s32 %v920, %v922
    %v924 = vrot.slane %v533, %v923
    %v926 = vunpack.c.l.s4 269488144
    %v927 = vunpack.c.0.s8 %v926
    %v928 = vlaneseq
    %v929 = vshrl.u32 %v928, 7
    %v930 = vsub.s32 %v927, %v929
    %v931 = vrot.slane %v534, %v930
    %v933 = vunpack.c.l.s4 842150450
    %v934 = vunpack.c.0.s8 %v933
    %v935 = vlaneseq
    %v936 = vshrl.u32 %v935, 7
    %v937 = vsub.s32 %v934, %v936
    %v938 = vrot.slane %v534, %v937
    %v940 = vunpack.c.l.s4 1414812756
    %v941 = vunpack.c.0.s8 %v940
    %v942 = vlaneseq
    %v943 = vshrl.u32 %v942, 7
    %v944 = vsub.s32 %v941, %v943
    %v945 = vrot.slane %v534, %v944
    %v947 = vunpack.c.l.s4 1987475062
    %v948 = vunpack.c.0.s8 %v947
    %v949 = vlaneseq
    %v950 = vshrl.u32 %v949, 7
    %v951 = vsub.s32 %v948, %v950
    %v952 = vrot.slane %v534, %v951
    %v954 = vunpack.c.l.s4 269488144
    %v955 = vunpack.c.0.s8 %v954
    %v956 = vlaneseq
    %v957 = vshrl.u32 %v956, 7
    %v958 = vsub.s32 %v955, %v957
    %v959 = vrot.slane %v535, %v958
    %v961 = vunpack.c.l.s4 842150450
    %v962 = vunpack.c.0.s8 %v961
    %v963 = vlaneseq
    %v964 = vshrl.u32 %v963, 7
    %v965 = vsub.s32 %v962, %v964
    %v966 = vrot.slane %v535, %v965
    %v968 = vunpack.c.l.s4 1414812756
    %v969 = vunpack.c.0.s8 %v968
    %v970 = vlaneseq
    %v971 = vshrl.u32 %v970, 7
    %v972 = vsub.s32 %v969, %v971
    %v973 = vrot.slane %v535, %v972
    %v975 = vunpack.c.l.s4 1987475062
    %v976 = vunpack.c.0.s8 %v975
    %v977 = vlaneseq
    %v978 = vshrl.u32 %v977, 7
    %v979 = vsub.s32 %v976, %v978
    %v980 = vrot.slane %v535, %v979
    %v982 = vunpack.c.l.s4 269488144
    %v983 = vunpack.c.0.s8 %v982
    %v984 = vlaneseq
    %v985 = vshrl.u32 %v984, 7
    %v986 = vsub.s32 %v983, %v985
    %v987 = vrot.slane %v536, %v986
    %v989 = vunpack.c.l.s4 842150450
    %v990 = vunpack.c.0.s8 %v989
    %v991 = vlaneseq
    %v992 = vshrl.u32 %v991, 7
    %v993 = vsub.s32 %v990, %v992
    %v994 = vrot.slane %v536, %v993
    %v996 = vunpack.c.l.s4 1414812756
    %v997 = vunpack.c.0.s8 %v996
    %v998 = vlaneseq
    %v999 = vshrl.u32 %v998, 7
    %v1000 = vsub.s32 %v997, %v999
    %v1001 = vrot.slane %v536, %v1000
    %v1003 = vunpack.c.l.s4 1987475062
    %v1004 = vunpack.c.0.s8 %v1003
    %v1005 = vlaneseq
    %v1006 = vshrl.u32 %v1005, 7
    %v1007 = vsub.s32 %v1004, %v1006
    %v1008 = vrot.slane %v536, %v1007
    %v1010 = vunpack.c.l.s4 269488144
    %v1011 = vunpack.c.0.s8 %v1010
    %v1012 = vlaneseq
    %v1013 = vshrl.u32 %v1012, 7
    %v1014 = vsub.s32 %v1011, %v1013
    %v1015 = vrot.slane %v537, %v1014
    %v1017 = vunpack.c.l.s4 842150450
    %v1018 = vunpack.c.0.s8 %v1017
    %v1019 = vlaneseq
    %v1020 = vshrl.u32 %v1019, 7
    %v1021 = vsub.s32 %v1018, %v1020
    %v1022 = vrot.slane %v537, %v1021
    %v1024 = vunpack.c.l.s4 1414812756
    %v1025 = vunpack.c.0.s8 %v1024
    %v1026 = vlaneseq
    %v1027 = vshrl.u32 %v1026, 7
    %v1028 = vsub.s32 %v1025, %v1027
    %v1029 = vrot.slane %v537, %v1028
    %v1031 = vunpack.c.l.s4 1987475062
    %v1032 = vunpack.c.0.s8 %v1031
    %v1033 = vlaneseq
    %v1034 = vshrl.u32 %v1033, 7
    %v1035 = vsub.s32 %v1032, %v1034
    %v1036 = vrot.slane %v537, %v1035
    %v1038 = vunpack.c.l.s4 269488144
    %v1039 = vunpack.c.0.s8 %v1038
    %v1040 = vlaneseq
    %v1041 = vshrl.u32 %v1040, 7
    %v1042 = vsub.s32 %v1039, %v1041
    %v1043 = vrot.slane %v538, %v1042
    %v1045 = vunpack.c.l.s4 842150450
    %v1046 = vunpack.c.0.s8 %v1045
    %v1047 = vlaneseq
    %v1048 = vshrl.u32 %v1047, 7
    %v1049 = vsub.s32 %v1046, %v1048
    %v1050 = vrot.slane %v538, %v1049
    %v1052 = vunpack.c.l.s4 1414812756
    %v1053 = vunpack.c.0.s8 %v1052
    %v1054 = vlaneseq
    %v1055 = vshrl.u32 %v1054, 7
    %v1056 = vsub.s32 %v1053, %v1055
    %v1057 = vrot.slane %v538, %v1056
    %v1059 = vunpack.c.l.s4 1987475062
    %v1060 = vunpack.c.0.s8 %v1059
    %v1061 = vlaneseq
    %v1062 = vshrl.u32 %v1061, 7
    %v1063 = vsub.s32 %v1060, %v1062
    %v1064 = vrot.slane %v538, %v1063
    %v1066 = vunpack.c.l.s4 269488144
    %v1067 = vunpack.c.0.s8 %v1066
    %v1068 = vlaneseq
    %v1069 = vshrl.u32 %v1068, 7
    %v1070 = vsub.s32 %v1067, %v1069
    %v1071 = vrot.slane %v539, %v1070
    %v1073 = vunpack.c.l.s4 842150450
    %v1074 = vunpack.c.0.s8 %v1073
    %v1075 = vlaneseq
    %v1076 = vshrl.u32 %v1075, 7
    %v1077 = vsub.s32 %v1074, %v1076
    %v1078 = vrot.slane %v539, %v1077
    %v1080 = vunpack.c.l.s4 1414812756
    %v1081 = vunpack.c.0.s8 %v1080
    %v1082 = vlaneseq
    %v1083 = vshrl.u32 %v1082, 7
    %v1084 = vsub.s32 %v1081, %v1083
    %v1085 = vrot.slane %v539, %v1084
    %v1087 = vunpack.c.l.s4 1987475062
    %v1088 = vunpack.c.0.s8 %v1087
    %v1089 = vlaneseq
    %v1090 = vshrl.u32 %v1089, 7
    %v1091 = vsub.s32 %v1088, %v1090
    %v1092 = vrot.slane %v539, %v1091
    %v1094 = vunpack.c.l.s4 269488144
    %v1095 = vunpack.c.0.s8 %v1094
    %v1096 = vlaneseq
    %v1097 = vshrl.u32 %v1096, 7
    %v1098 = vsub.s32 %v1095, %v1097
    %v1099 = vrot.slane %v540, %v1098
    %v1101 = vunpack.c.l.s4 842150450
    %v1102 = vunpack.c.0.s8 %v1101
    %v1103 = vlaneseq
    %v1104 = vshrl.u32 %v1103, 7
    %v1105 = vsub.s32 %v1102, %v1104
    %v1106 = vrot.slane %v540, %v1105
    %v1108 = vunpack.c.l.s4 1414812756
    %v1109 = vunpack.c.0.s8 %v1108
    %v1110 = vlaneseq
    %v1111 = vshrl.u32 %v1110, 7
    %v1112 = vsub.s32 %v1109, %v1111
    %v1113 = vrot.slane %v540, %v1112
    %v1115 = vunpack.c.l.s4 1987475062
    %v1116 = vunpack.c.0.s8 %v1115
    %v1117 = vlaneseq
    %v1118 = vshrl.u32 %v1117, 7
    %v1119 = vsub.s32 %v1116, %v1118
    %v1120 = vrot.slane %v540, %v1119
    %v1122 = vunpack.c.l.s4 269488144
    %v1123 = vunpack.c.0.s8 %v1122
    %v1124 = vlaneseq
    %v1125 = vshrl.u32 %v1124, 7
    %v1126 = vsub.s32 %v1123, %v1125
    %v1127 = vrot.slane %v541, %v1126
    %v1129 = vunpack.c.l.s4 842150450
    %v1130 = vunpack.c.0.s8 %v1129
    %v1131 = vlaneseq
    %v1132 = vshrl.u32 %v1131, 7
    %v1133 = vsub.s32 %v1130, %v1132
    %v1134 = vrot.slane %v541, %v1133
    %v1136 = vunpack.c.l.s4 1414812756
    %v1137 = vunpack.c.0.s8 %v1136
    %v1138 = vlaneseq
    %v1139 = vshrl.u32 %v1138, 7
    %v1140 = vsub.s32 %v1137, %v1139
    %v1141 = vrot.slane %v541, %v1140
    %v1143 = vunpack.c.l.s4 1987475062
    %v1144 = vunpack.c.0.s8 %v1143
    %v1145 = vlaneseq
    %v1146 = vshrl.u32 %v1145, 7
    %v1147 = vsub.s32 %v1144, %v1146
    %v1148 = vrot.slane %v541, %v1147
    %v1150 = vunpack.c.l.s4 269488144
    %v1151 = vunpack.c.0.s8 %v1150
    %v1152 = vlaneseq
    %v1153 = vshrl.u32 %v1152, 7
    %v1154 = vsub.s32 %v1151, %v1153
    %v1155 = vrot.slane %v542, %v1154
    %v1157 = vunpack.c.l.s4 842150450
    %v1158 = vunpack.c.0.s8 %v1157
    %v1159 = vlaneseq
    %v1160 = vshrl.u32 %v1159, 7
    %v1161 = vsub.s32 %v1158, %v1160
    %v1162 = vrot.slane %v542, %v1161
    %v1164 = vunpack.c.l.s4 1414812756
    %v1165 = vunpack.c.0.s8 %v1164
    %v1166 = vlaneseq
    %v1167 = vshrl.u32 %v1166, 7
    %v1168 = vsub.s32 %v1165, %v1167
    %v1169 = vrot.slane %v542, %v1168
    %v1171 = vunpack.c.l.s4 1987475062
    %v1172 = vunpack.c.0.s8 %v1171
    %v1173 = vlaneseq
    %v1174 = vshrl.u32 %v1173, 7
    %v1175 = vsub.s32 %v1172, %v1174
    %v1176 = vrot.slane %v542, %v1175
    %v1178 = vunpack.c.l.s4 269488144
    %v1179 = vunpack.c.0.s8 %v1178
    %v1180 = vlaneseq
    %v1181 = vshrl.u32 %v1180, 7
    %v1182 = vsub.s32 %v1179, %v1181
    %v1183 = vrot.slane %v543, %v1182
    %v1185 = vunpack.c.l.s4 842150450
    %v1186 = vunpack.c.0.s8 %v1185
    %v1187 = vlaneseq
    %v1188 = vshrl.u32 %v1187, 7
    %v1189 = vsub.s32 %v1186, %v1188
    %v1190 = vrot.slane %v543, %v1189
    %v1192 = vunpack.c.l.s4 1414812756
    %v1193 = vunpack.c.0.s8 %v1192
    %v1194 = vlaneseq
    %v1195 = vshrl.u32 %v1194, 7
    %v1196 = vsub.s32 %v1193, %v1195
    %v1197 = vrot.slane %v543, %v1196
    %v1199 = vunpack.c.l.s4 1987475062
    %v1200 = vunpack.c.0.s8 %v1199
    %v1201 = vlaneseq
    %v1202 = vshrl.u32 %v1201, 7
    %v1203 = vsub.s32 %v1200, %v1202
    %v1204 = vrot.slane %v543, %v1203
    %v1206 = vunpack.c.l.s4 269488144
    %v1207 = vunpack.c.0.s8 %v1206
    %v1208 = vlaneseq
    %v1209 = vshrl.u32 %v1208, 7
    %v1210 = vsub.s32 %v1207, %v1209
    %v1211 = vrot.slane %v544, %v1210
    %v1213 = vunpack.c.l.s4 842150450
    %v1214 = vunpack.c.0.s8 %v1213
    %v1215 = vlaneseq
    %v1216 = vshrl.u32 %v1215, 7
    %v1217 = vsub.s32 %v1214, %v1216
    %v1218 = vrot.slane %v544, %v1217
    %v1220 = vunpack.c.l.s4 1414812756
    %v1221 = vunpack.c.0.s8 %v1220
    %v1222 = vlaneseq
    %v1223 = vshrl.u32 %v1222, 7
    %v1224 = vsub.s32 %v1221, %v1223
    %v1225 = vrot.slane %v544, %v1224
    %v1227 = vunpack.c.l.s4 1987475062
    %v1228 = vunpack.c.0.s8 %v1227
    %v1229 = vlaneseq
    %v1230 = vshrl.u32 %v1229, 7
    %v1231 = vsub.s32 %v1228, %v1230
    %v1232 = vrot.slane %v544, %v1231
    %v1234 = vunpack.c.l.s4 269488144
    %v1235 = vunpack.c.0.s8 %v1234
    %v1236 = vlaneseq
    %v1237 = vshrl.u32 %v1236, 7
    %v1238 = vsub.s32 %v1235, %v1237
    %v1239 = vrot.slane %v545, %v1238
    %v1241 = vunpack.c.l.s4 842150450
    %v1242 = vunpack.c.0.s8 %v1241
    %v1243 = vlaneseq
    %v1244 = vshrl.u32 %v1243, 7
    %v1245 = vsub.s32 %v1242, %v1244
    %v1246 = vrot.slane %v545, %v1245
    %v1248 = vunpack.c.l.s4 1414812756
    %v1249 = vunpack.c.0.s8 %v1248
    %v1250 = vlaneseq
    %v1251 = vshrl.u32 %v1250, 7
    %v1252 = vsub.s32 %v1249, %v1251
    %v1253 = vrot.slane %v545, %v1252
    %v1255 = vunpack.c.l.s4 1987475062
    %v1256 = vunpack.c.0.s8 %v1255
    %v1257 = vlaneseq
    %v1258 = vshrl.u32 %v1257, 7
    %v1259 = vsub.s32 %v1256, %v1258
    %v1260 = vrot.slane %v545, %v1259
    %v1262 = vunpack.c.l.s4 269488144
    %v1263 = vunpack.c.0.s8 %v1262
    %v1264 = vlaneseq
    %v1265 = vshrl.u32 %v1264, 7
    %v1266 = vsub.s32 %v1263, %v1265
    %v1267 = vrot.slane %v546, %v1266
    %v1269 = vunpack.c.l.s4 842150450
    %v1270 = vunpack.c.0.s8 %v1269
    %v1271 = vlaneseq
    %v1272 = vshrl.u32 %v1271, 7
    %v1273 = vsub.s32 %v1270, %v1272
    %v1274 = vrot.slane %v546, %v1273
    %v1276 = vunpack.c.l.s4 1414812756
    %v1277 = vunpack.c.0.s8 %v1276
    %v1278 = vlaneseq
    %v1279 = vshrl.u32 %v1278, 7
    %v1280 = vsub.s32 %v1277, %v1279
    %v1281 = vrot.slane %v546, %v1280
    %v1283 = vunpack.c.l.s4 1987475062
    %v1284 = vunpack.c.0.s8 %v1283
    %v1285 = vlaneseq
    %v1286 = vshrl.u32 %v1285, 7
    %v1287 = vsub.s32 %v1284, %v1286
    %v1288 = vrot.slane %v546, %v1287
    %v1290 = vunpack.c.l.s4 269488144
    %v1291 = vunpack.c.0.s8 %v1290
    %v1292 = vlaneseq
    %v1293 = vshrl.u32 %v1292, 7
    %v1294 = vsub.s32 %v1291, %v1293
    %v1295 = vrot.slane %v547, %v1294
    %v1297 = vunpack.c.l.s4 842150450
    %v1298 = vunpack.c.0.s8 %v1297
    %v1299 = vlaneseq
    %v1300 = vshrl.u32 %v1299, 7
    %v1301 = vsub.s32 %v1298, %v1300
    %v1302 = vrot.slane %v547, %v1301
    %v1304 = vunpack.c.l.s4 1414812756
    %v1305 = vunpack.c.0.s8 %v1304
    %v1306 = vlaneseq
    %v1307 = vshrl.u32 %v1306, 7
    %v1308 = vsub.s32 %v1305, %v1307
    %v1309 = vrot.slane %v547, %v1308
    %v1311 = vunpack.c.l.s4 1987475062
    %v1312 = vunpack.c.0.s8 %v1311
    %v1313 = vlaneseq
    %v1314 = vshrl.u32 %v1313, 7
    %v1315 = vsub.s32 %v1312, %v1314
    %v1316 = vrot.slane %v547, %v1315
    %v1318 = vunpack.c.l.s4 269488144
    %v1319 = vunpack.c.0.s8 %v1318
    %v1320 = vlaneseq
    %v1321 = vshrl.u32 %v1320, 7
    %v1322 = vsub.s32 %v1319, %v1321
    %v1323 = vrot.slane %v548, %v1322
    %v1325 = vunpack.c.l.s4 842150450
    %v1326 = vunpack.c.0.s8 %v1325
    %v1327 = vlaneseq
    %v1328 = vshrl.u32 %v1327, 7
    %v1329 = vsub.s32 %v1326, %v1328
    %v1330 = vrot.slane %v548, %v1329
    %v1332 = vunpack.c.l.s4 1414812756
    %v1333 = vunpack.c.0.s8 %v1332
    %v1334 = vlaneseq
    %v1335 = vshrl.u32 %v1334, 7
    %v1336 = vsub.s32 %v1333, %v1335
    %v1337 = vrot.slane %v548, %v1336
    %v1339 = vunpack.c.l.s4 1987475062
    %v1340 = vunpack.c.0.s8 %v1339
    %v1341 = vlaneseq
    %v1342 = vshrl.u32 %v1341, 7
    %v1343 = vsub.s32 %v1340, %v1342
    %v1344 = vrot.slane %v548, %v1343
    %v1346 = vunpack.c.l.s4 269488144
    %v1347 = vunpack.c.0.s8 %v1346
    %v1348 = vlaneseq
    %v1349 = vshrl.u32 %v1348, 7
    %v1350 = vsub.s32 %v1347, %v1349
    %v1351 = vrot.slane %v549, %v1350
    %v1353 = vunpack.c.l.s4 842150450
    %v1354 = vunpack.c.0.s8 %v1353
    %v1355 = vlaneseq
    %v1356 = vshrl.u32 %v1355, 7
    %v1357 = vsub.s32 %v1354, %v1356
    %v1358 = vrot.slane %v549, %v1357
    %v1360 = vunpack.c.l.s4 1414812756
    %v1361 = vunpack.c.0.s8 %v1360
    %v1362 = vlaneseq
    %v1363 = vshrl.u32 %v1362, 7
    %v1364 = vsub.s32 %v1361, %v1363
    %v1365 = vrot.slane %v549, %v1364
    %v1367 = vunpack.c.l.s4 1987475062
    %v1368 = vunpack.c.0.s8 %v1367
    %v1369 = vlaneseq
    %v1370 = vshrl.u32 %v1369, 7
    %v1371 = vsub.s32 %v1368, %v1370
    %v1372 = vrot.slane %v549, %v1371
    %v1374 = vunpack.c.l.s4 269488144
    %v1375 = vunpack.c.0.s8 %v1374
    %v1376 = vlaneseq
    %v1377 = vshrl.u32 %v1376, 7
    %v1378 = vsub.s32 %v1375, %v1377
    %v1379 = vrot.slane %v550, %v1378
    %v1381 = vunpack.c.l.s4 842150450
    %v1382 = vunpack.c.0.s8 %v1381
    %v1383 = vlaneseq
    %v1384 = vshrl.u32 %v1383, 7
    %v1385 = vsub.s32 %v1382, %v1384
    %v1386 = vrot.slane %v550, %v1385
    %v1388 = vunpack.c.l.s4 1414812756
    %v1389 = vunpack.c.0.s8 %v1388
    %v1390 = vlaneseq
    %v1391 = vshrl.u32 %v1390, 7
    %v1392 = vsub.s32 %v1389, %v1391
    %v1393 = vrot.slane %v550, %v1392
    %v1395 = vunpack.c.l.s4 1987475062
    %v1396 = vunpack.c.0.s8 %v1395
    %v1397 = vlaneseq
    %v1398 = vshrl.u32 %v1397, 7
    %v1399 = vsub.s32 %v1396, %v1398
    %v1400 = vrot.slane %v550, %v1399
    %v1402 = vunpack.c.l.s4 269488144
    %v1403 = vunpack.c.0.s8 %v1402
    %v1404 = vlaneseq
    %v1405 = vshrl.u32 %v1404, 7
    %v1406 = vsub.s32 %v1403, %v1405
    %v1407 = vrot.slane %v551, %v1406
    %v1409 = vunpack.c.l.s4 842150450
    %v1410 = vunpack.c.0.s8 %v1409
    %v1411 = vlaneseq
    %v1412 = vshrl.u32 %v1411, 7
    %v1413 = vsub.s32 %v1410, %v1412
    %v1414 = vrot.slane %v551, %v1413
    %v1416 = vunpack.c.l.s4 1414812756
    %v1417 = vunpack.c.0.s8 %v1416
    %v1418 = vlaneseq
    %v1419 = vshrl.u32 %v1418, 7
    %v1420 = vsub.s32 %v1417, %v1419
    %v1421 = vrot.slane %v551, %v1420
    %v1423 = vunpack.c.l.s4 1987475062
    %v1424 = vunpack.c.0.s8 %v1423
    %v1425 = vlaneseq
    %v1426 = vshrl.u32 %v1425, 7
    %v1427 = vsub.s32 %v1424, %v1426
    %v1428 = vrot.slane %v551, %v1427
    %v1430 = vunpack.c.l.s4 269488144
    %v1431 = vunpack.c.0.s8 %v1430
    %v1432 = vlaneseq
    %v1433 = vshrl.u32 %v1432, 7
    %v1434 = vsub.s32 %v1431, %v1433
    %v1435 = vrot.slane %v552, %v1434
    %v1437 = vunpack.c.l.s4 842150450
    %v1438 = vunpack.c.0.s8 %v1437
    %v1439 = vlaneseq
    %v1440 = vshrl.u32 %v1439, 7
    %v1441 = vsub.s32 %v1438, %v1440
    %v1442 = vrot.slane %v552, %v1441
    %v1444 = vunpack.c.l.s4 1414812756
    %v1445 = vunpack.c.0.s8 %v1444
    %v1446 = vlaneseq
    %v1447 = vshrl.u32 %v1446, 7
    %v1448 = vsub.s32 %v1445, %v1447
    %v1449 = vrot.slane %v552, %v1448
    %v1451 = vunpack.c.l.s4 1987475062
    %v1452 = vunpack.c.0.s8 %v1451
    %v1453 = vlaneseq
    %v1454 = vshrl.u32 %v1453, 7
    %v1455 = vsub.s32 %v1452, %v1454
    %v1456 = vrot.slane %v552, %v1455
    %v1458 = vunpack.c.l.s4 269488144
    %v1459 = vunpack.c.0.s8 %v1458
    %v1460 = vlaneseq
    %v1461 = vshrl.u32 %v1460, 7
    %v1462 = vsub.s32 %v1459, %v1461
    %v1463 = vrot.slane %v553, %v1462
    %v1465 = vunpack.c.l.s4 842150450
    %v1466 = vunpack.c.0.s8 %v1465
    %v1467 = vlaneseq
    %v1468 = vshrl.u32 %v1467, 7
    %v1469 = vsub.s32 %v1466, %v1468
    %v1470 = vrot.slane %v553, %v1469
    %v1472 = vunpack.c.l.s4 1414812756
    %v1473 = vunpack.c.0.s8 %v1472
    %v1474 = vlaneseq
    %v1475 = vshrl.u32 %v1474, 7
    %v1476 = vsub.s32 %v1473, %v1475
    %v1477 = vrot.slane %v553, %v1476
    %v1479 = vunpack.c.l.s4 1987475062
    %v1480 = vunpack.c.0.s8 %v1479
    %v1481 = vlaneseq
    %v1482 = vshrl.u32 %v1481, 7
    %v1483 = vsub.s32 %v1480, %v1482
    %v1484 = vrot.slane %v553, %v1483
    %v1486 = vunpack.c.l.s4 269488144
    %v1487 = vunpack.c.0.s8 %v1486
    %v1488 = vlaneseq
    %v1489 = vshrl.u32 %v1488, 7
    %v1490 = vsub.s32 %v1487, %v1489
    %v1491 = vrot.slane %v554, %v1490
    %v1493 = vunpack.c.l.s4 842150450
    %v1494 = vunpack.c.0.s8 %v1493
    %v1495 = vlaneseq
    %v1496 = vshrl.u32 %v1495, 7
    %v1497 = vsub.s32 %v1494, %v1496
    %v1498 = vrot.slane %v554, %v1497
    %v1500 = vunpack.c.l.s4 1414812756
    %v1501 = vunpack.c.0.s8 %v1500
    %v1502 = vlaneseq
    %v1503 = vshrl.u32 %v1502, 7
    %v1504 = vsub.s32 %v1501, %v1503
    %v1505 = vrot.slane %v554, %v1504
    %v1507 = vunpack.c.l.s4 1987475062
    %v1508 = vunpack.c.0.s8 %v1507
    %v1509 = vlaneseq
    %v1510 = vshrl.u32 %v1509, 7
    %v1511 = vsub.s32 %v1508, %v1510
    %v1512 = vrot.slane %v554, %v1511
    %v1514 = vunpack.c.l.s4 269488144
    %v1515 = vunpack.c.0.s8 %v1514
    %v1516 = vlaneseq
    %v1517 = vshrl.u32 %v1516, 7
    %v1518 = vsub.s32 %v1515, %v1517
    %v1519 = vrot.slane %v555, %v1518
    %v1521 = vunpack.c.l.s4 842150450
    %v1522 = vunpack.c.0.s8 %v1521
    %v1523 = vlaneseq
    %v1524 = vshrl.u32 %v1523, 7
    %v1525 = vsub.s32 %v1522, %v1524
    %v1526 = vrot.slane %v555, %v1525
    %v1528 = vunpack.c.l.s4 1414812756
    %v1529 = vunpack.c.0.s8 %v1528
    %v1530 = vlaneseq
    %v1531 = vshrl.u32 %v1530, 7
    %v1532 = vsub.s32 %v1529, %v1531
    %v1533 = vrot.slane %v555, %v1532
    %v1535 = vunpack.c.l.s4 1987475062
    %v1536 = vunpack.c.0.s8 %v1535
    %v1537 = vlaneseq
    %v1538 = vshrl.u32 %v1537, 7
    %v1539 = vsub.s32 %v1536, %v1538
    %v1540 = vrot.slane %v555, %v1539
    %v1542 = vunpack.c.l.s4 269488144
    %v1543 = vunpack.c.0.s8 %v1542
    %v1544 = vlaneseq
    %v1545 = vshrl.u32 %v1544, 7
    %v1546 = vsub.s32 %v1543, %v1545
    %v1547 = vrot.slane %v556, %v1546
    %v1549 = vunpack.c.l.s4 842150450
    %v1550 = vunpack.c.0.s8 %v1549
    %v1551 = vlaneseq
    %v1552 = vshrl.u32 %v1551, 7
    %v1553 = vsub.s32 %v1550, %v1552
    %v1554 = vrot.slane %v556, %v1553
    %v1556 = vunpack.c.l.s4 1414812756
    %v1557 = vunpack.c.0.s8 %v1556
    %v1558 = vlaneseq
    %v1559 = vshrl.u32 %v1558, 7
    %v1560 = vsub.s32 %v1557, %v1559
    %v1561 = vrot.slane %v556, %v1560
    %v1563 = vunpack.c.l.s4 1987475062
    %v1564 = vunpack.c.0.s8 %v1563
    %v1565 = vlaneseq
    %v1566 = vshrl.u32 %v1565, 7
    %v1567 = vsub.s32 %v1564, %v1566
    %v1568 = vrot.slane %v556, %v1567
    %v1570 = vunpack.c.l.s4 269488144
    %v1571 = vunpack.c.0.s8 %v1570
    %v1572 = vlaneseq
    %v1573 = vshrl.u32 %v1572, 7
    %v1574 = vsub.s32 %v1571, %v1573
    %v1575 = vrot.slane %v557, %v1574
    %v1577 = vunpack.c.l.s4 842150450
    %v1578 = vunpack.c.0.s8 %v1577
    %v1579 = vlaneseq
    %v1580 = vshrl.u32 %v1579, 7
    %v1581 = vsub.s32 %v1578, %v1580
    %v1582 = vrot.slane %v557, %v1581
    %v1584 = vunpack.c.l.s4 1414812756
    %v1585 = vunpack.c.0.s8 %v1584
    %v1586 = vlaneseq
    %v1587 = vshrl.u32 %v1586, 7
    %v1588 = vsub.s32 %v1585, %v1587
    %v1589 = vrot.slane %v557, %v1588
    %v1591 = vunpack.c.l.s4 1987475062
    %v1592 = vunpack.c.0.s8 %v1591
    %v1593 = vlaneseq
    %v1594 = vshrl.u32 %v1593, 7
    %v1595 = vsub.s32 %v1592, %v1594
    %v1596 = vrot.slane %v557, %v1595
    %v1598 = vunpack.c.l.s4 269488144
    %v1599 = vunpack.c.0.s8 %v1598
    %v1600 = vlaneseq
    %v1601 = vshrl.u32 %v1600, 7
    %v1602 = vsub.s32 %v1599, %v1601
    %v1603 = vrot.slane %v558, %v1602
    %v1605 = vunpack.c.l.s4 842150450
    %v1606 = vunpack.c.0.s8 %v1605
    %v1607 = vlaneseq
    %v1608 = vshrl.u32 %v1607, 7
    %v1609 = vsub.s32 %v1606, %v1608
    %v1610 = vrot.slane %v558, %v1609
    %v1612 = vunpack.c.l.s4 1414812756
    %v1613 = vunpack.c.0.s8 %v1612
    %v1614 = vlaneseq
    %v1615 = vshrl.u32 %v1614, 7
    %v1616 = vsub.s32 %v1613, %v1615
    %v1617 = vrot.slane %v558, %v1616
    %v1619 = vunpack.c.l.s4 1987475062
    %v1620 = vunpack.c.0.s8 %v1619
    %v1621 = vlaneseq
    %v1622 = vshrl.u32 %v1621, 7
    %v1623 = vsub.s32 %v1620, %v1622
    %v1624 = vrot.slane %v558, %v1623
    %v1626 = vunpack.c.l.s4 269488144
    %v1627 = vunpack.c.0.s8 %v1626
    %v1628 = vlaneseq
    %v1629 = vshrl.u32 %v1628, 7
    %v1630 = vsub.s32 %v1627, %v1629
    %v1631 = vrot.slane %v559, %v1630
    %v1633 = vunpack.c.l.s4 842150450
    %v1634 = vunpack.c.0.s8 %v1633
    %v1635 = vlaneseq
    %v1636 = vshrl.u32 %v1635, 7
    %v1637 = vsub.s32 %v1634, %v1636
    %v1638 = vrot.slane %v559, %v1637
    %v1640 = vunpack.c.l.s4 1414812756
    %v1641 = vunpack.c.0.s8 %v1640
    %v1642 = vlaneseq
    %v1643 = vshrl.u32 %v1642, 7
    %v1644 = vsub.s32 %v1641, %v1643
    %v1645 = vrot.slane %v559, %v1644
    %v1647 = vunpack.c.l.s4 1987475062
    %v1648 = vunpack.c.0.s8 %v1647
    %v1649 = vlaneseq
    %v1650 = vshrl.u32 %v1649, 7
    %v1651 = vsub.s32 %v1648, %v1650
    %v1652 = vrot.slane %v559, %v1651
    %v1654 = vunpack.c.l.s4 269488144
    %v1655 = vunpack.c.0.s8 %v1654
    %v1656 = vlaneseq
    %v1657 = vshrl.u32 %v1656, 7
    %v1658 = vsub.s32 %v1655, %v1657
    %v1659 = vrot.slane %v560, %v1658
    %v1661 = vunpack.c.l.s4 842150450
    %v1662 = vunpack.c.0.s8 %v1661
    %v1663 = vlaneseq
    %v1664 = vshrl.u32 %v1663, 7
    %v1665 = vsub.s32 %v1662, %v1664
    %v1666 = vrot.slane %v560, %v1665
    %v1668 = vunpack.c.l.s4 1414812756
    %v1669 = vunpack.c.0.s8 %v1668
    %v1670 = vlaneseq
    %v1671 = vshrl.u32 %v1670, 7
    %v1672 = vsub.s32 %v1669, %v1671
    %v1673 = vrot.slane %v560, %v1672
    %v1675 = vunpack.c.l.s4 1987475062
    %v1676 = vunpack.c.0.s8 %v1675
    %v1677 = vlaneseq
    %v1678 = vshrl.u32 %v1677, 7
    %v1679 = vsub.s32 %v1676, %v1678
    %v1680 = vrot.slane %v560, %v1679
    %v1682 = vunpack.c.l.s4 269488144
    %v1683 = vunpack.c.0.s8 %v1682
    %v1684 = vlaneseq
    %v1685 = vshrl.u32 %v1684, 7
    %v1686 = vsub.s32 %v1683, %v1685
    %v1687 = vrot.slane %v561, %v1686
    %v1689 = vunpack.c.l.s4 842150450
    %v1690 = vunpack.c.0.s8 %v1689
    %v1691 = vlaneseq
    %v1692 = vshrl.u32 %v1691, 7
    %v1693 = vsub.s32 %v1690, %v1692
    %v1694 = vrot.slane %v561, %v1693
    %v1696 = vunpack.c.l.s4 1414812756
    %v1697 = vunpack.c.0.s8 %v1696
    %v1698 = vlaneseq
    %v1699 = vshrl.u32 %v1698, 7
    %v1700 = vsub.s32 %v1697, %v1699
    %v1701 = vrot.slane %v561, %v1700
    %v1703 = vunpack.c.l.s4 1987475062
    %v1704 = vunpack.c.0.s8 %v1703
    %v1705 = vlaneseq
    %v1706 = vshrl.u32 %v1705, 7
    %v1707 = vsub.s32 %v1704, %v1706
    %v1708 = vrot.slane %v561, %v1707
    %v1710 = vunpack.c.l.s4 269488144
    %v1711 = vunpack.c.0.s8 %v1710
    %v1712 = vlaneseq
    %v1713 = vshrl.u32 %v1712, 7
    %v1714 = vsub.s32 %v1711, %v1713
    %v1715 = vrot.slane %v562, %v1714
    %v1717 = vunpack.c.l.s4 842150450
    %v1718 = vunpack.c.0.s8 %v1717
    %v1719 = vlaneseq
    %v1720 = vshrl.u32 %v1719, 7
    %v1721 = vsub.s32 %v1718, %v1720
    %v1722 = vrot.slane %v562, %v1721
    %v1724 = vunpack.c.l.s4 1414812756
    %v1725 = vunpack.c.0.s8 %v1724
    %v1726 = vlaneseq
    %v1727 = vshrl.u32 %v1726, 7
    %v1728 = vsub.s32 %v1725, %v1727
    %v1729 = vrot.slane %v562, %v1728
    %v1731 = vunpack.c.l.s4 1987475062
    %v1732 = vunpack.c.0.s8 %v1731
    %v1733 = vlaneseq
    %v1734 = vshrl.u32 %v1733, 7
    %v1735 = vsub.s32 %v1732, %v1734
    %v1736 = vrot.slane %v562, %v1735
    %v1738 = vunpack.c.l.s4 269488144
    %v1739 = vunpack.c.0.s8 %v1738
    %v1740 = vlaneseq
    %v1741 = vshrl.u32 %v1740, 7
    %v1742 = vsub.s32 %v1739, %v1741
    %v1743 = vrot.slane %v563, %v1742
    %v1745 = vunpack.c.l.s4 842150450
    %v1746 = vunpack.c.0.s8 %v1745
    %v1747 = vlaneseq
    %v1748 = vshrl.u32 %v1747, 7
    %v1749 = vsub.s32 %v1746, %v1748
    %v1750 = vrot.slane %v563, %v1749
    %v1752 = vunpack.c.l.s4 1414812756
    %v1753 = vunpack.c.0.s8 %v1752
    %v1754 = vlaneseq
    %v1755 = vshrl.u32 %v1754, 7
    %v1756 = vsub.s32 %v1753, %v1755
    %v1757 = vrot.slane %v563, %v1756
    %v1759 = vunpack.c.l.s4 1987475062
    %v1760 = vunpack.c.0.s8 %v1759
    %v1761 = vlaneseq
    %v1762 = vshrl.u32 %v1761, 7
    %v1763 = vsub.s32 %v1760, %v1762
    %v1764 = vrot.slane %v563, %v1763
    %v1766 = vunpack.c.l.s4 269488144
    %v1767 = vunpack.c.0.s8 %v1766
    %v1768 = vlaneseq
    %v1769 = vshrl.u32 %v1768, 7
    %v1770 = vsub.s32 %v1767, %v1769
    %v1771 = vrot.slane %v564, %v1770
    %v1773 = vunpack.c.l.s4 842150450
    %v1774 = vunpack.c.0.s8 %v1773
    %v1775 = vlaneseq
    %v1776 = vshrl.u32 %v1775, 7
    %v1777 = vsub.s32 %v1774, %v1776
    %v1778 = vrot.slane %v564, %v1777
    %v1780 = vunpack.c.l.s4 1414812756
    %v1781 = vunpack.c.0.s8 %v1780
    %v1782 = vlaneseq
    %v1783 = vshrl.u32 %v1782, 7
    %v1784 = vsub.s32 %v1781, %v1783
    %v1785 = vrot.slane %v564, %v1784
    %v1787 = vunpack.c.l.s4 1987475062
    %v1788 = vunpack.c.0.s8 %v1787
    %v1789 = vlaneseq
    %v1790 = vshrl.u32 %v1789, 7
    %v1791 = vsub.s32 %v1788, %v1790
    %v1792 = vrot.slane %v564, %v1791
    %v1794 = vunpack.c.l.s4 269488144
    %v1795 = vunpack.c.0.s8 %v1794
    %v1796 = vlaneseq
    %v1797 = vshrl.u32 %v1796, 7
    %v1798 = vsub.s32 %v1795, %v1797
    %v1799 = vrot.slane %v565, %v1798
    %v1801 = vunpack.c.l.s4 842150450
    %v1802 = vunpack.c.0.s8 %v1801
    %v1803 = vlaneseq
    %v1804 = vshrl.u32 %v1803, 7
    %v1805 = vsub.s32 %v1802, %v1804
    %v1806 = vrot.slane %v565, %v1805
    %v1808 = vunpack.c.l.s4 1414812756
    %v1809 = vunpack.c.0.s8 %v1808
    %v1810 = vlaneseq
    %v1811 = vshrl.u32 %v1810, 7
    %v1812 = vsub.s32 %v1809, %v1811
    %v1813 = vrot.slane %v565, %v1812
    %v1815 = vunpack.c.l.s4 1987475062
    %v1816 = vunpack.c.0.s8 %v1815
    %v1817 = vlaneseq
    %v1818 = vshrl.u32 %v1817, 7
    %v1819 = vsub.s32 %v1816, %v1818
    %v1820 = vrot.slane %v565, %v1819
    %v1822 = vunpack.c.l.s4 269488144
    %v1823 = vunpack.c.0.s8 %v1822
    %v1824 = vlaneseq
    %v1825 = vshrl.u32 %v1824, 7
    %v1826 = vsub.s32 %v1823, %v1825
    %v1827 = vrot.slane %v566, %v1826
    %v1829 = vunpack.c.l.s4 842150450
    %v1830 = vunpack.c.0.s8 %v1829
    %v1831 = vlaneseq
    %v1832 = vshrl.u32 %v1831, 7
    %v1833 = vsub.s32 %v1830, %v1832
    %v1834 = vrot.slane %v566, %v1833
    %v1836 = vunpack.c.l.s4 1414812756
    %v1837 = vunpack.c.0.s8 %v1836
    %v1838 = vlaneseq
    %v1839 = vshrl.u32 %v1838, 7
    %v1840 = vsub.s32 %v1837, %v1839
    %v1841 = vrot.slane %v566, %v1840
    %v1843 = vunpack.c.l.s4 1987475062
    %v1844 = vunpack.c.0.s8 %v1843
    %v1845 = vlaneseq
    %v1846 = vshrl.u32 %v1845, 7
    %v1847 = vsub.s32 %v1844, %v1846
    %v1848 = vrot.slane %v566, %v1847
    %v1850 = vunpack.c.l.s4 269488144
    %v1851 = vunpack.c.0.s8 %v1850
    %v1852 = vlaneseq
    %v1853 = vshrl.u32 %v1852, 7
    %v1854 = vsub.s32 %v1851, %v1853
    %v1855 = vrot.slane %v567, %v1854
    %v1857 = vunpack.c.l.s4 842150450
    %v1858 = vunpack.c.0.s8 %v1857
    %v1859 = vlaneseq
    %v1860 = vshrl.u32 %v1859, 7
    %v1861 = vsub.s32 %v1858, %v1860
    %v1862 = vrot.slane %v567, %v1861
    %v1864 = vunpack.c.l.s4 1414812756
    %v1865 = vunpack.c.0.s8 %v1864
    %v1866 = vlaneseq
    %v1867 = vshrl.u32 %v1866, 7
    %v1868 = vsub.s32 %v1865, %v1867
    %v1869 = vrot.slane %v567, %v1868
    %v1871 = vunpack.c.l.s4 1987475062
    %v1872 = vunpack.c.0.s8 %v1871
    %v1873 = vlaneseq
    %v1874 = vshrl.u32 %v1873, 7
    %v1875 = vsub.s32 %v1872, %v1874
    %v1876 = vrot.slane %v567, %v1875
    %v1878 = vunpack.c.l.s4 269488144
    %v1879 = vunpack.c.0.s8 %v1878
    %v1880 = vlaneseq
    %v1881 = vshrl.u32 %v1880, 7
    %v1882 = vsub.s32 %v1879, %v1881
    %v1883 = vrot.slane %v568, %v1882
    %v1885 = vunpack.c.l.s4 842150450
    %v1886 = vunpack.c.0.s8 %v1885
    %v1887 = vlaneseq
    %v1888 = vshrl.u32 %v1887, 7
    %v1889 = vsub.s32 %v1886, %v1888
    %v1890 = vrot.slane %v568, %v1889
    %v1892 = vunpack.c.l.s4 1414812756
    %v1893 = vunpack.c.0.s8 %v1892
    %v1894 = vlaneseq
    %v1895 = vshrl.u32 %v1894, 7
    %v1896 = vsub.s32 %v1893, %v1895
    %v1897 = vrot.slane %v568, %v1896
    %v1899 = vunpack.c.l.s4 1987475062
    %v1900 = vunpack.c.0.s8 %v1899
    %v1901 = vlaneseq
    %v1902 = vshrl.u32 %v1901, 7
    %v1903 = vsub.s32 %v1900, %v1902
    %v1904 = vrot.slane %v568, %v1903
    %v1906 = vunpack.c.l.s4 269488144
    %v1907 = vunpack.c.0.s8 %v1906
    %v1908 = vlaneseq
    %v1909 = vshrl.u32 %v1908, 7
    %v1910 = vsub.s32 %v1907, %v1909
    %v1911 = vrot.slane %v569, %v1910
    %v1913 = vunpack.c.l.s4 842150450
    %v1914 = vunpack.c.0.s8 %v1913
    %v1915 = vlaneseq
    %v1916 = vshrl.u32 %v1915, 7
    %v1917 = vsub.s32 %v1914, %v1916
    %v1918 = vrot.slane %v569, %v1917
    %v1920 = vunpack.c.l.s4 1414812756
    %v1921 = vunpack.c.0.s8 %v1920
    %v1922 = vlaneseq
    %v1923 = vshrl.u32 %v1922, 7
    %v1924 = vsub.s32 %v1921, %v1923
    %v1925 = vrot.slane %v569, %v1924
    %v1927 = vunpack.c.l.s4 1987475062
    %v1928 = vunpack.c.0.s8 %v1927
    %v1929 = vlaneseq
    %v1930 = vshrl.u32 %v1929, 7
    %v1931 = vsub.s32 %v1928, %v1930
    %v1932 = vrot.slane %v569, %v1931
    %v1934 = vunpack.c.l.s4 269488144
    %v1935 = vunpack.c.0.s8 %v1934
    %v1936 = vlaneseq
    %v1937 = vshrl.u32 %v1936, 7
    %v1938 = vsub.s32 %v1935, %v1937
    %v1939 = vrot.slane %v570, %v1938
    %v1941 = vunpack.c.l.s4 842150450
    %v1942 = vunpack.c.0.s8 %v1941
    %v1943 = vlaneseq
    %v1944 = vshrl.u32 %v1943, 7
    %v1945 = vsub.s32 %v1942, %v1944
    %v1946 = vrot.slane %v570, %v1945
    %v1948 = vunpack.c.l.s4 1414812756
    %v1949 = vunpack.c.0.s8 %v1948
    %v1950 = vlaneseq
    %v1951 = vshrl.u32 %v1950, 7
    %v1952 = vsub.s32 %v1949, %v1951
    %v1953 = vrot.slane %v570, %v1952
    %v1955 = vunpack.c.l.s4 1987475062
    %v1956 = vunpack.c.0.s8 %v1955
    %v1957 = vlaneseq
    %v1958 = vshrl.u32 %v1957, 7
    %v1959 = vsub.s32 %v1956, %v1958
    %v1960 = vrot.slane %v570, %v1959
    %v1962 = vunpack.c.l.s4 269488144
    %v1963 = vunpack.c.0.s8 %v1962
    %v1964 = vlaneseq
    %v1965 = vshrl.u32 %v1964, 7
    %v1966 = vsub.s32 %v1963, %v1965
    %v1967 = vrot.slane %v571, %v1966
    %v1969 = vunpack.c.l.s4 842150450
    %v1970 = vunpack.c.0.s8 %v1969
    %v1971 = vlaneseq
    %v1972 = vshrl.u32 %v1971, 7
    %v1973 = vsub.s32 %v1970, %v1972
    %v1974 = vrot.slane %v571, %v1973
    %v1976 = vunpack.c.l.s4 1414812756
    %v1977 = vunpack.c.0.s8 %v1976
    %v1978 = vlaneseq
    %v1979 = vshrl.u32 %v1978, 7
    %v1980 = vsub.s32 %v1977, %v1979
    %v1981 = vrot.slane %v571, %v1980
    %v1983 = vunpack.c.l.s4 1987475062
    %v1984 = vunpack.c.0.s8 %v1983
    %v1985 = vlaneseq
    %v1986 = vshrl.u32 %v1985, 7
    %v1987 = vsub.s32 %v1984, %v1986
    %v1988 = vrot.slane %v571, %v1987
    %v1990 = vunpack.c.l.s4 269488144
    %v1991 = vunpack.c.0.s8 %v1990
    %v1992 = vlaneseq
    %v1993 = vshrl.u32 %v1992, 7
    %v1994 = vsub.s32 %v1991, %v1993
    %v1995 = vrot.slane %v572, %v1994
    %v1997 = vunpack.c.l.s4 842150450
    %v1998 = vunpack.c.0.s8 %v1997
    %v1999 = vlaneseq
    %v2000 = vshrl.u32 %v1999, 7
    %v2001 = vsub.s32 %v1998, %v2000
    %v2002 = vrot.slane %v572, %v2001
    %v2004 = vunpack.c.l.s4 1414812756
    %v2005 = vunpack.c.0.s8 %v2004
    %v2006 = vlaneseq
    %v2007 = vshrl.u32 %v2006, 7
    %v2008 = vsub.s32 %v2005, %v2007
    %v2009 = vrot.slane %v572, %v2008
    %v2011 = vunpack.c.l.s4 1987475062
    %v2012 = vunpack.c.0.s8 %v2011
    %v2013 = vlaneseq
    %v2014 = vshrl.u32 %v2013, 7
    %v2015 = vsub.s32 %v2012, %v2014
    %v2016 = vrot.slane %v572, %v2015
    %v2018 = vunpack.c.l.s4 269488144
    %v2019 = vunpack.c.0.s8 %v2018
    %v2020 = vlaneseq
    %v2021 = vshrl.u32 %v2020, 7
    %v2022 = vsub.s32 %v2019, %v2021
    %v2023 = vrot.slane %v573, %v2022
    %v2025 = vunpack.c.l.s4 842150450
    %v2026 = vunpack.c.0.s8 %v2025
    %v2027 = vlaneseq
    %v2028 = vshrl.u32 %v2027, 7
    %v2029 = vsub.s32 %v2026, %v2028
    %v2030 = vrot.slane %v573, %v2029
    %v2032 = vunpack.c.l.s4 1414812756
    %v2033 = vunpack.c.0.s8 %v2032
    %v2034 = vlaneseq
    %v2035 = vshrl.u32 %v2034, 7
    %v2036 = vsub.s32 %v2033, %v2035
    %v2037 = vrot.slane %v573, %v2036
    %v2039 = vunpack.c.l.s4 1987475062
    %v2040 = vunpack.c.0.s8 %v2039
    %v2041 = vlaneseq
    %v2042 = vshrl.u32 %v2041, 7
    %v2043 = vsub.s32 %v2040, %v2042
    %v2044 = vrot.slane %v573, %v2043
    %v2046 = vunpack.c.l.s4 269488144
    %v2047 = vunpack.c.0.s8 %v2046
    %v2048 = vlaneseq
    %v2049 = vshrl.u32 %v2048, 7
    %v2050 = vsub.s32 %v2047, %v2049
    %v2051 = vrot.slane %v574, %v2050
    %v2053 = vunpack.c.l.s4 842150450
    %v2054 = vunpack.c.0.s8 %v2053
    %v2055 = vlaneseq
    %v2056 = vshrl.u32 %v2055, 7
    %v2057 = vsub.s32 %v2054, %v2056
    %v2058 = vrot.slane %v574, %v2057
    %v2060 = vunpack.c.l.s4 1414812756
    %v2061 = vunpack.c.0.s8 %v2060
    %v2062 = vlaneseq
    %v2063 = vshrl.u32 %v2062, 7
    %v2064 = vsub.s32 %v2061, %v2063
    %v2065 = vrot.slane %v574, %v2064
    %v2067 = vunpack.c.l.s4 1987475062
    %v2068 = vunpack.c.0.s8 %v2067
    %v2069 = vlaneseq
    %v2070 = vshrl.u32 %v2069, 7
    %v2071 = vsub.s32 %v2068, %v2070
    %v2072 = vrot.slane %v574, %v2071
    %v2074 = vunpack.c.l.s4 269488144
    %v2075 = vunpack.c.0.s8 %v2074
    %v2076 = vlaneseq
    %v2077 = vshrl.u32 %v2076, 7
    %v2078 = vsub.s32 %v2075, %v2077
    %v2079 = vrot.slane %v575, %v2078
    %v2081 = vunpack.c.l.s4 842150450
    %v2082 = vunpack.c.0.s8 %v2081
    %v2083 = vlaneseq
    %v2084 = vshrl.u32 %v2083, 7
    %v2085 = vsub.s32 %v2082, %v2084
    %v2086 = vrot.slane %v575, %v2085
    %v2088 = vunpack.c.l.s4 1414812756
    %v2089 = vunpack.c.0.s8 %v2088
    %v2090 = vlaneseq
    %v2091 = vshrl.u32 %v2090, 7
    %v2092 = vsub.s32 %v2089, %v2091
    %v2093 = vrot.slane %v575, %v2092
    %v2095 = vunpack.c.l.s4 1987475062
    %v2096 = vunpack.c.0.s8 %v2095
    %v2097 = vlaneseq
    %v2098 = vshrl.u32 %v2097, 7
    %v2099 = vsub.s32 %v2096, %v2098
    %v2100 = vrot.slane %v575, %v2099
    %v2102 = vunpack.c.l.s4 269488144
    %v2103 = vunpack.c.0.s8 %v2102
    %v2104 = vlaneseq
    %v2105 = vshrl.u32 %v2104, 7
    %v2106 = vsub.s32 %v2103, %v2105
    %v2107 = vrot.slane %v576, %v2106
    %v2109 = vunpack.c.l.s4 842150450
    %v2110 = vunpack.c.0.s8 %v2109
    %v2111 = vlaneseq
    %v2112 = vshrl.u32 %v2111, 7
    %v2113 = vsub.s32 %v2110, %v2112
    %v2114 = vrot.slane %v576, %v2113
    %v2116 = vunpack.c.l.s4 1414812756
    %v2117 = vunpack.c.0.s8 %v2116
    %v2118 = vlaneseq
    %v2119 = vshrl.u32 %v2118, 7
    %v2120 = vsub.s32 %v2117, %v2119
    %v2121 = vrot.slane %v576, %v2120
    %v2123 = vunpack.c.l.s4 1987475062
    %v2124 = vunpack.c.0.s8 %v2123
    %v2125 = vlaneseq
    %v2126 = vshrl.u32 %v2125, 7
    %v2127 = vsub.s32 %v2124, %v2126
    %v2128 = vrot.slane %v576, %v2127
    %v2130 = vunpack.c.l.s4 269488144
    %v2131 = vunpack.c.0.s8 %v2130
    %v2132 = vlaneseq
    %v2133 = vshrl.u32 %v2132, 7
    %v2134 = vsub.s32 %v2131, %v2133
    %v2135 = vrot.slane %v577, %v2134
    %v2137 = vunpack.c.l.s4 842150450
    %v2138 = vunpack.c.0.s8 %v2137
    %v2139 = vlaneseq
    %v2140 = vshrl.u32 %v2139, 7
    %v2141 = vsub.s32 %v2138, %v2140
    %v2142 = vrot.slane %v577, %v2141
    %v2144 = vunpack.c.l.s4 1414812756
    %v2145 = vunpack.c.0.s8 %v2144
    %v2146 = vlaneseq
    %v2147 = vshrl.u32 %v2146, 7
    %v2148 = vsub.s32 %v2145, %v2147
    %v2149 = vrot.slane %v577, %v2148
    %v2151 = vunpack.c.l.s4 1987475062
    %v2152 = vunpack.c.0.s8 %v2151
    %v2153 = vlaneseq
    %v2154 = vshrl.u32 %v2153, 7
    %v2155 = vsub.s32 %v2152, %v2154
    %v2156 = vrot.slane %v577, %v2155
    %v2158 = vunpack.c.l.s4 269488144
    %v2159 = vunpack.c.0.s8 %v2158
    %v2160 = vlaneseq
    %v2161 = vshrl.u32 %v2160, 7
    %v2162 = vsub.s32 %v2159, %v2161
    %v2163 = vrot.slane %v578, %v2162
    %v2165 = vunpack.c.l.s4 842150450
    %v2166 = vunpack.c.0.s8 %v2165
    %v2167 = vlaneseq
    %v2168 = vshrl.u32 %v2167, 7
    %v2169 = vsub.s32 %v2166, %v2168
    %v2170 = vrot.slane %v578, %v2169
    %v2172 = vunpack.c.l.s4 1414812756
    %v2173 = vunpack.c.0.s8 %v2172
    %v2174 = vlaneseq
    %v2175 = vshrl.u32 %v2174, 7
    %v2176 = vsub.s32 %v2173, %v2175
    %v2177 = vrot.slane %v578, %v2176
    %v2179 = vunpack.c.l.s4 1987475062
    %v2180 = vunpack.c.0.s8 %v2179
    %v2181 = vlaneseq
    %v2182 = vshrl.u32 %v2181, 7
    %v2183 = vsub.s32 %v2180, %v2182
    %v2184 = vrot.slane %v578, %v2183
    %v2186 = vunpack.c.l.s4 269488144
    %v2187 = vunpack.c.0.s8 %v2186
    %v2188 = vlaneseq
    %v2189 = vshrl.u32 %v2188, 7
    %v2190 = vsub.s32 %v2187, %v2189
    %v2191 = vrot.slane %v579, %v2190
    %v2193 = vunpack.c.l.s4 842150450
    %v2194 = vunpack.c.0.s8 %v2193
    %v2195 = vlaneseq
    %v2196 = vshrl.u32 %v2195, 7
    %v2197 = vsub.s32 %v2194, %v2196
    %v2198 = vrot.slane %v579, %v2197
    %v2200 = vunpack.c.l.s4 1414812756
    %v2201 = vunpack.c.0.s8 %v2200
    %v2202 = vlaneseq
    %v2203 = vshrl.u32 %v2202, 7
    %v2204 = vsub.s32 %v2201, %v2203
    %v2205 = vrot.slane %v579, %v2204
    %v2207 = vunpack.c.l.s4 1987475062
    %v2208 = vunpack.c.0.s8 %v2207
    %v2209 = vlaneseq
    %v2210 = vshrl.u32 %v2209, 7
    %v2211 = vsub.s32 %v2208, %v2210
    %v2212 = vrot.slane %v579, %v2211
    %v2214 = vunpack.c.l.s4 269488144
    %v2215 = vunpack.c.0.s8 %v2214
    %v2216 = vlaneseq
    %v2217 = vshrl.u32 %v2216, 7
    %v2218 = vsub.s32 %v2215, %v2217
    %v2219 = vrot.slane %v580, %v2218
    %v2221 = vunpack.c.l.s4 842150450
    %v2222 = vunpack.c.0.s8 %v2221
    %v2223 = vlaneseq
    %v2224 = vshrl.u32 %v2223, 7
    %v2225 = vsub.s32 %v2222, %v2224
    %v2226 = vrot.slane %v580, %v2225
    %v2228 = vunpack.c.l.s4 1414812756
    %v2229 = vunpack.c.0.s8 %v2228
    %v2230 = vlaneseq
    %v2231 = vshrl.u32 %v2230, 7
    %v2232 = vsub.s32 %v2229, %v2231
    %v2233 = vrot.slane %v580, %v2232
    %v2235 = vunpack.c.l.s4 1987475062
    %v2236 = vunpack.c.0.s8 %v2235
    %v2237 = vlaneseq
    %v2238 = vshrl.u32 %v2237, 7
    %v2239 = vsub.s32 %v2236, %v2238
    %v2240 = vrot.slane %v580, %v2239
    %v2242 = vunpack.c.l.s4 269488144
    %v2243 = vunpack.c.0.s8 %v2242
    %v2244 = vlaneseq
    %v2245 = vshrl.u32 %v2244, 7
    %v2246 = vsub.s32 %v2243, %v2245
    %v2247 = vrot.slane %v581, %v2246
    %v2249 = vunpack.c.l.s4 842150450
    %v2250 = vunpack.c.0.s8 %v2249
    %v2251 = vlaneseq
    %v2252 = vshrl.u32 %v2251, 7
    %v2253 = vsub.s32 %v2250, %v2252
    %v2254 = vrot.slane %v581, %v2253
    %v2256 = vunpack.c.l.s4 1414812756
    %v2257 = vunpack.c.0.s8 %v2256
    %v2258 = vlaneseq
    %v2259 = vshrl.u32 %v2258, 7
    %v2260 = vsub.s32 %v2257, %v2259
    %v2261 = vrot.slane %v581, %v2260
    %v2263 = vunpack.c.l.s4 1987475062
    %v2264 = vunpack.c.0.s8 %v2263
    %v2265 = vlaneseq
    %v2266 = vshrl.u32 %v2265, 7
    %v2267 = vsub.s32 %v2264, %v2266
    %v2268 = vrot.slane %v581, %v2267
    %v2270 = vunpack.c.l.s4 269488144
    %v2271 = vunpack.c.0.s8 %v2270
    %v2272 = vlaneseq
    %v2273 = vshrl.u32 %v2272, 7
    %v2274 = vsub.s32 %v2271, %v2273
    %v2275 = vrot.slane %v582, %v2274
    %v2277 = vunpack.c.l.s4 842150450
    %v2278 = vunpack.c.0.s8 %v2277
    %v2279 = vlaneseq
    %v2280 = vshrl.u32 %v2279, 7
    %v2281 = vsub.s32 %v2278, %v2280
    %v2282 = vrot.slane %v582, %v2281
    %v2284 = vunpack.c.l.s4 1414812756
    %v2285 = vunpack.c.0.s8 %v2284
    %v2286 = vlaneseq
    %v2287 = vshrl.u32 %v2286, 7
    %v2288 = vsub.s32 %v2285, %v2287
    %v2289 = vrot.slane %v582, %v2288
    %v2291 = vunpack.c.l.s4 1987475062
    %v2292 = vunpack.c.0.s8 %v2291
    %v2293 = vlaneseq
    %v2294 = vshrl.u32 %v2293, 7
    %v2295 = vsub.s32 %v2292, %v2294
    %v2296 = vrot.slane %v582, %v2295
    %v2298 = vunpack.c.l.s4 269488144
    %v2299 = vunpack.c.0.s8 %v2298
    %v2300 = vlaneseq
    %v2301 = vshrl.u32 %v2300, 7
    %v2302 = vsub.s32 %v2299, %v2301
    %v2303 = vrot.slane %v583, %v2302
    %v2305 = vunpack.c.l.s4 842150450
    %v2306 = vunpack.c.0.s8 %v2305
    %v2307 = vlaneseq
    %v2308 = vshrl.u32 %v2307, 7
    %v2309 = vsub.s32 %v2306, %v2308
    %v2310 = vrot.slane %v583, %v2309
    %v2312 = vunpack.c.l.s4 1414812756
    %v2313 = vunpack.c.0.s8 %v2312
    %v2314 = vlaneseq
    %v2315 = vshrl.u32 %v2314, 7
    %v2316 = vsub.s32 %v2313, %v2315
    %v2317 = vrot.slane %v583, %v2316
    %v2319 = vunpack.c.l.s4 1987475062
    %v2320 = vunpack.c.0.s8 %v2319
    %v2321 = vlaneseq
    %v2322 = vshrl.u32 %v2321, 7
    %v2323 = vsub.s32 %v2320, %v2322
    %v2324 = vrot.slane %v583, %v2323
    %v2326 = vunpack.c.l.s4 269488144
    %v2327 = vunpack.c.0.s8 %v2326
    %v2328 = vlaneseq
    %v2329 = vshrl.u32 %v2328, 7
    %v2330 = vsub.s32 %v2327, %v2329
    %v2331 = vrot.slane %v584, %v2330
    %v2333 = vunpack.c.l.s4 842150450
    %v2334 = vunpack.c.0.s8 %v2333
    %v2335 = vlaneseq
    %v2336 = vshrl.u32 %v2335, 7
    %v2337 = vsub.s32 %v2334, %v2336
    %v2338 = vrot.slane %v584, %v2337
    %v2340 = vunpack.c.l.s4 1414812756
    %v2341 = vunpack.c.0.s8 %v2340
    %v2342 = vlaneseq
    %v2343 = vshrl.u32 %v2342, 7
    %v2344 = vsub.s32 %v2341, %v2343
    %v2345 = vrot.slane %v584, %v2344
    %v2347 = vunpack.c.l.s4 1987475062
    %v2348 = vunpack.c.0.s8 %v2347
    %v2349 = vlaneseq
    %v2350 = vshrl.u32 %v2349, 7
    %v2351 = vsub.s32 %v2348, %v2350
    %v2352 = vrot.slane %v584, %v2351
    %v2354 = vunpack.c.l.s4 269488144
    %v2355 = vunpack.c.0.s8 %v2354
    %v2356 = vlaneseq
    %v2357 = vshrl.u32 %v2356, 7
    %v2358 = vsub.s32 %v2355, %v2357
    %v2359 = vrot.slane %v585, %v2358
    %v2361 = vunpack.c.l.s4 842150450
    %v2362 = vunpack.c.0.s8 %v2361
    %v2363 = vlaneseq
    %v2364 = vshrl.u32 %v2363, 7
    %v2365 = vsub.s32 %v2362, %v2364
    %v2366 = vrot.slane %v585, %v2365
    %v2368 = vunpack.c.l.s4 1414812756
    %v2369 = vunpack.c.0.s8 %v2368
    %v2370 = vlaneseq
    %v2371 = vshrl.u32 %v2370, 7
    %v2372 = vsub.s32 %v2369, %v2371
    %v2373 = vrot.slane %v585, %v2372
    %v2375 = vunpack.c.l.s4 1987475062
    %v2376 = vunpack.c.0.s8 %v2375
    %v2377 = vlaneseq
    %v2378 = vshrl.u32 %v2377, 7
    %v2379 = vsub.s32 %v2376, %v2378
    %v2380 = vrot.slane %v585, %v2379
    %v2382 = vunpack.c.l.s4 269488144
    %v2383 = vunpack.c.0.s8 %v2382
    %v2384 = vlaneseq
    %v2385 = vshrl.u32 %v2384, 7
    %v2386 = vsub.s32 %v2383, %v2385
    %v2387 = vrot.slane %v586, %v2386
    %v2389 = vunpack.c.l.s4 842150450
    %v2390 = vunpack.c.0.s8 %v2389
    %v2391 = vlaneseq
    %v2392 = vshrl.u32 %v2391, 7
    %v2393 = vsub.s32 %v2390, %v2392
    %v2394 = vrot.slane %v586, %v2393
    %v2396 = vunpack.c.l.s4 1414812756
    %v2397 = vunpack.c.0.s8 %v2396
    %v2398 = vlaneseq
    %v2399 = vshrl.u32 %v2398, 7
    %v2400 = vsub.s32 %v2397, %v2399
    %v2401 = vrot.slane %v586, %v2400
    %v2403 = vunpack.c.l.s4 1987475062
    %v2404 = vunpack.c.0.s8 %v2403
    %v2405 = vlaneseq
    %v2406 = vshrl.u32 %v2405, 7
    %v2407 = vsub.s32 %v2404, %v2406
    %v2408 = vrot.slane %v586, %v2407
    %v2410 = vunpack.c.l.s4 269488144
    %v2411 = vunpack.c.0.s8 %v2410
    %v2412 = vlaneseq
    %v2413 = vshrl.u32 %v2412, 7
    %v2414 = vsub.s32 %v2411, %v2413
    %v2415 = vrot.slane %v587, %v2414
    %v2417 = vunpack.c.l.s4 842150450
    %v2418 = vunpack.c.0.s8 %v2417
    %v2419 = vlaneseq
    %v2420 = vshrl.u32 %v2419, 7
    %v2421 = vsub.s32 %v2418, %v2420
    %v2422 = vrot.slane %v587, %v2421
    %v2424 = vunpack.c.l.s4 1414812756
    %v2425 = vunpack.c.0.s8 %v2424
    %v2426 = vlaneseq
    %v2427 = vshrl.u32 %v2426, 7
    %v2428 = vsub.s32 %v2425, %v2427
    %v2429 = vrot.slane %v587, %v2428
    %v2431 = vunpack.c.l.s4 1987475062
    %v2432 = vunpack.c.0.s8 %v2431
    %v2433 = vlaneseq
    %v2434 = vshrl.u32 %v2433, 7
    %v2435 = vsub.s32 %v2432, %v2434
    %v2436 = vrot.slane %v587, %v2435
    %v2438 = vunpack.c.l.s4 269488144
    %v2439 = vunpack.c.0.s8 %v2438
    %v2440 = vlaneseq
    %v2441 = vshrl.u32 %v2440, 7
    %v2442 = vsub.s32 %v2439, %v2441
    %v2443 = vrot.slane %v588, %v2442
    %v2445 = vunpack.c.l.s4 842150450
    %v2446 = vunpack.c.0.s8 %v2445
    %v2447 = vlaneseq
    %v2448 = vshrl.u32 %v2447, 7
    %v2449 = vsub.s32 %v2446, %v2448
    %v2450 = vrot.slane %v588, %v2449
    %v2452 = vunpack.c.l.s4 1414812756
    %v2453 = vunpack.c.0.s8 %v2452
    %v2454 = vlaneseq
    %v2455 = vshrl.u32 %v2454, 7
    %v2456 = vsub.s32 %v2453, %v2455
    %v2457 = vrot.slane %v588, %v2456
    %v2459 = vunpack.c.l.s4 1987475062
    %v2460 = vunpack.c.0.s8 %v2459
    %v2461 = vlaneseq
    %v2462 = vshrl.u32 %v2461, 7
    %v2463 = vsub.s32 %v2460, %v2462
    %v2464 = vrot.slane %v588, %v2463
    %v2466 = vunpack.c.l.s4 269488144
    %v2467 = vunpack.c.0.s8 %v2466
    %v2468 = vlaneseq
    %v2469 = vshrl.u32 %v2468, 7
    %v2470 = vsub.s32 %v2467, %v2469
    %v2471 = vrot.slane %v589, %v2470
    %v2473 = vunpack.c.l.s4 842150450
    %v2474 = vunpack.c.0.s8 %v2473
    %v2475 = vlaneseq
    %v2476 = vshrl.u32 %v2475, 7
    %v2477 = vsub.s32 %v2474, %v2476
    %v2478 = vrot.slane %v589, %v2477
    %v2480 = vunpack.c.l.s4 1414812756
    %v2481 = vunpack.c.0.s8 %v2480
    %v2482 = vlaneseq
    %v2483 = vshrl.u32 %v2482, 7
    %v2484 = vsub.s32 %v2481, %v2483
    %v2485 = vrot.slane %v589, %v2484
    %v2487 = vunpack.c.l.s4 1987475062
    %v2488 = vunpack.c.0.s8 %v2487
    %v2489 = vlaneseq
    %v2490 = vshrl.u32 %v2489, 7
    %v2491 = vsub.s32 %v2488, %v2490
    %v2492 = vrot.slane %v589, %v2491
    %v2494 = vunpack.c.l.s4 269488144
    %v2495 = vunpack.c.0.s8 %v2494
    %v2496 = vlaneseq
    %v2497 = vshrl.u32 %v2496, 7
    %v2498 = vsub.s32 %v2495, %v2497
    %v2499 = vrot.slane %v590, %v2498
    %v2501 = vunpack.c.l.s4 842150450
    %v2502 = vunpack.c.0.s8 %v2501
    %v2503 = vlaneseq
    %v2504 = vshrl.u32 %v2503, 7
    %v2505 = vsub.s32 %v2502, %v2504
    %v2506 = vrot.slane %v590, %v2505
    %v2508 = vunpack.c.l.s4 1414812756
    %v2509 = vunpack.c.0.s8 %v2508
    %v2510 = vlaneseq
    %v2511 = vshrl.u32 %v2510, 7
    %v2512 = vsub.s32 %v2509, %v2511
    %v2513 = vrot.slane %v590, %v2512
    %v2515 = vunpack.c.l.s4 1987475062
    %v2516 = vunpack.c.0.s8 %v2515
    %v2517 = vlaneseq
    %v2518 = vshrl.u32 %v2517, 7
    %v2519 = vsub.s32 %v2516, %v2518
    %v2520 = vrot.slane %v590, %v2519
    %v2522 = vunpack.c.l.s4 269488144
    %v2523 = vunpack.c.0.s8 %v2522
    %v2524 = vlaneseq
    %v2525 = vshrl.u32 %v2524, 7
    %v2526 = vsub.s32 %v2523, %v2525
    %v2527 = vrot.slane %v591, %v2526
    %v2529 = vunpack.c.l.s4 842150450
    %v2530 = vunpack.c.0.s8 %v2529
    %v2531 = vlaneseq
    %v2532 = vshrl.u32 %v2531, 7
    %v2533 = vsub.s32 %v2530, %v2532
    %v2534 = vrot.slane %v591, %v2533
    %v2536 = vunpack.c.l.s4 1414812756
    %v2537 = vunpack.c.0.s8 %v2536
    %v2538 = vlaneseq
    %v2539 = vshrl.u32 %v2538, 7
    %v2540 = vsub.s32 %v2537, %v2539
    %v2541 = vrot.slane %v591, %v2540
    %v2543 = vunpack.c.l.s4 1987475062
    %v2544 = vunpack.c.0.s8 %v2543
    %v2545 = vlaneseq
    %v2546 = vshrl.u32 %v2545, 7
    %v2547 = vsub.s32 %v2544, %v2546
    %v2548 = vrot.slane %v591, %v2547
    %v2550 = vunpack.c.l.s4 269488144
    %v2551 = vunpack.c.0.s8 %v2550
    %v2552 = vlaneseq
    %v2553 = vshrl.u32 %v2552, 7
    %v2554 = vsub.s32 %v2551, %v2553
    %v2555 = vrot.slane %v592, %v2554
    %v2557 = vunpack.c.l.s4 842150450
    %v2558 = vunpack.c.0.s8 %v2557
    %v2559 = vlaneseq
    %v2560 = vshrl.u32 %v2559, 7
    %v2561 = vsub.s32 %v2558, %v2560
    %v2562 = vrot.slane %v592, %v2561
    %v2564 = vunpack.c.l.s4 1414812756
    %v2565 = vunpack.c.0.s8 %v2564
    %v2566 = vlaneseq
    %v2567 = vshrl.u32 %v2566, 7
    %v2568 = vsub.s32 %v2565, %v2567
    %v2569 = vrot.slane %v592, %v2568
    %v2571 = vunpack.c.l.s4 1987475062
    %v2572 = vunpack.c.0.s8 %v2571
    %v2573 = vlaneseq
    %v2574 = vshrl.u32 %v2573, 7
    %v2575 = vsub.s32 %v2572, %v2574
    %v2576 = vrot.slane %v592, %v2575
    %v2578 = vunpack.c.l.s4 269488144
    %v2579 = vunpack.c.0.s8 %v2578
    %v2580 = vlaneseq
    %v2581 = vshrl.u32 %v2580, 7
    %v2582 = vsub.s32 %v2579, %v2581
    %v2583 = vrot.slane %v593, %v2582
    %v2585 = vunpack.c.l.s4 842150450
    %v2586 = vunpack.c.0.s8 %v2585
    %v2587 = vlaneseq
    %v2588 = vshrl.u32 %v2587, 7
    %v2589 = vsub.s32 %v2586, %v2588
    %v2590 = vrot.slane %v593, %v2589
    %v2592 = vunpack.c.l.s4 1414812756
    %v2593 = vunpack.c.0.s8 %v2592
    %v2594 = vlaneseq
    %v2595 = vshrl.u32 %v2594, 7
    %v2596 = vsub.s32 %v2593, %v2595
    %v2597 = vrot.slane %v593, %v2596
    %v2599 = vunpack.c.l.s4 1987475062
    %v2600 = vunpack.c.0.s8 %v2599
    %v2601 = vlaneseq
    %v2602 = vshrl.u32 %v2601, 7
    %v2603 = vsub.s32 %v2600, %v2602
    %v2604 = vrot.slane %v593, %v2603
    %v2606 = vunpack.c.l.s4 269488144
    %v2607 = vunpack.c.0.s8 %v2606
    %v2608 = vlaneseq
    %v2609 = vshrl.u32 %v2608, 7
    %v2610 = vsub.s32 %v2607, %v2609
    %v2611 = vrot.slane %v594, %v2610
    %v2613 = vunpack.c.l.s4 842150450
    %v2614 = vunpack.c.0.s8 %v2613
    %v2615 = vlaneseq
    %v2616 = vshrl.u32 %v2615, 7
    %v2617 = vsub.s32 %v2614, %v2616
    %v2618 = vrot.slane %v594, %v2617
    %v2620 = vunpack.c.l.s4 1414812756
    %v2621 = vunpack.c.0.s8 %v2620
    %v2622 = vlaneseq
    %v2623 = vshrl.u32 %v2622, 7
    %v2624 = vsub.s32 %v2621, %v2623
    %v2625 = vrot.slane %v594, %v2624
    %v2627 = vunpack.c.l.s4 1987475062
    %v2628 = vunpack.c.0.s8 %v2627
    %v2629 = vlaneseq
    %v2630 = vshrl.u32 %v2629, 7
    %v2631 = vsub.s32 %v2628, %v2630
    %v2632 = vrot.slane %v594, %v2631
    %v2634 = vunpack.c.l.s4 269488144
    %v2635 = vunpack.c.0.s8 %v2634
    %v2636 = vlaneseq
    %v2637 = vshrl.u32 %v2636, 7
    %v2638 = vsub.s32 %v2635, %v2637
    %v2639 = vrot.slane %v595, %v2638
    %v2641 = vunpack.c.l.s4 842150450
    %v2642 = vunpack.c.0.s8 %v2641
    %v2643 = vlaneseq
    %v2644 = vshrl.u32 %v2643, 7
    %v2645 = vsub.s32 %v2642, %v2644
    %v2646 = vrot.slane %v595, %v2645
    %v2648 = vunpack.c.l.s4 1414812756
    %v2649 = vunpack.c.0.s8 %v2648
    %v2650 = vlaneseq
    %v2651 = vshrl.u32 %v2650, 7
    %v2652 = vsub.s32 %v2649, %v2651
    %v2653 = vrot.slane %v595, %v2652
    %v2655 = vunpack.c.l.s4 1987475062
    %v2656 = vunpack.c.0.s8 %v2655
    %v2657 = vlaneseq
    %v2658 = vshrl.u32 %v2657, 7
    %v2659 = vsub.s32 %v2656, %v2658
    %v2660 = vrot.slane %v595, %v2659
    %v2662 = vunpack.c.l.s4 269488144
    %v2663 = vunpack.c.0.s8 %v2662
    %v2664 = vlaneseq
    %v2665 = vshrl.u32 %v2664, 7
    %v2666 = vsub.s32 %v2663, %v2665
    %v2667 = vrot.slane %v596, %v2666
    %v2669 = vunpack.c.l.s4 842150450
    %v2670 = vunpack.c.0.s8 %v2669
    %v2671 = vlaneseq
    %v2672 = vshrl.u32 %v2671, 7
    %v2673 = vsub.s32 %v2670, %v2672
    %v2674 = vrot.slane %v596, %v2673
    %v2676 = vunpack.c.l.s4 1414812756
    %v2677 = vunpack.c.0.s8 %v2676
    %v2678 = vlaneseq
    %v2679 = vshrl.u32 %v2678, 7
    %v2680 = vsub.s32 %v2677, %v2679
    %v2681 = vrot.slane %v596, %v2680
    %v2683 = vunpack.c.l.s4 1987475062
    %v2684 = vunpack.c.0.s8 %v2683
    %v2685 = vlaneseq
    %v2686 = vshrl.u32 %v2685, 7
    %v2687 = vsub.s32 %v2684, %v2686
    %v2688 = vrot.slane %v596, %v2687
    %v2690 = vunpack.c.l.s4 269488144
    %v2691 = vunpack.c.0.s8 %v2690
    %v2692 = vlaneseq
    %v2693 = vshrl.u32 %v2692, 7
    %v2694 = vsub.s32 %v2691, %v2693
    %v2695 = vrot.slane %v597, %v2694
    %v2697 = vunpack.c.l.s4 842150450
    %v2698 = vunpack.c.0.s8 %v2697
    %v2699 = vlaneseq
    %v2700 = vshrl.u32 %v2699, 7
    %v2701 = vsub.s32 %v2698, %v2700
    %v2702 = vrot.slane %v597, %v2701
    %v2704 = vunpack.c.l.s4 1414812756
    %v2705 = vunpack.c.0.s8 %v2704
    %v2706 = vlaneseq
    %v2707 = vshrl.u32 %v2706, 7
    %v2708 = vsub.s32 %v2705, %v2707
    %v2709 = vrot.slane %v597, %v2708
    %v2711 = vunpack.c.l.s4 1987475062
    %v2712 = vunpack.c.0.s8 %v2711
    %v2713 = vlaneseq
    %v2714 = vshrl.u32 %v2713, 7
    %v2715 = vsub.s32 %v2712, %v2714
    %v2716 = vrot.slane %v597, %v2715
    %v2718 = vunpack.c.l.s4 269488144
    %v2719 = vunpack.c.0.s8 %v2718
    %v2720 = vlaneseq
    %v2721 = vshrl.u32 %v2720, 7
    %v2722 = vsub.s32 %v2719, %v2721
    %v2723 = vrot.slane %v598, %v2722
    %v2725 = vunpack.c.l.s4 842150450
    %v2726 = vunpack.c.0.s8 %v2725
    %v2727 = vlaneseq
    %v2728 = vshrl.u32 %v2727, 7
    %v2729 = vsub.s32 %v2726, %v2728
    %v2730 = vrot.slane %v598, %v2729
    %v2732 = vunpack.c.l.s4 1414812756
    %v2733 = vunpack.c.0.s8 %v2732
    %v2734 = vlaneseq
    %v2735 = vshrl.u32 %v2734, 7
    %v2736 = vsub.s32 %v2733, %v2735
    %v2737 = vrot.slane %v598, %v2736
    %v2739 = vunpack.c.l.s4 1987475062
    %v2740 = vunpack.c.0.s8 %v2739
    %v2741 = vlaneseq
    %v2742 = vshrl.u32 %v2741, 7
    %v2743 = vsub.s32 %v2740, %v2742
    %v2744 = vrot.slane %v598, %v2743
    %v2746 = vunpack.c.l.s4 269488144
    %v2747 = vunpack.c.0.s8 %v2746
    %v2748 = vlaneseq
    %v2749 = vshrl.u32 %v2748, 7
    %v2750 = vsub.s32 %v2747, %v2749
    %v2751 = vrot.slane %v599, %v2750
    %v2753 = vunpack.c.l.s4 842150450
    %v2754 = vunpack.c.0.s8 %v2753
    %v2755 = vlaneseq
    %v2756 = vshrl.u32 %v2755, 7
    %v2757 = vsub.s32 %v2754, %v2756
    %v2758 = vrot.slane %v599, %v2757
    %v2760 = vunpack.c.l.s4 1414812756
    %v2761 = vunpack.c.0.s8 %v2760
    %v2762 = vlaneseq
    %v2763 = vshrl.u32 %v2762, 7
    %v2764 = vsub.s32 %v2761, %v2763
    %v2765 = vrot.slane %v599, %v2764
    %v2767 = vunpack.c.l.s4 1987475062
    %v2768 = vunpack.c.0.s8 %v2767
    %v2769 = vlaneseq
    %v2770 = vshrl.u32 %v2769, 7
    %v2771 = vsub.s32 %v2768, %v2770
    %v2772 = vrot.slane %v599, %v2771
    %v2774 = vunpack.c.l.s4 269488144
    %v2775 = vunpack.c.0.s8 %v2774
    %v2776 = vlaneseq
    %v2777 = vshrl.u32 %v2776, 7
    %v2778 = vsub.s32 %v2775, %v2777
    %v2779 = vrot.slane %v600, %v2778
    %v2781 = vunpack.c.l.s4 842150450
    %v2782 = vunpack.c.0.s8 %v2781
    %v2783 = vlaneseq
    %v2784 = vshrl.u32 %v2783, 7
    %v2785 = vsub.s32 %v2782, %v2784
    %v2786 = vrot.slane %v600, %v2785
    %v2788 = vunpack.c.l.s4 1414812756
    %v2789 = vunpack.c.0.s8 %v2788
    %v2790 = vlaneseq
    %v2791 = vshrl.u32 %v2790, 7
    %v2792 = vsub.s32 %v2789, %v2791
    %v2793 = vrot.slane %v600, %v2792
    %v2795 = vunpack.c.l.s4 1987475062
    %v2796 = vunpack.c.0.s8 %v2795
    %v2797 = vlaneseq
    %v2798 = vshrl.u32 %v2797, 7
    %v2799 = vsub.s32 %v2796, %v2798
    %v2800 = vrot.slane %v600, %v2799
    %v2802 = vunpack.c.l.s4 269488144
    %v2803 = vunpack.c.0.s8 %v2802
    %v2804 = vlaneseq
    %v2805 = vshrl.u32 %v2804, 7
    %v2806 = vsub.s32 %v2803, %v2805
    %v2807 = vrot.slane %v601, %v2806
    %v2809 = vunpack.c.l.s4 842150450
    %v2810 = vunpack.c.0.s8 %v2809
    %v2811 = vlaneseq
    %v2812 = vshrl.u32 %v2811, 7
    %v2813 = vsub.s32 %v2810, %v2812
    %v2814 = vrot.slane %v601, %v2813
    %v2816 = vunpack.c.l.s4 1414812756
    %v2817 = vunpack.c.0.s8 %v2816
    %v2818 = vlaneseq
    %v2819 = vshrl.u32 %v2818, 7
    %v2820 = vsub.s32 %v2817, %v2819
    %v2821 = vrot.slane %v601, %v2820
    %v2823 = vunpack.c.l.s4 1987475062
    %v2824 = vunpack.c.0.s8 %v2823
    %v2825 = vlaneseq
    %v2826 = vshrl.u32 %v2825, 7
    %v2827 = vsub.s32 %v2824, %v2826
    %v2828 = vrot.slane %v601, %v2827
    %v2830 = vunpack.c.l.s4 269488144
    %v2831 = vunpack.c.0.s8 %v2830
    %v2832 = vlaneseq
    %v2833 = vshrl.u32 %v2832, 7
    %v2834 = vsub.s32 %v2831, %v2833
    %v2835 = vrot.slane %v602, %v2834
    %v2837 = vunpack.c.l.s4 842150450
    %v2838 = vunpack.c.0.s8 %v2837
    %v2839 = vlaneseq
    %v2840 = vshrl.u32 %v2839, 7
    %v2841 = vsub.s32 %v2838, %v2840
    %v2842 = vrot.slane %v602, %v2841
    %v2844 = vunpack.c.l.s4 1414812756
    %v2845 = vunpack.c.0.s8 %v2844
    %v2846 = vlaneseq
    %v2847 = vshrl.u32 %v2846, 7
    %v2848 = vsub.s32 %v2845, %v2847
    %v2849 = vrot.slane %v602, %v2848
    %v2851 = vunpack.c.l.s4 1987475062
    %v2852 = vunpack.c.0.s8 %v2851
    %v2853 = vlaneseq
    %v2854 = vshrl.u32 %v2853, 7
    %v2855 = vsub.s32 %v2852, %v2854
    %v2856 = vrot.slane %v602, %v2855
    %v2858 = vunpack.c.l.s4 269488144
    %v2859 = vunpack.c.0.s8 %v2858
    %v2860 = vlaneseq
    %v2861 = vshrl.u32 %v2860, 7
    %v2862 = vsub.s32 %v2859, %v2861
    %v2863 = vrot.slane %v603, %v2862
    %v2865 = vunpack.c.l.s4 842150450
    %v2866 = vunpack.c.0.s8 %v2865
    %v2867 = vlaneseq
    %v2868 = vshrl.u32 %v2867, 7
    %v2869 = vsub.s32 %v2866, %v2868
    %v2870 = vrot.slane %v603, %v2869
    %v2872 = vunpack.c.l.s4 1414812756
    %v2873 = vunpack.c.0.s8 %v2872
    %v2874 = vlaneseq
    %v2875 = vshrl.u32 %v2874, 7
    %v2876 = vsub.s32 %v2873, %v2875
    %v2877 = vrot.slane %v603, %v2876
    %v2879 = vunpack.c.l.s4 1987475062
    %v2880 = vunpack.c.0.s8 %v2879
    %v2881 = vlaneseq
    %v2882 = vshrl.u32 %v2881, 7
    %v2883 = vsub.s32 %v2880, %v2882
    %v2884 = vrot.slane %v603, %v2883
    %v2886 = vunpack.c.l.s4 269488144
    %v2887 = vunpack.c.0.s8 %v2886
    %v2888 = vlaneseq
    %v2889 = vshrl.u32 %v2888, 7
    %v2890 = vsub.s32 %v2887, %v2889
    %v2891 = vrot.slane %v604, %v2890
    %v2893 = vunpack.c.l.s4 842150450
    %v2894 = vunpack.c.0.s8 %v2893
    %v2895 = vlaneseq
    %v2896 = vshrl.u32 %v2895, 7
    %v2897 = vsub.s32 %v2894, %v2896
    %v2898 = vrot.slane %v604, %v2897
    %v2900 = vunpack.c.l.s4 1414812756
    %v2901 = vunpack.c.0.s8 %v2900
    %v2902 = vlaneseq
    %v2903 = vshrl.u32 %v2902, 7
    %v2904 = vsub.s32 %v2901, %v2903
    %v2905 = vrot.slane %v604, %v2904
    %v2907 = vunpack.c.l.s4 1987475062
    %v2908 = vunpack.c.0.s8 %v2907
    %v2909 = vlaneseq
    %v2910 = vshrl.u32 %v2909, 7
    %v2911 = vsub.s32 %v2908, %v2910
    %v2912 = vrot.slane %v604, %v2911
    %v2914 = vunpack.c.l.s4 269488144
    %v2915 = vunpack.c.0.s8 %v2914
    %v2916 = vlaneseq
    %v2917 = vshrl.u32 %v2916, 7
    %v2918 = vsub.s32 %v2915, %v2917
    %v2919 = vrot.slane %v605, %v2918
    %v2921 = vunpack.c.l.s4 842150450
    %v2922 = vunpack.c.0.s8 %v2921
    %v2923 = vlaneseq
    %v2924 = vshrl.u32 %v2923, 7
    %v2925 = vsub.s32 %v2922, %v2924
    %v2926 = vrot.slane %v605, %v2925
    %v2928 = vunpack.c.l.s4 1414812756
    %v2929 = vunpack.c.0.s8 %v2928
    %v2930 = vlaneseq
    %v2931 = vshrl.u32 %v2930, 7
    %v2932 = vsub.s32 %v2929, %v2931
    %v2933 = vrot.slane %v605, %v2932
    %v2935 = vunpack.c.l.s4 1987475062
    %v2936 = vunpack.c.0.s8 %v2935
    %v2937 = vlaneseq
    %v2938 = vshrl.u32 %v2937, 7
    %v2939 = vsub.s32 %v2936, %v2938
    %v2940 = vrot.slane %v605, %v2939
    %v2942 = vunpack.c.l.s4 269488144
    %v2943 = vunpack.c.0.s8 %v2942
    %v2944 = vlaneseq
    %v2945 = vshrl.u32 %v2944, 7
    %v2946 = vsub.s32 %v2943, %v2945
    %v2947 = vrot.slane %v606, %v2946
    %v2949 = vunpack.c.l.s4 842150450
    %v2950 = vunpack.c.0.s8 %v2949
    %v2951 = vlaneseq
    %v2952 = vshrl.u32 %v2951, 7
    %v2953 = vsub.s32 %v2950, %v2952
    %v2954 = vrot.slane %v606, %v2953
    %v2956 = vunpack.c.l.s4 1414812756
    %v2957 = vunpack.c.0.s8 %v2956
    %v2958 = vlaneseq
    %v2959 = vshrl.u32 %v2958, 7
    %v2960 = vsub.s32 %v2957, %v2959
    %v2961 = vrot.slane %v606, %v2960
    %v2963 = vunpack.c.l.s4 1987475062
    %v2964 = vunpack.c.0.s8 %v2963
    %v2965 = vlaneseq
    %v2966 = vshrl.u32 %v2965, 7
    %v2967 = vsub.s32 %v2964, %v2966
    %v2968 = vrot.slane %v606, %v2967
    %v2970 = vunpack.c.l.s4 269488144
    %v2971 = vunpack.c.0.s8 %v2970
    %v2972 = vlaneseq
    %v2973 = vshrl.u32 %v2972, 7
    %v2974 = vsub.s32 %v2971, %v2973
    %v2975 = vrot.slane %v607, %v2974
    %v2977 = vunpack.c.l.s4 842150450
    %v2978 = vunpack.c.0.s8 %v2977
    %v2979 = vlaneseq
    %v2980 = vshrl.u32 %v2979, 7
    %v2981 = vsub.s32 %v2978, %v2980
    %v2982 = vrot.slane %v607, %v2981
    %v2984 = vunpack.c.l.s4 1414812756
    %v2985 = vunpack.c.0.s8 %v2984
    %v2986 = vlaneseq
    %v2987 = vshrl.u32 %v2986, 7
    %v2988 = vsub.s32 %v2985, %v2987
    %v2989 = vrot.slane %v607, %v2988
    %v2991 = vunpack.c.l.s4 1987475062
    %v2992 = vunpack.c.0.s8 %v2991
    %v2993 = vlaneseq
    %v2994 = vshrl.u32 %v2993, 7
    %v2995 = vsub.s32 %v2992, %v2994
    %v2996 = vrot.slane %v607, %v2995
    %v2998 = vunpack.c.l.s4 269488144
    %v2999 = vunpack.c.0.s8 %v2998
    %v3000 = vlaneseq
    %v3001 = vshrl.u32 %v3000, 7
    %v3002 = vsub.s32 %v2999, %v3001
    %v3003 = vrot.slane %v608, %v3002
    %v3005 = vunpack.c.l.s4 842150450
    %v3006 = vunpack.c.0.s8 %v3005
    %v3007 = vlaneseq
    %v3008 = vshrl.u32 %v3007, 7
    %v3009 = vsub.s32 %v3006, %v3008
    %v3010 = vrot.slane %v608, %v3009
    %v3012 = vunpack.c.l.s4 1414812756
    %v3013 = vunpack.c.0.s8 %v3012
    %v3014 = vlaneseq
    %v3015 = vshrl.u32 %v3014, 7
    %v3016 = vsub.s32 %v3013, %v3015
    %v3017 = vrot.slane %v608, %v3016
    %v3019 = vunpack.c.l.s4 1987475062
    %v3020 = vunpack.c.0.s8 %v3019
    %v3021 = vlaneseq
    %v3022 = vshrl.u32 %v3021, 7
    %v3023 = vsub.s32 %v3020, %v3022
    %v3024 = vrot.slane %v608, %v3023
    %v3026 = vunpack.c.l.s4 269488144
    %v3027 = vunpack.c.0.s8 %v3026
    %v3028 = vlaneseq
    %v3029 = vshrl.u32 %v3028, 7
    %v3030 = vsub.s32 %v3027, %v3029
    %v3031 = vrot.slane %v609, %v3030
    %v3033 = vunpack.c.l.s4 842150450
    %v3034 = vunpack.c.0.s8 %v3033
    %v3035 = vlaneseq
    %v3036 = vshrl.u32 %v3035, 7
    %v3037 = vsub.s32 %v3034, %v3036
    %v3038 = vrot.slane %v609, %v3037
    %v3040 = vunpack.c.l.s4 1414812756
    %v3041 = vunpack.c.0.s8 %v3040
    %v3042 = vlaneseq
    %v3043 = vshrl.u32 %v3042, 7
    %v3044 = vsub.s32 %v3041, %v3043
    %v3045 = vrot.slane %v609, %v3044
    %v3047 = vunpack.c.l.s4 1987475062
    %v3048 = vunpack.c.0.s8 %v3047
    %v3049 = vlaneseq
    %v3050 = vshrl.u32 %v3049, 7
    %v3051 = vsub.s32 %v3048, %v3050
    %v3052 = vrot.slane %v609, %v3051
    %v3054 = vunpack.c.l.s4 269488144
    %v3055 = vunpack.c.0.s8 %v3054
    %v3056 = vlaneseq
    %v3057 = vshrl.u32 %v3056, 7
    %v3058 = vsub.s32 %v3055, %v3057
    %v3059 = vrot.slane %v610, %v3058
    %v3061 = vunpack.c.l.s4 842150450
    %v3062 = vunpack.c.0.s8 %v3061
    %v3063 = vlaneseq
    %v3064 = vshrl.u32 %v3063, 7
    %v3065 = vsub.s32 %v3062, %v3064
    %v3066 = vrot.slane %v610, %v3065
    %v3068 = vunpack.c.l.s4 1414812756
    %v3069 = vunpack.c.0.s8 %v3068
    %v3070 = vlaneseq
    %v3071 = vshrl.u32 %v3070, 7
    %v3072 = vsub.s32 %v3069, %v3071
    %v3073 = vrot.slane %v610, %v3072
    %v3075 = vunpack.c.l.s4 1987475062
    %v3076 = vunpack.c.0.s8 %v3075
    %v3077 = vlaneseq
    %v3078 = vshrl.u32 %v3077, 7
    %v3079 = vsub.s32 %v3076, %v3078
    %v3080 = vrot.slane %v610, %v3079
    %v3082 = vunpack.c.l.s4 269488144
    %v3083 = vunpack.c.0.s8 %v3082
    %v3084 = vlaneseq
    %v3085 = vshrl.u32 %v3084, 7
    %v3086 = vsub.s32 %v3083, %v3085
    %v3087 = vrot.slane %v611, %v3086
    %v3089 = vunpack.c.l.s4 842150450
    %v3090 = vunpack.c.0.s8 %v3089
    %v3091 = vlaneseq
    %v3092 = vshrl.u32 %v3091, 7
    %v3093 = vsub.s32 %v3090, %v3092
    %v3094 = vrot.slane %v611, %v3093
    %v3096 = vunpack.c.l.s4 1414812756
    %v3097 = vunpack.c.0.s8 %v3096
    %v3098 = vlaneseq
    %v3099 = vshrl.u32 %v3098, 7
    %v3100 = vsub.s32 %v3097, %v3099
    %v3101 = vrot.slane %v611, %v3100
    %v3103 = vunpack.c.l.s4 1987475062
    %v3104 = vunpack.c.0.s8 %v3103
    %v3105 = vlaneseq
    %v3106 = vshrl.u32 %v3105, 7
    %v3107 = vsub.s32 %v3104, %v3106
    %v3108 = vrot.slane %v611, %v3107
    %v3110 = vunpack.c.l.s4 269488144
    %v3111 = vunpack.c.0.s8 %v3110
    %v3112 = vlaneseq
    %v3113 = vshrl.u32 %v3112, 7
    %v3114 = vsub.s32 %v3111, %v3113
    %v3115 = vrot.slane %v612, %v3114
    %v3117 = vunpack.c.l.s4 842150450
    %v3118 = vunpack.c.0.s8 %v3117
    %v3119 = vlaneseq
    %v3120 = vshrl.u32 %v3119, 7
    %v3121 = vsub.s32 %v3118, %v3120
    %v3122 = vrot.slane %v612, %v3121
    %v3124 = vunpack.c.l.s4 1414812756
    %v3125 = vunpack.c.0.s8 %v3124
    %v3126 = vlaneseq
    %v3127 = vshrl.u32 %v3126, 7
    %v3128 = vsub.s32 %v3125, %v3127
    %v3129 = vrot.slane %v612, %v3128
    %v3131 = vunpack.c.l.s4 1987475062
    %v3132 = vunpack.c.0.s8 %v3131
    %v3133 = vlaneseq
    %v3134 = vshrl.u32 %v3133, 7
    %v3135 = vsub.s32 %v3132, %v3134
    %v3136 = vrot.slane %v612, %v3135
    %v3138 = vunpack.c.l.s4 269488144
    %v3139 = vunpack.c.0.s8 %v3138
    %v3140 = vlaneseq
    %v3141 = vshrl.u32 %v3140, 7
    %v3142 = vsub.s32 %v3139, %v3141
    %v3143 = vrot.slane %v613, %v3142
    %v3145 = vunpack.c.l.s4 842150450
    %v3146 = vunpack.c.0.s8 %v3145
    %v3147 = vlaneseq
    %v3148 = vshrl.u32 %v3147, 7
    %v3149 = vsub.s32 %v3146, %v3148
    %v3150 = vrot.slane %v613, %v3149
    %v3152 = vunpack.c.l.s4 1414812756
    %v3153 = vunpack.c.0.s8 %v3152
    %v3154 = vlaneseq
    %v3155 = vshrl.u32 %v3154, 7
    %v3156 = vsub.s32 %v3153, %v3155
    %v3157 = vrot.slane %v613, %v3156
    %v3159 = vunpack.c.l.s4 1987475062
    %v3160 = vunpack.c.0.s8 %v3159
    %v3161 = vlaneseq
    %v3162 = vshrl.u32 %v3161, 7
    %v3163 = vsub.s32 %v3160, %v3162
    %v3164 = vrot.slane %v613, %v3163
    %v3166 = vunpack.c.l.s4 269488144
    %v3167 = vunpack.c.0.s8 %v3166
    %v3168 = vlaneseq
    %v3169 = vshrl.u32 %v3168, 7
    %v3170 = vsub.s32 %v3167, %v3169
    %v3171 = vrot.slane %v614, %v3170
    %v3173 = vunpack.c.l.s4 842150450
    %v3174 = vunpack.c.0.s8 %v3173
    %v3175 = vlaneseq
    %v3176 = vshrl.u32 %v3175, 7
    %v3177 = vsub.s32 %v3174, %v3176
    %v3178 = vrot.slane %v614, %v3177
    %v3180 = vunpack.c.l.s4 1414812756
    %v3181 = vunpack.c.0.s8 %v3180
    %v3182 = vlaneseq
    %v3183 = vshrl.u32 %v3182, 7
    %v3184 = vsub.s32 %v3181, %v3183
    %v3185 = vrot.slane %v614, %v3184
    %v3187 = vunpack.c.l.s4 1987475062
    %v3188 = vunpack.c.0.s8 %v3187
    %v3189 = vlaneseq
    %v3190 = vshrl.u32 %v3189, 7
    %v3191 = vsub.s32 %v3188, %v3190
    %v3192 = vrot.slane %v614, %v3191
    %v3194 = vunpack.c.l.s4 269488144
    %v3195 = vunpack.c.0.s8 %v3194
    %v3196 = vlaneseq
    %v3197 = vshrl.u32 %v3196, 7
    %v3198 = vsub.s32 %v3195, %v3197
    %v3199 = vrot.slane %v615, %v3198
    %v3201 = vunpack.c.l.s4 842150450
    %v3202 = vunpack.c.0.s8 %v3201
    %v3203 = vlaneseq
    %v3204 = vshrl.u32 %v3203, 7
    %v3205 = vsub.s32 %v3202, %v3204
    %v3206 = vrot.slane %v615, %v3205
    %v3208 = vunpack.c.l.s4 1414812756
    %v3209 = vunpack.c.0.s8 %v3208
    %v3210 = vlaneseq
    %v3211 = vshrl.u32 %v3210, 7
    %v3212 = vsub.s32 %v3209, %v3211
    %v3213 = vrot.slane %v615, %v3212
    %v3215 = vunpack.c.l.s4 1987475062
    %v3216 = vunpack.c.0.s8 %v3215
    %v3217 = vlaneseq
    %v3218 = vshrl.u32 %v3217, 7
    %v3219 = vsub.s32 %v3216, %v3218
    %v3220 = vrot.slane %v615, %v3219
    %v3222 = vunpack.c.l.s4 269488144
    %v3223 = vunpack.c.0.s8 %v3222
    %v3224 = vlaneseq
    %v3225 = vshrl.u32 %v3224, 7
    %v3226 = vsub.s32 %v3223, %v3225
    %v3227 = vrot.slane %v616, %v3226
    %v3229 = vunpack.c.l.s4 842150450
    %v3230 = vunpack.c.0.s8 %v3229
    %v3231 = vlaneseq
    %v3232 = vshrl.u32 %v3231, 7
    %v3233 = vsub.s32 %v3230, %v3232
    %v3234 = vrot.slane %v616, %v3233
    %v3236 = vunpack.c.l.s4 1414812756
    %v3237 = vunpack.c.0.s8 %v3236
    %v3238 = vlaneseq
    %v3239 = vshrl.u32 %v3238, 7
    %v3240 = vsub.s32 %v3237, %v3239
    %v3241 = vrot.slane %v616, %v3240
    %v3243 = vunpack.c.l.s4 1987475062
    %v3244 = vunpack.c.0.s8 %v3243
    %v3245 = vlaneseq
    %v3246 = vshrl.u32 %v3245, 7
    %v3247 = vsub.s32 %v3244, %v3246
    %v3248 = vrot.slane %v616, %v3247
    %v3250 = vunpack.c.l.s4 269488144
    %v3251 = vunpack.c.0.s8 %v3250
    %v3252 = vlaneseq
    %v3253 = vshrl.u32 %v3252, 7
    %v3254 = vsub.s32 %v3251, %v3253
    %v3255 = vrot.slane %v617, %v3254
    %v3257 = vunpack.c.l.s4 842150450
    %v3258 = vunpack.c.0.s8 %v3257
    %v3259 = vlaneseq
    %v3260 = vshrl.u32 %v3259, 7
    %v3261 = vsub.s32 %v3258, %v3260
    %v3262 = vrot.slane %v617, %v3261
    %v3264 = vunpack.c.l.s4 1414812756
    %v3265 = vunpack.c.0.s8 %v3264
    %v3266 = vlaneseq
    %v3267 = vshrl.u32 %v3266, 7
    %v3268 = vsub.s32 %v3265, %v3267
    %v3269 = vrot.slane %v617, %v3268
    %v3271 = vunpack.c.l.s4 1987475062
    %v3272 = vunpack.c.0.s8 %v3271
    %v3273 = vlaneseq
    %v3274 = vshrl.u32 %v3273, 7
    %v3275 = vsub.s32 %v3272, %v3274
    %v3276 = vrot.slane %v617, %v3275
    %v3278 = vunpack.c.l.s4 269488144
    %v3279 = vunpack.c.0.s8 %v3278
    %v3280 = vlaneseq
    %v3281 = vshrl.u32 %v3280, 7
    %v3282 = vsub.s32 %v3279, %v3281
    %v3283 = vrot.slane %v618, %v3282
    %v3285 = vunpack.c.l.s4 842150450
    %v3286 = vunpack.c.0.s8 %v3285
    %v3287 = vlaneseq
    %v3288 = vshrl.u32 %v3287, 7
    %v3289 = vsub.s32 %v3286, %v3288
    %v3290 = vrot.slane %v618, %v3289
    %v3292 = vunpack.c.l.s4 1414812756
    %v3293 = vunpack.c.0.s8 %v3292
    %v3294 = vlaneseq
    %v3295 = vshrl.u32 %v3294, 7
    %v3296 = vsub.s32 %v3293, %v3295
    %v3297 = vrot.slane %v618, %v3296
    %v3299 = vunpack.c.l.s4 1987475062
    %v3300 = vunpack.c.0.s8 %v3299
    %v3301 = vlaneseq
    %v3302 = vshrl.u32 %v3301, 7
    %v3303 = vsub.s32 %v3300, %v3302
    %v3304 = vrot.slane %v618, %v3303
    %v3306 = vunpack.c.l.s4 269488144
    %v3307 = vunpack.c.0.s8 %v3306
    %v3308 = vlaneseq
    %v3309 = vshrl.u32 %v3308, 7
    %v3310 = vsub.s32 %v3307, %v3309
    %v3311 = vrot.slane %v619, %v3310
    %v3313 = vunpack.c.l.s4 842150450
    %v3314 = vunpack.c.0.s8 %v3313
    %v3315 = vlaneseq
    %v3316 = vshrl.u32 %v3315, 7
    %v3317 = vsub.s32 %v3314, %v3316
    %v3318 = vrot.slane %v619, %v3317
    %v3320 = vunpack.c.l.s4 1414812756
    %v3321 = vunpack.c.0.s8 %v3320
    %v3322 = vlaneseq
    %v3323 = vshrl.u32 %v3322, 7
    %v3324 = vsub.s32 %v3321, %v3323
    %v3325 = vrot.slane %v619, %v3324
    %v3327 = vunpack.c.l.s4 1987475062
    %v3328 = vunpack.c.0.s8 %v3327
    %v3329 = vlaneseq
    %v3330 = vshrl.u32 %v3329, 7
    %v3331 = vsub.s32 %v3328, %v3330
    %v3332 = vrot.slane %v619, %v3331
    %v3334 = vunpack.c.l.s4 269488144
    %v3335 = vunpack.c.0.s8 %v3334
    %v3336 = vlaneseq
    %v3337 = vshrl.u32 %v3336, 7
    %v3338 = vsub.s32 %v3335, %v3337
    %v3339 = vrot.slane %v620, %v3338
    %v3341 = vunpack.c.l.s4 842150450
    %v3342 = vunpack.c.0.s8 %v3341
    %v3343 = vlaneseq
    %v3344 = vshrl.u32 %v3343, 7
    %v3345 = vsub.s32 %v3342, %v3344
    %v3346 = vrot.slane %v620, %v3345
    %v3348 = vunpack.c.l.s4 1414812756
    %v3349 = vunpack.c.0.s8 %v3348
    %v3350 = vlaneseq
    %v3351 = vshrl.u32 %v3350, 7
    %v3352 = vsub.s32 %v3349, %v3351
    %v3353 = vrot.slane %v620, %v3352
    %v3355 = vunpack.c.l.s4 1987475062
    %v3356 = vunpack.c.0.s8 %v3355
    %v3357 = vlaneseq
    %v3358 = vshrl.u32 %v3357, 7
    %v3359 = vsub.s32 %v3356, %v3358
    %v3360 = vrot.slane %v620, %v3359
    %v3362 = vunpack.c.l.s4 269488144
    %v3363 = vunpack.c.0.s8 %v3362
    %v3364 = vlaneseq
    %v3365 = vshrl.u32 %v3364, 7
    %v3366 = vsub.s32 %v3363, %v3365
    %v3367 = vrot.slane %v621, %v3366
    %v3369 = vunpack.c.l.s4 842150450
    %v3370 = vunpack.c.0.s8 %v3369
    %v3371 = vlaneseq
    %v3372 = vshrl.u32 %v3371, 7
    %v3373 = vsub.s32 %v3370, %v3372
    %v3374 = vrot.slane %v621, %v3373
    %v3376 = vunpack.c.l.s4 1414812756
    %v3377 = vunpack.c.0.s8 %v3376
    %v3378 = vlaneseq
    %v3379 = vshrl.u32 %v3378, 7
    %v3380 = vsub.s32 %v3377, %v3379
    %v3381 = vrot.slane %v621, %v3380
    %v3383 = vunpack.c.l.s4 1987475062
    %v3384 = vunpack.c.0.s8 %v3383
    %v3385 = vlaneseq
    %v3386 = vshrl.u32 %v3385, 7
    %v3387 = vsub.s32 %v3384, %v3386
    %v3388 = vrot.slane %v621, %v3387
    %v3390 = vunpack.c.l.s4 269488144
    %v3391 = vunpack.c.0.s8 %v3390
    %v3392 = vlaneseq
    %v3393 = vshrl.u32 %v3392, 7
    %v3394 = vsub.s32 %v3391, %v3393
    %v3395 = vrot.slane %v622, %v3394
    %v3397 = vunpack.c.l.s4 842150450
    %v3398 = vunpack.c.0.s8 %v3397
    %v3399 = vlaneseq
    %v3400 = vshrl.u32 %v3399, 7
    %v3401 = vsub.s32 %v3398, %v3400
    %v3402 = vrot.slane %v622, %v3401
    %v3404 = vunpack.c.l.s4 1414812756
    %v3405 = vunpack.c.0.s8 %v3404
    %v3406 = vlaneseq
    %v3407 = vshrl.u32 %v3406, 7
    %v3408 = vsub.s32 %v3405, %v3407
    %v3409 = vrot.slane %v622, %v3408
    %v3411 = vunpack.c.l.s4 1987475062
    %v3412 = vunpack.c.0.s8 %v3411
    %v3413 = vlaneseq
    %v3414 = vshrl.u32 %v3413, 7
    %v3415 = vsub.s32 %v3412, %v3414
    %v3416 = vrot.slane %v622, %v3415
    %v3418 = vunpack.c.l.s4 269488144
    %v3419 = vunpack.c.0.s8 %v3418
    %v3420 = vlaneseq
    %v3421 = vshrl.u32 %v3420, 7
    %v3422 = vsub.s32 %v3419, %v3421
    %v3423 = vrot.slane %v623, %v3422
    %v3425 = vunpack.c.l.s4 842150450
    %v3426 = vunpack.c.0.s8 %v3425
    %v3427 = vlaneseq
    %v3428 = vshrl.u32 %v3427, 7
    %v3429 = vsub.s32 %v3426, %v3428
    %v3430 = vrot.slane %v623, %v3429
    %v3432 = vunpack.c.l.s4 1414812756
    %v3433 = vunpack.c.0.s8 %v3432
    %v3434 = vlaneseq
    %v3435 = vshrl.u32 %v3434, 7
    %v3436 = vsub.s32 %v3433, %v3435
    %v3437 = vrot.slane %v623, %v3436
    %v3439 = vunpack.c.l.s4 1987475062
    %v3440 = vunpack.c.0.s8 %v3439
    %v3441 = vlaneseq
    %v3442 = vshrl.u32 %v3441, 7
    %v3443 = vsub.s32 %v3440, %v3442
    %v3444 = vrot.slane %v623, %v3443
    %v3446 = vunpack.c.l.s4 269488144
    %v3447 = vunpack.c.0.s8 %v3446
    %v3448 = vlaneseq
    %v3449 = vshrl.u32 %v3448, 7
    %v3450 = vsub.s32 %v3447, %v3449
    %v3451 = vrot.slane %v624, %v3450
    %v3453 = vunpack.c.l.s4 842150450
    %v3454 = vunpack.c.0.s8 %v3453
    %v3455 = vlaneseq
    %v3456 = vshrl.u32 %v3455, 7
    %v3457 = vsub.s32 %v3454, %v3456
    %v3458 = vrot.slane %v624, %v3457
    %v3460 = vunpack.c.l.s4 1414812756
    %v3461 = vunpack.c.0.s8 %v3460
    %v3462 = vlaneseq
    %v3463 = vshrl.u32 %v3462, 7
    %v3464 = vsub.s32 %v3461, %v3463
    %v3465 = vrot.slane %v624, %v3464
    %v3467 = vunpack.c.l.s4 1987475062
    %v3468 = vunpack.c.0.s8 %v3467
    %v3469 = vlaneseq
    %v3470 = vshrl.u32 %v3469, 7
    %v3471 = vsub.s32 %v3468, %v3470
    %v3472 = vrot.slane %v624, %v3471
    %v3474 = vunpack.c.l.s4 269488144
    %v3475 = vunpack.c.0.s8 %v3474
    %v3476 = vlaneseq
    %v3477 = vshrl.u32 %v3476, 7
    %v3478 = vsub.s32 %v3475, %v3477
    %v3479 = vrot.slane %v625, %v3478
    %v3481 = vunpack.c.l.s4 842150450
    %v3482 = vunpack.c.0.s8 %v3481
    %v3483 = vlaneseq
    %v3484 = vshrl.u32 %v3483, 7
    %v3485 = vsub.s32 %v3482, %v3484
    %v3486 = vrot.slane %v625, %v3485
    %v3488 = vunpack.c.l.s4 1414812756
    %v3489 = vunpack.c.0.s8 %v3488
    %v3490 = vlaneseq
    %v3491 = vshrl.u32 %v3490, 7
    %v3492 = vsub.s32 %v3489, %v3491
    %v3493 = vrot.slane %v625, %v3492
    %v3495 = vunpack.c.l.s4 1987475062
    %v3496 = vunpack.c.0.s8 %v3495
    %v3497 = vlaneseq
    %v3498 = vshrl.u32 %v3497, 7
    %v3499 = vsub.s32 %v3496, %v3498
    %v3500 = vrot.slane %v625, %v3499
    %v3502 = vunpack.c.l.s4 269488144
    %v3503 = vunpack.c.0.s8 %v3502
    %v3504 = vlaneseq
    %v3505 = vshrl.u32 %v3504, 7
    %v3506 = vsub.s32 %v3503, %v3505
    %v3507 = vrot.slane %v626, %v3506
    %v3509 = vunpack.c.l.s4 842150450
    %v3510 = vunpack.c.0.s8 %v3509
    %v3511 = vlaneseq
    %v3512 = vshrl.u32 %v3511, 7
    %v3513 = vsub.s32 %v3510, %v3512
    %v3514 = vrot.slane %v626, %v3513
    %v3516 = vunpack.c.l.s4 1414812756
    %v3517 = vunpack.c.0.s8 %v3516
    %v3518 = vlaneseq
    %v3519 = vshrl.u32 %v3518, 7
    %v3520 = vsub.s32 %v3517, %v3519
    %v3521 = vrot.slane %v626, %v3520
    %v3523 = vunpack.c.l.s4 1987475062
    %v3524 = vunpack.c.0.s8 %v3523
    %v3525 = vlaneseq
    %v3526 = vshrl.u32 %v3525, 7
    %v3527 = vsub.s32 %v3524, %v3526
    %v3528 = vrot.slane %v626, %v3527
    %v3530 = vunpack.c.l.s4 269488144
    %v3531 = vunpack.c.0.s8 %v3530
    %v3532 = vlaneseq
    %v3533 = vshrl.u32 %v3532, 7
    %v3534 = vsub.s32 %v3531, %v3533
    %v3535 = vrot.slane %v627, %v3534
    %v3537 = vunpack.c.l.s4 842150450
    %v3538 = vunpack.c.0.s8 %v3537
    %v3539 = vlaneseq
    %v3540 = vshrl.u32 %v3539, 7
    %v3541 = vsub.s32 %v3538, %v3540
    %v3542 = vrot.slane %v627, %v3541
    %v3544 = vunpack.c.l.s4 1414812756
    %v3545 = vunpack.c.0.s8 %v3544
    %v3546 = vlaneseq
    %v3547 = vshrl.u32 %v3546, 7
    %v3548 = vsub.s32 %v3545, %v3547
    %v3549 = vrot.slane %v627, %v3548
    %v3551 = vunpack.c.l.s4 1987475062
    %v3552 = vunpack.c.0.s8 %v3551
    %v3553 = vlaneseq
    %v3554 = vshrl.u32 %v3553, 7
    %v3555 = vsub.s32 %v3552, %v3554
    %v3556 = vrot.slane %v627, %v3555
    %v3558 = vunpack.c.l.s4 269488144
    %v3559 = vunpack.c.0.s8 %v3558
    %v3560 = vlaneseq
    %v3561 = vshrl.u32 %v3560, 7
    %v3562 = vsub.s32 %v3559, %v3561
    %v3563 = vrot.slane %v628, %v3562
    %v3565 = vunpack.c.l.s4 842150450
    %v3566 = vunpack.c.0.s8 %v3565
    %v3567 = vlaneseq
    %v3568 = vshrl.u32 %v3567, 7
    %v3569 = vsub.s32 %v3566, %v3568
    %v3570 = vrot.slane %v628, %v3569
    %v3572 = vunpack.c.l.s4 1414812756
    %v3573 = vunpack.c.0.s8 %v3572
    %v3574 = vlaneseq
    %v3575 = vshrl.u32 %v3574, 7
    %v3576 = vsub.s32 %v3573, %v3575
    %v3577 = vrot.slane %v628, %v3576
    %v3579 = vunpack.c.l.s4 1987475062
    %v3580 = vunpack.c.0.s8 %v3579
    %v3581 = vlaneseq
    %v3582 = vshrl.u32 %v3581, 7
    %v3583 = vsub.s32 %v3580, %v3582
    %v3584 = vrot.slane %v628, %v3583
    %v3586 = vunpack.c.l.s4 269488144
    %v3587 = vunpack.c.0.s8 %v3586
    %v3588 = vlaneseq
    %v3589 = vshrl.u32 %v3588, 7
    %v3590 = vsub.s32 %v3587, %v3589
    %v3591 = vrot.slane %v629, %v3590
    %v3593 = vunpack.c.l.s4 842150450
    %v3594 = vunpack.c.0.s8 %v3593
    %v3595 = vlaneseq
    %v3596 = vshrl.u32 %v3595, 7
    %v3597 = vsub.s32 %v3594, %v3596
    %v3598 = vrot.slane %v629, %v3597
    %v3600 = vunpack.c.l.s4 1414812756
    %v3601 = vunpack.c.0.s8 %v3600
    %v3602 = vlaneseq
    %v3603 = vshrl.u32 %v3602, 7
    %v3604 = vsub.s32 %v3601, %v3603
    %v3605 = vrot.slane %v629, %v3604
    %v3607 = vunpack.c.l.s4 1987475062
    %v3608 = vunpack.c.0.s8 %v3607
    %v3609 = vlaneseq
    %v3610 = vshrl.u32 %v3609, 7
    %v3611 = vsub.s32 %v3608, %v3610
    %v3612 = vrot.slane %v629, %v3611
    %v3614 = vunpack.c.l.s4 269488144
    %v3615 = vunpack.c.0.s8 %v3614
    %v3616 = vlaneseq
    %v3617 = vshrl.u32 %v3616, 7
    %v3618 = vsub.s32 %v3615, %v3617
    %v3619 = vrot.slane %v630, %v3618
    %v3621 = vunpack.c.l.s4 842150450
    %v3622 = vunpack.c.0.s8 %v3621
    %v3623 = vlaneseq
    %v3624 = vshrl.u32 %v3623, 7
    %v3625 = vsub.s32 %v3622, %v3624
    %v3626 = vrot.slane %v630, %v3625
    %v3628 = vunpack.c.l.s4 1414812756
    %v3629 = vunpack.c.0.s8 %v3628
    %v3630 = vlaneseq
    %v3631 = vshrl.u32 %v3630, 7
    %v3632 = vsub.s32 %v3629, %v3631
    %v3633 = vrot.slane %v630, %v3632
    %v3635 = vunpack.c.l.s4 1987475062
    %v3636 = vunpack.c.0.s8 %v3635
    %v3637 = vlaneseq
    %v3638 = vshrl.u32 %v3637, 7
    %v3639 = vsub.s32 %v3636, %v3638
    %v3640 = vrot.slane %v630, %v3639
    %v3642 = vunpack.c.l.s4 269488144
    %v3643 = vunpack.c.0.s8 %v3642
    %v3644 = vlaneseq
    %v3645 = vshrl.u32 %v3644, 7
    %v3646 = vsub.s32 %v3643, %v3645
    %v3647 = vrot.slane %v631, %v3646
    %v3649 = vunpack.c.l.s4 842150450
    %v3650 = vunpack.c.0.s8 %v3649
    %v3651 = vlaneseq
    %v3652 = vshrl.u32 %v3651, 7
    %v3653 = vsub.s32 %v3650, %v3652
    %v3654 = vrot.slane %v631, %v3653
    %v3656 = vunpack.c.l.s4 1414812756
    %v3657 = vunpack.c.0.s8 %v3656
    %v3658 = vlaneseq
    %v3659 = vshrl.u32 %v3658, 7
    %v3660 = vsub.s32 %v3657, %v3659
    %v3661 = vrot.slane %v631, %v3660
    %v3663 = vunpack.c.l.s4 1987475062
    %v3664 = vunpack.c.0.s8 %v3663
    %v3665 = vlaneseq
    %v3666 = vshrl.u32 %v3665, 7
    %v3667 = vsub.s32 %v3664, %v3666
    %v3668 = vrot.slane %v631, %v3667
    %v3670 = vunpack.c.l.s4 269488144
    %v3671 = vunpack.c.0.s8 %v3670
    %v3672 = vlaneseq
    %v3673 = vshrl.u32 %v3672, 7
    %v3674 = vsub.s32 %v3671, %v3673
    %v3675 = vrot.slane %v632, %v3674
    %v3677 = vunpack.c.l.s4 842150450
    %v3678 = vunpack.c.0.s8 %v3677
    %v3679 = vlaneseq
    %v3680 = vshrl.u32 %v3679, 7
    %v3681 = vsub.s32 %v3678, %v3680
    %v3682 = vrot.slane %v632, %v3681
    %v3684 = vunpack.c.l.s4 1414812756
    %v3685 = vunpack.c.0.s8 %v3684
    %v3686 = vlaneseq
    %v3687 = vshrl.u32 %v3686, 7
    %v3688 = vsub.s32 %v3685, %v3687
    %v3689 = vrot.slane %v632, %v3688
    %v3691 = vunpack.c.l.s4 1987475062
    %v3692 = vunpack.c.0.s8 %v3691
    %v3693 = vlaneseq
    %v3694 = vshrl.u32 %v3693, 7
    %v3695 = vsub.s32 %v3692, %v3694
    %v3696 = vrot.slane %v632, %v3695
    %v3698 = vunpack.c.l.s4 269488144
    %v3699 = vunpack.c.0.s8 %v3698
    %v3700 = vlaneseq
    %v3701 = vshrl.u32 %v3700, 7
    %v3702 = vsub.s32 %v3699, %v3701
    %v3703 = vrot.slane %v633, %v3702
    %v3705 = vunpack.c.l.s4 842150450
    %v3706 = vunpack.c.0.s8 %v3705
    %v3707 = vlaneseq
    %v3708 = vshrl.u32 %v3707, 7
    %v3709 = vsub.s32 %v3706, %v3708
    %v3710 = vrot.slane %v633, %v3709
    %v3712 = vunpack.c.l.s4 1414812756
    %v3713 = vunpack.c.0.s8 %v3712
    %v3714 = vlaneseq
    %v3715 = vshrl.u32 %v3714, 7
    %v3716 = vsub.s32 %v3713, %v3715
    %v3717 = vrot.slane %v633, %v3716
    %v3719 = vunpack.c.l.s4 1987475062
    %v3720 = vunpack.c.0.s8 %v3719
    %v3721 = vlaneseq
    %v3722 = vshrl.u32 %v3721, 7
    %v3723 = vsub.s32 %v3720, %v3722
    %v3724 = vrot.slane %v633, %v3723
    %v3726 = vunpack.c.l.s4 269488144
    %v3727 = vunpack.c.0.s8 %v3726
    %v3728 = vlaneseq
    %v3729 = vshrl.u32 %v3728, 7
    %v3730 = vsub.s32 %v3727, %v3729
    %v3731 = vrot.slane %v634, %v3730
    %v3733 = vunpack.c.l.s4 842150450
    %v3734 = vunpack.c.0.s8 %v3733
    %v3735 = vlaneseq
    %v3736 = vshrl.u32 %v3735, 7
    %v3737 = vsub.s32 %v3734, %v3736
    %v3738 = vrot.slane %v634, %v3737
    %v3740 = vunpack.c.l.s4 1414812756
    %v3741 = vunpack.c.0.s8 %v3740
    %v3742 = vlaneseq
    %v3743 = vshrl.u32 %v3742, 7
    %v3744 = vsub.s32 %v3741, %v3743
    %v3745 = vrot.slane %v634, %v3744
    %v3747 = vunpack.c.l.s4 1987475062
    %v3748 = vunpack.c.0.s8 %v3747
    %v3749 = vlaneseq
    %v3750 = vshrl.u32 %v3749, 7
    %v3751 = vsub.s32 %v3748, %v3750
    %v3752 = vrot.slane %v634, %v3751
    %v3754 = vunpack.c.l.s4 269488144
    %v3755 = vunpack.c.0.s8 %v3754
    %v3756 = vlaneseq
    %v3757 = vshrl.u32 %v3756, 7
    %v3758 = vsub.s32 %v3755, %v3757
    %v3759 = vrot.slane %v635, %v3758
    %v3761 = vunpack.c.l.s4 842150450
    %v3762 = vunpack.c.0.s8 %v3761
    %v3763 = vlaneseq
    %v3764 = vshrl.u32 %v3763, 7
    %v3765 = vsub.s32 %v3762, %v3764
    %v3766 = vrot.slane %v635, %v3765
    %v3768 = vunpack.c.l.s4 1414812756
    %v3769 = vunpack.c.0.s8 %v3768
    %v3770 = vlaneseq
    %v3771 = vshrl.u32 %v3770, 7
    %v3772 = vsub.s32 %v3769, %v3771
    %v3773 = vrot.slane %v635, %v3772
    %v3775 = vunpack.c.l.s4 1987475062
    %v3776 = vunpack.c.0.s8 %v3775
    %v3777 = vlaneseq
    %v3778 = vshrl.u32 %v3777, 7
    %v3779 = vsub.s32 %v3776, %v3778
    %v3780 = vrot.slane %v635, %v3779
    %v3782 = vunpack.c.l.s4 269488144
    %v3783 = vunpack.c.0.s8 %v3782
    %v3784 = vlaneseq
    %v3785 = vshrl.u32 %v3784, 7
    %v3786 = vsub.s32 %v3783, %v3785
    %v3787 = vrot.slane %v636, %v3786
    %v3789 = vunpack.c.l.s4 842150450
    %v3790 = vunpack.c.0.s8 %v3789
    %v3791 = vlaneseq
    %v3792 = vshrl.u32 %v3791, 7
    %v3793 = vsub.s32 %v3790, %v3792
    %v3794 = vrot.slane %v636, %v3793
    %v3796 = vunpack.c.l.s4 1414812756
    %v3797 = vunpack.c.0.s8 %v3796
    %v3798 = vlaneseq
    %v3799 = vshrl.u32 %v3798, 7
    %v3800 = vsub.s32 %v3797, %v3799
    %v3801 = vrot.slane %v636, %v3800
    %v3803 = vunpack.c.l.s4 1987475062
    %v3804 = vunpack.c.0.s8 %v3803
    %v3805 = vlaneseq
    %v3806 = vshrl.u32 %v3805, 7
    %v3807 = vsub.s32 %v3804, %v3806
    %v3808 = vrot.slane %v636, %v3807
    %v3810 = vunpack.c.l.s4 269488144
    %v3811 = vunpack.c.0.s8 %v3810
    %v3812 = vlaneseq
    %v3813 = vshrl.u32 %v3812, 7
    %v3814 = vsub.s32 %v3811, %v3813
    %v3815 = vrot.slane %v637, %v3814
    %v3817 = vunpack.c.l.s4 842150450
    %v3818 = vunpack.c.0.s8 %v3817
    %v3819 = vlaneseq
    %v3820 = vshrl.u32 %v3819, 7
    %v3821 = vsub.s32 %v3818, %v3820
    %v3822 = vrot.slane %v637, %v3821
    %v3824 = vunpack.c.l.s4 1414812756
    %v3825 = vunpack.c.0.s8 %v3824
    %v3826 = vlaneseq
    %v3827 = vshrl.u32 %v3826, 7
    %v3828 = vsub.s32 %v3825, %v3827
    %v3829 = vrot.slane %v637, %v3828
    %v3831 = vunpack.c.l.s4 1987475062
    %v3832 = vunpack.c.0.s8 %v3831
    %v3833 = vlaneseq
    %v3834 = vshrl.u32 %v3833, 7
    %v3835 = vsub.s32 %v3832, %v3834
    %v3836 = vrot.slane %v637, %v3835
    %v3838 = vunpack.c.l.s4 269488144
    %v3839 = vunpack.c.0.s8 %v3838
    %v3840 = vlaneseq
    %v3841 = vshrl.u32 %v3840, 7
    %v3842 = vsub.s32 %v3839, %v3841
    %v3843 = vrot.slane %v638, %v3842
    %v3845 = vunpack.c.l.s4 842150450
    %v3846 = vunpack.c.0.s8 %v3845
    %v3847 = vlaneseq
    %v3848 = vshrl.u32 %v3847, 7
    %v3849 = vsub.s32 %v3846, %v3848
    %v3850 = vrot.slane %v638, %v3849
    %v3852 = vunpack.c.l.s4 1414812756
    %v3853 = vunpack.c.0.s8 %v3852
    %v3854 = vlaneseq
    %v3855 = vshrl.u32 %v3854, 7
    %v3856 = vsub.s32 %v3853, %v3855
    %v3857 = vrot.slane %v638, %v3856
    %v3859 = vunpack.c.l.s4 1987475062
    %v3860 = vunpack.c.0.s8 %v3859
    %v3861 = vlaneseq
    %v3862 = vshrl.u32 %v3861, 7
    %v3863 = vsub.s32 %v3860, %v3862
    %v3864 = vrot.slane %v638, %v3863
    %v3866 = vunpack.c.l.s4 269488144
    %v3867 = vunpack.c.0.s8 %v3866
    %v3868 = vlaneseq
    %v3869 = vshrl.u32 %v3868, 7
    %v3870 = vsub.s32 %v3867, %v3869
    %v3871 = vrot.slane %v639, %v3870
    %v3873 = vunpack.c.l.s4 842150450
    %v3874 = vunpack.c.0.s8 %v3873
    %v3875 = vlaneseq
    %v3876 = vshrl.u32 %v3875, 7
    %v3877 = vsub.s32 %v3874, %v3876
    %v3878 = vrot.slane %v639, %v3877
    %v3880 = vunpack.c.l.s4 1414812756
    %v3881 = vunpack.c.0.s8 %v3880
    %v3882 = vlaneseq
    %v3883 = vshrl.u32 %v3882, 7
    %v3884 = vsub.s32 %v3881, %v3883
    %v3885 = vrot.slane %v639, %v3884
    %v3887 = vunpack.c.l.s4 1987475062
    %v3888 = vunpack.c.0.s8 %v3887
    %v3889 = vlaneseq
    %v3890 = vshrl.u32 %v3889, 7
    %v3891 = vsub.s32 %v3888, %v3890
    %v3892 = vrot.slane %v639, %v3891
    %v3894 = vunpack.c.l.s4 269488144
    %v3895 = vunpack.c.0.s8 %v3894
    %v3896 = vlaneseq
    %v3897 = vshrl.u32 %v3896, 7
    %v3898 = vsub.s32 %v3895, %v3897
    %v3899 = vrot.slane %v640, %v3898
    %v3901 = vunpack.c.l.s4 842150450
    %v3902 = vunpack.c.0.s8 %v3901
    %v3903 = vlaneseq
    %v3904 = vshrl.u32 %v3903, 7
    %v3905 = vsub.s32 %v3902, %v3904
    %v3906 = vrot.slane %v640, %v3905
    %v3908 = vunpack.c.l.s4 1414812756
    %v3909 = vunpack.c.0.s8 %v3908
    %v3910 = vlaneseq
    %v3911 = vshrl.u32 %v3910, 7
    %v3912 = vsub.s32 %v3909, %v3911
    %v3913 = vrot.slane %v640, %v3912
    %v3915 = vunpack.c.l.s4 1987475062
    %v3916 = vunpack.c.0.s8 %v3915
    %v3917 = vlaneseq
    %v3918 = vshrl.u32 %v3917, 7
    %v3919 = vsub.s32 %v3916, %v3918
    %v3920 = vrot.slane %v640, %v3919
    %v3922 = vunpack.c.l.s4 269488144
    %v3923 = vunpack.c.0.s8 %v3922
    %v3924 = vlaneseq
    %v3925 = vshrl.u32 %v3924, 7
    %v3926 = vsub.s32 %v3923, %v3925
    %v3927 = vrot.slane %v641, %v3926
    %v3929 = vunpack.c.l.s4 842150450
    %v3930 = vunpack.c.0.s8 %v3929
    %v3931 = vlaneseq
    %v3932 = vshrl.u32 %v3931, 7
    %v3933 = vsub.s32 %v3930, %v3932
    %v3934 = vrot.slane %v641, %v3933
    %v3936 = vunpack.c.l.s4 1414812756
    %v3937 = vunpack.c.0.s8 %v3936
    %v3938 = vlaneseq
    %v3939 = vshrl.u32 %v3938, 7
    %v3940 = vsub.s32 %v3937, %v3939
    %v3941 = vrot.slane %v641, %v3940
    %v3943 = vunpack.c.l.s4 1987475062
    %v3944 = vunpack.c.0.s8 %v3943
    %v3945 = vlaneseq
    %v3946 = vshrl.u32 %v3945, 7
    %v3947 = vsub.s32 %v3944, %v3946
    %v3948 = vrot.slane %v641, %v3947
    %v3950 = vunpack.c.l.s4 269488144
    %v3951 = vunpack.c.0.s8 %v3950
    %v3952 = vlaneseq
    %v3953 = vshrl.u32 %v3952, 7
    %v3954 = vsub.s32 %v3951, %v3953
    %v3955 = vrot.slane %v642, %v3954
    %v3957 = vunpack.c.l.s4 842150450
    %v3958 = vunpack.c.0.s8 %v3957
    %v3959 = vlaneseq
    %v3960 = vshrl.u32 %v3959, 7
    %v3961 = vsub.s32 %v3958, %v3960
    %v3962 = vrot.slane %v642, %v3961
    %v3964 = vunpack.c.l.s4 1414812756
    %v3965 = vunpack.c.0.s8 %v3964
    %v3966 = vlaneseq
    %v3967 = vshrl.u32 %v3966, 7
    %v3968 = vsub.s32 %v3965, %v3967
    %v3969 = vrot.slane %v642, %v3968
    %v3971 = vunpack.c.l.s4 1987475062
    %v3972 = vunpack.c.0.s8 %v3971
    %v3973 = vlaneseq
    %v3974 = vshrl.u32 %v3973, 7
    %v3975 = vsub.s32 %v3972, %v3974
    %v3976 = vrot.slane %v642, %v3975
    %v3978 = vunpack.c.l.s4 269488144
    %v3979 = vunpack.c.0.s8 %v3978
    %v3980 = vlaneseq
    %v3981 = vshrl.u32 %v3980, 7
    %v3982 = vsub.s32 %v3979, %v3981
    %v3983 = vrot.slane %v643, %v3982
    %v3985 = vunpack.c.l.s4 842150450
    %v3986 = vunpack.c.0.s8 %v3985
    %v3987 = vlaneseq
    %v3988 = vshrl.u32 %v3987, 7
    %v3989 = vsub.s32 %v3986, %v3988
    %v3990 = vrot.slane %v643, %v3989
    %v3992 = vunpack.c.l.s4 1414812756
    %v3993 = vunpack.c.0.s8 %v3992
    %v3994 = vlaneseq
    %v3995 = vshrl.u32 %v3994, 7
    %v3996 = vsub.s32 %v3993, %v3995
    %v3997 = vrot.slane %v643, %v3996
    %v3999 = vunpack.c.l.s4 1987475062
    %v4000 = vunpack.c.0.s8 %v3999
    %v4001 = vlaneseq
    %v4002 = vshrl.u32 %v4001, 7
    %v4003 = vsub.s32 %v4000, %v4002
    %v4004 = vrot.slane %v643, %v4003
    %v4006 = vunpack.c.l.s4 269488144
    %v4007 = vunpack.c.0.s8 %v4006
    %v4008 = vlaneseq
    %v4009 = vshrl.u32 %v4008, 7
    %v4010 = vsub.s32 %v4007, %v4009
    %v4011 = vrot.slane %v644, %v4010
    %v4013 = vunpack.c.l.s4 842150450
    %v4014 = vunpack.c.0.s8 %v4013
    %v4015 = vlaneseq
    %v4016 = vshrl.u32 %v4015, 7
    %v4017 = vsub.s32 %v4014, %v4016
    %v4018 = vrot.slane %v644, %v4017
    %v4020 = vunpack.c.l.s4 1414812756
    %v4021 = vunpack.c.0.s8 %v4020
    %v4022 = vlaneseq
    %v4023 = vshrl.u32 %v4022, 7
    %v4024 = vsub.s32 %v4021, %v4023
    %v4025 = vrot.slane %v644, %v4024
    %v4027 = vunpack.c.l.s4 1987475062
    %v4028 = vunpack.c.0.s8 %v4027
    %v4029 = vlaneseq
    %v4030 = vshrl.u32 %v4029, 7
    %v4031 = vsub.s32 %v4028, %v4030
    %v4032 = vrot.slane %v644, %v4031
    %v4034 = vunpack.c.l.s4 269488144
    %v4035 = vunpack.c.0.s8 %v4034
    %v4036 = vlaneseq
    %v4037 = vshrl.u32 %v4036, 7
    %v4038 = vsub.s32 %v4035, %v4037
    %v4039 = vrot.slane %v645, %v4038
    %v4041 = vunpack.c.l.s4 842150450
    %v4042 = vunpack.c.0.s8 %v4041
    %v4043 = vlaneseq
    %v4044 = vshrl.u32 %v4043, 7
    %v4045 = vsub.s32 %v4042, %v4044
    %v4046 = vrot.slane %v645, %v4045
    %v4048 = vunpack.c.l.s4 1414812756
    %v4049 = vunpack.c.0.s8 %v4048
    %v4050 = vlaneseq
    %v4051 = vshrl.u32 %v4050, 7
    %v4052 = vsub.s32 %v4049, %v4051
    %v4053 = vrot.slane %v645, %v4052
    %v4055 = vunpack.c.l.s4 1987475062
    %v4056 = vunpack.c.0.s8 %v4055
    %v4057 = vlaneseq
    %v4058 = vshrl.u32 %v4057, 7
    %v4059 = vsub.s32 %v4056, %v4058
    %v4060 = vrot.slane %v645, %v4059
    %v4062 = vunpack.c.l.s4 269488144
    %v4063 = vunpack.c.0.s8 %v4062
    %v4064 = vlaneseq
    %v4065 = vshrl.u32 %v4064, 7
    %v4066 = vsub.s32 %v4063, %v4065
    %v4067 = vrot.slane %v646, %v4066
    %v4069 = vunpack.c.l.s4 842150450
    %v4070 = vunpack.c.0.s8 %v4069
    %v4071 = vlaneseq
    %v4072 = vshrl.u32 %v4071, 7
    %v4073 = vsub.s32 %v4070, %v4072
    %v4074 = vrot.slane %v646, %v4073
    %v4076 = vunpack.c.l.s4 1414812756
    %v4077 = vunpack.c.0.s8 %v4076
    %v4078 = vlaneseq
    %v4079 = vshrl.u32 %v4078, 7
    %v4080 = vsub.s32 %v4077, %v4079
    %v4081 = vrot.slane %v646, %v4080
    %v4083 = vunpack.c.l.s4 1987475062
    %v4084 = vunpack.c.0.s8 %v4083
    %v4085 = vlaneseq
    %v4086 = vshrl.u32 %v4085, 7
    %v4087 = vsub.s32 %v4084, %v4086
    %v4088 = vrot.slane %v646, %v4087
    %v4090 = vunpack.c.l.s4 269488144
    %v4091 = vunpack.c.0.s8 %v4090
    %v4092 = vlaneseq
    %v4093 = vshrl.u32 %v4092, 7
    %v4094 = vsub.s32 %v4091, %v4093
    %v4095 = vrot.slane %v647, %v4094
    %v4097 = vunpack.c.l.s4 842150450
    %v4098 = vunpack.c.0.s8 %v4097
    %v4099 = vlaneseq
    %v4100 = vshrl.u32 %v4099, 7
    %v4101 = vsub.s32 %v4098, %v4100
    %v4102 = vrot.slane %v647, %v4101
    %v4104 = vunpack.c.l.s4 1414812756
    %v4105 = vunpack.c.0.s8 %v4104
    %v4106 = vlaneseq
    %v4107 = vshrl.u32 %v4106, 7
    %v4108 = vsub.s32 %v4105, %v4107
    %v4109 = vrot.slane %v647, %v4108
    %v4111 = vunpack.c.l.s4 1987475062
    %v4112 = vunpack.c.0.s8 %v4111
    %v4113 = vlaneseq
    %v4114 = vshrl.u32 %v4113, 7
    %v4115 = vsub.s32 %v4112, %v4114
    %v4116 = vrot.slane %v647, %v4115
    %v4118 = vunpack.c.l.s4 269488144
    %v4119 = vunpack.c.0.s8 %v4118
    %v4120 = vlaneseq
    %v4121 = vshrl.u32 %v4120, 7
    %v4122 = vsub.s32 %v4119, %v4121
    %v4123 = vrot.slane %v648, %v4122
    %v4125 = vunpack.c.l.s4 842150450
    %v4126 = vunpack.c.0.s8 %v4125
    %v4127 = vlaneseq
    %v4128 = vshrl.u32 %v4127, 7
    %v4129 = vsub.s32 %v4126, %v4128
    %v4130 = vrot.slane %v648, %v4129
    %v4132 = vunpack.c.l.s4 1414812756
    %v4133 = vunpack.c.0.s8 %v4132
    %v4134 = vlaneseq
    %v4135 = vshrl.u32 %v4134, 7
    %v4136 = vsub.s32 %v4133, %v4135
    %v4137 = vrot.slane %v648, %v4136
    %v4139 = vunpack.c.l.s4 1987475062
    %v4140 = vunpack.c.0.s8 %v4139
    %v4141 = vlaneseq
    %v4142 = vshrl.u32 %v4141, 7
    %v4143 = vsub.s32 %v4140, %v4142
    %v4144 = vrot.slane %v648, %v4143
    %v4146 = vunpack.c.l.s4 269488144
    %v4147 = vunpack.c.0.s8 %v4146
    %v4148 = vlaneseq
    %v4149 = vshrl.u32 %v4148, 7
    %v4150 = vsub.s32 %v4147, %v4149
    %v4151 = vrot.slane %v649, %v4150
    %v4153 = vunpack.c.l.s4 842150450
    %v4154 = vunpack.c.0.s8 %v4153
    %v4155 = vlaneseq
    %v4156 = vshrl.u32 %v4155, 7
    %v4157 = vsub.s32 %v4154, %v4156
    %v4158 = vrot.slane %v649, %v4157
    %v4160 = vunpack.c.l.s4 1414812756
    %v4161 = vunpack.c.0.s8 %v4160
    %v4162 = vlaneseq
    %v4163 = vshrl.u32 %v4162, 7
    %v4164 = vsub.s32 %v4161, %v4163
    %v4165 = vrot.slane %v649, %v4164
    %v4167 = vunpack.c.l.s4 1987475062
    %v4168 = vunpack.c.0.s8 %v4167
    %v4169 = vlaneseq
    %v4170 = vshrl.u32 %v4169, 7
    %v4171 = vsub.s32 %v4168, %v4170
    %v4172 = vrot.slane %v649, %v4171
    %v4174 = vunpack.c.l.s4 269488144
    %v4175 = vunpack.c.0.s8 %v4174
    %v4176 = vlaneseq
    %v4177 = vshrl.u32 %v4176, 7
    %v4178 = vsub.s32 %v4175, %v4177
    %v4179 = vrot.slane %v650, %v4178
    %v4181 = vunpack.c.l.s4 842150450
    %v4182 = vunpack.c.0.s8 %v4181
    %v4183 = vlaneseq
    %v4184 = vshrl.u32 %v4183, 7
    %v4185 = vsub.s32 %v4182, %v4184
    %v4186 = vrot.slane %v650, %v4185
    %v4188 = vunpack.c.l.s4 1414812756
    %v4189 = vunpack.c.0.s8 %v4188
    %v4190 = vlaneseq
    %v4191 = vshrl.u32 %v4190, 7
    %v4192 = vsub.s32 %v4189, %v4191
    %v4193 = vrot.slane %v650, %v4192
    %v4195 = vunpack.c.l.s4 1987475062
    %v4196 = vunpack.c.0.s8 %v4195
    %v4197 = vlaneseq
    %v4198 = vshrl.u32 %v4197, 7
    %v4199 = vsub.s32 %v4196, %v4198
    %v4200 = vrot.slane %v650, %v4199
    %v4202 = vunpack.c.l.s4 269488144
    %v4203 = vunpack.c.0.s8 %v4202
    %v4204 = vlaneseq
    %v4205 = vshrl.u32 %v4204, 7
    %v4206 = vsub.s32 %v4203, %v4205
    %v4207 = vrot.slane %v651, %v4206
    %v4209 = vunpack.c.l.s4 842150450
    %v4210 = vunpack.c.0.s8 %v4209
    %v4211 = vlaneseq
    %v4212 = vshrl.u32 %v4211, 7
    %v4213 = vsub.s32 %v4210, %v4212
    %v4214 = vrot.slane %v651, %v4213
    %v4216 = vunpack.c.l.s4 1414812756
    %v4217 = vunpack.c.0.s8 %v4216
    %v4218 = vlaneseq
    %v4219 = vshrl.u32 %v4218, 7
    %v4220 = vsub.s32 %v4217, %v4219
    %v4221 = vrot.slane %v651, %v4220
    %v4223 = vunpack.c.l.s4 1987475062
    %v4224 = vunpack.c.0.s8 %v4223
    %v4225 = vlaneseq
    %v4226 = vshrl.u32 %v4225, 7
    %v4227 = vsub.s32 %v4224, %v4226
    %v4228 = vrot.slane %v651, %v4227
    %v4230 = vunpack.c.l.s4 269488144
    %v4231 = vunpack.c.0.s8 %v4230
    %v4232 = vlaneseq
    %v4233 = vshrl.u32 %v4232, 7
    %v4234 = vsub.s32 %v4231, %v4233
    %v4235 = vrot.slane %v652, %v4234
    %v4237 = vunpack.c.l.s4 842150450
    %v4238 = vunpack.c.0.s8 %v4237
    %v4239 = vlaneseq
    %v4240 = vshrl.u32 %v4239, 7
    %v4241 = vsub.s32 %v4238, %v4240
    %v4242 = vrot.slane %v652, %v4241
    %v4244 = vunpack.c.l.s4 1414812756
    %v4245 = vunpack.c.0.s8 %v4244
    %v4246 = vlaneseq
    %v4247 = vshrl.u32 %v4246, 7
    %v4248 = vsub.s32 %v4245, %v4247
    %v4249 = vrot.slane %v652, %v4248
    %v4251 = vunpack.c.l.s4 1987475062
    %v4252 = vunpack.c.0.s8 %v4251
    %v4253 = vlaneseq
    %v4254 = vshrl.u32 %v4253, 7
    %v4255 = vsub.s32 %v4252, %v4254
    %v4256 = vrot.slane %v652, %v4255
    %v4258 = vunpack.c.l.s4 269488144
    %v4259 = vunpack.c.0.s8 %v4258
    %v4260 = vlaneseq
    %v4261 = vshrl.u32 %v4260, 7
    %v4262 = vsub.s32 %v4259, %v4261
    %v4263 = vrot.slane %v653, %v4262
    %v4265 = vunpack.c.l.s4 842150450
    %v4266 = vunpack.c.0.s8 %v4265
    %v4267 = vlaneseq
    %v4268 = vshrl.u32 %v4267, 7
    %v4269 = vsub.s32 %v4266, %v4268
    %v4270 = vrot.slane %v653, %v4269
    %v4272 = vunpack.c.l.s4 1414812756
    %v4273 = vunpack.c.0.s8 %v4272
    %v4274 = vlaneseq
    %v4275 = vshrl.u32 %v4274, 7
    %v4276 = vsub.s32 %v4273, %v4275
    %v4277 = vrot.slane %v653, %v4276
    %v4279 = vunpack.c.l.s4 1987475062
    %v4280 = vunpack.c.0.s8 %v4279
    %v4281 = vlaneseq
    %v4282 = vshrl.u32 %v4281, 7
    %v4283 = vsub.s32 %v4280, %v4282
    %v4284 = vrot.slane %v653, %v4283
    %v4286 = vunpack.c.l.s4 269488144
    %v4287 = vunpack.c.0.s8 %v4286
    %v4288 = vlaneseq
    %v4289 = vshrl.u32 %v4288, 7
    %v4290 = vsub.s32 %v4287, %v4289
    %v4291 = vrot.slane %v654, %v4290
    %v4293 = vunpack.c.l.s4 842150450
    %v4294 = vunpack.c.0.s8 %v4293
    %v4295 = vlaneseq
    %v4296 = vshrl.u32 %v4295, 7
    %v4297 = vsub.s32 %v4294, %v4296
    %v4298 = vrot.slane %v654, %v4297
    %v4300 = vunpack.c.l.s4 1414812756
    %v4301 = vunpack.c.0.s8 %v4300
    %v4302 = vlaneseq
    %v4303 = vshrl.u32 %v4302, 7
    %v4304 = vsub.s32 %v4301, %v4303
    %v4305 = vrot.slane %v654, %v4304
    %v4307 = vunpack.c.l.s4 1987475062
    %v4308 = vunpack.c.0.s8 %v4307
    %v4309 = vlaneseq
    %v4310 = vshrl.u32 %v4309, 7
    %v4311 = vsub.s32 %v4308, %v4310
    %v4312 = vrot.slane %v654, %v4311
    %v4314 = vunpack.c.l.s4 269488144
    %v4315 = vunpack.c.0.s8 %v4314
    %v4316 = vlaneseq
    %v4317 = vshrl.u32 %v4316, 7
    %v4318 = vsub.s32 %v4315, %v4317
    %v4319 = vrot.slane %v655, %v4318
    %v4321 = vunpack.c.l.s4 842150450
    %v4322 = vunpack.c.0.s8 %v4321
    %v4323 = vlaneseq
    %v4324 = vshrl.u32 %v4323, 7
    %v4325 = vsub.s32 %v4322, %v4324
    %v4326 = vrot.slane %v655, %v4325
    %v4328 = vunpack.c.l.s4 1414812756
    %v4329 = vunpack.c.0.s8 %v4328
    %v4330 = vlaneseq
    %v4331 = vshrl.u32 %v4330, 7
    %v4332 = vsub.s32 %v4329, %v4331
    %v4333 = vrot.slane %v655, %v4332
    %v4335 = vunpack.c.l.s4 1987475062
    %v4336 = vunpack.c.0.s8 %v4335
    %v4337 = vlaneseq
    %v4338 = vshrl.u32 %v4337, 7
    %v4339 = vsub.s32 %v4336, %v4338
    %v4340 = vrot.slane %v655, %v4339
    %v4342 = vunpack.c.l.s4 269488144
    %v4343 = vunpack.c.0.s8 %v4342
    %v4344 = vlaneseq
    %v4345 = vshrl.u32 %v4344, 7
    %v4346 = vsub.s32 %v4343, %v4345
    %v4347 = vrot.slane %v656, %v4346
    %v4349 = vunpack.c.l.s4 842150450
    %v4350 = vunpack.c.0.s8 %v4349
    %v4351 = vlaneseq
    %v4352 = vshrl.u32 %v4351, 7
    %v4353 = vsub.s32 %v4350, %v4352
    %v4354 = vrot.slane %v656, %v4353
    %v4356 = vunpack.c.l.s4 1414812756
    %v4357 = vunpack.c.0.s8 %v4356
    %v4358 = vlaneseq
    %v4359 = vshrl.u32 %v4358, 7
    %v4360 = vsub.s32 %v4357, %v4359
    %v4361 = vrot.slane %v656, %v4360
    %v4363 = vunpack.c.l.s4 1987475062
    %v4364 = vunpack.c.0.s8 %v4363
    %v4365 = vlaneseq
    %v4366 = vshrl.u32 %v4365, 7
    %v4367 = vsub.s32 %v4364, %v4366
    %v4368 = vrot.slane %v656, %v4367
    %v4369 = vcombine.low %v791, %v798
    %v4370 = vcombine.low %v805, %v812
    %v4372 = vunpack.c.l.s4 1983009808
    %v4373 = vunpack.c.0.s8 %v4372
    %v4374 = vlaneseq
    %v4375 = vshrl.u32 %v4374, 7
    %v4376 = vsub.s32 %v4373, %v4375
    %v4377 = vrot.slane %v4369, %v4376
    %v4379 = vunpack.c.l.s4 1983009808
    %v4380 = vunpack.c.0.s8 %v4379
    %v4381 = vlaneseq
    %v4382 = vshrl.u32 %v4381, 7
    %v4383 = vsub.s32 %v4380, %v4382
    %v4384 = vrot.slane %v4370, %v4383
    %v4385 = vcombine.low %v4377, %v4384
    %v4386 = vcombine.low %v819, %v826
    %v4387 = vcombine.low %v833, %v840
    %v4389 = vunpack.c.l.s4 1983009808
    %v4390 = vunpack.c.0.s8 %v4389
    %v4391 = vlaneseq
    %v4392 = vshrl.u32 %v4391, 7
    %v4393 = vsub.s32 %v4390, %v4392
    %v4394 = vrot.slane %v4386, %v4393
    %v4396 = vunpack.c.l.s4 1983009808
    %v4397 = vunpack.c.0.s8 %v4396
    %v4398 = vlaneseq
    %v4399 = vshrl.u32 %v4398, 7
    %v4400 = vsub.s32 %v4397, %v4399
    %v4401 = vrot.slane %v4387, %v4400
    %v4402 = vcombine.low %v4394, %v4401
    %v4403 = vcombine.low %v847, %v854
    %v4404 = vcombine.low %v861, %v868
    %v4406 = vunpack.c.l.s4 1983009808
    %v4407 = vunpack.c.0.s8 %v4406
    %v4408 = vlaneseq
    %v4409 = vshrl.u32 %v4408, 7
    %v4410 = vsub.s32 %v4407, %v4409
    %v4411 = vrot.slane %v4403, %v4410
    %v4413 = vunpack.c.l.s4 1983009808
    %v4414 = vunpack.c.0.s8 %v4413
    %v4415 = vlaneseq
    %v4416 = vshrl.u32 %v4415, 7
    %v4417 = vsub.s32 %v4414, %v4416
    %v4418 = vrot.slane %v4404, %v4417
    %v4419 = vcombine.low %v4411, %v4418
    %v4420 = vcombine.low %v875, %v882
    %v4421 = vcombine.low %v889, %v896
    %v4423 = vunpack.c.l.s4 1983009808
    %v4424 = vunpack.c.0.s8 %v4423
    %v4425 = vlaneseq
    %v4426 = vshrl.u32 %v4425, 7
    %v4427 = vsub.s32 %v4424, %v4426
    %v4428 = vrot.slane %v4420, %v4427
    %v4430 = vunpack.c.l.s4 1983009808
    %v4431 = vunpack.c.0.s8 %v4430
    %v4432 = vlaneseq
    %v4433 = vshrl.u32 %v4432, 7
    %v4434 = vsub.s32 %v4431, %v4433
    %v4435 = vrot.slane %v4421, %v4434
    %v4436 = vcombine.low %v4428, %v4435
    %v4437 = vcombine.low %v903, %v910
    %v4438 = vcombine.low %v917, %v924
    %v4440 = vunpack.c.l.s4 1983009808
    %v4441 = vunpack.c.0.s8 %v4440
    %v4442 = vlaneseq
    %v4443 = vshrl.u32 %v4442, 7
    %v4444 = vsub.s32 %v4441, %v4443
    %v4445 = vrot.slane %v4437, %v4444
    %v4447 = vunpack.c.l.s4 1983009808
    %v4448 = vunpack.c.0.s8 %v4447
    %v4449 = vlaneseq
    %v4450 = vshrl.u32 %v4449, 7
    %v4451 = vsub.s32 %v4448, %v4450
    %v4452 = vrot.slane %v4438, %v4451
    %v4453 = vcombine.low %v4445, %v4452
    %v4454 = vcombine.low %v931, %v938
    %v4455 = vcombine.low %v945, %v952
    %v4457 = vunpack.c.l.s4 1983009808
    %v4458 = vunpack.c.0.s8 %v4457
    %v4459 = vlaneseq
    %v4460 = vshrl.u32 %v4459, 7
    %v4461 = vsub.s32 %v4458, %v4460
    %v4462 = vrot.slane %v4454, %v4461
    %v4464 = vunpack.c.l.s4 1983009808
    %v4465 = vunpack.c.0.s8 %v4464
    %v4466 = vlaneseq
    %v4467 = vshrl.u32 %v4466, 7
    %v4468 = vsub.s32 %v4465, %v4467
    %v4469 = vrot.slane %v4455, %v4468
    %v4470 = vcombine.low %v4462, %v4469
    %v4471 = vcombine.low %v959, %v966
    %v4472 = vcombine.low %v973, %v980
    %v4474 = vunpack.c.l.s4 1983009808
    %v4475 = vunpack.c.0.s8 %v4474
    %v4476 = vlaneseq
    %v4477 = vshrl.u32 %v4476, 7
    %v4478 = vsub.s32 %v4475, %v4477
    %v4479 = vrot.slane %v4471, %v4478
    %v4481 = vunpack.c.l.s4 1983009808
    %v4482 = vunpack.c.0.s8 %v4481
    %v4483 = vlaneseq
    %v4484 = vshrl.u32 %v4483, 7
    %v4485 = vsub.s32 %v4482, %v4484
    %v4486 = vrot.slane %v4472, %v4485
    %v4487 = vcombine.low %v4479, %v4486
    %v4488 = vcombine.low %v987, %v994
    %v4489 = vcombine.low %v1001, %v1008
    %v4491 = vunpack.c.l.s4 1983009808
    %v4492 = vunpack.c.0.s8 %v4491
    %v4493 = vlaneseq
    %v4494 = vshrl.u32 %v4493, 7
    %v4495 = vsub.s32 %v4492, %v4494
    %v4496 = vrot.slane %v4488, %v4495
    %v4498 = vunpack.c.l.s4 1983009808
    %v4499 = vunpack.c.0.s8 %v4498
    %v4500 = vlaneseq
    %v4501 = vshrl.u32 %v4500, 7
    %v4502 = vsub.s32 %v4499, %v4501
    %v4503 = vrot.slane %v4489, %v4502
    %v4504 = vcombine.low %v4496, %v4503
    %v4505 = vcombine.low %v1015, %v1022
    %v4506 = vcombine.low %v1029, %v1036
    %v4508 = vunpack.c.l.s4 1983009808
    %v4509 = vunpack.c.0.s8 %v4508
    %v4510 = vlaneseq
    %v4511 = vshrl.u32 %v4510, 7
    %v4512 = vsub.s32 %v4509, %v4511
    %v4513 = vrot.slane %v4505, %v4512
    %v4515 = vunpack.c.l.s4 1983009808
    %v4516 = vunpack.c.0.s8 %v4515
    %v4517 = vlaneseq
    %v4518 = vshrl.u32 %v4517, 7
    %v4519 = vsub.s32 %v4516, %v4518
    %v4520 = vrot.slane %v4506, %v4519
    %v4521 = vcombine.low %v4513, %v4520
    %v4522 = vcombine.low %v1043, %v1050
    %v4523 = vcombine.low %v1057, %v1064
    %v4525 = vunpack.c.l.s4 1983009808
    %v4526 = vunpack.c.0.s8 %v4525
    %v4527 = vlaneseq
    %v4528 = vshrl.u32 %v4527, 7
    %v4529 = vsub.s32 %v4526, %v4528
    %v4530 = vrot.slane %v4522, %v4529
    %v4532 = vunpack.c.l.s4 1983009808
    %v4533 = vunpack.c.0.s8 %v4532
    %v4534 = vlaneseq
    %v4535 = vshrl.u32 %v4534, 7
    %v4536 = vsub.s32 %v4533, %v4535
    %v4537 = vrot.slane %v4523, %v4536
    %v4538 = vcombine.low %v4530, %v4537
    %v4539 = vcombine.low %v1071, %v1078
    %v4540 = vcombine.low %v1085, %v1092
    %v4542 = vunpack.c.l.s4 1983009808
    %v4543 = vunpack.c.0.s8 %v4542
    %v4544 = vlaneseq
    %v4545 = vshrl.u32 %v4544, 7
    %v4546 = vsub.s32 %v4543, %v4545
    %v4547 = vrot.slane %v4539, %v4546
    %v4549 = vunpack.c.l.s4 1983009808
    %v4550 = vunpack.c.0.s8 %v4549
    %v4551 = vlaneseq
    %v4552 = vshrl.u32 %v4551, 7
    %v4553 = vsub.s32 %v4550, %v4552
    %v4554 = vrot.slane %v4540, %v4553
    %v4555 = vcombine.low %v4547, %v4554
    %v4556 = vcombine.low %v1099, %v1106
    %v4557 = vcombine.low %v1113, %v1120
    %v4559 = vunpack.c.l.s4 1983009808
    %v4560 = vunpack.c.0.s8 %v4559
    %v4561 = vlaneseq
    %v4562 = vshrl.u32 %v4561, 7
    %v4563 = vsub.s32 %v4560, %v4562
    %v4564 = vrot.slane %v4556, %v4563
    %v4566 = vunpack.c.l.s4 1983009808
    %v4567 = vunpack.c.0.s8 %v4566
    %v4568 = vlaneseq
    %v4569 = vshrl.u32 %v4568, 7
    %v4570 = vsub.s32 %v4567, %v4569
    %v4571 = vrot.slane %v4557, %v4570
    %v4572 = vcombine.low %v4564, %v4571
    %v4573 = vcombine.low %v1127, %v1134
    %v4574 = vcombine.low %v1141, %v1148
    %v4576 = vunpack.c.l.s4 1983009808
    %v4577 = vunpack.c.0.s8 %v4576
    %v4578 = vlaneseq
    %v4579 = vshrl.u32 %v4578, 7
    %v4580 = vsub.s32 %v4577, %v4579
    %v4581 = vrot.slane %v4573, %v4580
    %v4583 = vunpack.c.l.s4 1983009808
    %v4584 = vunpack.c.0.s8 %v4583
    %v4585 = vlaneseq
    %v4586 = vshrl.u32 %v4585, 7
    %v4587 = vsub.s32 %v4584, %v4586
    %v4588 = vrot.slane %v4574, %v4587
    %v4589 = vcombine.low %v4581, %v4588
    %v4590 = vcombine.low %v1155, %v1162
    %v4591 = vcombine.low %v1169, %v1176
    %v4593 = vunpack.c.l.s4 1983009808
    %v4594 = vunpack.c.0.s8 %v4593
    %v4595 = vlaneseq
    %v4596 = vshrl.u32 %v4595, 7
    %v4597 = vsub.s32 %v4594, %v4596
    %v4598 = vrot.slane %v4590, %v4597
    %v4600 = vunpack.c.l.s4 1983009808
    %v4601 = vunpack.c.0.s8 %v4600
    %v4602 = vlaneseq
    %v4603 = vshrl.u32 %v4602, 7
    %v4604 = vsub.s32 %v4601, %v4603
    %v4605 = vrot.slane %v4591, %v4604
    %v4606 = vcombine.low %v4598, %v4605
    %v4607 = vcombine.low %v1183, %v1190
    %v4608 = vcombine.low %v1197, %v1204
    %v4610 = vunpack.c.l.s4 1983009808
    %v4611 = vunpack.c.0.s8 %v4610
    %v4612 = vlaneseq
    %v4613 = vshrl.u32 %v4612, 7
    %v4614 = vsub.s32 %v4611, %v4613
    %v4615 = vrot.slane %v4607, %v4614
    %v4617 = vunpack.c.l.s4 1983009808
    %v4618 = vunpack.c.0.s8 %v4617
    %v4619 = vlaneseq
    %v4620 = vshrl.u32 %v4619, 7
    %v4621 = vsub.s32 %v4618, %v4620
    %v4622 = vrot.slane %v4608, %v4621
    %v4623 = vcombine.low %v4615, %v4622
    %v4624 = vcombine.low %v1211, %v1218
    %v4625 = vcombine.low %v1225, %v1232
    %v4627 = vunpack.c.l.s4 1983009808
    %v4628 = vunpack.c.0.s8 %v4627
    %v4629 = vlaneseq
    %v4630 = vshrl.u32 %v4629, 7
    %v4631 = vsub.s32 %v4628, %v4630
    %v4632 = vrot.slane %v4624, %v4631
    %v4634 = vunpack.c.l.s4 1983009808
    %v4635 = vunpack.c.0.s8 %v4634
    %v4636 = vlaneseq
    %v4637 = vshrl.u32 %v4636, 7
    %v4638 = vsub.s32 %v4635, %v4637
    %v4639 = vrot.slane %v4625, %v4638
    %v4640 = vcombine.low %v4632, %v4639
    %v4641 = vcombine.low %v1239, %v1246
    %v4642 = vcombine.low %v1253, %v1260
    %v4644 = vunpack.c.l.s4 1983009808
    %v4645 = vunpack.c.0.s8 %v4644
    %v4646 = vlaneseq
    %v4647 = vshrl.u32 %v4646, 7
    %v4648 = vsub.s32 %v4645, %v4647
    %v4649 = vrot.slane %v4641, %v4648
    %v4651 = vunpack.c.l.s4 1983009808
    %v4652 = vunpack.c.0.s8 %v4651
    %v4653 = vlaneseq
    %v4654 = vshrl.u32 %v4653, 7
    %v4655 = vsub.s32 %v4652, %v4654
    %v4656 = vrot.slane %v4642, %v4655
    %v4657 = vcombine.low %v4649, %v4656
    %v4658 = vcombine.low %v1267, %v1274
    %v4659 = vcombine.low %v1281, %v1288
    %v4661 = vunpack.c.l.s4 1983009808
    %v4662 = vunpack.c.0.s8 %v4661
    %v4663 = vlaneseq
    %v4664 = vshrl.u32 %v4663, 7
    %v4665 = vsub.s32 %v4662, %v4664
    %v4666 = vrot.slane %v4658, %v4665
    %v4668 = vunpack.c.l.s4 1983009808
    %v4669 = vunpack.c.0.s8 %v4668
    %v4670 = vlaneseq
    %v4671 = vshrl.u32 %v4670, 7
    %v4672 = vsub.s32 %v4669, %v4671
    %v4673 = vrot.slane %v4659, %v4672
    %v4674 = vcombine.low %v4666, %v4673
    %v4675 = vcombine.low %v1295, %v1302
    %v4676 = vcombine.low %v1309, %v1316
    %v4678 = vunpack.c.l.s4 1983009808
    %v4679 = vunpack.c.0.s8 %v4678
    %v4680 = vlaneseq
    %v4681 = vshrl.u32 %v4680, 7
    %v4682 = vsub.s32 %v4679, %v4681
    %v4683 = vrot.slane %v4675, %v4682
    %v4685 = vunpack.c.l.s4 1983009808
    %v4686 = vunpack.c.0.s8 %v4685
    %v4687 = vlaneseq
    %v4688 = vshrl.u32 %v4687, 7
    %v4689 = vsub.s32 %v4686, %v4688
    %v4690 = vrot.slane %v4676, %v4689
    %v4691 = vcombine.low %v4683, %v4690
    %v4692 = vcombine.low %v1323, %v1330
    %v4693 = vcombine.low %v1337, %v1344
    %v4695 = vunpack.c.l.s4 1983009808
    %v4696 = vunpack.c.0.s8 %v4695
    %v4697 = vlaneseq
    %v4698 = vshrl.u32 %v4697, 7
    %v4699 = vsub.s32 %v4696, %v4698
    %v4700 = vrot.slane %v4692, %v4699
    %v4702 = vunpack.c.l.s4 1983009808
    %v4703 = vunpack.c.0.s8 %v4702
    %v4704 = vlaneseq
    %v4705 = vshrl.u32 %v4704, 7
    %v4706 = vsub.s32 %v4703, %v4705
    %v4707 = vrot.slane %v4693, %v4706
    %v4708 = vcombine.low %v4700, %v4707
    %v4709 = vcombine.low %v1351, %v1358
    %v4710 = vcombine.low %v1365, %v1372
    %v4712 = vunpack.c.l.s4 1983009808
    %v4713 = vunpack.c.0.s8 %v4712
    %v4714 = vlaneseq
    %v4715 = vshrl.u32 %v4714, 7
    %v4716 = vsub.s32 %v4713, %v4715
    %v4717 = vrot.slane %v4709, %v4716
    %v4719 = vunpack.c.l.s4 1983009808
    %v4720 = vunpack.c.0.s8 %v4719
    %v4721 = vlaneseq
    %v4722 = vshrl.u32 %v4721, 7
    %v4723 = vsub.s32 %v4720, %v4722
    %v4724 = vrot.slane %v4710, %v4723
    %v4725 = vcombine.low %v4717, %v4724
    %v4726 = vcombine.low %v1379, %v1386
    %v4727 = vcombine.low %v1393, %v1400
    %v4729 = vunpack.c.l.s4 1983009808
    %v4730 = vunpack.c.0.s8 %v4729
    %v4731 = vlaneseq
    %v4732 = vshrl.u32 %v4731, 7
    %v4733 = vsub.s32 %v4730, %v4732
    %v4734 = vrot.slane %v4726, %v4733
    %v4736 = vunpack.c.l.s4 1983009808
    %v4737 = vunpack.c.0.s8 %v4736
    %v4738 = vlaneseq
    %v4739 = vshrl.u32 %v4738, 7
    %v4740 = vsub.s32 %v4737, %v4739
    %v4741 = vrot.slane %v4727, %v4740
    %v4742 = vcombine.low %v4734, %v4741
    %v4743 = vcombine.low %v1407, %v1414
    %v4744 = vcombine.low %v1421, %v1428
    %v4746 = vunpack.c.l.s4 1983009808
    %v4747 = vunpack.c.0.s8 %v4746
    %v4748 = vlaneseq
    %v4749 = vshrl.u32 %v4748, 7
    %v4750 = vsub.s32 %v4747, %v4749
    %v4751 = vrot.slane %v4743, %v4750
    %v4753 = vunpack.c.l.s4 1983009808
    %v4754 = vunpack.c.0.s8 %v4753
    %v4755 = vlaneseq
    %v4756 = vshrl.u32 %v4755, 7
    %v4757 = vsub.s32 %v4754, %v4756
    %v4758 = vrot.slane %v4744, %v4757
    %v4759 = vcombine.low %v4751, %v4758
    %v4760 = vcombine.low %v1435, %v1442
    %v4761 = vcombine.low %v1449, %v1456
    %v4763 = vunpack.c.l.s4 1983009808
    %v4764 = vunpack.c.0.s8 %v4763
    %v4765 = vlaneseq
    %v4766 = vshrl.u32 %v4765, 7
    %v4767 = vsub.s32 %v4764, %v4766
    %v4768 = vrot.slane %v4760, %v4767
    %v4770 = vunpack.c.l.s4 1983009808
    %v4771 = vunpack.c.0.s8 %v4770
    %v4772 = vlaneseq
    %v4773 = vshrl.u32 %v4772, 7
    %v4774 = vsub.s32 %v4771, %v4773
    %v4775 = vrot.slane %v4761, %v4774
    %v4776 = vcombine.low %v4768, %v4775
    %v4777 = vcombine.low %v1463, %v1470
    %v4778 = vcombine.low %v1477, %v1484
    %v4780 = vunpack.c.l.s4 1983009808
    %v4781 = vunpack.c.0.s8 %v4780
    %v4782 = vlaneseq
    %v4783 = vshrl.u32 %v4782, 7
    %v4784 = vsub.s32 %v4781, %v4783
    %v4785 = vrot.slane %v4777, %v4784
    %v4787 = vunpack.c.l.s4 1983009808
    %v4788 = vunpack.c.0.s8 %v4787
    %v4789 = vlaneseq
    %v4790 = vshrl.u32 %v4789, 7
    %v4791 = vsub.s32 %v4788, %v4790
    %v4792 = vrot.slane %v4778, %v4791
    %v4793 = vcombine.low %v4785, %v4792
    %v4794 = vcombine.low %v1491, %v1498
    %v4795 = vcombine.low %v1505, %v1512
    %v4797 = vunpack.c.l.s4 1983009808
    %v4798 = vunpack.c.0.s8 %v4797
    %v4799 = vlaneseq
    %v4800 = vshrl.u32 %v4799, 7
    %v4801 = vsub.s32 %v4798, %v4800
    %v4802 = vrot.slane %v4794, %v4801
    %v4804 = vunpack.c.l.s4 1983009808
    %v4805 = vunpack.c.0.s8 %v4804
    %v4806 = vlaneseq
    %v4807 = vshrl.u32 %v4806, 7
    %v4808 = vsub.s32 %v4805, %v4807
    %v4809 = vrot.slane %v4795, %v4808
    %v4810 = vcombine.low %v4802, %v4809
    %v4811 = vcombine.low %v1519, %v1526
    %v4812 = vcombine.low %v1533, %v1540
    %v4814 = vunpack.c.l.s4 1983009808
    %v4815 = vunpack.c.0.s8 %v4814
    %v4816 = vlaneseq
    %v4817 = vshrl.u32 %v4816, 7
    %v4818 = vsub.s32 %v4815, %v4817
    %v4819 = vrot.slane %v4811, %v4818
    %v4821 = vunpack.c.l.s4 1983009808
    %v4822 = vunpack.c.0.s8 %v4821
    %v4823 = vlaneseq
    %v4824 = vshrl.u32 %v4823, 7
    %v4825 = vsub.s32 %v4822, %v4824
    %v4826 = vrot.slane %v4812, %v4825
    %v4827 = vcombine.low %v4819, %v4826
    %v4828 = vcombine.low %v1547, %v1554
    %v4829 = vcombine.low %v1561, %v1568
    %v4831 = vunpack.c.l.s4 1983009808
    %v4832 = vunpack.c.0.s8 %v4831
    %v4833 = vlaneseq
    %v4834 = vshrl.u32 %v4833, 7
    %v4835 = vsub.s32 %v4832, %v4834
    %v4836 = vrot.slane %v4828, %v4835
    %v4838 = vunpack.c.l.s4 1983009808
    %v4839 = vunpack.c.0.s8 %v4838
    %v4840 = vlaneseq
    %v4841 = vshrl.u32 %v4840, 7
    %v4842 = vsub.s32 %v4839, %v4841
    %v4843 = vrot.slane %v4829, %v4842
    %v4844 = vcombine.low %v4836, %v4843
    %v4845 = vcombine.low %v1575, %v1582
    %v4846 = vcombine.low %v1589, %v1596
    %v4848 = vunpack.c.l.s4 1983009808
    %v4849 = vunpack.c.0.s8 %v4848
    %v4850 = vlaneseq
    %v4851 = vshrl.u32 %v4850, 7
    %v4852 = vsub.s32 %v4849, %v4851
    %v4853 = vrot.slane %v4845, %v4852
    %v4855 = vunpack.c.l.s4 1983009808
    %v4856 = vunpack.c.0.s8 %v4855
    %v4857 = vlaneseq
    %v4858 = vshrl.u32 %v4857, 7
    %v4859 = vsub.s32 %v4856, %v4858
    %v4860 = vrot.slane %v4846, %v4859
    %v4861 = vcombine.low %v4853, %v4860
    %v4862 = vcombine.low %v1603, %v1610
    %v4863 = vcombine.low %v1617, %v1624
    %v4865 = vunpack.c.l.s4 1983009808
    %v4866 = vunpack.c.0.s8 %v4865
    %v4867 = vlaneseq
    %v4868 = vshrl.u32 %v4867, 7
    %v4869 = vsub.s32 %v4866, %v4868
    %v4870 = vrot.slane %v4862, %v4869
    %v4872 = vunpack.c.l.s4 1983009808
    %v4873 = vunpack.c.0.s8 %v4872
    %v4874 = vlaneseq
    %v4875 = vshrl.u32 %v4874, 7
    %v4876 = vsub.s32 %v4873, %v4875
    %v4877 = vrot.slane %v4863, %v4876
    %v4878 = vcombine.low %v4870, %v4877
    %v4879 = vcombine.low %v1631, %v1638
    %v4880 = vcombine.low %v1645, %v1652
    %v4882 = vunpack.c.l.s4 1983009808
    %v4883 = vunpack.c.0.s8 %v4882
    %v4884 = vlaneseq
    %v4885 = vshrl.u32 %v4884, 7
    %v4886 = vsub.s32 %v4883, %v4885
    %v4887 = vrot.slane %v4879, %v4886
    %v4889 = vunpack.c.l.s4 1983009808
    %v4890 = vunpack.c.0.s8 %v4889
    %v4891 = vlaneseq
    %v4892 = vshrl.u32 %v4891, 7
    %v4893 = vsub.s32 %v4890, %v4892
    %v4894 = vrot.slane %v4880, %v4893
    %v4895 = vcombine.low %v4887, %v4894
    %v4896 = vcombine.low %v1659, %v1666
    %v4897 = vcombine.low %v1673, %v1680
    %v4899 = vunpack.c.l.s4 1983009808
    %v4900 = vunpack.c.0.s8 %v4899
    %v4901 = vlaneseq
    %v4902 = vshrl.u32 %v4901, 7
    %v4903 = vsub.s32 %v4900, %v4902
    %v4904 = vrot.slane %v4896, %v4903
    %v4906 = vunpack.c.l.s4 1983009808
    %v4907 = vunpack.c.0.s8 %v4906
    %v4908 = vlaneseq
    %v4909 = vshrl.u32 %v4908, 7
    %v4910 = vsub.s32 %v4907, %v4909
    %v4911 = vrot.slane %v4897, %v4910
    %v4912 = vcombine.low %v4904, %v4911
    %v4913 = vcombine.low %v1687, %v1694
    %v4914 = vcombine.low %v1701, %v1708
    %v4916 = vunpack.c.l.s4 1983009808
    %v4917 = vunpack.c.0.s8 %v4916
    %v4918 = vlaneseq
    %v4919 = vshrl.u32 %v4918, 7
    %v4920 = vsub.s32 %v4917, %v4919
    %v4921 = vrot.slane %v4913, %v4920
    %v4923 = vunpack.c.l.s4 1983009808
    %v4924 = vunpack.c.0.s8 %v4923
    %v4925 = vlaneseq
    %v4926 = vshrl.u32 %v4925, 7
    %v4927 = vsub.s32 %v4924, %v4926
    %v4928 = vrot.slane %v4914, %v4927
    %v4929 = vcombine.low %v4921, %v4928
    %v4930 = vcombine.low %v1715, %v1722
    %v4931 = vcombine.low %v1729, %v1736
    %v4933 = vunpack.c.l.s4 1983009808
    %v4934 = vunpack.c.0.s8 %v4933
    %v4935 = vlaneseq
    %v4936 = vshrl.u32 %v4935, 7
    %v4937 = vsub.s32 %v4934, %v4936
    %v4938 = vrot.slane %v4930, %v4937
    %v4940 = vunpack.c.l.s4 1983009808
    %v4941 = vunpack.c.0.s8 %v4940
    %v4942 = vlaneseq
    %v4943 = vshrl.u32 %v4942, 7
    %v4944 = vsub.s32 %v4941, %v4943
    %v4945 = vrot.slane %v4931, %v4944
    %v4946 = vcombine.low %v4938, %v4945
    %v4947 = vcombine.low %v1743, %v1750
    %v4948 = vcombine.low %v1757, %v1764
    %v4950 = vunpack.c.l.s4 1983009808
    %v4951 = vunpack.c.0.s8 %v4950
    %v4952 = vlaneseq
    %v4953 = vshrl.u32 %v4952, 7
    %v4954 = vsub.s32 %v4951, %v4953
    %v4955 = vrot.slane %v4947, %v4954
    %v4957 = vunpack.c.l.s4 1983009808
    %v4958 = vunpack.c.0.s8 %v4957
    %v4959 = vlaneseq
    %v4960 = vshrl.u32 %v4959, 7
    %v4961 = vsub.s32 %v4958, %v4960
    %v4962 = vrot.slane %v4948, %v4961
    %v4963 = vcombine.low %v4955, %v4962
    %v4964 = vcombine.low %v1771, %v1778
    %v4965 = vcombine.low %v1785, %v1792
    %v4967 = vunpack.c.l.s4 1983009808
    %v4968 = vunpack.c.0.s8 %v4967
    %v4969 = vlaneseq
    %v4970 = vshrl.u32 %v4969, 7
    %v4971 = vsub.s32 %v4968, %v4970
    %v4972 = vrot.slane %v4964, %v4971
    %v4974 = vunpack.c.l.s4 1983009808
    %v4975 = vunpack.c.0.s8 %v4974
    %v4976 = vlaneseq
    %v4977 = vshrl.u32 %v4976, 7
    %v4978 = vsub.s32 %v4975, %v4977
    %v4979 = vrot.slane %v4965, %v4978
    %v4980 = vcombine.low %v4972, %v4979
    %v4981 = vcombine.low %v1799, %v1806
    %v4982 = vcombine.low %v1813, %v1820
    %v4984 = vunpack.c.l.s4 1983009808
    %v4985 = vunpack.c.0.s8 %v4984
    %v4986 = vlaneseq
    %v4987 = vshrl.u32 %v4986, 7
    %v4988 = vsub.s32 %v4985, %v4987
    %v4989 = vrot.slane %v4981, %v4988
    %v4991 = vunpack.c.l.s4 1983009808
    %v4992 = vunpack.c.0.s8 %v4991
    %v4993 = vlaneseq
    %v4994 = vshrl.u32 %v4993, 7
    %v4995 = vsub.s32 %v4992, %v4994
    %v4996 = vrot.slane %v4982, %v4995
    %v4997 = vcombine.low %v4989, %v4996
    %v4998 = vcombine.low %v1827, %v1834
    %v4999 = vcombine.low %v1841, %v1848
    %v5001 = vunpack.c.l.s4 1983009808
    %v5002 = vunpack.c.0.s8 %v5001
    %v5003 = vlaneseq
    %v5004 = vshrl.u32 %v5003, 7
    %v5005 = vsub.s32 %v5002, %v5004
    %v5006 = vrot.slane %v4998, %v5005
    %v5008 = vunpack.c.l.s4 1983009808
    %v5009 = vunpack.c.0.s8 %v5008
    %v5010 = vlaneseq
    %v5011 = vshrl.u32 %v5010, 7
    %v5012 = vsub.s32 %v5009, %v5011
    %v5013 = vrot.slane %v4999, %v5012
    %v5014 = vcombine.low %v5006, %v5013
    %v5015 = vcombine.low %v1855, %v1862
    %v5016 = vcombine.low %v1869, %v1876
    %v5018 = vunpack.c.l.s4 1983009808
    %v5019 = vunpack.c.0.s8 %v5018
    %v5020 = vlaneseq
    %v5021 = vshrl.u32 %v5020, 7
    %v5022 = vsub.s32 %v5019, %v5021
    %v5023 = vrot.slane %v5015, %v5022
    %v5025 = vunpack.c.l.s4 1983009808
    %v5026 = vunpack.c.0.s8 %v5025
    %v5027 = vlaneseq
    %v5028 = vshrl.u32 %v5027, 7
    %v5029 = vsub.s32 %v5026, %v5028
    %v5030 = vrot.slane %v5016, %v5029
    %v5031 = vcombine.low %v5023, %v5030
    %v5032 = vcombine.low %v1883, %v1890
    %v5033 = vcombine.low %v1897, %v1904
    %v5035 = vunpack.c.l.s4 1983009808
    %v5036 = vunpack.c.0.s8 %v5035
    %v5037 = vlaneseq
    %v5038 = vshrl.u32 %v5037, 7
    %v5039 = vsub.s32 %v5036, %v5038
    %v5040 = vrot.slane %v5032, %v5039
    %v5042 = vunpack.c.l.s4 1983009808
    %v5043 = vunpack.c.0.s8 %v5042
    %v5044 = vlaneseq
    %v5045 = vshrl.u32 %v5044, 7
    %v5046 = vsub.s32 %v5043, %v5045
    %v5047 = vrot.slane %v5033, %v5046
    %v5048 = vcombine.low %v5040, %v5047
    %v5049 = vcombine.low %v1911, %v1918
    %v5050 = vcombine.low %v1925, %v1932
    %v5052 = vunpack.c.l.s4 1983009808
    %v5053 = vunpack.c.0.s8 %v5052
    %v5054 = vlaneseq
    %v5055 = vshrl.u32 %v5054, 7
    %v5056 = vsub.s32 %v5053, %v5055
    %v5057 = vrot.slane %v5049, %v5056
    %v5059 = vunpack.c.l.s4 1983009808
    %v5060 = vunpack.c.0.s8 %v5059
    %v5061 = vlaneseq
    %v5062 = vshrl.u32 %v5061, 7
    %v5063 = vsub.s32 %v5060, %v5062
    %v5064 = vrot.slane %v5050, %v5063
    %v5065 = vcombine.low %v5057, %v5064
    %v5066 = vcombine.low %v1939, %v1946
    %v5067 = vcombine.low %v1953, %v1960
    %v5069 = vunpack.c.l.s4 1983009808
    %v5070 = vunpack.c.0.s8 %v5069
    %v5071 = vlaneseq
    %v5072 = vshrl.u32 %v5071, 7
    %v5073 = vsub.s32 %v5070, %v5072
    %v5074 = vrot.slane %v5066, %v5073
    %v5076 = vunpack.c.l.s4 1983009808
    %v5077 = vunpack.c.0.s8 %v5076
    %v5078 = vlaneseq
    %v5079 = vshrl.u32 %v5078, 7
    %v5080 = vsub.s32 %v5077, %v5079
    %v5081 = vrot.slane %v5067, %v5080
    %v5082 = vcombine.low %v5074, %v5081
    %v5083 = vcombine.low %v1967, %v1974
    %v5084 = vcombine.low %v1981, %v1988
    %v5086 = vunpack.c.l.s4 1983009808
    %v5087 = vunpack.c.0.s8 %v5086
    %v5088 = vlaneseq
    %v5089 = vshrl.u32 %v5088, 7
    %v5090 = vsub.s32 %v5087, %v5089
    %v5091 = vrot.slane %v5083, %v5090
    %v5093 = vunpack.c.l.s4 1983009808
    %v5094 = vunpack.c.0.s8 %v5093
    %v5095 = vlaneseq
    %v5096 = vshrl.u32 %v5095, 7
    %v5097 = vsub.s32 %v5094, %v5096
    %v5098 = vrot.slane %v5084, %v5097
    %v5099 = vcombine.low %v5091, %v5098
    %v5100 = vcombine.low %v1995, %v2002
    %v5101 = vcombine.low %v2009, %v2016
    %v5103 = vunpack.c.l.s4 1983009808
    %v5104 = vunpack.c.0.s8 %v5103
    %v5105 = vlaneseq
    %v5106 = vshrl.u32 %v5105, 7
    %v5107 = vsub.s32 %v5104, %v5106
    %v5108 = vrot.slane %v5100, %v5107
    %v5110 = vunpack.c.l.s4 1983009808
    %v5111 = vunpack.c.0.s8 %v5110
    %v5112 = vlaneseq
    %v5113 = vshrl.u32 %v5112, 7
    %v5114 = vsub.s32 %v5111, %v5113
    %v5115 = vrot.slane %v5101, %v5114
    %v5116 = vcombine.low %v5108, %v5115
    %v5117 = vcombine.low %v2023, %v2030
    %v5118 = vcombine.low %v2037, %v2044
    %v5120 = vunpack.c.l.s4 1983009808
    %v5121 = vunpack.c.0.s8 %v5120
    %v5122 = vlaneseq
    %v5123 = vshrl.u32 %v5122, 7
    %v5124 = vsub.s32 %v5121, %v5123
    %v5125 = vrot.slane %v5117, %v5124
    %v5127 = vunpack.c.l.s4 1983009808
    %v5128 = vunpack.c.0.s8 %v5127
    %v5129 = vlaneseq
    %v5130 = vshrl.u32 %v5129, 7
    %v5131 = vsub.s32 %v5128, %v5130
    %v5132 = vrot.slane %v5118, %v5131
    %v5133 = vcombine.low %v5125, %v5132
    %v5134 = vcombine.low %v2051, %v2058
    %v5135 = vcombine.low %v2065, %v2072
    %v5137 = vunpack.c.l.s4 1983009808
    %v5138 = vunpack.c.0.s8 %v5137
    %v5139 = vlaneseq
    %v5140 = vshrl.u32 %v5139, 7
    %v5141 = vsub.s32 %v5138, %v5140
    %v5142 = vrot.slane %v5134, %v5141
    %v5144 = vunpack.c.l.s4 1983009808
    %v5145 = vunpack.c.0.s8 %v5144
    %v5146 = vlaneseq
    %v5147 = vshrl.u32 %v5146, 7
    %v5148 = vsub.s32 %v5145, %v5147
    %v5149 = vrot.slane %v5135, %v5148
    %v5150 = vcombine.low %v5142, %v5149
    %v5151 = vcombine.low %v2079, %v2086
    %v5152 = vcombine.low %v2093, %v2100
    %v5154 = vunpack.c.l.s4 1983009808
    %v5155 = vunpack.c.0.s8 %v5154
    %v5156 = vlaneseq
    %v5157 = vshrl.u32 %v5156, 7
    %v5158 = vsub.s32 %v5155, %v5157
    %v5159 = vrot.slane %v5151, %v5158
    %v5161 = vunpack.c.l.s4 1983009808
    %v5162 = vunpack.c.0.s8 %v5161
    %v5163 = vlaneseq
    %v5164 = vshrl.u32 %v5163, 7
    %v5165 = vsub.s32 %v5162, %v5164
    %v5166 = vrot.slane %v5152, %v5165
    %v5167 = vcombine.low %v5159, %v5166
    %v5168 = vcombine.low %v2107, %v2114
    %v5169 = vcombine.low %v2121, %v2128
    %v5171 = vunpack.c.l.s4 1983009808
    %v5172 = vunpack.c.0.s8 %v5171
    %v5173 = vlaneseq
    %v5174 = vshrl.u32 %v5173, 7
    %v5175 = vsub.s32 %v5172, %v5174
    %v5176 = vrot.slane %v5168, %v5175
    %v5178 = vunpack.c.l.s4 1983009808
    %v5179 = vunpack.c.0.s8 %v5178
    %v5180 = vlaneseq
    %v5181 = vshrl.u32 %v5180, 7
    %v5182 = vsub.s32 %v5179, %v5181
    %v5183 = vrot.slane %v5169, %v5182
    %v5184 = vcombine.low %v5176, %v5183
    %v5185 = vcombine.low %v2135, %v2142
    %v5186 = vcombine.low %v2149, %v2156
    %v5188 = vunpack.c.l.s4 1983009808
    %v5189 = vunpack.c.0.s8 %v5188
    %v5190 = vlaneseq
    %v5191 = vshrl.u32 %v5190, 7
    %v5192 = vsub.s32 %v5189, %v5191
    %v5193 = vrot.slane %v5185, %v5192
    %v5195 = vunpack.c.l.s4 1983009808
    %v5196 = vunpack.c.0.s8 %v5195
    %v5197 = vlaneseq
    %v5198 = vshrl.u32 %v5197, 7
    %v5199 = vsub.s32 %v5196, %v5198
    %v5200 = vrot.slane %v5186, %v5199
    %v5201 = vcombine.low %v5193, %v5200
    %v5202 = vcombine.low %v2163, %v2170
    %v5203 = vcombine.low %v2177, %v2184
    %v5205 = vunpack.c.l.s4 1983009808
    %v5206 = vunpack.c.0.s8 %v5205
    %v5207 = vlaneseq
    %v5208 = vshrl.u32 %v5207, 7
    %v5209 = vsub.s32 %v5206, %v5208
    %v5210 = vrot.slane %v5202, %v5209
    %v5212 = vunpack.c.l.s4 1983009808
    %v5213 = vunpack.c.0.s8 %v5212
    %v5214 = vlaneseq
    %v5215 = vshrl.u32 %v5214, 7
    %v5216 = vsub.s32 %v5213, %v5215
    %v5217 = vrot.slane %v5203, %v5216
    %v5218 = vcombine.low %v5210, %v5217
    %v5219 = vcombine.low %v2191, %v2198
    %v5220 = vcombine.low %v2205, %v2212
    %v5222 = vunpack.c.l.s4 1983009808
    %v5223 = vunpack.c.0.s8 %v5222
    %v5224 = vlaneseq
    %v5225 = vshrl.u32 %v5224, 7
    %v5226 = vsub.s32 %v5223, %v5225
    %v5227 = vrot.slane %v5219, %v5226
    %v5229 = vunpack.c.l.s4 1983009808
    %v5230 = vunpack.c.0.s8 %v5229
    %v5231 = vlaneseq
    %v5232 = vshrl.u32 %v5231, 7
    %v5233 = vsub.s32 %v5230, %v5232
    %v5234 = vrot.slane %v5220, %v5233
    %v5235 = vcombine.low %v5227, %v5234
    %v5236 = vcombine.low %v2219, %v2226
    %v5237 = vcombine.low %v2233, %v2240
    %v5239 = vunpack.c.l.s4 1983009808
    %v5240 = vunpack.c.0.s8 %v5239
    %v5241 = vlaneseq
    %v5242 = vshrl.u32 %v5241, 7
    %v5243 = vsub.s32 %v5240, %v5242
    %v5244 = vrot.slane %v5236, %v5243
    %v5246 = vunpack.c.l.s4 1983009808
    %v5247 = vunpack.c.0.s8 %v5246
    %v5248 = vlaneseq
    %v5249 = vshrl.u32 %v5248, 7
    %v5250 = vsub.s32 %v5247, %v5249
    %v5251 = vrot.slane %v5237, %v5250
    %v5252 = vcombine.low %v5244, %v5251
    %v5253 = vcombine.low %v2247, %v2254
    %v5254 = vcombine.low %v2261, %v2268
    %v5256 = vunpack.c.l.s4 1983009808
    %v5257 = vunpack.c.0.s8 %v5256
    %v5258 = vlaneseq
    %v5259 = vshrl.u32 %v5258, 7
    %v5260 = vsub.s32 %v5257, %v5259
    %v5261 = vrot.slane %v5253, %v5260
    %v5263 = vunpack.c.l.s4 1983009808
    %v5264 = vunpack.c.0.s8 %v5263
    %v5265 = vlaneseq
    %v5266 = vshrl.u32 %v5265, 7
    %v5267 = vsub.s32 %v5264, %v5266
    %v5268 = vrot.slane %v5254, %v5267
    %v5269 = vcombine.low %v5261, %v5268
    %v5270 = vcombine.low %v2275, %v2282
    %v5271 = vcombine.low %v2289, %v2296
    %v5273 = vunpack.c.l.s4 1983009808
    %v5274 = vunpack.c.0.s8 %v5273
    %v5275 = vlaneseq
    %v5276 = vshrl.u32 %v5275, 7
    %v5277 = vsub.s32 %v5274, %v5276
    %v5278 = vrot.slane %v5270, %v5277
    %v5280 = vunpack.c.l.s4 1983009808
    %v5281 = vunpack.c.0.s8 %v5280
    %v5282 = vlaneseq
    %v5283 = vshrl.u32 %v5282, 7
    %v5284 = vsub.s32 %v5281, %v5283
    %v5285 = vrot.slane %v5271, %v5284
    %v5286 = vcombine.low %v5278, %v5285
    %v5287 = vcombine.low %v2303, %v2310
    %v5288 = vcombine.low %v2317, %v2324
    %v5290 = vunpack.c.l.s4 1983009808
    %v5291 = vunpack.c.0.s8 %v5290
    %v5292 = vlaneseq
    %v5293 = vshrl.u32 %v5292, 7
    %v5294 = vsub.s32 %v5291, %v5293
    %v5295 = vrot.slane %v5287, %v5294
    %v5297 = vunpack.c.l.s4 1983009808
    %v5298 = vunpack.c.0.s8 %v5297
    %v5299 = vlaneseq
    %v5300 = vshrl.u32 %v5299, 7
    %v5301 = vsub.s32 %v5298, %v5300
    %v5302 = vrot.slane %v5288, %v5301
    %v5303 = vcombine.low %v5295, %v5302
    %v5304 = vcombine.low %v2331, %v2338
    %v5305 = vcombine.low %v2345, %v2352
    %v5307 = vunpack.c.l.s4 1983009808
    %v5308 = vunpack.c.0.s8 %v5307
    %v5309 = vlaneseq
    %v5310 = vshrl.u32 %v5309, 7
    %v5311 = vsub.s32 %v5308, %v5310
    %v5312 = vrot.slane %v5304, %v5311
    %v5314 = vunpack.c.l.s4 1983009808
    %v5315 = vunpack.c.0.s8 %v5314
    %v5316 = vlaneseq
    %v5317 = vshrl.u32 %v5316, 7
    %v5318 = vsub.s32 %v5315, %v5317
    %v5319 = vrot.slane %v5305, %v5318
    %v5320 = vcombine.low %v5312, %v5319
    %v5321 = vcombine.low %v2359, %v2366
    %v5322 = vcombine.low %v2373, %v2380
    %v5324 = vunpack.c.l.s4 1983009808
    %v5325 = vunpack.c.0.s8 %v5324
    %v5326 = vlaneseq
    %v5327 = vshrl.u32 %v5326, 7
    %v5328 = vsub.s32 %v5325, %v5327
    %v5329 = vrot.slane %v5321, %v5328
    %v5331 = vunpack.c.l.s4 1983009808
    %v5332 = vunpack.c.0.s8 %v5331
    %v5333 = vlaneseq
    %v5334 = vshrl.u32 %v5333, 7
    %v5335 = vsub.s32 %v5332, %v5334
    %v5336 = vrot.slane %v5322, %v5335
    %v5337 = vcombine.low %v5329, %v5336
    %v5338 = vcombine.low %v2387, %v2394
    %v5339 = vcombine.low %v2401, %v2408
    %v5341 = vunpack.c.l.s4 1983009808
    %v5342 = vunpack.c.0.s8 %v5341
    %v5343 = vlaneseq
    %v5344 = vshrl.u32 %v5343, 7
    %v5345 = vsub.s32 %v5342, %v5344
    %v5346 = vrot.slane %v5338, %v5345
    %v5348 = vunpack.c.l.s4 1983009808
    %v5349 = vunpack.c.0.s8 %v5348
    %v5350 = vlaneseq
    %v5351 = vshrl.u32 %v5350, 7
    %v5352 = vsub.s32 %v5349, %v5351
    %v5353 = vrot.slane %v5339, %v5352
    %v5354 = vcombine.low %v5346, %v5353
    %v5355 = vcombine.low %v2415, %v2422
    %v5356 = vcombine.low %v2429, %v2436
    %v5358 = vunpack.c.l.s4 1983009808
    %v5359 = vunpack.c.0.s8 %v5358
    %v5360 = vlaneseq
    %v5361 = vshrl.u32 %v5360, 7
    %v5362 = vsub.s32 %v5359, %v5361
    %v5363 = vrot.slane %v5355, %v5362
    %v5365 = vunpack.c.l.s4 1983009808
    %v5366 = vunpack.c.0.s8 %v5365
    %v5367 = vlaneseq
    %v5368 = vshrl.u32 %v5367, 7
    %v5369 = vsub.s32 %v5366, %v5368
    %v5370 = vrot.slane %v5356, %v5369
    %v5371 = vcombine.low %v5363, %v5370
    %v5372 = vcombine.low %v2443, %v2450
    %v5373 = vcombine.low %v2457, %v2464
    %v5375 = vunpack.c.l.s4 1983009808
    %v5376 = vunpack.c.0.s8 %v5375
    %v5377 = vlaneseq
    %v5378 = vshrl.u32 %v5377, 7
    %v5379 = vsub.s32 %v5376, %v5378
    %v5380 = vrot.slane %v5372, %v5379
    %v5382 = vunpack.c.l.s4 1983009808
    %v5383 = vunpack.c.0.s8 %v5382
    %v5384 = vlaneseq
    %v5385 = vshrl.u32 %v5384, 7
    %v5386 = vsub.s32 %v5383, %v5385
    %v5387 = vrot.slane %v5373, %v5386
    %v5388 = vcombine.low %v5380, %v5387
    %v5389 = vcombine.low %v2471, %v2478
    %v5390 = vcombine.low %v2485, %v2492
    %v5392 = vunpack.c.l.s4 1983009808
    %v5393 = vunpack.c.0.s8 %v5392
    %v5394 = vlaneseq
    %v5395 = vshrl.u32 %v5394, 7
    %v5396 = vsub.s32 %v5393, %v5395
    %v5397 = vrot.slane %v5389, %v5396
    %v5399 = vunpack.c.l.s4 1983009808
    %v5400 = vunpack.c.0.s8 %v5399
    %v5401 = vlaneseq
    %v5402 = vshrl.u32 %v5401, 7
    %v5403 = vsub.s32 %v5400, %v5402
    %v5404 = vrot.slane %v5390, %v5403
    %v5405 = vcombine.low %v5397, %v5404
    %v5406 = vcombine.low %v2499, %v2506
    %v5407 = vcombine.low %v2513, %v2520
    %v5409 = vunpack.c.l.s4 1983009808
    %v5410 = vunpack.c.0.s8 %v5409
    %v5411 = vlaneseq
    %v5412 = vshrl.u32 %v5411, 7
    %v5413 = vsub.s32 %v5410, %v5412
    %v5414 = vrot.slane %v5406, %v5413
    %v5416 = vunpack.c.l.s4 1983009808
    %v5417 = vunpack.c.0.s8 %v5416
    %v5418 = vlaneseq
    %v5419 = vshrl.u32 %v5418, 7
    %v5420 = vsub.s32 %v5417, %v5419
    %v5421 = vrot.slane %v5407, %v5420
    %v5422 = vcombine.low %v5414, %v5421
    %v5423 = vcombine.low %v2527, %v2534
    %v5424 = vcombine.low %v2541, %v2548
    %v5426 = vunpack.c.l.s4 1983009808
    %v5427 = vunpack.c.0.s8 %v5426
    %v5428 = vlaneseq
    %v5429 = vshrl.u32 %v5428, 7
    %v5430 = vsub.s32 %v5427, %v5429
    %v5431 = vrot.slane %v5423, %v5430
    %v5433 = vunpack.c.l.s4 1983009808
    %v5434 = vunpack.c.0.s8 %v5433
    %v5435 = vlaneseq
    %v5436 = vshrl.u32 %v5435, 7
    %v5437 = vsub.s32 %v5434, %v5436
    %v5438 = vrot.slane %v5424, %v5437
    %v5439 = vcombine.low %v5431, %v5438
    %v5440 = vcombine.low %v2555, %v2562
    %v5441 = vcombine.low %v2569, %v2576
    %v5443 = vunpack.c.l.s4 1983009808
    %v5444 = vunpack.c.0.s8 %v5443
    %v5445 = vlaneseq
    %v5446 = vshrl.u32 %v5445, 7
    %v5447 = vsub.s32 %v5444, %v5446
    %v5448 = vrot.slane %v5440, %v5447
    %v5450 = vunpack.c.l.s4 1983009808
    %v5451 = vunpack.c.0.s8 %v5450
    %v5452 = vlaneseq
    %v5453 = vshrl.u32 %v5452, 7
    %v5454 = vsub.s32 %v5451, %v5453
    %v5455 = vrot.slane %v5441, %v5454
    %v5456 = vcombine.low %v5448, %v5455
    %v5457 = vcombine.low %v2583, %v2590
    %v5458 = vcombine.low %v2597, %v2604
    %v5460 = vunpack.c.l.s4 1983009808
    %v5461 = vunpack.c.0.s8 %v5460
    %v5462 = vlaneseq
    %v5463 = vshrl.u32 %v5462, 7
    %v5464 = vsub.s32 %v5461, %v5463
    %v5465 = vrot.slane %v5457, %v5464
    %v5467 = vunpack.c.l.s4 1983009808
    %v5468 = vunpack.c.0.s8 %v5467
    %v5469 = vlaneseq
    %v5470 = vshrl.u32 %v5469, 7
    %v5471 = vsub.s32 %v5468, %v5470
    %v5472 = vrot.slane %v5458, %v5471
    %v5473 = vcombine.low %v5465, %v5472
    %v5474 = vcombine.low %v2611, %v2618
    %v5475 = vcombine.low %v2625, %v2632
    %v5477 = vunpack.c.l.s4 1983009808
    %v5478 = vunpack.c.0.s8 %v5477
    %v5479 = vlaneseq
    %v5480 = vshrl.u32 %v5479, 7
    %v5481 = vsub.s32 %v5478, %v5480
    %v5482 = vrot.slane %v5474, %v5481
    %v5484 = vunpack.c.l.s4 1983009808
    %v5485 = vunpack.c.0.s8 %v5484
    %v5486 = vlaneseq
    %v5487 = vshrl.u32 %v5486, 7
    %v5488 = vsub.s32 %v5485, %v5487
    %v5489 = vrot.slane %v5475, %v5488
    %v5490 = vcombine.low %v5482, %v5489
    %v5491 = vcombine.low %v2639, %v2646
    %v5492 = vcombine.low %v2653, %v2660
    %v5494 = vunpack.c.l.s4 1983009808
    %v5495 = vunpack.c.0.s8 %v5494
    %v5496 = vlaneseq
    %v5497 = vshrl.u32 %v5496, 7
    %v5498 = vsub.s32 %v5495, %v5497
    %v5499 = vrot.slane %v5491, %v5498
    %v5501 = vunpack.c.l.s4 1983009808
    %v5502 = vunpack.c.0.s8 %v5501
    %v5503 = vlaneseq
    %v5504 = vshrl.u32 %v5503, 7
    %v5505 = vsub.s32 %v5502, %v5504
    %v5506 = vrot.slane %v5492, %v5505
    %v5507 = vcombine.low %v5499, %v5506
    %v5508 = vcombine.low %v2667, %v2674
    %v5509 = vcombine.low %v2681, %v2688
    %v5511 = vunpack.c.l.s4 1983009808
    %v5512 = vunpack.c.0.s8 %v5511
    %v5513 = vlaneseq
    %v5514 = vshrl.u32 %v5513, 7
    %v5515 = vsub.s32 %v5512, %v5514
    %v5516 = vrot.slane %v5508, %v5515
    %v5518 = vunpack.c.l.s4 1983009808
    %v5519 = vunpack.c.0.s8 %v5518
    %v5520 = vlaneseq
    %v5521 = vshrl.u32 %v5520, 7
    %v5522 = vsub.s32 %v5519, %v5521
    %v5523 = vrot.slane %v5509, %v5522
    %v5524 = vcombine.low %v5516, %v5523
    %v5525 = vcombine.low %v2695, %v2702
    %v5526 = vcombine.low %v2709, %v2716
    %v5528 = vunpack.c.l.s4 1983009808
    %v5529 = vunpack.c.0.s8 %v5528
    %v5530 = vlaneseq
    %v5531 = vshrl.u32 %v5530, 7
    %v5532 = vsub.s32 %v5529, %v5531
    %v5533 = vrot.slane %v5525, %v5532
    %v5535 = vunpack.c.l.s4 1983009808
    %v5536 = vunpack.c.0.s8 %v5535
    %v5537 = vlaneseq
    %v5538 = vshrl.u32 %v5537, 7
    %v5539 = vsub.s32 %v5536, %v5538
    %v5540 = vrot.slane %v5526, %v5539
    %v5541 = vcombine.low %v5533, %v5540
    %v5542 = vcombine.low %v2723, %v2730
    %v5543 = vcombine.low %v2737, %v2744
    %v5545 = vunpack.c.l.s4 1983009808
    %v5546 = vunpack.c.0.s8 %v5545
    %v5547 = vlaneseq
    %v5548 = vshrl.u32 %v5547, 7
    %v5549 = vsub.s32 %v5546, %v5548
    %v5550 = vrot.slane %v5542, %v5549
    %v5552 = vunpack.c.l.s4 1983009808
    %v5553 = vunpack.c.0.s8 %v5552
    %v5554 = vlaneseq
    %v5555 = vshrl.u32 %v5554, 7
    %v5556 = vsub.s32 %v5553, %v5555
    %v5557 = vrot.slane %v5543, %v5556
    %v5558 = vcombine.low %v5550, %v5557
    %v5559 = vcombine.low %v2751, %v2758
    %v5560 = vcombine.low %v2765, %v2772
    %v5562 = vunpack.c.l.s4 1983009808
    %v5563 = vunpack.c.0.s8 %v5562
    %v5564 = vlaneseq
    %v5565 = vshrl.u32 %v5564, 7
    %v5566 = vsub.s32 %v5563, %v5565
    %v5567 = vrot.slane %v5559, %v5566
    %v5569 = vunpack.c.l.s4 1983009808
    %v5570 = vunpack.c.0.s8 %v5569
    %v5571 = vlaneseq
    %v5572 = vshrl.u32 %v5571, 7
    %v5573 = vsub.s32 %v5570, %v5572
    %v5574 = vrot.slane %v5560, %v5573
    %v5575 = vcombine.low %v5567, %v5574
    %v5576 = vcombine.low %v2779, %v2786
    %v5577 = vcombine.low %v2793, %v2800
    %v5579 = vunpack.c.l.s4 1983009808
    %v5580 = vunpack.c.0.s8 %v5579
    %v5581 = vlaneseq
    %v5582 = vshrl.u32 %v5581, 7
    %v5583 = vsub.s32 %v5580, %v5582
    %v5584 = vrot.slane %v5576, %v5583
    %v5586 = vunpack.c.l.s4 1983009808
    %v5587 = vunpack.c.0.s8 %v5586
    %v5588 = vlaneseq
    %v5589 = vshrl.u32 %v5588, 7
    %v5590 = vsub.s32 %v5587, %v5589
    %v5591 = vrot.slane %v5577, %v5590
    %v5592 = vcombine.low %v5584, %v5591
    %v5593 = vcombine.low %v2807, %v2814
    %v5594 = vcombine.low %v2821, %v2828
    %v5596 = vunpack.c.l.s4 1983009808
    %v5597 = vunpack.c.0.s8 %v5596
    %v5598 = vlaneseq
    %v5599 = vshrl.u32 %v5598, 7
    %v5600 = vsub.s32 %v5597, %v5599
    %v5601 = vrot.slane %v5593, %v5600
    %v5603 = vunpack.c.l.s4 1983009808
    %v5604 = vunpack.c.0.s8 %v5603
    %v5605 = vlaneseq
    %v5606 = vshrl.u32 %v5605, 7
    %v5607 = vsub.s32 %v5604, %v5606
    %v5608 = vrot.slane %v5594, %v5607
    %v5609 = vcombine.low %v5601, %v5608
    %v5610 = vcombine.low %v2835, %v2842
    %v5611 = vcombine.low %v2849, %v2856
    %v5613 = vunpack.c.l.s4 1983009808
    %v5614 = vunpack.c.0.s8 %v5613
    %v5615 = vlaneseq
    %v5616 = vshrl.u32 %v5615, 7
    %v5617 = vsub.s32 %v5614, %v5616
    %v5618 = vrot.slane %v5610, %v5617
    %v5620 = vunpack.c.l.s4 1983009808
    %v5621 = vunpack.c.0.s8 %v5620
    %v5622 = vlaneseq
    %v5623 = vshrl.u32 %v5622, 7
    %v5624 = vsub.s32 %v5621, %v5623
    %v5625 = vrot.slane %v5611, %v5624
    %v5626 = vcombine.low %v5618, %v5625
    %v5627 = vcombine.low %v2863, %v2870
    %v5628 = vcombine.low %v2877, %v2884
    %v5630 = vunpack.c.l.s4 1983009808
    %v5631 = vunpack.c.0.s8 %v5630
    %v5632 = vlaneseq
    %v5633 = vshrl.u32 %v5632, 7
    %v5634 = vsub.s32 %v5631, %v5633
    %v5635 = vrot.slane %v5627, %v5634
    %v5637 = vunpack.c.l.s4 1983009808
    %v5638 = vunpack.c.0.s8 %v5637
    %v5639 = vlaneseq
    %v5640 = vshrl.u32 %v5639, 7
    %v5641 = vsub.s32 %v5638, %v5640
    %v5642 = vrot.slane %v5628, %v5641
    %v5643 = vcombine.low %v5635, %v5642
    %v5644 = vcombine.low %v2891, %v2898
    %v5645 = vcombine.low %v2905, %v2912
    %v5647 = vunpack.c.l.s4 1983009808
    %v5648 = vunpack.c.0.s8 %v5647
    %v5649 = vlaneseq
    %v5650 = vshrl.u32 %v5649, 7
    %v5651 = vsub.s32 %v5648, %v5650
    %v5652 = vrot.slane %v5644, %v5651
    %v5654 = vunpack.c.l.s4 1983009808
    %v5655 = vunpack.c.0.s8 %v5654
    %v5656 = vlaneseq
    %v5657 = vshrl.u32 %v5656, 7
    %v5658 = vsub.s32 %v5655, %v5657
    %v5659 = vrot.slane %v5645, %v5658
    %v5660 = vcombine.low %v5652, %v5659
    %v5661 = vcombine.low %v2919, %v2926
    %v5662 = vcombine.low %v2933, %v2940
    %v5664 = vunpack.c.l.s4 1983009808
    %v5665 = vunpack.c.0.s8 %v5664
    %v5666 = vlaneseq
    %v5667 = vshrl.u32 %v5666, 7
    %v5668 = vsub.s32 %v5665, %v5667
    %v5669 = vrot.slane %v5661, %v5668
    %v5671 = vunpack.c.l.s4 1983009808
    %v5672 = vunpack.c.0.s8 %v5671
    %v5673 = vlaneseq
    %v5674 = vshrl.u32 %v5673, 7
    %v5675 = vsub.s32 %v5672, %v5674
    %v5676 = vrot.slane %v5662, %v5675
    %v5677 = vcombine.low %v5669, %v5676
    %v5678 = vcombine.low %v2947, %v2954
    %v5679 = vcombine.low %v2961, %v2968
    %v5681 = vunpack.c.l.s4 1983009808
    %v5682 = vunpack.c.0.s8 %v5681
    %v5683 = vlaneseq
    %v5684 = vshrl.u32 %v5683, 7
    %v5685 = vsub.s32 %v5682, %v5684
    %v5686 = vrot.slane %v5678, %v5685
    %v5688 = vunpack.c.l.s4 1983009808
    %v5689 = vunpack.c.0.s8 %v5688
    %v5690 = vlaneseq
    %v5691 = vshrl.u32 %v5690, 7
    %v5692 = vsub.s32 %v5689, %v5691
    %v5693 = vrot.slane %v5679, %v5692
    %v5694 = vcombine.low %v5686, %v5693
    %v5695 = vcombine.low %v2975, %v2982
    %v5696 = vcombine.low %v2989, %v2996
    %v5698 = vunpack.c.l.s4 1983009808
    %v5699 = vunpack.c.0.s8 %v5698
    %v5700 = vlaneseq
    %v5701 = vshrl.u32 %v5700, 7
    %v5702 = vsub.s32 %v5699, %v5701
    %v5703 = vrot.slane %v5695, %v5702
    %v5705 = vunpack.c.l.s4 1983009808
    %v5706 = vunpack.c.0.s8 %v5705
    %v5707 = vlaneseq
    %v5708 = vshrl.u32 %v5707, 7
    %v5709 = vsub.s32 %v5706, %v5708
    %v5710 = vrot.slane %v5696, %v5709
    %v5711 = vcombine.low %v5703, %v5710
    %v5712 = vcombine.low %v3003, %v3010
    %v5713 = vcombine.low %v3017, %v3024
    %v5715 = vunpack.c.l.s4 1983009808
    %v5716 = vunpack.c.0.s8 %v5715
    %v5717 = vlaneseq
    %v5718 = vshrl.u32 %v5717, 7
    %v5719 = vsub.s32 %v5716, %v5718
    %v5720 = vrot.slane %v5712, %v5719
    %v5722 = vunpack.c.l.s4 1983009808
    %v5723 = vunpack.c.0.s8 %v5722
    %v5724 = vlaneseq
    %v5725 = vshrl.u32 %v5724, 7
    %v5726 = vsub.s32 %v5723, %v5725
    %v5727 = vrot.slane %v5713, %v5726
    %v5728 = vcombine.low %v5720, %v5727
    %v5729 = vcombine.low %v3031, %v3038
    %v5730 = vcombine.low %v3045, %v3052
    %v5732 = vunpack.c.l.s4 1983009808
    %v5733 = vunpack.c.0.s8 %v5732
    %v5734 = vlaneseq
    %v5735 = vshrl.u32 %v5734, 7
    %v5736 = vsub.s32 %v5733, %v5735
    %v5737 = vrot.slane %v5729, %v5736
    %v5739 = vunpack.c.l.s4 1983009808
    %v5740 = vunpack.c.0.s8 %v5739
    %v5741 = vlaneseq
    %v5742 = vshrl.u32 %v5741, 7
    %v5743 = vsub.s32 %v5740, %v5742
    %v5744 = vrot.slane %v5730, %v5743
    %v5745 = vcombine.low %v5737, %v5744
    %v5746 = vcombine.low %v3059, %v3066
    %v5747 = vcombine.low %v3073, %v3080
    %v5749 = vunpack.c.l.s4 1983009808
    %v5750 = vunpack.c.0.s8 %v5749
    %v5751 = vlaneseq
    %v5752 = vshrl.u32 %v5751, 7
    %v5753 = vsub.s32 %v5750, %v5752
    %v5754 = vrot.slane %v5746, %v5753
    %v5756 = vunpack.c.l.s4 1983009808
    %v5757 = vunpack.c.0.s8 %v5756
    %v5758 = vlaneseq
    %v5759 = vshrl.u32 %v5758, 7
    %v5760 = vsub.s32 %v5757, %v5759
    %v5761 = vrot.slane %v5747, %v5760
    %v5762 = vcombine.low %v5754, %v5761
    %v5763 = vcombine.low %v3087, %v3094
    %v5764 = vcombine.low %v3101, %v3108
    %v5766 = vunpack.c.l.s4 1983009808
    %v5767 = vunpack.c.0.s8 %v5766
    %v5768 = vlaneseq
    %v5769 = vshrl.u32 %v5768, 7
    %v5770 = vsub.s32 %v5767, %v5769
    %v5771 = vrot.slane %v5763, %v5770
    %v5773 = vunpack.c.l.s4 1983009808
    %v5774 = vunpack.c.0.s8 %v5773
    %v5775 = vlaneseq
    %v5776 = vshrl.u32 %v5775, 7
    %v5777 = vsub.s32 %v5774, %v5776
    %v5778 = vrot.slane %v5764, %v5777
    %v5779 = vcombine.low %v5771, %v5778
    %v5780 = vcombine.low %v3115, %v3122
    %v5781 = vcombine.low %v3129, %v3136
    %v5783 = vunpack.c.l.s4 1983009808
    %v5784 = vunpack.c.0.s8 %v5783
    %v5785 = vlaneseq
    %v5786 = vshrl.u32 %v5785, 7
    %v5787 = vsub.s32 %v5784, %v5786
    %v5788 = vrot.slane %v5780, %v5787
    %v5790 = vunpack.c.l.s4 1983009808
    %v5791 = vunpack.c.0.s8 %v5790
    %v5792 = vlaneseq
    %v5793 = vshrl.u32 %v5792, 7
    %v5794 = vsub.s32 %v5791, %v5793
    %v5795 = vrot.slane %v5781, %v5794
    %v5796 = vcombine.low %v5788, %v5795
    %v5797 = vcombine.low %v3143, %v3150
    %v5798 = vcombine.low %v3157, %v3164
    %v5800 = vunpack.c.l.s4 1983009808
    %v5801 = vunpack.c.0.s8 %v5800
    %v5802 = vlaneseq
    %v5803 = vshrl.u32 %v5802, 7
    %v5804 = vsub.s32 %v5801, %v5803
    %v5805 = vrot.slane %v5797, %v5804
    %v5807 = vunpack.c.l.s4 1983009808
    %v5808 = vunpack.c.0.s8 %v5807
    %v5809 = vlaneseq
    %v5810 = vshrl.u32 %v5809, 7
    %v5811 = vsub.s32 %v5808, %v5810
    %v5812 = vrot.slane %v5798, %v5811
    %v5813 = vcombine.low %v5805, %v5812
    %v5814 = vcombine.low %v3171, %v3178
    %v5815 = vcombine.low %v3185, %v3192
    %v5817 = vunpack.c.l.s4 1983009808
    %v5818 = vunpack.c.0.s8 %v5817
    %v5819 = vlaneseq
    %v5820 = vshrl.u32 %v5819, 7
    %v5821 = vsub.s32 %v5818, %v5820
    %v5822 = vrot.slane %v5814, %v5821
    %v5824 = vunpack.c.l.s4 1983009808
    %v5825 = vunpack.c.0.s8 %v5824
    %v5826 = vlaneseq
    %v5827 = vshrl.u32 %v5826, 7
    %v5828 = vsub.s32 %v5825, %v5827
    %v5829 = vrot.slane %v5815, %v5828
    %v5830 = vcombine.low %v5822, %v5829
    %v5831 = vcombine.low %v3199, %v3206
    %v5832 = vcombine.low %v3213, %v3220
    %v5834 = vunpack.c.l.s4 1983009808
    %v5835 = vunpack.c.0.s8 %v5834
    %v5836 = vlaneseq
    %v5837 = vshrl.u32 %v5836, 7
    %v5838 = vsub.s32 %v5835, %v5837
    %v5839 = vrot.slane %v5831, %v5838
    %v5841 = vunpack.c.l.s4 1983009808
    %v5842 = vunpack.c.0.s8 %v5841
    %v5843 = vlaneseq
    %v5844 = vshrl.u32 %v5843, 7
    %v5845 = vsub.s32 %v5842, %v5844
    %v5846 = vrot.slane %v5832, %v5845
    %v5847 = vcombine.low %v5839, %v5846
    %v5848 = vcombine.low %v3227, %v3234
    %v5849 = vcombine.low %v3241, %v3248
    %v5851 = vunpack.c.l.s4 1983009808
    %v5852 = vunpack.c.0.s8 %v5851
    %v5853 = vlaneseq
    %v5854 = vshrl.u32 %v5853, 7
    %v5855 = vsub.s32 %v5852, %v5854
    %v5856 = vrot.slane %v5848, %v5855
    %v5858 = vunpack.c.l.s4 1983009808
    %v5859 = vunpack.c.0.s8 %v5858
    %v5860 = vlaneseq
    %v5861 = vshrl.u32 %v5860, 7
    %v5862 = vsub.s32 %v5859, %v5861
    %v5863 = vrot.slane %v5849, %v5862
    %v5864 = vcombine.low %v5856, %v5863
    %v5865 = vcombine.low %v3255, %v3262
    %v5866 = vcombine.low %v3269, %v3276
    %v5868 = vunpack.c.l.s4 1983009808
    %v5869 = vunpack.c.0.s8 %v5868
    %v5870 = vlaneseq
    %v5871 = vshrl.u32 %v5870, 7
    %v5872 = vsub.s32 %v5869, %v5871
    %v5873 = vrot.slane %v5865, %v5872
    %v5875 = vunpack.c.l.s4 1983009808
    %v5876 = vunpack.c.0.s8 %v5875
    %v5877 = vlaneseq
    %v5878 = vshrl.u32 %v5877, 7
    %v5879 = vsub.s32 %v5876, %v5878
    %v5880 = vrot.slane %v5866, %v5879
    %v5881 = vcombine.low %v5873, %v5880
    %v5882 = vcombine.low %v3283, %v3290
    %v5883 = vcombine.low %v3297, %v3304
    %v5885 = vunpack.c.l.s4 1983009808
    %v5886 = vunpack.c.0.s8 %v5885
    %v5887 = vlaneseq
    %v5888 = vshrl.u32 %v5887, 7
    %v5889 = vsub.s32 %v5886, %v5888
    %v5890 = vrot.slane %v5882, %v5889
    %v5892 = vunpack.c.l.s4 1983009808
    %v5893 = vunpack.c.0.s8 %v5892
    %v5894 = vlaneseq
    %v5895 = vshrl.u32 %v5894, 7
    %v5896 = vsub.s32 %v5893, %v5895
    %v5897 = vrot.slane %v5883, %v5896
    %v5898 = vcombine.low %v5890, %v5897
    %v5899 = vcombine.low %v3311, %v3318
    %v5900 = vcombine.low %v3325, %v3332
    %v5902 = vunpack.c.l.s4 1983009808
    %v5903 = vunpack.c.0.s8 %v5902
    %v5904 = vlaneseq
    %v5905 = vshrl.u32 %v5904, 7
    %v5906 = vsub.s32 %v5903, %v5905
    %v5907 = vrot.slane %v5899, %v5906
    %v5909 = vunpack.c.l.s4 1983009808
    %v5910 = vunpack.c.0.s8 %v5909
    %v5911 = vlaneseq
    %v5912 = vshrl.u32 %v5911, 7
    %v5913 = vsub.s32 %v5910, %v5912
    %v5914 = vrot.slane %v5900, %v5913
    %v5915 = vcombine.low %v5907, %v5914
    %v5916 = vcombine.low %v3339, %v3346
    %v5917 = vcombine.low %v3353, %v3360
    %v5919 = vunpack.c.l.s4 1983009808
    %v5920 = vunpack.c.0.s8 %v5919
    %v5921 = vlaneseq
    %v5922 = vshrl.u32 %v5921, 7
    %v5923 = vsub.s32 %v5920, %v5922
    %v5924 = vrot.slane %v5916, %v5923
    %v5926 = vunpack.c.l.s4 1983009808
    %v5927 = vunpack.c.0.s8 %v5926
    %v5928 = vlaneseq
    %v5929 = vshrl.u32 %v5928, 7
    %v5930 = vsub.s32 %v5927, %v5929
    %v5931 = vrot.slane %v5917, %v5930
    %v5932 = vcombine.low %v5924, %v5931
    %v5933 = vcombine.low %v3367, %v3374
    %v5934 = vcombine.low %v3381, %v3388
    %v5936 = vunpack.c.l.s4 1983009808
    %v5937 = vunpack.c.0.s8 %v5936
    %v5938 = vlaneseq
    %v5939 = vshrl.u32 %v5938, 7
    %v5940 = vsub.s32 %v5937, %v5939
    %v5941 = vrot.slane %v5933, %v5940
    %v5943 = vunpack.c.l.s4 1983009808
    %v5944 = vunpack.c.0.s8 %v5943
    %v5945 = vlaneseq
    %v5946 = vshrl.u32 %v5945, 7
    %v5947 = vsub.s32 %v5944, %v5946
    %v5948 = vrot.slane %v5934, %v5947
    %v5949 = vcombine.low %v5941, %v5948
    %v5950 = vcombine.low %v3395, %v3402
    %v5951 = vcombine.low %v3409, %v3416
    %v5953 = vunpack.c.l.s4 1983009808
    %v5954 = vunpack.c.0.s8 %v5953
    %v5955 = vlaneseq
    %v5956 = vshrl.u32 %v5955, 7
    %v5957 = vsub.s32 %v5954, %v5956
    %v5958 = vrot.slane %v5950, %v5957
    %v5960 = vunpack.c.l.s4 1983009808
    %v5961 = vunpack.c.0.s8 %v5960
    %v5962 = vlaneseq
    %v5963 = vshrl.u32 %v5962, 7
    %v5964 = vsub.s32 %v5961, %v5963
    %v5965 = vrot.slane %v5951, %v5964
    %v5966 = vcombine.low %v5958, %v5965
    %v5967 = vcombine.low %v3423, %v3430
    %v5968 = vcombine.low %v3437, %v3444
    %v5970 = vunpack.c.l.s4 1983009808
    %v5971 = vunpack.c.0.s8 %v5970
    %v5972 = vlaneseq
    %v5973 = vshrl.u32 %v5972, 7
    %v5974 = vsub.s32 %v5971, %v5973
    %v5975 = vrot.slane %v5967, %v5974
    %v5977 = vunpack.c.l.s4 1983009808
    %v5978 = vunpack.c.0.s8 %v5977
    %v5979 = vlaneseq
    %v5980 = vshrl.u32 %v5979, 7
    %v5981 = vsub.s32 %v5978, %v5980
    %v5982 = vrot.slane %v5968, %v5981
    %v5983 = vcombine.low %v5975, %v5982
    %v5984 = vcombine.low %v3451, %v3458
    %v5985 = vcombine.low %v3465, %v3472
    %v5987 = vunpack.c.l.s4 1983009808
    %v5988 = vunpack.c.0.s8 %v5987
    %v5989 = vlaneseq
    %v5990 = vshrl.u32 %v5989, 7
    %v5991 = vsub.s32 %v5988, %v5990
    %v5992 = vrot.slane %v5984, %v5991
    %v5994 = vunpack.c.l.s4 1983009808
    %v5995 = vunpack.c.0.s8 %v5994
    %v5996 = vlaneseq
    %v5997 = vshrl.u32 %v5996, 7
    %v5998 = vsub.s32 %v5995, %v5997
    %v5999 = vrot.slane %v5985, %v5998
    %v6000 = vcombine.low %v5992, %v5999
    %v6001 = vcombine.low %v3479, %v3486
    %v6002 = vcombine.low %v3493, %v3500
    %v6004 = vunpack.c.l.s4 1983009808
    %v6005 = vunpack.c.0.s8 %v6004
    %v6006 = vlaneseq
    %v6007 = vshrl.u32 %v6006, 7
    %v6008 = vsub.s32 %v6005, %v6007
    %v6009 = vrot.slane %v6001, %v6008
    %v6011 = vunpack.c.l.s4 1983009808
    %v6012 = vunpack.c.0.s8 %v6011
    %v6013 = vlaneseq
    %v6014 = vshrl.u32 %v6013, 7
    %v6015 = vsub.s32 %v6012, %v6014
    %v6016 = vrot.slane %v6002, %v6015
    %v6017 = vcombine.low %v6009, %v6016
    %v6018 = vcombine.low %v3507, %v3514
    %v6019 = vcombine.low %v3521, %v3528
    %v6021 = vunpack.c.l.s4 1983009808
    %v6022 = vunpack.c.0.s8 %v6021
    %v6023 = vlaneseq
    %v6024 = vshrl.u32 %v6023, 7
    %v6025 = vsub.s32 %v6022, %v6024
    %v6026 = vrot.slane %v6018, %v6025
    %v6028 = vunpack.c.l.s4 1983009808
    %v6029 = vunpack.c.0.s8 %v6028
    %v6030 = vlaneseq
    %v6031 = vshrl.u32 %v6030, 7
    %v6032 = vsub.s32 %v6029, %v6031
    %v6033 = vrot.slane %v6019, %v6032
    %v6034 = vcombine.low %v6026, %v6033
    %v6035 = vcombine.low %v3535, %v3542
    %v6036 = vcombine.low %v3549, %v3556
    %v6038 = vunpack.c.l.s4 1983009808
    %v6039 = vunpack.c.0.s8 %v6038
    %v6040 = vlaneseq
    %v6041 = vshrl.u32 %v6040, 7
    %v6042 = vsub.s32 %v6039, %v6041
    %v6043 = vrot.slane %v6035, %v6042
    %v6045 = vunpack.c.l.s4 1983009808
    %v6046 = vunpack.c.0.s8 %v6045
    %v6047 = vlaneseq
    %v6048 = vshrl.u32 %v6047, 7
    %v6049 = vsub.s32 %v6046, %v6048
    %v6050 = vrot.slane %v6036, %v6049
    %v6051 = vcombine.low %v6043, %v6050
    %v6052 = vcombine.low %v3563, %v3570
    %v6053 = vcombine.low %v3577, %v3584
    %v6055 = vunpack.c.l.s4 1983009808
    %v6056 = vunpack.c.0.s8 %v6055
    %v6057 = vlaneseq
    %v6058 = vshrl.u32 %v6057, 7
    %v6059 = vsub.s32 %v6056, %v6058
    %v6060 = vrot.slane %v6052, %v6059
    %v6062 = vunpack.c.l.s4 1983009808
    %v6063 = vunpack.c.0.s8 %v6062
    %v6064 = vlaneseq
    %v6065 = vshrl.u32 %v6064, 7
    %v6066 = vsub.s32 %v6063, %v6065
    %v6067 = vrot.slane %v6053, %v6066
    %v6068 = vcombine.low %v6060, %v6067
    %v6069 = vcombine.low %v3591, %v3598
    %v6070 = vcombine.low %v3605, %v3612
    %v6072 = vunpack.c.l.s4 1983009808
    %v6073 = vunpack.c.0.s8 %v6072
    %v6074 = vlaneseq
    %v6075 = vshrl.u32 %v6074, 7
    %v6076 = vsub.s32 %v6073, %v6075
    %v6077 = vrot.slane %v6069, %v6076
    %v6079 = vunpack.c.l.s4 1983009808
    %v6080 = vunpack.c.0.s8 %v6079
    %v6081 = vlaneseq
    %v6082 = vshrl.u32 %v6081, 7
    %v6083 = vsub.s32 %v6080, %v6082
    %v6084 = vrot.slane %v6070, %v6083
    %v6085 = vcombine.low %v6077, %v6084
    %v6086 = vcombine.low %v3619, %v3626
    %v6087 = vcombine.low %v3633, %v3640
    %v6089 = vunpack.c.l.s4 1983009808
    %v6090 = vunpack.c.0.s8 %v6089
    %v6091 = vlaneseq
    %v6092 = vshrl.u32 %v6091, 7
    %v6093 = vsub.s32 %v6090, %v6092
    %v6094 = vrot.slane %v6086, %v6093
    %v6096 = vunpack.c.l.s4 1983009808
    %v6097 = vunpack.c.0.s8 %v6096
    %v6098 = vlaneseq
    %v6099 = vshrl.u32 %v6098, 7
    %v6100 = vsub.s32 %v6097, %v6099
    %v6101 = vrot.slane %v6087, %v6100
    %v6102 = vcombine.low %v6094, %v6101
    %v6103 = vcombine.low %v3647, %v3654
    %v6104 = vcombine.low %v3661, %v3668
    %v6106 = vunpack.c.l.s4 1983009808
    %v6107 = vunpack.c.0.s8 %v6106
    %v6108 = vlaneseq
    %v6109 = vshrl.u32 %v6108, 7
    %v6110 = vsub.s32 %v6107, %v6109
    %v6111 = vrot.slane %v6103, %v6110
    %v6113 = vunpack.c.l.s4 1983009808
    %v6114 = vunpack.c.0.s8 %v6113
    %v6115 = vlaneseq
    %v6116 = vshrl.u32 %v6115, 7
    %v6117 = vsub.s32 %v6114, %v6116
    %v6118 = vrot.slane %v6104, %v6117
    %v6119 = vcombine.low %v6111, %v6118
    %v6120 = vcombine.low %v3675, %v3682
    %v6121 = vcombine.low %v3689, %v3696
    %v6123 = vunpack.c.l.s4 1983009808
    %v6124 = vunpack.c.0.s8 %v6123
    %v6125 = vlaneseq
    %v6126 = vshrl.u32 %v6125, 7
    %v6127 = vsub.s32 %v6124, %v6126
    %v6128 = vrot.slane %v6120, %v6127
    %v6130 = vunpack.c.l.s4 1983009808
    %v6131 = vunpack.c.0.s8 %v6130
    %v6132 = vlaneseq
    %v6133 = vshrl.u32 %v6132, 7
    %v6134 = vsub.s32 %v6131, %v6133
    %v6135 = vrot.slane %v6121, %v6134
    %v6136 = vcombine.low %v6128, %v6135
    %v6137 = vcombine.low %v3703, %v3710
    %v6138 = vcombine.low %v3717, %v3724
    %v6140 = vunpack.c.l.s4 1983009808
    %v6141 = vunpack.c.0.s8 %v6140
    %v6142 = vlaneseq
    %v6143 = vshrl.u32 %v6142, 7
    %v6144 = vsub.s32 %v6141, %v6143
    %v6145 = vrot.slane %v6137, %v6144
    %v6147 = vunpack.c.l.s4 1983009808
    %v6148 = vunpack.c.0.s8 %v6147
    %v6149 = vlaneseq
    %v6150 = vshrl.u32 %v6149, 7
    %v6151 = vsub.s32 %v6148, %v6150
    %v6152 = vrot.slane %v6138, %v6151
    %v6153 = vcombine.low %v6145, %v6152
    %v6154 = vcombine.low %v3731, %v3738
    %v6155 = vcombine.low %v3745, %v3752
    %v6157 = vunpack.c.l.s4 1983009808
    %v6158 = vunpack.c.0.s8 %v6157
    %v6159 = vlaneseq
    %v6160 = vshrl.u32 %v6159, 7
    %v6161 = vsub.s32 %v6158, %v6160
    %v6162 = vrot.slane %v6154, %v6161
    %v6164 = vunpack.c.l.s4 1983009808
    %v6165 = vunpack.c.0.s8 %v6164
    %v6166 = vlaneseq
    %v6167 = vshrl.u32 %v6166, 7
    %v6168 = vsub.s32 %v6165, %v6167
    %v6169 = vrot.slane %v6155, %v6168
    %v6170 = vcombine.low %v6162, %v6169
    %v6171 = vcombine.low %v3759, %v3766
    %v6172 = vcombine.low %v3773, %v3780
    %v6174 = vunpack.c.l.s4 1983009808
    %v6175 = vunpack.c.0.s8 %v6174
    %v6176 = vlaneseq
    %v6177 = vshrl.u32 %v6176, 7
    %v6178 = vsub.s32 %v6175, %v6177
    %v6179 = vrot.slane %v6171, %v6178
    %v6181 = vunpack.c.l.s4 1983009808
    %v6182 = vunpack.c.0.s8 %v6181
    %v6183 = vlaneseq
    %v6184 = vshrl.u32 %v6183, 7
    %v6185 = vsub.s32 %v6182, %v6184
    %v6186 = vrot.slane %v6172, %v6185
    %v6187 = vcombine.low %v6179, %v6186
    %v6188 = vcombine.low %v3787, %v3794
    %v6189 = vcombine.low %v3801, %v3808
    %v6191 = vunpack.c.l.s4 1983009808
    %v6192 = vunpack.c.0.s8 %v6191
    %v6193 = vlaneseq
    %v6194 = vshrl.u32 %v6193, 7
    %v6195 = vsub.s32 %v6192, %v6194
    %v6196 = vrot.slane %v6188, %v6195
    %v6198 = vunpack.c.l.s4 1983009808
    %v6199 = vunpack.c.0.s8 %v6198
    %v6200 = vlaneseq
    %v6201 = vshrl.u32 %v6200, 7
    %v6202 = vsub.s32 %v6199, %v6201
    %v6203 = vrot.slane %v6189, %v6202
    %v6204 = vcombine.low %v6196, %v6203
    %v6205 = vcombine.low %v3815, %v3822
    %v6206 = vcombine.low %v3829, %v3836
    %v6208 = vunpack.c.l.s4 1983009808
    %v6209 = vunpack.c.0.s8 %v6208
    %v6210 = vlaneseq
    %v6211 = vshrl.u32 %v6210, 7
    %v6212 = vsub.s32 %v6209, %v6211
    %v6213 = vrot.slane %v6205, %v6212
    %v6215 = vunpack.c.l.s4 1983009808
    %v6216 = vunpack.c.0.s8 %v6215
    %v6217 = vlaneseq
    %v6218 = vshrl.u32 %v6217, 7
    %v6219 = vsub.s32 %v6216, %v6218
    %v6220 = vrot.slane %v6206, %v6219
    %v6221 = vcombine.low %v6213, %v6220
    %v6222 = vcombine.low %v3843, %v3850
    %v6223 = vcombine.low %v3857, %v3864
    %v6225 = vunpack.c.l.s4 1983009808
    %v6226 = vunpack.c.0.s8 %v6225
    %v6227 = vlaneseq
    %v6228 = vshrl.u32 %v6227, 7
    %v6229 = vsub.s32 %v6226, %v6228
    %v6230 = vrot.slane %v6222, %v6229
    %v6232 = vunpack.c.l.s4 1983009808
    %v6233 = vunpack.c.0.s8 %v6232
    %v6234 = vlaneseq
    %v6235 = vshrl.u32 %v6234, 7
    %v6236 = vsub.s32 %v6233, %v6235
    %v6237 = vrot.slane %v6223, %v6236
    %v6238 = vcombine.low %v6230, %v6237
    %v6239 = vcombine.low %v3871, %v3878
    %v6240 = vcombine.low %v3885, %v3892
    %v6242 = vunpack.c.l.s4 1983009808
    %v6243 = vunpack.c.0.s8 %v6242
    %v6244 = vlaneseq
    %v6245 = vshrl.u32 %v6244, 7
    %v6246 = vsub.s32 %v6243, %v6245
    %v6247 = vrot.slane %v6239, %v6246
    %v6249 = vunpack.c.l.s4 1983009808
    %v6250 = vunpack.c.0.s8 %v6249
    %v6251 = vlaneseq
    %v6252 = vshrl.u32 %v6251, 7
    %v6253 = vsub.s32 %v6250, %v6252
    %v6254 = vrot.slane %v6240, %v6253
    %v6255 = vcombine.low %v6247, %v6254
    %v6256 = vcombine.low %v3899, %v3906
    %v6257 = vcombine.low %v3913, %v3920
    %v6259 = vunpack.c.l.s4 1983009808
    %v6260 = vunpack.c.0.s8 %v6259
    %v6261 = vlaneseq
    %v6262 = vshrl.u32 %v6261, 7
    %v6263 = vsub.s32 %v6260, %v6262
    %v6264 = vrot.slane %v6256, %v6263
    %v6266 = vunpack.c.l.s4 1983009808
    %v6267 = vunpack.c.0.s8 %v6266
    %v6268 = vlaneseq
    %v6269 = vshrl.u32 %v6268, 7
    %v6270 = vsub.s32 %v6267, %v6269
    %v6271 = vrot.slane %v6257, %v6270
    %v6272 = vcombine.low %v6264, %v6271
    %v6273 = vcombine.low %v3927, %v3934
    %v6274 = vcombine.low %v3941, %v3948
    %v6276 = vunpack.c.l.s4 1983009808
    %v6277 = vunpack.c.0.s8 %v6276
    %v6278 = vlaneseq
    %v6279 = vshrl.u32 %v6278, 7
    %v6280 = vsub.s32 %v6277, %v6279
    %v6281 = vrot.slane %v6273, %v6280
    %v6283 = vunpack.c.l.s4 1983009808
    %v6284 = vunpack.c.0.s8 %v6283
    %v6285 = vlaneseq
    %v6286 = vshrl.u32 %v6285, 7
    %v6287 = vsub.s32 %v6284, %v6286
    %v6288 = vrot.slane %v6274, %v6287
    %v6289 = vcombine.low %v6281, %v6288
    %v6290 = vcombine.low %v3955, %v3962
    %v6291 = vcombine.low %v3969, %v3976
    %v6293 = vunpack.c.l.s4 1983009808
    %v6294 = vunpack.c.0.s8 %v6293
    %v6295 = vlaneseq
    %v6296 = vshrl.u32 %v6295, 7
    %v6297 = vsub.s32 %v6294, %v6296
    %v6298 = vrot.slane %v6290, %v6297
    %v6300 = vunpack.c.l.s4 1983009808
    %v6301 = vunpack.c.0.s8 %v6300
    %v6302 = vlaneseq
    %v6303 = vshrl.u32 %v6302, 7
    %v6304 = vsub.s32 %v6301, %v6303
    %v6305 = vrot.slane %v6291, %v6304
    %v6306 = vcombine.low %v6298, %v6305
    %v6307 = vcombine.low %v3983, %v3990
    %v6308 = vcombine.low %v3997, %v4004
    %v6310 = vunpack.c.l.s4 1983009808
    %v6311 = vunpack.c.0.s8 %v6310
    %v6312 = vlaneseq
    %v6313 = vshrl.u32 %v6312, 7
    %v6314 = vsub.s32 %v6311, %v6313
    %v6315 = vrot.slane %v6307, %v6314
    %v6317 = vunpack.c.l.s4 1983009808
    %v6318 = vunpack.c.0.s8 %v6317
    %v6319 = vlaneseq
    %v6320 = vshrl.u32 %v6319, 7
    %v6321 = vsub.s32 %v6318, %v6320
    %v6322 = vrot.slane %v6308, %v6321
    %v6323 = vcombine.low %v6315, %v6322
    %v6324 = vcombine.low %v4011, %v4018
    %v6325 = vcombine.low %v4025, %v4032
    %v6327 = vunpack.c.l.s4 1983009808
    %v6328 = vunpack.c.0.s8 %v6327
    %v6329 = vlaneseq
    %v6330 = vshrl.u32 %v6329, 7
    %v6331 = vsub.s32 %v6328, %v6330
    %v6332 = vrot.slane %v6324, %v6331
    %v6334 = vunpack.c.l.s4 1983009808
    %v6335 = vunpack.c.0.s8 %v6334
    %v6336 = vlaneseq
    %v6337 = vshrl.u32 %v6336, 7
    %v6338 = vsub.s32 %v6335, %v6337
    %v6339 = vrot.slane %v6325, %v6338
    %v6340 = vcombine.low %v6332, %v6339
    %v6341 = vcombine.low %v4039, %v4046
    %v6342 = vcombine.low %v4053, %v4060
    %v6344 = vunpack.c.l.s4 1983009808
    %v6345 = vunpack.c.0.s8 %v6344
    %v6346 = vlaneseq
    %v6347 = vshrl.u32 %v6346, 7
    %v6348 = vsub.s32 %v6345, %v6347
    %v6349 = vrot.slane %v6341, %v6348
    %v6351 = vunpack.c.l.s4 1983009808
    %v6352 = vunpack.c.0.s8 %v6351
    %v6353 = vlaneseq
    %v6354 = vshrl.u32 %v6353, 7
    %v6355 = vsub.s32 %v6352, %v6354
    %v6356 = vrot.slane %v6342, %v6355
    %v6357 = vcombine.low %v6349, %v6356
    %v6358 = vcombine.low %v4067, %v4074
    %v6359 = vcombine.low %v4081, %v4088
    %v6361 = vunpack.c.l.s4 1983009808
    %v6362 = vunpack.c.0.s8 %v6361
    %v6363 = vlaneseq
    %v6364 = vshrl.u32 %v6363, 7
    %v6365 = vsub.s32 %v6362, %v6364
    %v6366 = vrot.slane %v6358, %v6365
    %v6368 = vunpack.c.l.s4 1983009808
    %v6369 = vunpack.c.0.s8 %v6368
    %v6370 = vlaneseq
    %v6371 = vshrl.u32 %v6370, 7
    %v6372 = vsub.s32 %v6369, %v6371
    %v6373 = vrot.slane %v6359, %v6372
    %v6374 = vcombine.low %v6366, %v6373
    %v6375 = vcombine.low %v4095, %v4102
    %v6376 = vcombine.low %v4109, %v4116
    %v6378 = vunpack.c.l.s4 1983009808
    %v6379 = vunpack.c.0.s8 %v6378
    %v6380 = vlaneseq
    %v6381 = vshrl.u32 %v6380, 7
    %v6382 = vsub.s32 %v6379, %v6381
    %v6383 = vrot.slane %v6375, %v6382
    %v6385 = vunpack.c.l.s4 1983009808
    %v6386 = vunpack.c.0.s8 %v6385
    %v6387 = vlaneseq
    %v6388 = vshrl.u32 %v6387, 7
    %v6389 = vsub.s32 %v6386, %v6388
    %v6390 = vrot.slane %v6376, %v6389
    %v6391 = vcombine.low %v6383, %v6390
    %v6392 = vcombine.low %v4123, %v4130
    %v6393 = vcombine.low %v4137, %v4144
    %v6395 = vunpack.c.l.s4 1983009808
    %v6396 = vunpack.c.0.s8 %v6395
    %v6397 = vlaneseq
    %v6398 = vshrl.u32 %v6397, 7
    %v6399 = vsub.s32 %v6396, %v6398
    %v6400 = vrot.slane %v6392, %v6399
    %v6402 = vunpack.c.l.s4 1983009808
    %v6403 = vunpack.c.0.s8 %v6402
    %v6404 = vlaneseq
    %v6405 = vshrl.u32 %v6404, 7
    %v6406 = vsub.s32 %v6403, %v6405
    %v6407 = vrot.slane %v6393, %v6406
    %v6408 = vcombine.low %v6400, %v6407
    %v6409 = vcombine.low %v4151, %v4158
    %v6410 = vcombine.low %v4165, %v4172
    %v6412 = vunpack.c.l.s4 1983009808
    %v6413 = vunpack.c.0.s8 %v6412
    %v6414 = vlaneseq
    %v6415 = vshrl.u32 %v6414, 7
    %v6416 = vsub.s32 %v6413, %v6415
    %v6417 = vrot.slane %v6409, %v6416
    %v6419 = vunpack.c.l.s4 1983009808
    %v6420 = vunpack.c.0.s8 %v6419
    %v6421 = vlaneseq
    %v6422 = vshrl.u32 %v6421, 7
    %v6423 = vsub.s32 %v6420, %v6422
    %v6424 = vrot.slane %v6410, %v6423
    %v6425 = vcombine.low %v6417, %v6424
    %v6426 = vcombine.low %v4179, %v4186
    %v6427 = vcombine.low %v4193, %v4200
    %v6429 = vunpack.c.l.s4 1983009808
    %v6430 = vunpack.c.0.s8 %v6429
    %v6431 = vlaneseq
    %v6432 = vshrl.u32 %v6431, 7
    %v6433 = vsub.s32 %v6430, %v6432
    %v6434 = vrot.slane %v6426, %v6433
    %v6436 = vunpack.c.l.s4 1983009808
    %v6437 = vunpack.c.0.s8 %v6436
    %v6438 = vlaneseq
    %v6439 = vshrl.u32 %v6438, 7
    %v6440 = vsub.s32 %v6437, %v6439
    %v6441 = vrot.slane %v6427, %v6440
    %v6442 = vcombine.low %v6434, %v6441
    %v6443 = vcombine.low %v4207, %v4214
    %v6444 = vcombine.low %v4221, %v4228
    %v6446 = vunpack.c.l.s4 1983009808
    %v6447 = vunpack.c.0.s8 %v6446
    %v6448 = vlaneseq
    %v6449 = vshrl.u32 %v6448, 7
    %v6450 = vsub.s32 %v6447, %v6449
    %v6451 = vrot.slane %v6443, %v6450
    %v6453 = vunpack.c.l.s4 1983009808
    %v6454 = vunpack.c.0.s8 %v6453
    %v6455 = vlaneseq
    %v6456 = vshrl.u32 %v6455, 7
    %v6457 = vsub.s32 %v6454, %v6456
    %v6458 = vrot.slane %v6444, %v6457
    %v6459 = vcombine.low %v6451, %v6458
    %v6460 = vcombine.low %v4235, %v4242
    %v6461 = vcombine.low %v4249, %v4256
    %v6463 = vunpack.c.l.s4 1983009808
    %v6464 = vunpack.c.0.s8 %v6463
    %v6465 = vlaneseq
    %v6466 = vshrl.u32 %v6465, 7
    %v6467 = vsub.s32 %v6464, %v6466
    %v6468 = vrot.slane %v6460, %v6467
    %v6470 = vunpack.c.l.s4 1983009808
    %v6471 = vunpack.c.0.s8 %v6470
    %v6472 = vlaneseq
    %v6473 = vshrl.u32 %v6472, 7
    %v6474 = vsub.s32 %v6471, %v6473
    %v6475 = vrot.slane %v6461, %v6474
    %v6476 = vcombine.low %v6468, %v6475
    %v6477 = vcombine.low %v4263, %v4270
    %v6478 = vcombine.low %v4277, %v4284
    %v6480 = vunpack.c.l.s4 1983009808
    %v6481 = vunpack.c.0.s8 %v6480
    %v6482 = vlaneseq
    %v6483 = vshrl.u32 %v6482, 7
    %v6484 = vsub.s32 %v6481, %v6483
    %v6485 = vrot.slane %v6477, %v6484
    %v6487 = vunpack.c.l.s4 1983009808
    %v6488 = vunpack.c.0.s8 %v6487
    %v6489 = vlaneseq
    %v6490 = vshrl.u32 %v6489, 7
    %v6491 = vsub.s32 %v6488, %v6490
    %v6492 = vrot.slane %v6478, %v6491
    %v6493 = vcombine.low %v6485, %v6492
    %v6494 = vcombine.low %v4291, %v4298
    %v6495 = vcombine.low %v4305, %v4312
    %v6497 = vunpack.c.l.s4 1983009808
    %v6498 = vunpack.c.0.s8 %v6497
    %v6499 = vlaneseq
    %v6500 = vshrl.u32 %v6499, 7
    %v6501 = vsub.s32 %v6498, %v6500
    %v6502 = vrot.slane %v6494, %v6501
    %v6504 = vunpack.c.l.s4 1983009808
    %v6505 = vunpack.c.0.s8 %v6504
    %v6506 = vlaneseq
    %v6507 = vshrl.u32 %v6506, 7
    %v6508 = vsub.s32 %v6505, %v6507
    %v6509 = vrot.slane %v6495, %v6508
    %v6510 = vcombine.low %v6502, %v6509
    %v6511 = vcombine.low %v4319, %v4326
    %v6512 = vcombine.low %v4333, %v4340
    %v6514 = vunpack.c.l.s4 1983009808
    %v6515 = vunpack.c.0.s8 %v6514
    %v6516 = vlaneseq
    %v6517 = vshrl.u32 %v6516, 7
    %v6518 = vsub.s32 %v6515, %v6517
    %v6519 = vrot.slane %v6511, %v6518
    %v6521 = vunpack.c.l.s4 1983009808
    %v6522 = vunpack.c.0.s8 %v6521
    %v6523 = vlaneseq
    %v6524 = vshrl.u32 %v6523, 7
    %v6525 = vsub.s32 %v6522, %v6524
    %v6526 = vrot.slane %v6512, %v6525
    %v6527 = vcombine.low %v6519, %v6526
    %v6528 = vcombine.low %v4347, %v4354
    %v6529 = vcombine.low %v4361, %v4368
    %v6531 = vunpack.c.l.s4 1983009808
    %v6532 = vunpack.c.0.s8 %v6531
    %v6533 = vlaneseq
    %v6534 = vshrl.u32 %v6533, 7
    %v6535 = vsub.s32 %v6532, %v6534
    %v6536 = vrot.slane %v6528, %v6535
    %v6538 = vunpack.c.l.s4 1983009808
    %v6539 = vunpack.c.0.s8 %v6538
    %v6540 = vlaneseq
    %v6541 = vshrl.u32 %v6540, 7
    %v6542 = vsub.s32 %v6539, %v6541
    %v6543 = vrot.slane %v6529, %v6542
    %v6544 = vcombine.low %v6536, %v6543
    %6545 = vset.pattern.permute.xlu0 0
    %6546 = vperm.xlu0 %6545, %v4385
    %v6547 = vpop.permute.xlu0 %6546
    %6548 = vset.pattern.permute.xlu0 0
    %6549 = vperm.xlu0 %6548, %v4402
    %v6550 = vpop.permute.xlu0 %6549
    %6551 = vset.pattern.permute.xlu0 0
    %6552 = vperm.xlu0 %6551, %v4419
    %v6553 = vpop.permute.xlu0 %6552
    %6554 = vset.pattern.permute.xlu0 0
    %6555 = vperm.xlu0 %6554, %v4436
    %v6556 = vpop.permute.xlu0 %6555
    %6557 = vset.pattern.permute.xlu0 0
    %6558 = vperm.xlu0 %6557, %v4453
    %v6559 = vpop.permute.xlu0 %6558
    %6560 = vset.pattern.permute.xlu0 0
    %6561 = vperm.xlu0 %6560, %v4470
    %v6562 = vpop.permute.xlu0 %6561
    %6563 = vset.pattern.permute.xlu0 0
    %6564 = vperm.xlu0 %6563, %v4487
    %v6565 = vpop.permute.xlu0 %6564
    %6566 = vset.pattern.permute.xlu0 0
    %6567 = vperm.xlu0 %6566, %v4504
    %v6568 = vpop.permute.xlu0 %6567
    %6569 = vset.pattern.permute.xlu0 0
    %6570 = vperm.xlu0 %6569, %v4521
    %v6571 = vpop.permute.xlu0 %6570
    %6572 = vset.pattern.permute.xlu0 0
    %6573 = vperm.xlu0 %6572, %v4538
    %v6574 = vpop.permute.xlu0 %6573
    %6575 = vset.pattern.permute.xlu0 0
    %6576 = vperm.xlu0 %6575, %v4555
    %v6577 = vpop.permute.xlu0 %6576
    %6578 = vset.pattern.permute.xlu0 0
    %6579 = vperm.xlu0 %6578, %v4572
    %v6580 = vpop.permute.xlu0 %6579
    %6581 = vset.pattern.permute.xlu0 0
    %6582 = vperm.xlu0 %6581, %v4589
    %v6583 = vpop.permute.xlu0 %6582
    %6584 = vset.pattern.permute.xlu0 0
    %6585 = vperm.xlu0 %6584, %v4606
    %v6586 = vpop.permute.xlu0 %6585
    %6587 = vset.pattern.permute.xlu0 0
    %6588 = vperm.xlu0 %6587, %v4623
    %v6589 = vpop.permute.xlu0 %6588
    %6590 = vset.pattern.permute.xlu0 0
    %6591 = vperm.xlu0 %6590, %v4640
    %v6592 = vpop.permute.xlu0 %6591
    %6593 = vset.pattern.permute.xlu0 0
    %6594 = vperm.xlu0 %6593, %v4657
    %v6595 = vpop.permute.xlu0 %6594
    %6596 = vset.pattern.permute.xlu0 0
    %6597 = vperm.xlu0 %6596, %v4674
    %v6598 = vpop.permute.xlu0 %6597
    %6599 = vset.pattern.permute.xlu0 0
    %6600 = vperm.xlu0 %6599, %v4691
    %v6601 = vpop.permute.xlu0 %6600
    %6602 = vset.pattern.permute.xlu0 0
    %6603 = vperm.xlu0 %6602, %v4708
    %v6604 = vpop.permute.xlu0 %6603
    %6605 = vset.pattern.permute.xlu0 0
    %6606 = vperm.xlu0 %6605, %v4725
    %v6607 = vpop.permute.xlu0 %6606
    %6608 = vset.pattern.permute.xlu0 0
    %6609 = vperm.xlu0 %6608, %v4742
    %v6610 = vpop.permute.xlu0 %6609
    %6611 = vset.pattern.permute.xlu0 0
    %6612 = vperm.xlu0 %6611, %v4759
    %v6613 = vpop.permute.xlu0 %6612
    %6614 = vset.pattern.permute.xlu0 0
    %6615 = vperm.xlu0 %6614, %v4776
    %v6616 = vpop.permute.xlu0 %6615
    %6617 = vset.pattern.permute.xlu0 0
    %6618 = vperm.xlu0 %6617, %v4793
    %v6619 = vpop.permute.xlu0 %6618
    %6620 = vset.pattern.permute.xlu0 0
    %6621 = vperm.xlu0 %6620, %v4810
    %v6622 = vpop.permute.xlu0 %6621
    %6623 = vset.pattern.permute.xlu0 0
    %6624 = vperm.xlu0 %6623, %v4827
    %v6625 = vpop.permute.xlu0 %6624
    %6626 = vset.pattern.permute.xlu0 0
    %6627 = vperm.xlu0 %6626, %v4844
    %v6628 = vpop.permute.xlu0 %6627
    %6629 = vset.pattern.permute.xlu0 0
    %6630 = vperm.xlu0 %6629, %v4861
    %v6631 = vpop.permute.xlu0 %6630
    %6632 = vset.pattern.permute.xlu0 0
    %6633 = vperm.xlu0 %6632, %v4878
    %v6634 = vpop.permute.xlu0 %6633
    %6635 = vset.pattern.permute.xlu0 0
    %6636 = vperm.xlu0 %6635, %v4895
    %v6637 = vpop.permute.xlu0 %6636
    %6638 = vset.pattern.permute.xlu0 0
    %6639 = vperm.xlu0 %6638, %v4912
    %v6640 = vpop.permute.xlu0 %6639
    %6641 = vset.pattern.permute.xlu0 0
    %6642 = vperm.xlu0 %6641, %v4929
    %v6643 = vpop.permute.xlu0 %6642
    %6644 = vset.pattern.permute.xlu0 0
    %6645 = vperm.xlu0 %6644, %v4946
    %v6646 = vpop.permute.xlu0 %6645
    %6647 = vset.pattern.permute.xlu0 0
    %6648 = vperm.xlu0 %6647, %v4963
    %v6649 = vpop.permute.xlu0 %6648
    %6650 = vset.pattern.permute.xlu0 0
    %6651 = vperm.xlu0 %6650, %v4980
    %v6652 = vpop.permute.xlu0 %6651
    %6653 = vset.pattern.permute.xlu0 0
    %6654 = vperm.xlu0 %6653, %v4997
    %v6655 = vpop.permute.xlu0 %6654
    %6656 = vset.pattern.permute.xlu0 0
    %6657 = vperm.xlu0 %6656, %v5014
    %v6658 = vpop.permute.xlu0 %6657
    %6659 = vset.pattern.permute.xlu0 0
    %6660 = vperm.xlu0 %6659, %v5031
    %v6661 = vpop.permute.xlu0 %6660
    %6662 = vset.pattern.permute.xlu0 0
    %6663 = vperm.xlu0 %6662, %v5048
    %v6664 = vpop.permute.xlu0 %6663
    %6665 = vset.pattern.permute.xlu0 0
    %6666 = vperm.xlu0 %6665, %v5065
    %v6667 = vpop.permute.xlu0 %6666
    %6668 = vset.pattern.permute.xlu0 0
    %6669 = vperm.xlu0 %6668, %v5082
    %v6670 = vpop.permute.xlu0 %6669
    %6671 = vset.pattern.permute.xlu0 0
    %6672 = vperm.xlu0 %6671, %v5099
    %v6673 = vpop.permute.xlu0 %6672
    %6674 = vset.pattern.permute.xlu0 0
    %6675 = vperm.xlu0 %6674, %v5116
    %v6676 = vpop.permute.xlu0 %6675
    %6677 = vset.pattern.permute.xlu0 0
    %6678 = vperm.xlu0 %6677, %v5133
    %v6679 = vpop.permute.xlu0 %6678
    %6680 = vset.pattern.permute.xlu0 0
    %6681 = vperm.xlu0 %6680, %v5150
    %v6682 = vpop.permute.xlu0 %6681
    %6683 = vset.pattern.permute.xlu0 0
    %6684 = vperm.xlu0 %6683, %v5167
    %v6685 = vpop.permute.xlu0 %6684
    %6686 = vset.pattern.permute.xlu0 0
    %6687 = vperm.xlu0 %6686, %v5184
    %v6688 = vpop.permute.xlu0 %6687
    %6689 = vset.pattern.permute.xlu0 0
    %6690 = vperm.xlu0 %6689, %v5201
    %v6691 = vpop.permute.xlu0 %6690
    %6692 = vset.pattern.permute.xlu0 0
    %6693 = vperm.xlu0 %6692, %v5218
    %v6694 = vpop.permute.xlu0 %6693
    %6695 = vset.pattern.permute.xlu0 0
    %6696 = vperm.xlu0 %6695, %v5235
    %v6697 = vpop.permute.xlu0 %6696
    %6698 = vset.pattern.permute.xlu0 0
    %6699 = vperm.xlu0 %6698, %v5252
    %v6700 = vpop.permute.xlu0 %6699
    %6701 = vset.pattern.permute.xlu0 0
    %6702 = vperm.xlu0 %6701, %v5269
    %v6703 = vpop.permute.xlu0 %6702
    %6704 = vset.pattern.permute.xlu0 0
    %6705 = vperm.xlu0 %6704, %v5286
    %v6706 = vpop.permute.xlu0 %6705
    %6707 = vset.pattern.permute.xlu0 0
    %6708 = vperm.xlu0 %6707, %v5303
    %v6709 = vpop.permute.xlu0 %6708
    %6710 = vset.pattern.permute.xlu0 0
    %6711 = vperm.xlu0 %6710, %v5320
    %v6712 = vpop.permute.xlu0 %6711
    %6713 = vset.pattern.permute.xlu0 0
    %6714 = vperm.xlu0 %6713, %v5337
    %v6715 = vpop.permute.xlu0 %6714
    %6716 = vset.pattern.permute.xlu0 0
    %6717 = vperm.xlu0 %6716, %v5354
    %v6718 = vpop.permute.xlu0 %6717
    %6719 = vset.pattern.permute.xlu0 0
    %6720 = vperm.xlu0 %6719, %v5371
    %v6721 = vpop.permute.xlu0 %6720
    %6722 = vset.pattern.permute.xlu0 0
    %6723 = vperm.xlu0 %6722, %v5388
    %v6724 = vpop.permute.xlu0 %6723
    %6725 = vset.pattern.permute.xlu0 0
    %6726 = vperm.xlu0 %6725, %v5405
    %v6727 = vpop.permute.xlu0 %6726
    %6728 = vset.pattern.permute.xlu0 0
    %6729 = vperm.xlu0 %6728, %v5422
    %v6730 = vpop.permute.xlu0 %6729
    %6731 = vset.pattern.permute.xlu0 0
    %6732 = vperm.xlu0 %6731, %v5439
    %v6733 = vpop.permute.xlu0 %6732
    %6734 = vset.pattern.permute.xlu0 0
    %6735 = vperm.xlu0 %6734, %v5456
    %v6736 = vpop.permute.xlu0 %6735
    %6737 = vset.pattern.permute.xlu0 0
    %6738 = vperm.xlu0 %6737, %v5473
    %v6739 = vpop.permute.xlu0 %6738
    %6740 = vset.pattern.permute.xlu0 0
    %6741 = vperm.xlu0 %6740, %v5490
    %v6742 = vpop.permute.xlu0 %6741
    %6743 = vset.pattern.permute.xlu0 0
    %6744 = vperm.xlu0 %6743, %v5507
    %v6745 = vpop.permute.xlu0 %6744
    %6746 = vset.pattern.permute.xlu0 0
    %6747 = vperm.xlu0 %6746, %v5524
    %v6748 = vpop.permute.xlu0 %6747
    %6749 = vset.pattern.permute.xlu0 0
    %6750 = vperm.xlu0 %6749, %v5541
    %v6751 = vpop.permute.xlu0 %6750
    %6752 = vset.pattern.permute.xlu0 0
    %6753 = vperm.xlu0 %6752, %v5558
    %v6754 = vpop.permute.xlu0 %6753
    %6755 = vset.pattern.permute.xlu0 0
    %6756 = vperm.xlu0 %6755, %v5575
    %v6757 = vpop.permute.xlu0 %6756
    %6758 = vset.pattern.permute.xlu0 0
    %6759 = vperm.xlu0 %6758, %v5592
    %v6760 = vpop.permute.xlu0 %6759
    %6761 = vset.pattern.permute.xlu0 0
    %6762 = vperm.xlu0 %6761, %v5609
    %v6763 = vpop.permute.xlu0 %6762
    %6764 = vset.pattern.permute.xlu0 0
    %6765 = vperm.xlu0 %6764, %v5626
    %v6766 = vpop.permute.xlu0 %6765
    %6767 = vset.pattern.permute.xlu0 0
    %6768 = vperm.xlu0 %6767, %v5643
    %v6769 = vpop.permute.xlu0 %6768
    %6770 = vset.pattern.permute.xlu0 0
    %6771 = vperm.xlu0 %6770, %v5660
    %v6772 = vpop.permute.xlu0 %6771
    %6773 = vset.pattern.permute.xlu0 0
    %6774 = vperm.xlu0 %6773, %v5677
    %v6775 = vpop.permute.xlu0 %6774
    %6776 = vset.pattern.permute.xlu0 0
    %6777 = vperm.xlu0 %6776, %v5694
    %v6778 = vpop.permute.xlu0 %6777
    %6779 = vset.pattern.permute.xlu0 0
    %6780 = vperm.xlu0 %6779, %v5711
    %v6781 = vpop.permute.xlu0 %6780
    %6782 = vset.pattern.permute.xlu0 0
    %6783 = vperm.xlu0 %6782, %v5728
    %v6784 = vpop.permute.xlu0 %6783
    %6785 = vset.pattern.permute.xlu0 0
    %6786 = vperm.xlu0 %6785, %v5745
    %v6787 = vpop.permute.xlu0 %6786
    %6788 = vset.pattern.permute.xlu0 0
    %6789 = vperm.xlu0 %6788, %v5762
    %v6790 = vpop.permute.xlu0 %6789
    %6791 = vset.pattern.permute.xlu0 0
    %6792 = vperm.xlu0 %6791, %v5779
    %v6793 = vpop.permute.xlu0 %6792
    %6794 = vset.pattern.permute.xlu0 0
    %6795 = vperm.xlu0 %6794, %v5796
    %v6796 = vpop.permute.xlu0 %6795
    %6797 = vset.pattern.permute.xlu0 0
    %6798 = vperm.xlu0 %6797, %v5813
    %v6799 = vpop.permute.xlu0 %6798
    %6800 = vset.pattern.permute.xlu0 0
    %6801 = vperm.xlu0 %6800, %v5830
    %v6802 = vpop.permute.xlu0 %6801
    %6803 = vset.pattern.permute.xlu0 0
    %6804 = vperm.xlu0 %6803, %v5847
    %v6805 = vpop.permute.xlu0 %6804
    %6806 = vset.pattern.permute.xlu0 0
    %6807 = vperm.xlu0 %6806, %v5864
    %v6808 = vpop.permute.xlu0 %6807
    %6809 = vset.pattern.permute.xlu0 0
    %6810 = vperm.xlu0 %6809, %v5881
    %v6811 = vpop.permute.xlu0 %6810
    %6812 = vset.pattern.permute.xlu0 0
    %6813 = vperm.xlu0 %6812, %v5898
    %v6814 = vpop.permute.xlu0 %6813
    %6815 = vset.pattern.permute.xlu0 0
    %6816 = vperm.xlu0 %6815, %v5915
    %v6817 = vpop.permute.xlu0 %6816
    %6818 = vset.pattern.permute.xlu0 0
    %6819 = vperm.xlu0 %6818, %v5932
    %v6820 = vpop.permute.xlu0 %6819
    %6821 = vset.pattern.permute.xlu0 0
    %6822 = vperm.xlu0 %6821, %v5949
    %v6823 = vpop.permute.xlu0 %6822
    %6824 = vset.pattern.permute.xlu0 0
    %6825 = vperm.xlu0 %6824, %v5966
    %v6826 = vpop.permute.xlu0 %6825
    %6827 = vset.pattern.permute.xlu0 0
    %6828 = vperm.xlu0 %6827, %v5983
    %v6829 = vpop.permute.xlu0 %6828
    %6830 = vset.pattern.permute.xlu0 0
    %6831 = vperm.xlu0 %6830, %v6000
    %v6832 = vpop.permute.xlu0 %6831
    %6833 = vset.pattern.permute.xlu0 0
    %6834 = vperm.xlu0 %6833, %v6017
    %v6835 = vpop.permute.xlu0 %6834
    %6836 = vset.pattern.permute.xlu0 0
    %6837 = vperm.xlu0 %6836, %v6034
    %v6838 = vpop.permute.xlu0 %6837
    %6839 = vset.pattern.permute.xlu0 0
    %6840 = vperm.xlu0 %6839, %v6051
    %v6841 = vpop.permute.xlu0 %6840
    %6842 = vset.pattern.permute.xlu0 0
    %6843 = vperm.xlu0 %6842, %v6068
    %v6844 = vpop.permute.xlu0 %6843
    %6845 = vset.pattern.permute.xlu0 0
    %6846 = vperm.xlu0 %6845, %v6085
    %v6847 = vpop.permute.xlu0 %6846
    %6848 = vset.pattern.permute.xlu0 0
    %6849 = vperm.xlu0 %6848, %v6102
    %v6850 = vpop.permute.xlu0 %6849
    %6851 = vset.pattern.permute.xlu0 0
    %6852 = vperm.xlu0 %6851, %v6119
    %v6853 = vpop.permute.xlu0 %6852
    %6854 = vset.pattern.permute.xlu0 0
    %6855 = vperm.xlu0 %6854, %v6136
    %v6856 = vpop.permute.xlu0 %6855
    %6857 = vset.pattern.permute.xlu0 0
    %6858 = vperm.xlu0 %6857, %v6153
    %v6859 = vpop.permute.xlu0 %6858
    %6860 = vset.pattern.permute.xlu0 0
    %6861 = vperm.xlu0 %6860, %v6170
    %v6862 = vpop.permute.xlu0 %6861
    %6863 = vset.pattern.permute.xlu0 0
    %6864 = vperm.xlu0 %6863, %v6187
    %v6865 = vpop.permute.xlu0 %6864
    %6866 = vset.pattern.permute.xlu0 0
    %6867 = vperm.xlu0 %6866, %v6204
    %v6868 = vpop.permute.xlu0 %6867
    %6869 = vset.pattern.permute.xlu0 0
    %6870 = vperm.xlu0 %6869, %v6221
    %v6871 = vpop.permute.xlu0 %6870
    %6872 = vset.pattern.permute.xlu0 0
    %6873 = vperm.xlu0 %6872, %v6238
    %v6874 = vpop.permute.xlu0 %6873
    %6875 = vset.pattern.permute.xlu0 0
    %6876 = vperm.xlu0 %6875, %v6255
    %v6877 = vpop.permute.xlu0 %6876
    %6878 = vset.pattern.permute.xlu0 0
    %6879 = vperm.xlu0 %6878, %v6272
    %v6880 = vpop.permute.xlu0 %6879
    %6881 = vset.pattern.permute.xlu0 0
    %6882 = vperm.xlu0 %6881, %v6289
    %v6883 = vpop.permute.xlu0 %6882
    %6884 = vset.pattern.permute.xlu0 0
    %6885 = vperm.xlu0 %6884, %v6306
    %v6886 = vpop.permute.xlu0 %6885
    %6887 = vset.pattern.permute.xlu0 0
    %6888 = vperm.xlu0 %6887, %v6323
    %v6889 = vpop.permute.xlu0 %6888
    %6890 = vset.pattern.permute.xlu0 0
    %6891 = vperm.xlu0 %6890, %v6340
    %v6892 = vpop.permute.xlu0 %6891
    %6893 = vset.pattern.permute.xlu0 0
    %6894 = vperm.xlu0 %6893, %v6357
    %v6895 = vpop.permute.xlu0 %6894
    %6896 = vset.pattern.permute.xlu0 0
    %6897 = vperm.xlu0 %6896, %v6374
    %v6898 = vpop.permute.xlu0 %6897
    %6899 = vset.pattern.permute.xlu0 0
    %6900 = vperm.xlu0 %6899, %v6391
    %v6901 = vpop.permute.xlu0 %6900
    %6902 = vset.pattern.permute.xlu0 0
    %6903 = vperm.xlu0 %6902, %v6408
    %v6904 = vpop.permute.xlu0 %6903
    %6905 = vset.pattern.permute.xlu0 0
    %6906 = vperm.xlu0 %6905, %v6425
    %v6907 = vpop.permute.xlu0 %6906
    %6908 = vset.pattern.permute.xlu0 0
    %6909 = vperm.xlu0 %6908, %v6442
    %v6910 = vpop.permute.xlu0 %6909
    %6911 = vset.pattern.permute.xlu0 0
    %6912 = vperm.xlu0 %6911, %v6459
    %v6913 = vpop.permute.xlu0 %6912
    %6914 = vset.pattern.permute.xlu0 0
    %6915 = vperm.xlu0 %6914, %v6476
    %v6916 = vpop.permute.xlu0 %6915
    %6917 = vset.pattern.permute.xlu0 0
    %6918 = vperm.xlu0 %6917, %v6493
    %v6919 = vpop.permute.xlu0 %6918
    %6920 = vset.pattern.permute.xlu0 0
    %6921 = vperm.xlu0 %6920, %v6510
    %v6922 = vpop.permute.xlu0 %6921
    %6923 = vset.pattern.permute.xlu0 0
    %6924 = vperm.xlu0 %6923, %v6527
    %v6925 = vpop.permute.xlu0 %6924
    %6926 = vset.pattern.permute.xlu0 0
    %6927 = vperm.xlu0 %6926, %v6544
    %v6928 = vpop.permute.xlu0 %6927
    %v6929 = vlaneseq
    %v6930 = vand.u32 %v6929, 127
    %v6931 = vlaneseq
    %v6932 = vshrl.u32 %v6931, 7
    %v6933 = vsub.s32 %v6930, %v6932
    %v6934 = vrot.slane %v6547, %v6933
    %v6935 = vadd.s32 %v6930, 4294967288
    %v6936 = vlaneseq
    %v6937 = vshrl.u32 %v6936, 7
    %v6938 = vsub.s32 %v6935, %v6937
    %v6939 = vrot.slane %v6550, %v6938
    %vm6940 = vcmask 130112
    %v6941 = vsel %vm6940, %v6939, %v6934
    %v6942 = vadd.s32 %v6930, 4294967280
    %v6943 = vlaneseq
    %v6944 = vshrl.u32 %v6943, 7
    %v6945 = vsub.s32 %v6942, %v6944
    %v6946 = vrot.slane %v6553, %v6945
    %vm6947 = vcmask 195712
    %v6948 = vsel %vm6947, %v6946, %v6941
    %v6949 = vadd.s32 %v6930, 4294967272
    %v6950 = vlaneseq
    %v6951 = vshrl.u32 %v6950, 7
    %v6952 = vsub.s32 %v6949, %v6951
    %v6953 = vrot.slane %v6556, %v6952
    %vm6954 = vcmask 261312
    %v6955 = vsel %vm6954, %v6953, %v6948
    %v6956 = vadd.s32 %v6930, 4294967264
    %v6957 = vlaneseq
    %v6958 = vshrl.u32 %v6957, 7
    %v6959 = vsub.s32 %v6956, %v6958
    %v6960 = vrot.slane %v6559, %v6959
    %vm6961 = vcmask 326912
    %v6962 = vsel %vm6961, %v6960, %v6955
    %v6963 = vadd.s32 %v6930, 4294967256
    %v6964 = vlaneseq
    %v6965 = vshrl.u32 %v6964, 7
    %v6966 = vsub.s32 %v6963, %v6965
    %v6967 = vrot.slane %v6562, %v6966
    %vm6968 = vcmask 392512
    %v6969 = vsel %vm6968, %v6967, %v6962
    %v6970 = vadd.s32 %v6930, 4294967248
    %v6971 = vlaneseq
    %v6972 = vshrl.u32 %v6971, 7
    %v6973 = vsub.s32 %v6970, %v6972
    %v6974 = vrot.slane %v6565, %v6973
    %vm6975 = vcmask 458112
    %v6976 = vsel %vm6975, %v6974, %v6969
    %v6977 = vadd.s32 %v6930, 4294967240
    %v6978 = vlaneseq
    %v6979 = vshrl.u32 %v6978, 7
    %v6980 = vsub.s32 %v6977, %v6979
    %v6981 = vrot.slane %v6568, %v6980
    %vm6982 = vcmask 523712
    %v6983 = vsel %vm6982, %v6981, %v6976
    %v6984 = vadd.s32 %v6930, 4294967232
    %v6985 = vlaneseq
    %v6986 = vshrl.u32 %v6985, 7
    %v6987 = vsub.s32 %v6984, %v6986
    %v6988 = vrot.slane %v6571, %v6987
    %vm6989 = vcmask 589312
    %v6990 = vsel %vm6989, %v6988, %v6983
    %v6991 = vadd.s32 %v6930, 4294967224
    %v6992 = vlaneseq
    %v6993 = vshrl.u32 %v6992, 7
    %v6994 = vsub.s32 %v6991, %v6993
    %v6995 = vrot.slane %v6574, %v6994
    %vm6996 = vcmask 654912
    %v6997 = vsel %vm6996, %v6995, %v6990
    %v6998 = vadd.s32 %v6930, 4294967216
    %v6999 = vlaneseq
    %v7000 = vshrl.u32 %v6999, 7
    %v7001 = vsub.s32 %v6998, %v7000
    %v7002 = vrot.slane %v6577, %v7001
    %vm7003 = vcmask 720512
    %v7004 = vsel %vm7003, %v7002, %v6997
    %v7005 = vadd.s32 %v6930, 4294967208
    %v7006 = vlaneseq
    %v7007 = vshrl.u32 %v7006, 7
    %v7008 = vsub.s32 %v7005, %v7007
    %v7009 = vrot.slane %v6580, %v7008
    %vm7010 = vcmask 786112
    %v7011 = vsel %vm7010, %v7009, %v7004
    %v7012 = vadd.s32 %v6930, 4294967200
    %v7013 = vlaneseq
    %v7014 = vshrl.u32 %v7013, 7
    %v7015 = vsub.s32 %v7012, %v7014
    %v7016 = vrot.slane %v6583, %v7015
    %vm7017 = vcmask 851712
    %v7018 = vsel %vm7017, %v7016, %v7011
    %v7019 = vadd.s32 %v6930, 4294967192
    %v7020 = vlaneseq
    %v7021 = vshrl.u32 %v7020, 7
    %v7022 = vsub.s32 %v7019, %v7021
    %v7023 = vrot.slane %v6586, %v7022
    %vm7024 = vcmask 917312
    %v7025 = vsel %vm7024, %v7023, %v7018
    %v7026 = vadd.s32 %v6930, 4294967184
    %v7027 = vlaneseq
    %v7028 = vshrl.u32 %v7027, 7
    %v7029 = vsub.s32 %v7026, %v7028
    %v7030 = vrot.slane %v6589, %v7029
    %vm7031 = vcmask 982912
    %v7032 = vsel %vm7031, %v7030, %v7025
    %v7033 = vadd.s32 %v6930, 4294967176
    %v7034 = vlaneseq
    %v7035 = vshrl.u32 %v7034, 7
    %v7036 = vsub.s32 %v7033, %v7035
    %v7037 = vrot.slane %v6592, %v7036
    %vm7038 = vcmask 1048512
    %v7039 = vsel %vm7038, %v7037, %v7032
    %v7040 = vlaneseq
    %v7041 = vshrl.u32 %v7040, 7
    %v7042 = vsub.s32 %v6930, %v7041
    %v7043 = vrot.slane %v6595, %v7042
    %v7044 = vlaneseq
    %v7045 = vshrl.u32 %v7044, 7
    %v7046 = vsub.s32 %v6935, %v7045
    %v7047 = vrot.slane %v6598, %v7046
    %v7048 = vsel %vm6940, %v7047, %v7043
    %v7049 = vlaneseq
    %v7050 = vshrl.u32 %v7049, 7
    %v7051 = vsub.s32 %v6942, %v7050
    %v7052 = vrot.slane %v6601, %v7051
    %v7053 = vsel %vm6947, %v7052, %v7048
    %v7054 = vlaneseq
    %v7055 = vshrl.u32 %v7054, 7
    %v7056 = vsub.s32 %v6949, %v7055
    %v7057 = vrot.slane %v6604, %v7056
    %v7058 = vsel %vm6954, %v7057, %v7053
    %v7059 = vlaneseq
    %v7060 = vshrl.u32 %v7059, 7
    %v7061 = vsub.s32 %v6956, %v7060
    %v7062 = vrot.slane %v6607, %v7061
    %v7063 = vsel %vm6961, %v7062, %v7058
    %v7064 = vlaneseq
    %v7065 = vshrl.u32 %v7064, 7
    %v7066 = vsub.s32 %v6963, %v7065
    %v7067 = vrot.slane %v6610, %v7066
    %v7068 = vsel %vm6968, %v7067, %v7063
    %v7069 = vlaneseq
    %v7070 = vshrl.u32 %v7069, 7
    %v7071 = vsub.s32 %v6970, %v7070
    %v7072 = vrot.slane %v6613, %v7071
    %v7073 = vsel %vm6975, %v7072, %v7068
    %v7074 = vlaneseq
    %v7075 = vshrl.u32 %v7074, 7
    %v7076 = vsub.s32 %v6977, %v7075
    %v7077 = vrot.slane %v6616, %v7076
    %v7078 = vsel %vm6982, %v7077, %v7073
    %v7079 = vlaneseq
    %v7080 = vshrl.u32 %v7079, 7
    %v7081 = vsub.s32 %v6984, %v7080
    %v7082 = vrot.slane %v6619, %v7081
    %v7083 = vsel %vm6989, %v7082, %v7078
    %v7084 = vlaneseq
    %v7085 = vshrl.u32 %v7084, 7
    %v7086 = vsub.s32 %v6991, %v7085
    %v7087 = vrot.slane %v6622, %v7086
    %v7088 = vsel %vm6996, %v7087, %v7083
    %v7089 = vlaneseq
    %v7090 = vshrl.u32 %v7089, 7
    %v7091 = vsub.s32 %v6998, %v7090
    %v7092 = vrot.slane %v6625, %v7091
    %v7093 = vsel %vm7003, %v7092, %v7088
    %v7094 = vlaneseq
    %v7095 = vshrl.u32 %v7094, 7
    %v7096 = vsub.s32 %v7005, %v7095
    %v7097 = vrot.slane %v6628, %v7096
    %v7098 = vsel %vm7010, %v7097, %v7093
    %v7099 = vlaneseq
    %v7100 = vshrl.u32 %v7099, 7
    %v7101 = vsub.s32 %v7012, %v7100
    %v7102 = vrot.slane %v6631, %v7101
    %v7103 = vsel %vm7017, %v7102, %v7098
    %v7104 = vlaneseq
    %v7105 = vshrl.u32 %v7104, 7
    %v7106 = vsub.s32 %v7019, %v7105
    %v7107 = vrot.slane %v6634, %v7106
    %v7108 = vsel %vm7024, %v7107, %v7103
    %v7109 = vlaneseq
    %v7110 = vshrl.u32 %v7109, 7
    %v7111 = vsub.s32 %v7026, %v7110
    %v7112 = vrot.slane %v6637, %v7111
    %v7113 = vsel %vm7031, %v7112, %v7108
    %v7114 = vlaneseq
    %v7115 = vshrl.u32 %v7114, 7
    %v7116 = vsub.s32 %v7033, %v7115
    %v7117 = vrot.slane %v6640, %v7116
    %v7118 = vsel %vm7038, %v7117, %v7113
    %v7119 = vlaneseq
    %v7120 = vshrl.u32 %v7119, 7
    %v7121 = vsub.s32 %v6930, %v7120
    %v7122 = vrot.slane %v6643, %v7121
    %v7123 = vlaneseq
    %v7124 = vshrl.u32 %v7123, 7
    %v7125 = vsub.s32 %v6935, %v7124
    %v7126 = vrot.slane %v6646, %v7125
    %v7127 = vsel %vm6940, %v7126, %v7122
    %v7128 = vlaneseq
    %v7129 = vshrl.u32 %v7128, 7
    %v7130 = vsub.s32 %v6942, %v7129
    %v7131 = vrot.slane %v6649, %v7130
    %v7132 = vsel %vm6947, %v7131, %v7127
    %v7133 = vlaneseq
    %v7134 = vshrl.u32 %v7133, 7
    %v7135 = vsub.s32 %v6949, %v7134
    %v7136 = vrot.slane %v6652, %v7135
    %v7137 = vsel %vm6954, %v7136, %v7132
    %v7138 = vlaneseq
    %v7139 = vshrl.u32 %v7138, 7
    %v7140 = vsub.s32 %v6956, %v7139
    %v7141 = vrot.slane %v6655, %v7140
    %v7142 = vsel %vm6961, %v7141, %v7137
    %v7143 = vlaneseq
    %v7144 = vshrl.u32 %v7143, 7
    %v7145 = vsub.s32 %v6963, %v7144
    %v7146 = vrot.slane %v6658, %v7145
    %v7147 = vsel %vm6968, %v7146, %v7142
    %v7148 = vlaneseq
    %v7149 = vshrl.u32 %v7148, 7
    %v7150 = vsub.s32 %v6970, %v7149
    %v7151 = vrot.slane %v6661, %v7150
    %v7152 = vsel %vm6975, %v7151, %v7147
    %v7153 = vlaneseq
    %v7154 = vshrl.u32 %v7153, 7
    %v7155 = vsub.s32 %v6977, %v7154
    %v7156 = vrot.slane %v6664, %v7155
    %v7157 = vsel %vm6982, %v7156, %v7152
    %v7158 = vlaneseq
    %v7159 = vshrl.u32 %v7158, 7
    %v7160 = vsub.s32 %v6984, %v7159
    %v7161 = vrot.slane %v6667, %v7160
    %v7162 = vsel %vm6989, %v7161, %v7157
    %v7163 = vlaneseq
    %v7164 = vshrl.u32 %v7163, 7
    %v7165 = vsub.s32 %v6991, %v7164
    %v7166 = vrot.slane %v6670, %v7165
    %v7167 = vsel %vm6996, %v7166, %v7162
    %v7168 = vlaneseq
    %v7169 = vshrl.u32 %v7168, 7
    %v7170 = vsub.s32 %v6998, %v7169
    %v7171 = vrot.slane %v6673, %v7170
    %v7172 = vsel %vm7003, %v7171, %v7167
    %v7173 = vlaneseq
    %v7174 = vshrl.u32 %v7173, 7
    %v7175 = vsub.s32 %v7005, %v7174
    %v7176 = vrot.slane %v6676, %v7175
    %v7177 = vsel %vm7010, %v7176, %v7172
    %v7178 = vlaneseq
    %v7179 = vshrl.u32 %v7178, 7
    %v7180 = vsub.s32 %v7012, %v7179
    %v7181 = vrot.slane %v6679, %v7180
    %v7182 = vsel %vm7017, %v7181, %v7177
    %v7183 = vlaneseq
    %v7184 = vshrl.u32 %v7183, 7
    %v7185 = vsub.s32 %v7019, %v7184
    %v7186 = vrot.slane %v6682, %v7185
    %v7187 = vsel %vm7024, %v7186, %v7182
    %v7188 = vlaneseq
    %v7189 = vshrl.u32 %v7188, 7
    %v7190 = vsub.s32 %v7026, %v7189
    %v7191 = vrot.slane %v6685, %v7190
    %v7192 = vsel %vm7031, %v7191, %v7187
    %v7193 = vlaneseq
    %v7194 = vshrl.u32 %v7193, 7
    %v7195 = vsub.s32 %v7033, %v7194
    %v7196 = vrot.slane %v6688, %v7195
    %v7197 = vsel %vm7038, %v7196, %v7192
    %v7198 = vlaneseq
    %v7199 = vshrl.u32 %v7198, 7
    %v7200 = vsub.s32 %v6930, %v7199
    %v7201 = vrot.slane %v6691, %v7200
    %v7202 = vlaneseq
    %v7203 = vshrl.u32 %v7202, 7
    %v7204 = vsub.s32 %v6935, %v7203
    %v7205 = vrot.slane %v6694, %v7204
    %v7206 = vsel %vm6940, %v7205, %v7201
    %v7207 = vlaneseq
    %v7208 = vshrl.u32 %v7207, 7
    %v7209 = vsub.s32 %v6942, %v7208
    %v7210 = vrot.slane %v6697, %v7209
    %v7211 = vsel %vm6947, %v7210, %v7206
    %v7212 = vlaneseq
    %v7213 = vshrl.u32 %v7212, 7
    %v7214 = vsub.s32 %v6949, %v7213
    %v7215 = vrot.slane %v6700, %v7214
    %v7216 = vsel %vm6954, %v7215, %v7211
    %v7217 = vlaneseq
    %v7218 = vshrl.u32 %v7217, 7
    %v7219 = vsub.s32 %v6956, %v7218
    %v7220 = vrot.slane %v6703, %v7219
    %v7221 = vsel %vm6961, %v7220, %v7216
    %v7222 = vlaneseq
    %v7223 = vshrl.u32 %v7222, 7
    %v7224 = vsub.s32 %v6963, %v7223
    %v7225 = vrot.slane %v6706, %v7224
    %v7226 = vsel %vm6968, %v7225, %v7221
    %v7227 = vlaneseq
    %v7228 = vshrl.u32 %v7227, 7
    %v7229 = vsub.s32 %v6970, %v7228
    %v7230 = vrot.slane %v6709, %v7229
    %v7231 = vsel %vm6975, %v7230, %v7226
    %v7232 = vlaneseq
    %v7233 = vshrl.u32 %v7232, 7
    %v7234 = vsub.s32 %v6977, %v7233
    %v7235 = vrot.slane %v6712, %v7234
    %v7236 = vsel %vm6982, %v7235, %v7231
    %v7237 = vlaneseq
    %v7238 = vshrl.u32 %v7237, 7
    %v7239 = vsub.s32 %v6984, %v7238
    %v7240 = vrot.slane %v6715, %v7239
    %v7241 = vsel %vm6989, %v7240, %v7236
    %v7242 = vlaneseq
    %v7243 = vshrl.u32 %v7242, 7
    %v7244 = vsub.s32 %v6991, %v7243
    %v7245 = vrot.slane %v6718, %v7244
    %v7246 = vsel %vm6996, %v7245, %v7241
    %v7247 = vlaneseq
    %v7248 = vshrl.u32 %v7247, 7
    %v7249 = vsub.s32 %v6998, %v7248
    %v7250 = vrot.slane %v6721, %v7249
    %v7251 = vsel %vm7003, %v7250, %v7246
    %v7252 = vlaneseq
    %v7253 = vshrl.u32 %v7252, 7
    %v7254 = vsub.s32 %v7005, %v7253
    %v7255 = vrot.slane %v6724, %v7254
    %v7256 = vsel %vm7010, %v7255, %v7251
    %v7257 = vlaneseq
    %v7258 = vshrl.u32 %v7257, 7
    %v7259 = vsub.s32 %v7012, %v7258
    %v7260 = vrot.slane %v6727, %v7259
    %v7261 = vsel %vm7017, %v7260, %v7256
    %v7262 = vlaneseq
    %v7263 = vshrl.u32 %v7262, 7
    %v7264 = vsub.s32 %v7019, %v7263
    %v7265 = vrot.slane %v6730, %v7264
    %v7266 = vsel %vm7024, %v7265, %v7261
    %v7267 = vlaneseq
    %v7268 = vshrl.u32 %v7267, 7
    %v7269 = vsub.s32 %v7026, %v7268
    %v7270 = vrot.slane %v6733, %v7269
    %v7271 = vsel %vm7031, %v7270, %v7266
    %v7272 = vlaneseq
    %v7273 = vshrl.u32 %v7272, 7
    %v7274 = vsub.s32 %v7033, %v7273
    %v7275 = vrot.slane %v6736, %v7274
    %v7276 = vsel %vm7038, %v7275, %v7271
    %v7277 = vlaneseq
    %v7278 = vshrl.u32 %v7277, 7
    %v7279 = vsub.s32 %v6930, %v7278
    %v7280 = vrot.slane %v6739, %v7279
    %v7281 = vlaneseq
    %v7282 = vshrl.u32 %v7281, 7
    %v7283 = vsub.s32 %v6935, %v7282
    %v7284 = vrot.slane %v6742, %v7283
    %v7285 = vsel %vm6940, %v7284, %v7280
    %v7286 = vlaneseq
    %v7287 = vshrl.u32 %v7286, 7
    %v7288 = vsub.s32 %v6942, %v7287
    %v7289 = vrot.slane %v6745, %v7288
    %v7290 = vsel %vm6947, %v7289, %v7285
    %v7291 = vlaneseq
    %v7292 = vshrl.u32 %v7291, 7
    %v7293 = vsub.s32 %v6949, %v7292
    %v7294 = vrot.slane %v6748, %v7293
    %v7295 = vsel %vm6954, %v7294, %v7290
    %v7296 = vlaneseq
    %v7297 = vshrl.u32 %v7296, 7
    %v7298 = vsub.s32 %v6956, %v7297
    %v7299 = vrot.slane %v6751, %v7298
    %v7300 = vsel %vm6961, %v7299, %v7295
    %v7301 = vlaneseq
    %v7302 = vshrl.u32 %v7301, 7
    %v7303 = vsub.s32 %v6963, %v7302
    %v7304 = vrot.slane %v6754, %v7303
    %v7305 = vsel %vm6968, %v7304, %v7300
    %v7306 = vlaneseq
    %v7307 = vshrl.u32 %v7306, 7
    %v7308 = vsub.s32 %v6970, %v7307
    %v7309 = vrot.slane %v6757, %v7308
    %v7310 = vsel %vm6975, %v7309, %v7305
    %v7311 = vlaneseq
    %v7312 = vshrl.u32 %v7311, 7
    %v7313 = vsub.s32 %v6977, %v7312
    %v7314 = vrot.slane %v6760, %v7313
    %v7315 = vsel %vm6982, %v7314, %v7310
    %v7316 = vlaneseq
    %v7317 = vshrl.u32 %v7316, 7
    %v7318 = vsub.s32 %v6984, %v7317
    %v7319 = vrot.slane %v6763, %v7318
    %v7320 = vsel %vm6989, %v7319, %v7315
    %v7321 = vlaneseq
    %v7322 = vshrl.u32 %v7321, 7
    %v7323 = vsub.s32 %v6991, %v7322
    %v7324 = vrot.slane %v6766, %v7323
    %v7325 = vsel %vm6996, %v7324, %v7320
    %v7326 = vlaneseq
    %v7327 = vshrl.u32 %v7326, 7
    %v7328 = vsub.s32 %v6998, %v7327
    %v7329 = vrot.slane %v6769, %v7328
    %v7330 = vsel %vm7003, %v7329, %v7325
    %v7331 = vlaneseq
    %v7332 = vshrl.u32 %v7331, 7
    %v7333 = vsub.s32 %v7005, %v7332
    %v7334 = vrot.slane %v6772, %v7333
    %v7335 = vsel %vm7010, %v7334, %v7330
    %v7336 = vlaneseq
    %v7337 = vshrl.u32 %v7336, 7
    %v7338 = vsub.s32 %v7012, %v7337
    %v7339 = vrot.slane %v6775, %v7338
    %v7340 = vsel %vm7017, %v7339, %v7335
    %v7341 = vlaneseq
    %v7342 = vshrl.u32 %v7341, 7
    %v7343 = vsub.s32 %v7019, %v7342
    %v7344 = vrot.slane %v6778, %v7343
    %v7345 = vsel %vm7024, %v7344, %v7340
    %v7346 = vlaneseq
    %v7347 = vshrl.u32 %v7346, 7
    %v7348 = vsub.s32 %v7026, %v7347
    %v7349 = vrot.slane %v6781, %v7348
    %v7350 = vsel %vm7031, %v7349, %v7345
    %v7351 = vlaneseq
    %v7352 = vshrl.u32 %v7351, 7
    %v7353 = vsub.s32 %v7033, %v7352
    %v7354 = vrot.slane %v6784, %v7353
    %v7355 = vsel %vm7038, %v7354, %v7350
    %v7356 = vlaneseq
    %v7357 = vshrl.u32 %v7356, 7
    %v7358 = vsub.s32 %v6930, %v7357
    %v7359 = vrot.slane %v6787, %v7358
    %v7360 = vlaneseq
    %v7361 = vshrl.u32 %v7360, 7
    %v7362 = vsub.s32 %v6935, %v7361
    %v7363 = vrot.slane %v6790, %v7362
    %v7364 = vsel %vm6940, %v7363, %v7359
    %v7365 = vlaneseq
    %v7366 = vshrl.u32 %v7365, 7
    %v7367 = vsub.s32 %v6942, %v7366
    %v7368 = vrot.slane %v6793, %v7367
    %v7369 = vsel %vm6947, %v7368, %v7364
    %v7370 = vlaneseq
    %v7371 = vshrl.u32 %v7370, 7
    %v7372 = vsub.s32 %v6949, %v7371
    %v7373 = vrot.slane %v6796, %v7372
    %v7374 = vsel %vm6954, %v7373, %v7369
    %v7375 = vlaneseq
    %v7376 = vshrl.u32 %v7375, 7
    %v7377 = vsub.s32 %v6956, %v7376
    %v7378 = vrot.slane %v6799, %v7377
    %v7379 = vsel %vm6961, %v7378, %v7374
    %v7380 = vlaneseq
    %v7381 = vshrl.u32 %v7380, 7
    %v7382 = vsub.s32 %v6963, %v7381
    %v7383 = vrot.slane %v6802, %v7382
    %v7384 = vsel %vm6968, %v7383, %v7379
    %v7385 = vlaneseq
    %v7386 = vshrl.u32 %v7385, 7
    %v7387 = vsub.s32 %v6970, %v7386
    %v7388 = vrot.slane %v6805, %v7387
    %v7389 = vsel %vm6975, %v7388, %v7384
    %v7390 = vlaneseq
    %v7391 = vshrl.u32 %v7390, 7
    %v7392 = vsub.s32 %v6977, %v7391
    %v7393 = vrot.slane %v6808, %v7392
    %v7394 = vsel %vm6982, %v7393, %v7389
    %v7395 = vlaneseq
    %v7396 = vshrl.u32 %v7395, 7
    %v7397 = vsub.s32 %v6984, %v7396
    %v7398 = vrot.slane %v6811, %v7397
    %v7399 = vsel %vm6989, %v7398, %v7394
    %v7400 = vlaneseq
    %v7401 = vshrl.u32 %v7400, 7
    %v7402 = vsub.s32 %v6991, %v7401
    %v7403 = vrot.slane %v6814, %v7402
    %v7404 = vsel %vm6996, %v7403, %v7399
    %v7405 = vlaneseq
    %v7406 = vshrl.u32 %v7405, 7
    %v7407 = vsub.s32 %v6998, %v7406
    %v7408 = vrot.slane %v6817, %v7407
    %v7409 = vsel %vm7003, %v7408, %v7404
    %v7410 = vlaneseq
    %v7411 = vshrl.u32 %v7410, 7
    %v7412 = vsub.s32 %v7005, %v7411
    %v7413 = vrot.slane %v6820, %v7412
    %v7414 = vsel %vm7010, %v7413, %v7409
    %v7415 = vlaneseq
    %v7416 = vshrl.u32 %v7415, 7
    %v7417 = vsub.s32 %v7012, %v7416
    %v7418 = vrot.slane %v6823, %v7417
    %v7419 = vsel %vm7017, %v7418, %v7414
    %v7420 = vlaneseq
    %v7421 = vshrl.u32 %v7420, 7
    %v7422 = vsub.s32 %v7019, %v7421
    %v7423 = vrot.slane %v6826, %v7422
    %v7424 = vsel %vm7024, %v7423, %v7419
    %v7425 = vlaneseq
    %v7426 = vshrl.u32 %v7425, 7
    %v7427 = vsub.s32 %v7026, %v7426
    %v7428 = vrot.slane %v6829, %v7427
    %v7429 = vsel %vm7031, %v7428, %v7424
    %v7430 = vlaneseq
    %v7431 = vshrl.u32 %v7430, 7
    %v7432 = vsub.s32 %v7033, %v7431
    %v7433 = vrot.slane %v6832, %v7432
    %v7434 = vsel %vm7038, %v7433, %v7429
    %v7435 = vlaneseq
    %v7436 = vshrl.u32 %v7435, 7
    %v7437 = vsub.s32 %v6930, %v7436
    %v7438 = vrot.slane %v6835, %v7437
    %v7439 = vlaneseq
    %v7440 = vshrl.u32 %v7439, 7
    %v7441 = vsub.s32 %v6935, %v7440
    %v7442 = vrot.slane %v6838, %v7441
    %v7443 = vsel %vm6940, %v7442, %v7438
    %v7444 = vlaneseq
    %v7445 = vshrl.u32 %v7444, 7
    %v7446 = vsub.s32 %v6942, %v7445
    %v7447 = vrot.slane %v6841, %v7446
    %v7448 = vsel %vm6947, %v7447, %v7443
    %v7449 = vlaneseq
    %v7450 = vshrl.u32 %v7449, 7
    %v7451 = vsub.s32 %v6949, %v7450
    %v7452 = vrot.slane %v6844, %v7451
    %v7453 = vsel %vm6954, %v7452, %v7448
    %v7454 = vlaneseq
    %v7455 = vshrl.u32 %v7454, 7
    %v7456 = vsub.s32 %v6956, %v7455
    %v7457 = vrot.slane %v6847, %v7456
    %v7458 = vsel %vm6961, %v7457, %v7453
    %v7459 = vlaneseq
    %v7460 = vshrl.u32 %v7459, 7
    %v7461 = vsub.s32 %v6963, %v7460
    %v7462 = vrot.slane %v6850, %v7461
    %v7463 = vsel %vm6968, %v7462, %v7458
    %v7464 = vlaneseq
    %v7465 = vshrl.u32 %v7464, 7
    %v7466 = vsub.s32 %v6970, %v7465
    %v7467 = vrot.slane %v6853, %v7466
    %v7468 = vsel %vm6975, %v7467, %v7463
    %v7469 = vlaneseq
    %v7470 = vshrl.u32 %v7469, 7
    %v7471 = vsub.s32 %v6977, %v7470
    %v7472 = vrot.slane %v6856, %v7471
    %v7473 = vsel %vm6982, %v7472, %v7468
    %v7474 = vlaneseq
    %v7475 = vshrl.u32 %v7474, 7
    %v7476 = vsub.s32 %v6984, %v7475
    %v7477 = vrot.slane %v6859, %v7476
    %v7478 = vsel %vm6989, %v7477, %v7473
    %v7479 = vlaneseq
    %v7480 = vshrl.u32 %v7479, 7
    %v7481 = vsub.s32 %v6991, %v7480
    %v7482 = vrot.slane %v6862, %v7481
    %v7483 = vsel %vm6996, %v7482, %v7478
    %v7484 = vlaneseq
    %v7485 = vshrl.u32 %v7484, 7
    %v7486 = vsub.s32 %v6998, %v7485
    %v7487 = vrot.slane %v6865, %v7486
    %v7488 = vsel %vm7003, %v7487, %v7483
    %v7489 = vlaneseq
    %v7490 = vshrl.u32 %v7489, 7
    %v7491 = vsub.s32 %v7005, %v7490
    %v7492 = vrot.slane %v6868, %v7491
    %v7493 = vsel %vm7010, %v7492, %v7488
    %v7494 = vlaneseq
    %v7495 = vshrl.u32 %v7494, 7
    %v7496 = vsub.s32 %v7012, %v7495
    %v7497 = vrot.slane %v6871, %v7496
    %v7498 = vsel %vm7017, %v7497, %v7493
    %v7499 = vlaneseq
    %v7500 = vshrl.u32 %v7499, 7
    %v7501 = vsub.s32 %v7019, %v7500
    %v7502 = vrot.slane %v6874, %v7501
    %v7503 = vsel %vm7024, %v7502, %v7498
    %v7504 = vlaneseq
    %v7505 = vshrl.u32 %v7504, 7
    %v7506 = vsub.s32 %v7026, %v7505
    %v7507 = vrot.slane %v6877, %v7506
    %v7508 = vsel %vm7031, %v7507, %v7503
    %v7509 = vlaneseq
    %v7510 = vshrl.u32 %v7509, 7
    %v7511 = vsub.s32 %v7033, %v7510
    %v7512 = vrot.slane %v6880, %v7511
    %v7513 = vsel %vm7038, %v7512, %v7508
    %v7514 = vlaneseq
    %v7515 = vshrl.u32 %v7514, 7
    %v7516 = vsub.s32 %v6930, %v7515
    %v7517 = vrot.slane %v6883, %v7516
    %v7518 = vlaneseq
    %v7519 = vshrl.u32 %v7518, 7
    %v7520 = vsub.s32 %v6935, %v7519
    %v7521 = vrot.slane %v6886, %v7520
    %v7522 = vsel %vm6940, %v7521, %v7517
    %v7523 = vlaneseq
    %v7524 = vshrl.u32 %v7523, 7
    %v7525 = vsub.s32 %v6942, %v7524
    %v7526 = vrot.slane %v6889, %v7525
    %v7527 = vsel %vm6947, %v7526, %v7522
    %v7528 = vlaneseq
    %v7529 = vshrl.u32 %v7528, 7
    %v7530 = vsub.s32 %v6949, %v7529
    %v7531 = vrot.slane %v6892, %v7530
    %v7532 = vsel %vm6954, %v7531, %v7527
    %v7533 = vlaneseq
    %v7534 = vshrl.u32 %v7533, 7
    %v7535 = vsub.s32 %v6956, %v7534
    %v7536 = vrot.slane %v6895, %v7535
    %v7537 = vsel %vm6961, %v7536, %v7532
    %v7538 = vlaneseq
    %v7539 = vshrl.u32 %v7538, 7
    %v7540 = vsub.s32 %v6963, %v7539
    %v7541 = vrot.slane %v6898, %v7540
    %v7542 = vsel %vm6968, %v7541, %v7537
    %v7543 = vlaneseq
    %v7544 = vshrl.u32 %v7543, 7
    %v7545 = vsub.s32 %v6970, %v7544
    %v7546 = vrot.slane %v6901, %v7545
    %v7547 = vsel %vm6975, %v7546, %v7542
    %v7548 = vlaneseq
    %v7549 = vshrl.u32 %v7548, 7
    %v7550 = vsub.s32 %v6977, %v7549
    %v7551 = vrot.slane %v6904, %v7550
    %v7552 = vsel %vm6982, %v7551, %v7547
    %v7553 = vlaneseq
    %v7554 = vshrl.u32 %v7553, 7
    %v7555 = vsub.s32 %v6984, %v7554
    %v7556 = vrot.slane %v6907, %v7555
    %v7557 = vsel %vm6989, %v7556, %v7552
    %v7558 = vlaneseq
    %v7559 = vshrl.u32 %v7558, 7
    %v7560 = vsub.s32 %v6991, %v7559
    %v7561 = vrot.slane %v6910, %v7560
    %v7562 = vsel %vm6996, %v7561, %v7557
    %v7563 = vlaneseq
    %v7564 = vshrl.u32 %v7563, 7
    %v7565 = vsub.s32 %v6998, %v7564
    %v7566 = vrot.slane %v6913, %v7565
    %v7567 = vsel %vm7003, %v7566, %v7562
    %v7568 = vlaneseq
    %v7569 = vshrl.u32 %v7568, 7
    %v7570 = vsub.s32 %v7005, %v7569
    %v7571 = vrot.slane %v6916, %v7570
    %v7572 = vsel %vm7010, %v7571, %v7567
    %v7573 = vlaneseq
    %v7574 = vshrl.u32 %v7573, 7
    %v7575 = vsub.s32 %v7012, %v7574
    %v7576 = vrot.slane %v6919, %v7575
    %v7577 = vsel %vm7017, %v7576, %v7572
    %v7578 = vlaneseq
    %v7579 = vshrl.u32 %v7578, 7
    %v7580 = vsub.s32 %v7019, %v7579
    %v7581 = vrot.slane %v6922, %v7580
    %v7582 = vsel %vm7024, %v7581, %v7577
    %v7583 = vlaneseq
    %v7584 = vshrl.u32 %v7583, 7
    %v7585 = vsub.s32 %v7026, %v7584
    %v7586 = vrot.slane %v6925, %v7585
    %v7587 = vsel %vm7031, %v7586, %v7582
    %v7588 = vlaneseq
    %v7589 = vshrl.u32 %v7588, 7
    %v7590 = vsub.s32 %v7033, %v7589
    %v7591 = vrot.slane %v6928, %v7590
    %v7592 = vsel %vm7038, %v7591, %v7587
    %vm7593 = vcmask 1041409
    %v7594 = vsel %vm7593, %v7355, %v7039
    %v7595 = vsel %vm7593, %v7434, %v7118
    %v7596 = vsel %vm7593, %v7513, %v7197
    %v7597 = vsel %vm7593, %v7592, %v7276
    %v7598 = vcombine.low %v7594, %v7595
    %v7599 = vcombine.low %v7596, %v7597
    %v7601 = vunpack.c.l.s4 1983009808
    %v7602 = vunpack.c.0.s8 %v7601
    %v7603 = vlaneseq
    %v7604 = vshrl.u32 %v7603, 7
    %v7605 = vsub.s32 %v7602, %v7604
    %v7606 = vrot.slane %v7598, %v7605
    %v7608 = vunpack.c.l.s4 1983009808
    %v7609 = vunpack.c.0.s8 %v7608
    %v7610 = vlaneseq
    %v7611 = vshrl.u32 %v7610, 7
    %v7612 = vsub.s32 %v7609, %v7611
    %v7613 = vrot.slane %v7599, %v7612
    %v7614 = vcombine.low %v7606, %v7613
    %7616 = vst [vmem:[#allocation4] sm:$0xff] %v7614
    %v7617 = vld [vmem:[%s1] sm:$0xff]
    %v7618 = vld [vmem:[%s1 + $0x8] sm:$0xff]
    %v7619 = vld [vmem:[%s1 + $0x10] sm:$0xff]
    %v7620 = vld [vmem:[%s1 + $0x18] sm:$0xff]
    %v7621 = vld [vmem:[%s1 + $0x20] sm:$0xff]
    %v7622 = vld [vmem:[%s1 + $0x28] sm:$0xff]
    %v7623 = vld [vmem:[%s1 + $0x30] sm:$0xff]
    %v7624 = vld [vmem:[%s1 + $0x38] sm:$0xff]
    %v7625 = vld [vmem:[%s1 + $0x40] sm:$0xff]
    %v7626 = vld [vmem:[%s1 + $0x48] sm:$0xff]
    %v7627 = vld [vmem:[%s1 + $0x50] sm:$0xff]
    %v7628 = vld [vmem:[%s1 + $0x58] sm:$0xff]
    %v7629 = vld [vmem:[%s1 + $0x60] sm:$0xff]
    %v7630 = vld [vmem:[%s1 + $0x68] sm:$0xff]
    %v7631 = vld [vmem:[%s1 + $0x70] sm:$0xff]
    %v7632 = vld [vmem:[%s1 + $0x78] sm:$0xff]
    %v7633 = vld [vmem:[%s1 + $0x80] sm:$0xff]
    %v7634 = vld [vmem:[%s1 + $0x88] sm:$0xff]
    %v7635 = vld [vmem:[%s1 + $0x90] sm:$0xff]
    %v7636 = vld [vmem:[%s1 + $0x98] sm:$0xff]
    %v7637 = vld [vmem:[%s1 + $0xa0] sm:$0xff]
    %v7638 = vld [vmem:[%s1 + $0xa8] sm:$0xff]
    %v7639 = vld [vmem:[%s1 + $0xb0] sm:$0xff]
    %v7640 = vld [vmem:[%s1 + $0xb8] sm:$0xff]
    %v7641 = vld [vmem:[%s1 + $0xc0] sm:$0xff]
    %v7642 = vld [vmem:[%s1 + $0xc8] sm:$0xff]
    %v7643 = vld [vmem:[%s1 + $0xd0] sm:$0xff]
    %v7644 = vld [vmem:[%s1 + $0xd8] sm:$0xff]
    %v7645 = vld [vmem:[%s1 + $0xe0] sm:$0xff]
    %v7646 = vld [vmem:[%s1 + $0xe8] sm:$0xff]
    %v7647 = vld [vmem:[%s1 + $0xf0] sm:$0xff]
    %v7648 = vld [vmem:[%s1 + $0xf8] sm:$0xff]
    %v7649 = vld [vmem:[%s1 + $0x100] sm:$0xff]
    %v7650 = vld [vmem:[%s1 + $0x108] sm:$0xff]
    %v7651 = vld [vmem:[%s1 + $0x110] sm:$0xff]
    %v7652 = vld [vmem:[%s1 + $0x118] sm:$0xff]
    %v7653 = vld [vmem:[%s1 + $0x120] sm:$0xff]
    %v7654 = vld [vmem:[%s1 + $0x128] sm:$0xff]
    %v7655 = vld [vmem:[%s1 + $0x130] sm:$0xff]
    %v7656 = vld [vmem:[%s1 + $0x138] sm:$0xff]
    %v7657 = vld [vmem:[%s1 + $0x140] sm:$0xff]
    %v7658 = vld [vmem:[%s1 + $0x148] sm:$0xff]
    %v7659 = vld [vmem:[%s1 + $0x150] sm:$0xff]
    %v7660 = vld [vmem:[%s1 + $0x158] sm:$0xff]
    %v7661 = vld [vmem:[%s1 + $0x160] sm:$0xff]
    %v7662 = vld [vmem:[%s1 + $0x168] sm:$0xff]
    %v7663 = vld [vmem:[%s1 + $0x170] sm:$0xff]
    %v7664 = vld [vmem:[%s1 + $0x178] sm:$0xff]
    %v7665 = vld [vmem:[%s1 + $0x180] sm:$0xff]
    %v7666 = vld [vmem:[%s1 + $0x188] sm:$0xff]
    %v7667 = vld [vmem:[%s1 + $0x190] sm:$0xff]
    %v7668 = vld [vmem:[%s1 + $0x198] sm:$0xff]
    %v7669 = vld [vmem:[%s1 + $0x1a0] sm:$0xff]
    %v7670 = vld [vmem:[%s1 + $0x1a8] sm:$0xff]
    %v7671 = vld [vmem:[%s1 + $0x1b0] sm:$0xff]
    %v7672 = vld [vmem:[%s1 + $0x1b8] sm:$0xff]
    %v7673 = vld [vmem:[%s1 + $0x1c0] sm:$0xff]
    %v7674 = vld [vmem:[%s1 + $0x1c8] sm:$0xff]
    %v7675 = vld [vmem:[%s1 + $0x1d0] sm:$0xff]
    %v7676 = vld [vmem:[%s1 + $0x1d8] sm:$0xff]
    %v7677 = vld [vmem:[%s1 + $0x1e0] sm:$0xff]
    %v7678 = vld [vmem:[%s1 + $0x1e8] sm:$0xff]
    %v7679 = vld [vmem:[%s1 + $0x1f0] sm:$0xff]
    %v7680 = vld [vmem:[%s1 + $0x1f8] sm:$0xff]
    %v7681 = vlaneseq
    %v7682 = vshrl.u32 %v7681, 7
    %v7683 = vsub.s32 %v6930, %v7682
    %v7684 = vrot.slane %v529, %v7683
    %v7685 = vlaneseq
    %v7686 = vshrl.u32 %v7685, 7
    %v7687 = vsub.s32 %v6935, %v7686
    %v7688 = vrot.slane %v530, %v7687
    %v7689 = vsel %vm6940, %v7688, %v7684
    %v7690 = vlaneseq
    %v7691 = vshrl.u32 %v7690, 7
    %v7692 = vsub.s32 %v6942, %v7691
    %v7693 = vrot.slane %v531, %v7692
    %v7694 = vsel %vm6947, %v7693, %v7689
    %v7695 = vlaneseq
    %v7696 = vshrl.u32 %v7695, 7
    %v7697 = vsub.s32 %v6949, %v7696
    %v7698 = vrot.slane %v532, %v7697
    %v7699 = vsel %vm6954, %v7698, %v7694
    %v7700 = vlaneseq
    %v7701 = vshrl.u32 %v7700, 7
    %v7702 = vsub.s32 %v6956, %v7701
    %v7703 = vrot.slane %v533, %v7702
    %v7704 = vsel %vm6961, %v7703, %v7699
    %v7705 = vlaneseq
    %v7706 = vshrl.u32 %v7705, 7
    %v7707 = vsub.s32 %v6963, %v7706
    %v7708 = vrot.slane %v534, %v7707
    %v7709 = vsel %vm6968, %v7708, %v7704
    %v7710 = vlaneseq
    %v7711 = vshrl.u32 %v7710, 7
    %v7712 = vsub.s32 %v6970, %v7711
    %v7713 = vrot.slane %v535, %v7712
    %v7714 = vsel %vm6975, %v7713, %v7709
    %v7715 = vlaneseq
    %v7716 = vshrl.u32 %v7715, 7
    %v7717 = vsub.s32 %v6977, %v7716
    %v7718 = vrot.slane %v536, %v7717
    %v7719 = vsel %vm6982, %v7718, %v7714
    %v7720 = vlaneseq
    %v7721 = vshrl.u32 %v7720, 7
    %v7722 = vsub.s32 %v6984, %v7721
    %v7723 = vrot.slane %v537, %v7722
    %v7724 = vsel %vm6989, %v7723, %v7719
    %v7725 = vlaneseq
    %v7726 = vshrl.u32 %v7725, 7
    %v7727 = vsub.s32 %v6991, %v7726
    %v7728 = vrot.slane %v538, %v7727
    %v7729 = vsel %vm6996, %v7728, %v7724
    %v7730 = vlaneseq
    %v7731 = vshrl.u32 %v7730, 7
    %v7732 = vsub.s32 %v6998, %v7731
    %v7733 = vrot.slane %v539, %v7732
    %v7734 = vsel %vm7003, %v7733, %v7729
    %v7735 = vlaneseq
    %v7736 = vshrl.u32 %v7735, 7
    %v7737 = vsub.s32 %v7005, %v7736
    %v7738 = vrot.slane %v540, %v7737
    %v7739 = vsel %vm7010, %v7738, %v7734
    %v7740 = vlaneseq
    %v7741 = vshrl.u32 %v7740, 7
    %v7742 = vsub.s32 %v7012, %v7741
    %v7743 = vrot.slane %v541, %v7742
    %v7744 = vsel %vm7017, %v7743, %v7739
    %v7745 = vlaneseq
    %v7746 = vshrl.u32 %v7745, 7
    %v7747 = vsub.s32 %v7019, %v7746
    %v7748 = vrot.slane %v542, %v7747
    %v7749 = vsel %vm7024, %v7748, %v7744
    %v7750 = vlaneseq
    %v7751 = vshrl.u32 %v7750, 7
    %v7752 = vsub.s32 %v7026, %v7751
    %v7753 = vrot.slane %v543, %v7752
    %v7754 = vsel %vm7031, %v7753, %v7749
    %v7755 = vlaneseq
    %v7756 = vshrl.u32 %v7755, 7
    %v7757 = vsub.s32 %v7033, %v7756
    %v7758 = vrot.slane %v544, %v7757
    %v7759 = vsel %vm7038, %v7758, %v7754
    %v7760 = vlaneseq
    %v7761 = vshrl.u32 %v7760, 7
    %v7762 = vsub.s32 %v6930, %v7761
    %v7763 = vrot.slane %v545, %v7762
    %v7764 = vlaneseq
    %v7765 = vshrl.u32 %v7764, 7
    %v7766 = vsub.s32 %v6935, %v7765
    %v7767 = vrot.slane %v546, %v7766
    %v7768 = vsel %vm6940, %v7767, %v7763
    %v7769 = vlaneseq
    %v7770 = vshrl.u32 %v7769, 7
    %v7771 = vsub.s32 %v6942, %v7770
    %v7772 = vrot.slane %v547, %v7771
    %v7773 = vsel %vm6947, %v7772, %v7768
    %v7774 = vlaneseq
    %v7775 = vshrl.u32 %v7774, 7
    %v7776 = vsub.s32 %v6949, %v7775
    %v7777 = vrot.slane %v548, %v7776
    %v7778 = vsel %vm6954, %v7777, %v7773
    %v7779 = vlaneseq
    %v7780 = vshrl.u32 %v7779, 7
    %v7781 = vsub.s32 %v6956, %v7780
    %v7782 = vrot.slane %v549, %v7781
    %v7783 = vsel %vm6961, %v7782, %v7778
    %v7784 = vlaneseq
    %v7785 = vshrl.u32 %v7784, 7
    %v7786 = vsub.s32 %v6963, %v7785
    %v7787 = vrot.slane %v550, %v7786
    %v7788 = vsel %vm6968, %v7787, %v7783
    %v7789 = vlaneseq
    %v7790 = vshrl.u32 %v7789, 7
    %v7791 = vsub.s32 %v6970, %v7790
    %v7792 = vrot.slane %v551, %v7791
    %v7793 = vsel %vm6975, %v7792, %v7788
    %v7794 = vlaneseq
    %v7795 = vshrl.u32 %v7794, 7
    %v7796 = vsub.s32 %v6977, %v7795
    %v7797 = vrot.slane %v552, %v7796
    %v7798 = vsel %vm6982, %v7797, %v7793
    %v7799 = vlaneseq
    %v7800 = vshrl.u32 %v7799, 7
    %v7801 = vsub.s32 %v6984, %v7800
    %v7802 = vrot.slane %v553, %v7801
    %v7803 = vsel %vm6989, %v7802, %v7798
    %v7804 = vlaneseq
    %v7805 = vshrl.u32 %v7804, 7
    %v7806 = vsub.s32 %v6991, %v7805
    %v7807 = vrot.slane %v554, %v7806
    %v7808 = vsel %vm6996, %v7807, %v7803
    %v7809 = vlaneseq
    %v7810 = vshrl.u32 %v7809, 7
    %v7811 = vsub.s32 %v6998, %v7810
    %v7812 = vrot.slane %v555, %v7811
    %v7813 = vsel %vm7003, %v7812, %v7808
    %v7814 = vlaneseq
    %v7815 = vshrl.u32 %v7814, 7
    %v7816 = vsub.s32 %v7005, %v7815
    %v7817 = vrot.slane %v556, %v7816
    %v7818 = vsel %vm7010, %v7817, %v7813
    %v7819 = vlaneseq
    %v7820 = vshrl.u32 %v7819, 7
    %v7821 = vsub.s32 %v7012, %v7820
    %v7822 = vrot.slane %v557, %v7821
    %v7823 = vsel %vm7017, %v7822, %v7818
    %v7824 = vlaneseq
    %v7825 = vshrl.u32 %v7824, 7
    %v7826 = vsub.s32 %v7019, %v7825
    %v7827 = vrot.slane %v558, %v7826
    %v7828 = vsel %vm7024, %v7827, %v7823
    %v7829 = vlaneseq
    %v7830 = vshrl.u32 %v7829, 7
    %v7831 = vsub.s32 %v7026, %v7830
    %v7832 = vrot.slane %v559, %v7831
    %v7833 = vsel %vm7031, %v7832, %v7828
    %v7834 = vlaneseq
    %v7835 = vshrl.u32 %v7834, 7
    %v7836 = vsub.s32 %v7033, %v7835
    %v7837 = vrot.slane %v560, %v7836
    %v7838 = vsel %vm7038, %v7837, %v7833
    %v7839 = vlaneseq
    %v7840 = vshrl.u32 %v7839, 7
    %v7841 = vsub.s32 %v6930, %v7840
    %v7842 = vrot.slane %v561, %v7841
    %v7843 = vlaneseq
    %v7844 = vshrl.u32 %v7843, 7
    %v7845 = vsub.s32 %v6935, %v7844
    %v7846 = vrot.slane %v562, %v7845
    %v7847 = vsel %vm6940, %v7846, %v7842
    %v7848 = vlaneseq
    %v7849 = vshrl.u32 %v7848, 7
    %v7850 = vsub.s32 %v6942, %v7849
    %v7851 = vrot.slane %v563, %v7850
    %v7852 = vsel %vm6947, %v7851, %v7847
    %v7853 = vlaneseq
    %v7854 = vshrl.u32 %v7853, 7
    %v7855 = vsub.s32 %v6949, %v7854
    %v7856 = vrot.slane %v564, %v7855
    %v7857 = vsel %vm6954, %v7856, %v7852
    %v7858 = vlaneseq
    %v7859 = vshrl.u32 %v7858, 7
    %v7860 = vsub.s32 %v6956, %v7859
    %v7861 = vrot.slane %v565, %v7860
    %v7862 = vsel %vm6961, %v7861, %v7857
    %v7863 = vlaneseq
    %v7864 = vshrl.u32 %v7863, 7
    %v7865 = vsub.s32 %v6963, %v7864
    %v7866 = vrot.slane %v566, %v7865
    %v7867 = vsel %vm6968, %v7866, %v7862
    %v7868 = vlaneseq
    %v7869 = vshrl.u32 %v7868, 7
    %v7870 = vsub.s32 %v6970, %v7869
    %v7871 = vrot.slane %v567, %v7870
    %v7872 = vsel %vm6975, %v7871, %v7867
    %v7873 = vlaneseq
    %v7874 = vshrl.u32 %v7873, 7
    %v7875 = vsub.s32 %v6977, %v7874
    %v7876 = vrot.slane %v568, %v7875
    %v7877 = vsel %vm6982, %v7876, %v7872
    %v7878 = vlaneseq
    %v7879 = vshrl.u32 %v7878, 7
    %v7880 = vsub.s32 %v6984, %v7879
    %v7881 = vrot.slane %v569, %v7880
    %v7882 = vsel %vm6989, %v7881, %v7877
    %v7883 = vlaneseq
    %v7884 = vshrl.u32 %v7883, 7
    %v7885 = vsub.s32 %v6991, %v7884
    %v7886 = vrot.slane %v570, %v7885
    %v7887 = vsel %vm6996, %v7886, %v7882
    %v7888 = vlaneseq
    %v7889 = vshrl.u32 %v7888, 7
    %v7890 = vsub.s32 %v6998, %v7889
    %v7891 = vrot.slane %v571, %v7890
    %v7892 = vsel %vm7003, %v7891, %v7887
    %v7893 = vlaneseq
    %v7894 = vshrl.u32 %v7893, 7
    %v7895 = vsub.s32 %v7005, %v7894
    %v7896 = vrot.slane %v572, %v7895
    %v7897 = vsel %vm7010, %v7896, %v7892
    %v7898 = vlaneseq
    %v7899 = vshrl.u32 %v7898, 7
    %v7900 = vsub.s32 %v7012, %v7899
    %v7901 = vrot.slane %v573, %v7900
    %v7902 = vsel %vm7017, %v7901, %v7897
    %v7903 = vlaneseq
    %v7904 = vshrl.u32 %v7903, 7
    %v7905 = vsub.s32 %v7019, %v7904
    %v7906 = vrot.slane %v574, %v7905
    %v7907 = vsel %vm7024, %v7906, %v7902
    %v7908 = vlaneseq
    %v7909 = vshrl.u32 %v7908, 7
    %v7910 = vsub.s32 %v7026, %v7909
    %v7911 = vrot.slane %v575, %v7910
    %v7912 = vsel %vm7031, %v7911, %v7907
    %v7913 = vlaneseq
    %v7914 = vshrl.u32 %v7913, 7
    %v7915 = vsub.s32 %v7033, %v7914
    %v7916 = vrot.slane %v576, %v7915
    %v7917 = vsel %vm7038, %v7916, %v7912
    %v7918 = vlaneseq
    %v7919 = vshrl.u32 %v7918, 7
    %v7920 = vsub.s32 %v6930, %v7919
    %v7921 = vrot.slane %v577, %v7920
    %v7922 = vlaneseq
    %v7923 = vshrl.u32 %v7922, 7
    %v7924 = vsub.s32 %v6935, %v7923
    %v7925 = vrot.slane %v578, %v7924
    %v7926 = vsel %vm6940, %v7925, %v7921
    %v7927 = vlaneseq
    %v7928 = vshrl.u32 %v7927, 7
    %v7929 = vsub.s32 %v6942, %v7928
    %v7930 = vrot.slane %v579, %v7929
    %v7931 = vsel %vm6947, %v7930, %v7926
    %v7932 = vlaneseq
    %v7933 = vshrl.u32 %v7932, 7
    %v7934 = vsub.s32 %v6949, %v7933
    %v7935 = vrot.slane %v580, %v7934
    %v7936 = vsel %vm6954, %v7935, %v7931
    %v7937 = vlaneseq
    %v7938 = vshrl.u32 %v7937, 7
    %v7939 = vsub.s32 %v6956, %v7938
    %v7940 = vrot.slane %v581, %v7939
    %v7941 = vsel %vm6961, %v7940, %v7936
    %v7942 = vlaneseq
    %v7943 = vshrl.u32 %v7942, 7
    %v7944 = vsub.s32 %v6963, %v7943
    %v7945 = vrot.slane %v582, %v7944
    %v7946 = vsel %vm6968, %v7945, %v7941
    %v7947 = vlaneseq
    %v7948 = vshrl.u32 %v7947, 7
    %v7949 = vsub.s32 %v6970, %v7948
    %v7950 = vrot.slane %v583, %v7949
    %v7951 = vsel %vm6975, %v7950, %v7946
    %v7952 = vlaneseq
    %v7953 = vshrl.u32 %v7952, 7
    %v7954 = vsub.s32 %v6977, %v7953
    %v7955 = vrot.slane %v584, %v7954
    %v7956 = vsel %vm6982, %v7955, %v7951
    %v7957 = vlaneseq
    %v7958 = vshrl.u32 %v7957, 7
    %v7959 = vsub.s32 %v6984, %v7958
    %v7960 = vrot.slane %v585, %v7959
    %v7961 = vsel %vm6989, %v7960, %v7956
    %v7962 = vlaneseq
    %v7963 = vshrl.u32 %v7962, 7
    %v7964 = vsub.s32 %v6991, %v7963
    %v7965 = vrot.slane %v586, %v7964
    %v7966 = vsel %vm6996, %v7965, %v7961
    %v7967 = vlaneseq
    %v7968 = vshrl.u32 %v7967, 7
    %v7969 = vsub.s32 %v6998, %v7968
    %v7970 = vrot.slane %v587, %v7969
    %v7971 = vsel %vm7003, %v7970, %v7966
    %v7972 = vlaneseq
    %v7973 = vshrl.u32 %v7972, 7
    %v7974 = vsub.s32 %v7005, %v7973
    %v7975 = vrot.slane %v588, %v7974
    %v7976 = vsel %vm7010, %v7975, %v7971
    %v7977 = vlaneseq
    %v7978 = vshrl.u32 %v7977, 7
    %v7979 = vsub.s32 %v7012, %v7978
    %v7980 = vrot.slane %v589, %v7979
    %v7981 = vsel %vm7017, %v7980, %v7976
    %v7982 = vlaneseq
    %v7983 = vshrl.u32 %v7982, 7
    %v7984 = vsub.s32 %v7019, %v7983
    %v7985 = vrot.slane %v590, %v7984
    %v7986 = vsel %vm7024, %v7985, %v7981
    %v7987 = vlaneseq
    %v7988 = vshrl.u32 %v7987, 7
    %v7989 = vsub.s32 %v7026, %v7988
    %v7990 = vrot.slane %v591, %v7989
    %v7991 = vsel %vm7031, %v7990, %v7986
    %v7992 = vlaneseq
    %v7993 = vshrl.u32 %v7992, 7
    %v7994 = vsub.s32 %v7033, %v7993
    %v7995 = vrot.slane %v592, %v7994
    %v7996 = vsel %vm7038, %v7995, %v7991
    %v7997 = vlaneseq
    %v7998 = vshrl.u32 %v7997, 7
    %v7999 = vsub.s32 %v6930, %v7998
    %v8000 = vrot.slane %v593, %v7999
    %v8001 = vlaneseq
    %v8002 = vshrl.u32 %v8001, 7
    %v8003 = vsub.s32 %v6935, %v8002
    %v8004 = vrot.slane %v594, %v8003
    %v8005 = vsel %vm6940, %v8004, %v8000
    %v8006 = vlaneseq
    %v8007 = vshrl.u32 %v8006, 7
    %v8008 = vsub.s32 %v6942, %v8007
    %v8009 = vrot.slane %v595, %v8008
    %v8010 = vsel %vm6947, %v8009, %v8005
    %v8011 = vlaneseq
    %v8012 = vshrl.u32 %v8011, 7
    %v8013 = vsub.s32 %v6949, %v8012
    %v8014 = vrot.slane %v596, %v8013
    %v8015 = vsel %vm6954, %v8014, %v8010
    %v8016 = vlaneseq
    %v8017 = vshrl.u32 %v8016, 7
    %v8018 = vsub.s32 %v6956, %v8017
    %v8019 = vrot.slane %v597, %v8018
    %v8020 = vsel %vm6961, %v8019, %v8015
    %v8021 = vlaneseq
    %v8022 = vshrl.u32 %v8021, 7
    %v8023 = vsub.s32 %v6963, %v8022
    %v8024 = vrot.slane %v598, %v8023
    %v8025 = vsel %vm6968, %v8024, %v8020
    %v8026 = vlaneseq
    %v8027 = vshrl.u32 %v8026, 7
    %v8028 = vsub.s32 %v6970, %v8027
    %v8029 = vrot.slane %v599, %v8028
    %v8030 = vsel %vm6975, %v8029, %v8025
    %v8031 = vlaneseq
    %v8032 = vshrl.u32 %v8031, 7
    %v8033 = vsub.s32 %v6977, %v8032
    %v8034 = vrot.slane %v600, %v8033
    %v8035 = vsel %vm6982, %v8034, %v8030
    %v8036 = vlaneseq
    %v8037 = vshrl.u32 %v8036, 7
    %v8038 = vsub.s32 %v6984, %v8037
    %v8039 = vrot.slane %v601, %v8038
    %v8040 = vsel %vm6989, %v8039, %v8035
    %v8041 = vlaneseq
    %v8042 = vshrl.u32 %v8041, 7
    %v8043 = vsub.s32 %v6991, %v8042
    %v8044 = vrot.slane %v602, %v8043
    %v8045 = vsel %vm6996, %v8044, %v8040
    %v8046 = vlaneseq
    %v8047 = vshrl.u32 %v8046, 7
    %v8048 = vsub.s32 %v6998, %v8047
    %v8049 = vrot.slane %v603, %v8048
    %v8050 = vsel %vm7003, %v8049, %v8045
    %v8051 = vlaneseq
    %v8052 = vshrl.u32 %v8051, 7
    %v8053 = vsub.s32 %v7005, %v8052
    %v8054 = vrot.slane %v604, %v8053
    %v8055 = vsel %vm7010, %v8054, %v8050
    %v8056 = vlaneseq
    %v8057 = vshrl.u32 %v8056, 7
    %v8058 = vsub.s32 %v7012, %v8057
    %v8059 = vrot.slane %v605, %v8058
    %v8060 = vsel %vm7017, %v8059, %v8055
    %v8061 = vlaneseq
    %v8062 = vshrl.u32 %v8061, 7
    %v8063 = vsub.s32 %v7019, %v8062
    %v8064 = vrot.slane %v606, %v8063
    %v8065 = vsel %vm7024, %v8064, %v8060
    %v8066 = vlaneseq
    %v8067 = vshrl.u32 %v8066, 7
    %v8068 = vsub.s32 %v7026, %v8067
    %v8069 = vrot.slane %v607, %v8068
    %v8070 = vsel %vm7031, %v8069, %v8065
    %v8071 = vlaneseq
    %v8072 = vshrl.u32 %v8071, 7
    %v8073 = vsub.s32 %v7033, %v8072
    %v8074 = vrot.slane %v608, %v8073
    %v8075 = vsel %vm7038, %v8074, %v8070
    %v8076 = vlaneseq
    %v8077 = vshrl.u32 %v8076, 7
    %v8078 = vsub.s32 %v6930, %v8077
    %v8079 = vrot.slane %v609, %v8078
    %v8080 = vlaneseq
    %v8081 = vshrl.u32 %v8080, 7
    %v8082 = vsub.s32 %v6935, %v8081
    %v8083 = vrot.slane %v610, %v8082
    %v8084 = vsel %vm6940, %v8083, %v8079
    %v8085 = vlaneseq
    %v8086 = vshrl.u32 %v8085, 7
    %v8087 = vsub.s32 %v6942, %v8086
    %v8088 = vrot.slane %v611, %v8087
    %v8089 = vsel %vm6947, %v8088, %v8084
    %v8090 = vlaneseq
    %v8091 = vshrl.u32 %v8090, 7
    %v8092 = vsub.s32 %v6949, %v8091
    %v8093 = vrot.slane %v612, %v8092
    %v8094 = vsel %vm6954, %v8093, %v8089
    %v8095 = vlaneseq
    %v8096 = vshrl.u32 %v8095, 7
    %v8097 = vsub.s32 %v6956, %v8096
    %v8098 = vrot.slane %v613, %v8097
    %v8099 = vsel %vm6961, %v8098, %v8094
    %v8100 = vlaneseq
    %v8101 = vshrl.u32 %v8100, 7
    %v8102 = vsub.s32 %v6963, %v8101
    %v8103 = vrot.slane %v614, %v8102
    %v8104 = vsel %vm6968, %v8103, %v8099
    %v8105 = vlaneseq
    %v8106 = vshrl.u32 %v8105, 7
    %v8107 = vsub.s32 %v6970, %v8106
    %v8108 = vrot.slane %v615, %v8107
    %v8109 = vsel %vm6975, %v8108, %v8104
    %v8110 = vlaneseq
    %v8111 = vshrl.u32 %v8110, 7
    %v8112 = vsub.s32 %v6977, %v8111
    %v8113 = vrot.slane %v616, %v8112
    %v8114 = vsel %vm6982, %v8113, %v8109
    %v8115 = vlaneseq
    %v8116 = vshrl.u32 %v8115, 7
    %v8117 = vsub.s32 %v6984, %v8116
    %v8118 = vrot.slane %v617, %v8117
    %v8119 = vsel %vm6989, %v8118, %v8114
    %v8120 = vlaneseq
    %v8121 = vshrl.u32 %v8120, 7
    %v8122 = vsub.s32 %v6991, %v8121
    %v8123 = vrot.slane %v618, %v8122
    %v8124 = vsel %vm6996, %v8123, %v8119
    %v8125 = vlaneseq
    %v8126 = vshrl.u32 %v8125, 7
    %v8127 = vsub.s32 %v6998, %v8126
    %v8128 = vrot.slane %v619, %v8127
    %v8129 = vsel %vm7003, %v8128, %v8124
    %v8130 = vlaneseq
    %v8131 = vshrl.u32 %v8130, 7
    %v8132 = vsub.s32 %v7005, %v8131
    %v8133 = vrot.slane %v620, %v8132
    %v8134 = vsel %vm7010, %v8133, %v8129
    %v8135 = vlaneseq
    %v8136 = vshrl.u32 %v8135, 7
    %v8137 = vsub.s32 %v7012, %v8136
    %v8138 = vrot.slane %v621, %v8137
    %v8139 = vsel %vm7017, %v8138, %v8134
    %v8140 = vlaneseq
    %v8141 = vshrl.u32 %v8140, 7
    %v8142 = vsub.s32 %v7019, %v8141
    %v8143 = vrot.slane %v622, %v8142
    %v8144 = vsel %vm7024, %v8143, %v8139
    %v8145 = vlaneseq
    %v8146 = vshrl.u32 %v8145, 7
    %v8147 = vsub.s32 %v7026, %v8146
    %v8148 = vrot.slane %v623, %v8147
    %v8149 = vsel %vm7031, %v8148, %v8144
    %v8150 = vlaneseq
    %v8151 = vshrl.u32 %v8150, 7
    %v8152 = vsub.s32 %v7033, %v8151
    %v8153 = vrot.slane %v624, %v8152
    %v8154 = vsel %vm7038, %v8153, %v8149
    %v8155 = vlaneseq
    %v8156 = vshrl.u32 %v8155, 7
    %v8157 = vsub.s32 %v6930, %v8156
    %v8158 = vrot.slane %v625, %v8157
    %v8159 = vlaneseq
    %v8160 = vshrl.u32 %v8159, 7
    %v8161 = vsub.s32 %v6935, %v8160
    %v8162 = vrot.slane %v626, %v8161
    %v8163 = vsel %vm6940, %v8162, %v8158
    %v8164 = vlaneseq
    %v8165 = vshrl.u32 %v8164, 7
    %v8166 = vsub.s32 %v6942, %v8165
    %v8167 = vrot.slane %v627, %v8166
    %v8168 = vsel %vm6947, %v8167, %v8163
    %v8169 = vlaneseq
    %v8170 = vshrl.u32 %v8169, 7
    %v8171 = vsub.s32 %v6949, %v8170
    %v8172 = vrot.slane %v628, %v8171
    %v8173 = vsel %vm6954, %v8172, %v8168
    %v8174 = vlaneseq
    %v8175 = vshrl.u32 %v8174, 7
    %v8176 = vsub.s32 %v6956, %v8175
    %v8177 = vrot.slane %v629, %v8176
    %v8178 = vsel %vm6961, %v8177, %v8173
    %v8179 = vlaneseq
    %v8180 = vshrl.u32 %v8179, 7
    %v8181 = vsub.s32 %v6963, %v8180
    %v8182 = vrot.slane %v630, %v8181
    %v8183 = vsel %vm6968, %v8182, %v8178
    %v8184 = vlaneseq
    %v8185 = vshrl.u32 %v8184, 7
    %v8186 = vsub.s32 %v6970, %v8185
    %v8187 = vrot.slane %v631, %v8186
    %v8188 = vsel %vm6975, %v8187, %v8183
    %v8189 = vlaneseq
    %v8190 = vshrl.u32 %v8189, 7
    %v8191 = vsub.s32 %v6977, %v8190
    %v8192 = vrot.slane %v632, %v8191
    %v8193 = vsel %vm6982, %v8192, %v8188
    %v8194 = vlaneseq
    %v8195 = vshrl.u32 %v8194, 7
    %v8196 = vsub.s32 %v6984, %v8195
    %v8197 = vrot.slane %v633, %v8196
    %v8198 = vsel %vm6989, %v8197, %v8193
    %v8199 = vlaneseq
    %v8200 = vshrl.u32 %v8199, 7
    %v8201 = vsub.s32 %v6991, %v8200
    %v8202 = vrot.slane %v634, %v8201
    %v8203 = vsel %vm6996, %v8202, %v8198
    %v8204 = vlaneseq
    %v8205 = vshrl.u32 %v8204, 7
    %v8206 = vsub.s32 %v6998, %v8205
    %v8207 = vrot.slane %v635, %v8206
    %v8208 = vsel %vm7003, %v8207, %v8203
    %v8209 = vlaneseq
    %v8210 = vshrl.u32 %v8209, 7
    %v8211 = vsub.s32 %v7005, %v8210
    %v8212 = vrot.slane %v636, %v8211
    %v8213 = vsel %vm7010, %v8212, %v8208
    %v8214 = vlaneseq
    %v8215 = vshrl.u32 %v8214, 7
    %v8216 = vsub.s32 %v7012, %v8215
    %v8217 = vrot.slane %v637, %v8216
    %v8218 = vsel %vm7017, %v8217, %v8213
    %v8219 = vlaneseq
    %v8220 = vshrl.u32 %v8219, 7
    %v8221 = vsub.s32 %v7019, %v8220
    %v8222 = vrot.slane %v638, %v8221
    %v8223 = vsel %vm7024, %v8222, %v8218
    %v8224 = vlaneseq
    %v8225 = vshrl.u32 %v8224, 7
    %v8226 = vsub.s32 %v7026, %v8225
    %v8227 = vrot.slane %v639, %v8226
    %v8228 = vsel %vm7031, %v8227, %v8223
    %v8229 = vlaneseq
    %v8230 = vshrl.u32 %v8229, 7
    %v8231 = vsub.s32 %v7033, %v8230
    %v8232 = vrot.slane %v640, %v8231
    %v8233 = vsel %vm7038, %v8232, %v8228
    %v8234 = vlaneseq
    %v8235 = vshrl.u32 %v8234, 7
    %v8236 = vsub.s32 %v6930, %v8235
    %v8237 = vrot.slane %v641, %v8236
    %v8238 = vlaneseq
    %v8239 = vshrl.u32 %v8238, 7
    %v8240 = vsub.s32 %v6935, %v8239
    %v8241 = vrot.slane %v642, %v8240
    %v8242 = vsel %vm6940, %v8241, %v8237
    %v8243 = vlaneseq
    %v8244 = vshrl.u32 %v8243, 7
    %v8245 = vsub.s32 %v6942, %v8244
    %v8246 = vrot.slane %v643, %v8245
    %v8247 = vsel %vm6947, %v8246, %v8242
    %v8248 = vlaneseq
    %v8249 = vshrl.u32 %v8248, 7
    %v8250 = vsub.s32 %v6949, %v8249
    %v8251 = vrot.slane %v644, %v8250
    %v8252 = vsel %vm6954, %v8251, %v8247
    %v8253 = vlaneseq
    %v8254 = vshrl.u32 %v8253, 7
    %v8255 = vsub.s32 %v6956, %v8254
    %v8256 = vrot.slane %v645, %v8255
    %v8257 = vsel %vm6961, %v8256, %v8252
    %v8258 = vlaneseq
    %v8259 = vshrl.u32 %v8258, 7
    %v8260 = vsub.s32 %v6963, %v8259
    %v8261 = vrot.slane %v646, %v8260
    %v8262 = vsel %vm6968, %v8261, %v8257
    %v8263 = vlaneseq
    %v8264 = vshrl.u32 %v8263, 7
    %v8265 = vsub.s32 %v6970, %v8264
    %v8266 = vrot.slane %v647, %v8265
    %v8267 = vsel %vm6975, %v8266, %v8262
    %v8268 = vlaneseq
    %v8269 = vshrl.u32 %v8268, 7
    %v8270 = vsub.s32 %v6977, %v8269
    %v8271 = vrot.slane %v648, %v8270
    %v8272 = vsel %vm6982, %v8271, %v8267
    %v8273 = vlaneseq
    %v8274 = vshrl.u32 %v8273, 7
    %v8275 = vsub.s32 %v6984, %v8274
    %v8276 = vrot.slane %v649, %v8275
    %v8277 = vsel %vm6989, %v8276, %v8272
    %v8278 = vlaneseq
    %v8279 = vshrl.u32 %v8278, 7
    %v8280 = vsub.s32 %v6991, %v8279
    %v8281 = vrot.slane %v650, %v8280
    %v8282 = vsel %vm6996, %v8281, %v8277
    %v8283 = vlaneseq
    %v8284 = vshrl.u32 %v8283, 7
    %v8285 = vsub.s32 %v6998, %v8284
    %v8286 = vrot.slane %v651, %v8285
    %v8287 = vsel %vm7003, %v8286, %v8282
    %v8288 = vlaneseq
    %v8289 = vshrl.u32 %v8288, 7
    %v8290 = vsub.s32 %v7005, %v8289
    %v8291 = vrot.slane %v652, %v8290
    %v8292 = vsel %vm7010, %v8291, %v8287
    %v8293 = vlaneseq
    %v8294 = vshrl.u32 %v8293, 7
    %v8295 = vsub.s32 %v7012, %v8294
    %v8296 = vrot.slane %v653, %v8295
    %v8297 = vsel %vm7017, %v8296, %v8292
    %v8298 = vlaneseq
    %v8299 = vshrl.u32 %v8298, 7
    %v8300 = vsub.s32 %v7019, %v8299
    %v8301 = vrot.slane %v654, %v8300
    %v8302 = vsel %vm7024, %v8301, %v8297
    %v8303 = vlaneseq
    %v8304 = vshrl.u32 %v8303, 7
    %v8305 = vsub.s32 %v7026, %v8304
    %v8306 = vrot.slane %v655, %v8305
    %v8307 = vsel %vm7031, %v8306, %v8302
    %v8308 = vlaneseq
    %v8309 = vshrl.u32 %v8308, 7
    %v8310 = vsub.s32 %v7033, %v8309
    %v8311 = vrot.slane %v656, %v8310
    %v8312 = vsel %vm7038, %v8311, %v8307
    %v8313 = vsel %vm7593, %v8075, %v7759
    %v8314 = vsel %vm7593, %v8154, %v7838
    %v8315 = vsel %vm7593, %v8233, %v7917
    %v8316 = vsel %vm7593, %v8312, %v7996
    %8321 = vmatprep.subr.mxu0 0.0
    %8322 = vmatpush1.msra.mxu0 %v7632
    %8323 = vmatprep.subr.mxu0 0.0
    %8324 = vmatpush1.msra.mxu0 %v7631
    %8325 = vmatprep.subr.mxu0 0.0
    %8326 = vmatpush1.msra.mxu0 %v7630
    %8327 = vmatprep.subr.mxu0 0.0
    %8328 = vmatpush1.msra.mxu0 %v7629
    %8329 = vmatprep.subr.mxu0 0.0
    %8330 = vmatpush1.msra.mxu0 %v7628
    %8331 = vmatprep.subr.mxu0 0.0
    %8332 = vmatpush1.msra.mxu0 %v7627
    %8333 = vmatprep.subr.mxu0 0.0
    %8334 = vmatpush1.msra.mxu0 %v7626
    %8335 = vmatprep.subr.mxu0 0.0
    %8336 = vmatpush1.msra.mxu0 %v7625
    %8337 = vmatprep.subr.mxu0 0.0
    %8338 = vmatpush1.msra.mxu0 %v7624
    %8339 = vmatprep.subr.mxu0 0.0
    %8340 = vmatpush1.msra.mxu0 %v7623
    %8341 = vmatprep.subr.mxu0 0.0
    %8342 = vmatpush1.msra.mxu0 %v7622
    %8343 = vmatprep.subr.mxu0 0.0
    %8344 = vmatpush1.msra.mxu0 %v7621
    %8345 = vmatprep.subr.mxu0 0.0
    %8346 = vmatpush1.msra.mxu0 %v7620
    %8347 = vmatprep.subr.mxu0 0.0
    %8348 = vmatpush1.msra.mxu0 %v7619
    %8349 = vmatprep.subr.mxu0 0.0
    %8350 = vmatpush1.msra.mxu0 %v7618
    %8351 = vmatprep.subr.mxu0 0.0
    %8352 = vmatpush1.msra.mxu0 %v7617
    %8353 = vmatprep.subr.mxu0 0.0
    %8354 = vmatpush2.msra.mxu0 %v7648
    %8355 = vmatprep.subr.mxu0 0.0
    %8356 = vmatpush2.msra.mxu0 %v7647
    %8357 = vmatprep.subr.mxu0 0.0
    %8358 = vmatpush2.msra.mxu0 %v7646
    %8359 = vmatprep.subr.mxu0 0.0
    %8360 = vmatpush2.msra.mxu0 %v7645
    %8361 = vmatprep.subr.mxu0 0.0
    %8362 = vmatpush2.msra.mxu0 %v7644
    %8363 = vmatprep.subr.mxu0 0.0
    %8364 = vmatpush2.msra.mxu0 %v7643
    %8365 = vmatprep.subr.mxu0 0.0
    %8366 = vmatpush2.msra.mxu0 %v7642
    %8367 = vmatprep.subr.mxu0 0.0
    %8368 = vmatpush2.msra.mxu0 %v7641
    %8369 = vmatprep.subr.mxu0 0.0
    %8370 = vmatpush2.msra.mxu0 %v7640
    %8371 = vmatprep.subr.mxu0 0.0
    %8372 = vmatpush2.msra.mxu0 %v7639
    %8373 = vmatprep.subr.mxu0 0.0
    %8374 = vmatpush2.msra.mxu0 %v7638
    %8375 = vmatprep.subr.mxu0 0.0
    %8376 = vmatpush2.msra.mxu0 %v7637
    %8377 = vmatprep.subr.mxu0 0.0
    %8378 = vmatpush2.msra.mxu0 %v7636
    %8379 = vmatprep.subr.mxu0 0.0
    %8380 = vmatpush2.msra.mxu0 %v7635
    %8381 = vmatprep.subr.mxu0 0.0
    %8382 = vmatpush2.msra.mxu0 %v7634
    %8383 = vmatprep.subr.mxu0 0.0
    %8384 = vmatpush2.msra.mxu0 %v7633
    %8385 = vmatprep.mubr.f32.mxu0 %v8314
    %8386 = vmatmul.mubr.f32.gmra.mxu0 %v8313
    %v8387 = vpop.f32.mrf.mxu0
    %v8388 = vadd.f32 0.0, %v8387
    %v8389 = vpop.f32.mrf.mxu0
    %8390 = vdwg.mxu0
    %8391 = vmatprep.subr.mxu0 0.0
    %8392 = vmatpush1.msra.mxu0 %v7664
    %8393 = vmatprep.subr.mxu0 0.0
    %8394 = vmatpush1.msra.mxu0 %v7663
    %8395 = vmatprep.subr.mxu0 0.0
    %8396 = vmatpush1.msra.mxu0 %v7662
    %8397 = vmatprep.subr.mxu0 0.0
    %8398 = vmatpush1.msra.mxu0 %v7661
    %8399 = vmatprep.subr.mxu0 0.0
    %8400 = vmatpush1.msra.mxu0 %v7660
    %8401 = vmatprep.subr.mxu0 0.0
    %8402 = vmatpush1.msra.mxu0 %v7659
    %8403 = vmatprep.subr.mxu0 0.0
    %8404 = vmatpush1.msra.mxu0 %v7658
    %8405 = vmatprep.subr.mxu0 0.0
    %8406 = vmatpush1.msra.mxu0 %v7657
    %8407 = vmatprep.subr.mxu0 0.0
    %8408 = vmatpush1.msra.mxu0 %v7656
    %8409 = vmatprep.subr.mxu0 0.0
    %8410 = vmatpush1.msra.mxu0 %v7655
    %8411 = vmatprep.subr.mxu0 0.0
    %8412 = vmatpush1.msra.mxu0 %v7654
    %8413 = vmatprep.subr.mxu0 0.0
    %8414 = vmatpush1.msra.mxu0 %v7653
    %8415 = vmatprep.subr.mxu0 0.0
    %8416 = vmatpush1.msra.mxu0 %v7652
    %8417 = vmatprep.subr.mxu0 0.0
    %8418 = vmatpush1.msra.mxu0 %v7651
    %8419 = vmatprep.subr.mxu0 0.0
    %8420 = vmatpush1.msra.mxu0 %v7650
    %8421 = vmatprep.subr.mxu0 0.0
    %8422 = vmatpush1.msra.mxu0 %v7649
    %8423 = vmatprep.subr.mxu0 0.0
    %8424 = vmatpush2.msra.mxu0 %v7680
    %8425 = vmatprep.subr.mxu0 0.0
    %8426 = vmatpush2.msra.mxu0 %v7679
    %8427 = vmatprep.subr.mxu0 0.0
    %8428 = vmatpush2.msra.mxu0 %v7678
    %8429 = vmatprep.subr.mxu0 0.0
    %8430 = vmatpush2.msra.mxu0 %v7677
    %8431 = vmatprep.subr.mxu0 0.0
    %8432 = vmatpush2.msra.mxu0 %v7676
    %8433 = vmatprep.subr.mxu0 0.0
    %8434 = vmatpush2.msra.mxu0 %v7675
    %8435 = vmatprep.subr.mxu0 0.0
    %8436 = vmatpush2.msra.mxu0 %v7674
    %8437 = vmatprep.subr.mxu0 0.0
    %8438 = vmatpush2.msra.mxu0 %v7673
    %8439 = vmatprep.subr.mxu0 0.0
    %8440 = vmatpush2.msra.mxu0 %v7672
    %8441 = vmatprep.subr.mxu0 0.0
    %8442 = vmatpush2.msra.mxu0 %v7671
    %8443 = vmatprep.subr.mxu0 0.0
    %8444 = vmatpush2.msra.mxu0 %v7670
    %8445 = vmatprep.subr.mxu0 0.0
    %8446 = vmatpush2.msra.mxu0 %v7669
    %8447 = vmatprep.subr.mxu0 0.0
    %8448 = vmatpush2.msra.mxu0 %v7668
    %8449 = vmatprep.subr.mxu0 0.0
    %8450 = vmatpush2.msra.mxu0 %v7667
    %8451 = vmatprep.subr.mxu0 0.0
    %8452 = vmatpush2.msra.mxu0 %v7666
    %8453 = vmatprep.subr.mxu0 0.0
    %8454 = vmatpush2.msra.mxu0 %v7665
    %8455 = vmatprep.mubr.f32.mxu0 %v8316
    %8456 = vmatmul.mubr.f32.gmra.mxu0 %v8315
    %v8457 = vpop.f32.mrf.mxu0
    %v8458 = vadd.f32 %v8388, %v8457
    %v8459 = vpop.f32.mrf.mxu0
    %8460 = vdwg.mxu0
    %8461 = vst [vmem:[#allocation2] sm:$0x3] %v8458
    // Predicated region
    $region10: #{tpu_custom_call.1} parent=1 // pred_check
      _
    $region11: #{tpu_custom_call.1} parent=1 // pred_check_branch
      %8463 = sbr.rel (0) target = $region13
    $region12: #{tpu_custom_call.1} parent=1 // pred_region
      %s8465 = ssub.s32 32, 32
      %8466 = vsyncadd [#allocation3], %s8465
      %s8468 = sshll.u32 [#allocation2], 4
      %s8469 = int_to_ptr.vmem [resolvable:$true] %s8468
      %8471 = dma.vmem_to_hbm [thread:$0]  %s8469, 32, %s2, [#allocation3]
    $region13: #{tpu_custom_call.1} parent=1 // pred_fallthru
      _
    // Predicated region
    $region14: #{tpu_custom_call.1} parent=1 // pred_check
      _
    $region15: #{tpu_custom_call.1} parent=1 // pred_check_branch
      %8473 = sbr.rel (0) target = $region17
    $region16: #{tpu_custom_call.1} parent=1 // pred_region
      %s8475 = ssub.s32 128, 128
      %8476 = vsyncadd [#allocation5], %s8475
      %s8478 = sshll.u32 [#allocation4], 4
      %s8479 = int_to_ptr.vmem [resolvable:$true] %s8478
      %8481 = dma.vmem_to_hbm [thread:$0]  %s8479, 128, %s3, [#allocation5]
    $region17: #{tpu_custom_call.1} parent=1 // pred_fallthru
      _
    // Predicated region
    $region18: #{tpu_custom_call.1} parent=1 // pred_check
      _
    $region19: #{tpu_custom_call.1} parent=1 // pred_check_branch
      %8483 = sbr.rel (0) target = $region21
    $region20: #{tpu_custom_call.1} parent=1 // pred_region
      %8484 = dma.done [#allocation3], 32
    $region21: #{tpu_custom_call.1} parent=1 // pred_fallthru
      _
    // Predicated region
    $region22: #{tpu_custom_call.1} parent=1 // pred_check
      _
    $region23: #{tpu_custom_call.1} parent=1 // pred_check_branch
      %8486 = sbr.rel (0) target = $region25
    $region24: #{tpu_custom_call.1} parent=1 // pred_region
      %8487 = dma.done [#allocation5], 128
    $region25: #{tpu_custom_call.1} parent=1 // pred_fallthru
      _
    %8488 = vsyncpa [#allocation3], 1
    %8489 = vsyncpa [#allocation5], 1

</llo_original>
